<compile_context>
chip_gen: v5e
topology: v5e:2x2
jax: 0.10.0
libtpu: 0.0.40
codegen_flags: <defaults>
</compile_context>

<pallas_src>
import functools

import numpy as np

import jax
import jax.numpy as jnp
from jax.experimental import pallas as pl
from jax.experimental.pallas import tpu as pltpu

VMEM_LIMIT = 16 << 20  # actual footprint is a few MiB; stay well under v7x's 64 MiB VMEM


# ----------------------------------------------------------------------------
# Pallas kernels
# ----------------------------------------------------------------------------
def _conv_pool_relu_kernel(x_ref, wb_ref, b_ref, o_ref, *, hp, wc, n_out,
                           out_rows, out_cols):
    """Fused 3x3 valid conv + 2x2 max-pool (floor) + ReLU for one image.

    x_ref : (1, Q, 2*wc)  bf16   row-paired input: lane block [0:wc] = image row 2q,
                                 [wc:2wc] = image row 2q+1 (w-major, channel-minor).
    wb_ref: (2, 3, wc, n_out) bf16  banded conv weights [col parity, kernel row].
    b_ref : (1, n_out)    f32    channel bias tiled over pooled output columns.
    o_ref : (1, out_rows, out_cols)  bf16  pooled+ReLU output (zero padded if larger).
    """
    a = x_ref[0, 0:hp, 0:wc]            # image rows 2p
    bm = x_ref[0, 0:hp, wc:2 * wc]      # image rows 2p + 1
    c = x_ref[0, 1:hp + 1, 0:wc]        # image rows 2p + 2
    d = x_ref[0, 1:hp + 1, wc:2 * wc]   # image rows 2p + 3

    def conv_rows(r0, r1, r2, parity):
        acc = jnp.dot(r0, wb_ref[parity, 0], preferred_element_type=jnp.float32)
        acc += jnp.dot(r1, wb_ref[parity, 1], preferred_element_type=jnp.float32)
        acc += jnp.dot(r2, wb_ref[parity, 2], preferred_element_type=jnp.float32)
        return acc  # (hp, n_out) f32: conv rows {2p} or {2p+1}, one column parity

    # max over the 2x2 pooling window = max over (row parity) x (col parity).
    pooled = jnp.maximum(
        jnp.maximum(conv_rows(a, bm, c, 0), conv_rows(a, bm, c, 1)),
        jnp.maximum(conv_rows(bm, c, d, 0), conv_rows(bm, c, d, 1)),
    )
    y = jnp.maximum(pooled + b_ref[...], 0.0).astype(o_ref.dtype)   # bias + ReLU

    if out_rows == hp and out_cols == n_out:
        o_ref[0] = y
    else:
        # write a zero-padded slab so the next stage can consume it directly.
        o_ref[0] = jnp.zeros((out_rows, out_cols), o_ref.dtype)
        o_ref[0, 0:hp, 0:n_out] = y


def _conv3_fc_kernel(x_ref, wb_ref, b3_ref, w1_ref, b1_ref, w2_ref, b2_ref, o_ref):
    """Fused conv3(3x3,64->128) + ReLU + flatten + fc1 + ReLU + fc2 for one image.

    x_ref : (1, 6, 384) bf16   (h, w*64 + c) layout from stage 2.
    wb_ref: (3, 384, 512) bf16 banded conv3 weights per kernel row.
    b3_ref: (1, 512) f32       conv3 bias tiled over output columns.
    w1_ref: (4, 512, 128) bf16 fc1 weights, pre-permuted to our (h, w, c) layout.
    b1_ref: (1, 128) f32
    w2_ref: (128, 128) bf16    fc2 weights, zero-padded from (128, 2).
    b2_ref: (1, 128) f32       fc2 bias, zero-padded.
    o_ref : (1, 8, 128) f32    logits live in row 0, lanes 0:2.
    """
    c3 = jnp.dot(x_ref[0, 0:4, :], wb_ref[0], preferred_element_type=jnp.float32)
    c3 += jnp.dot(x_ref[0, 1:5, :], wb_ref[1], preferred_element_type=jnp.float32)
    c3 += jnp.dot(x_ref[0, 2:6, :], wb_ref[2], preferred_element_type=jnp.float32)
    c3 = jnp.maximum(c3 + b3_ref[...], 0.0).astype(jnp.bfloat16)          # (4, 512)

    h = jnp.dot(c3[0:1, :], w1_ref[0], preferred_element_type=jnp.float32)
    h += jnp.dot(c3[1:2, :], w1_ref[1], preferred_element_type=jnp.float32)
    h += jnp.dot(c3[2:3, :], w1_ref[2], preferred_element_type=jnp.float32)
    h += jnp.dot(c3[3:4, :], w1_ref[3], preferred_element_type=jnp.float32)
    h = jnp.maximum(h + b1_ref[...], 0.0).astype(jnp.bfloat16)            # (1, 128)

    logits = jnp.dot(h, w2_ref[...], preferred_element_type=jnp.float32) + b2_ref[...]
    o_ref[0] = jnp.broadcast_to(logits, (8, 128))                         # lane-dense store


# ----------------------------------------------------------------------------
# pallas_call wrappers (grid over batch, "parallel" for megacore on v7x)
# ----------------------------------------------------------------------------
def conv_pool_relu(xp, wband, bias_t, *, hp, wc, out_rows, out_cols):
    b = xp.shape[0]
    n_out = bias_t.shape[1]
    kernel = functools.partial(_conv_pool_relu_kernel, hp=hp, wc=wc, n_out=n_out,
                               out_rows=out_rows, out_cols=out_cols)
    return pl.pallas_call(
        kernel,
        out_shape=jax.ShapeDtypeStruct((b, out_rows, out_cols), jnp.bfloat16),
        grid=(b,),
        in_specs=[
            pl.BlockSpec((1,) + xp.shape[1:], lambda i: (i, 0, 0)),
            pl.BlockSpec(wband.shape, lambda i: (0, 0, 0, 0)),   # resident (constant index)
            pl.BlockSpec(bias_t.shape, lambda i: (0, 0)),
        ],
        out_specs=pl.BlockSpec((1, out_rows, out_cols), lambda i: (i, 0, 0)),
        compiler_params=pltpu.CompilerParams(
            dimension_semantics=("parallel",), vmem_limit_bytes=VMEM_LIMIT),
    )(xp, wband, bias_t)


def conv3_fc1_fc2(x, prep):
    b = x.shape[0]
    return pl.pallas_call(
        _conv3_fc_kernel,
        out_shape=jax.ShapeDtypeStruct((b, 8, 128), jnp.float32),
        grid=(b,),
        in_specs=[
            pl.BlockSpec((1, 6, 384), lambda i: (i, 0, 0)),
            pl.BlockSpec((3, 384, 512), lambda i: (0, 0, 0)),
            pl.BlockSpec((1, 512), lambda i: (0, 0)),
            pl.BlockSpec((4, 512, 128), lambda i: (0, 0, 0)),
            pl.BlockSpec((1, 128), lambda i: (0, 0)),
            pl.BlockSpec((128, 128), lambda i: (0, 0)),
            pl.BlockSpec((1, 128), lambda i: (0, 0)),
        ],
        out_specs=pl.BlockSpec((1, 8, 128), lambda i: (i, 0, 0)),
        compiler_params=pltpu.CompilerParams(
            dimension_semantics=("parallel",), vmem_limit_bytes=VMEM_LIMIT),
    )(x, prep["wb3"], prep["b3t"], prep["fc1_w"], prep["fc1_b"],
      prep["fc2_w"], prep["fc2_b"])


# ----------------------------------------------------------------------------
# One-time weight transforms (banding / permutation / padding) -- done at init.
# ----------------------------------------------------------------------------
def _pool_conv_bands(w, w_in, wp, k_pad):
    """Banded weights turning 3x3 conv + 2x2 column-pool into dense GEMMs.

    Returns (2, 3, k_pad, wp*Cout):
      band[t, ki][col*Cin + c, jp*Cout + o] = w[o, c, ki, kj]  where kj = col - (2*jp + t),
    nonzero only for kj in [0, 3).  't' is the column parity inside the pooling pair.
    """
    w = np.asarray(w, np.float32)
    cout, cin = w.shape[:2]
    band = np.zeros((2, 3, k_pad, wp * cout), np.float32)
    for t in range(2):
        for ki in range(3):
            for jp in range(wp):
                for kj in range(3):
                    col = 2 * jp + t + kj
                    if col < w_in:
                        band[t, ki, col * cin:(col + 1) * cin,
                             jp * cout:(jp + 1) * cout] = w[:, :, ki, kj].T
    return jnp.asarray(band, jnp.bfloat16)


def _conv_bands(w, w_in, wo):
    """Banded weights for a plain 3x3 valid conv (no pooling): (3, w_in*Cin, wo*Cout)."""
    w = np.asarray(w, np.float32)
    cout, cin = w.shape[:2]
    band = np.zeros((3, w_in * cin, wo * cout), np.float32)
    for ki in range(3):
        for j in range(wo):
            for kj in range(3):
                col = j + kj
                if col < w_in:
                    band[ki, col * cin:(col + 1) * cin,
                         j * cout:(j + 1) * cout] = w[:, :, ki, kj].T
    return jnp.asarray(band, jnp.bfloat16)


def prepare_params(p):
    """Build kernel-ready weights once (hoisted out of the forward pass)."""
    # fc1: permute input features from our (h, w, c) layout to PyTorch's (c, h, w) flatten.
    fc1_w = np.asarray(p["fc1_w"], np.float32)          # (128, 2048) = (out, in)
    ii = np.arange(2048)
    h, rem = ii // 512, ii % 512
    w_, c_ = rem // 128, rem % 128
    fc1_wp = fc1_w[:, c_ * 16 + h * 4 + w_].T.reshape(4, 512, 128)

    # fc2: transpose + zero-pad N from 2 to 128 (lane-dense output).
    fc2_wp = np.zeros((128, 128), np.float32)
    fc2_wp[:, :2] = np.asarray(p["fc2_w"], np.float32).T
    fc2_bp = np.zeros((128,), np.float32)
    fc2_bp[:2] = np.asarray(p["fc2_b"], np.float32)

    return {
        "wb1": _pool_conv_bands(p["w1"], w_in=32, wp=15, k_pad=128),   # (2,3,128,480)
        "b1t": jnp.tile(jnp.asarray(p["b1"], jnp.float32), 15)[None, :],
        "wb2": _pool_conv_bands(p["w2"], w_in=16, wp=6, k_pad=512),    # (2,3,512,384)
        "b2t": jnp.tile(jnp.asarray(p["b2"], jnp.float32), 6)[None, :],
        "wb3": _conv_bands(p["w3"], w_in=6, wo=4),                     # (3,384,512)
        "b3t": jnp.tile(jnp.asarray(p["b3"], jnp.float32), 4)[None, :],
        "fc1_w": jnp.asarray(fc1_wp, jnp.bfloat16),                    # (4,512,128)
        "fc1_b": jnp.asarray(p["fc1_b"], jnp.float32)[None, :],
        "fc2_w": jnp.asarray(fc2_wp, jnp.bfloat16),                    # (128,128)
        "fc2_b": jnp.asarray(fc2_bp, jnp.float32)[None, :],
    }


# ----------------------------------------------------------------------------
# Raw parameters (deterministic synthetic init; shapes match the PyTorch module)
# ----------------------------------------------------------------------------
def init_params(key):
    ks = jax.random.split(key, 10)
    def n(k, shape, scale):
        return jax.random.normal(k, shape, dtype=jnp.float32) * scale
    return {
        "w1": n(ks[0], (32, 3, 3, 3), 0.10),   "b1": n(ks[1], (32,), 0.01),
        "w2": n(ks[2], (64, 32, 3, 3), 0.05),  "b2": n(ks[3], (64,), 0.01),
        "w3": n(ks[4], (128, 64, 3, 3), 0.03), "b3": n(ks[5], (128,), 0.01),
        "fc1_w": n(ks[6], (128, 2048), 0.02),  "fc1_b": n(ks[7], (128,), 0.01),
        "fc2_w": n(ks[8], (2, 128), 0.05),     "fc2_b": n(ks[9], (2,), 0.01),
    }


# ----------------------------------------------------------------------------
# Forward pass (mirrors the PyTorch module, inference mode)
# ----------------------------------------------------------------------------
@jax.jit
def cnn_forward(x_nchw, prep):
    b = x_nchw.shape[0]
    # NCHW -> NHWC -> (B, 32, W*Cin=96) -> pad lanes to 128 -> pair rows (B, 16, 256).
    x = jnp.transpose(x_nchw, (0, 2, 3, 1)).reshape(b, 32, 96)
    x = jnp.pad(x, ((0, 0), (0, 0), (0, 32)))
    xp1 = x.reshape(b, 16, 256).astype(jnp.bfloat16)

    # conv1 (3->32) + pool + ReLU; output padded to (B, 16, 512): [h<15, w<15, c=32].
    y1 = conv_pool_relu(xp1, prep["wb1"], prep["b1t"], hp=15, wc=128,
                        out_rows=16, out_cols=512)
    # TODO(synk): Dropout2d is an eval-mode identity; training-mode masking not implemented.

    # pair rows: (B, 16, 512) -> (B, 8, 1024) is a free metadata reshape.
    xp2 = y1.reshape(b, 8, 1024)
    # conv2 (32->64) + pool + ReLU -> (B, 6, 6*64=384)
    y2 = conv_pool_relu(xp2, prep["wb2"], prep["b2t"], hp=6, wc=512,
                        out_rows=6, out_cols=384)

    # conv3 (64->128) + ReLU + flatten(NCHW order via permuted fc1) + fc1 + ReLU + fc2.
    out = conv3_fc1_fc2(y2, prep)          # (B, 8, 128); row 0, lanes 0:2 are the logits
    return out[:, 0, :2]


# ----------------------------------------------------------------------------
# Pure-JAX reference (for a sanity check only)
# ----------------------------------------------------------------------------
def cnn_reference(x, p):
    def conv(z, w, bias):
        y = jax.lax.conv_general_dilated(z, w, (1, 1), "VALID",
                                         dimension_numbers=("NCHW", "OIHW", "NCHW"))
        return y + bias[None, :, None, None]
    def pool(z):
        return jax.lax.reduce_window(z, -jnp.inf, jax.lax.max,
                                     (1, 1, 2, 2), (1, 1, 2, 2), "VALID")
    out = jnp.maximum(pool(conv(x, p["w1"], p["b1"])), 0.0)
    out = jnp.maximum(pool(conv(out, p["w2"], p["b2"])), 0.0)
    out = jnp.maximum(conv(out, p["w3"], p["b3"]), 0.0)
    out = out.reshape(out.shape[0], -1)
    out = jnp.maximum(out @ p["fc1_w"].T + p["fc1_b"], 0.0)
    return out @ p["fc2_w"].T + p["fc2_b"]


if __name__ == "__main__":
    key = jax.random.PRNGKey(0)
    pkey, xkey = jax.random.split(key)
    params = init_params(pkey)
    prep = prepare_params(params)   # one-time weight banding / permutation / padding
    # Input spatial size must be 32x32 so that flatten yields 2048 (= 128*4*4).
    x = jax.random.normal(xkey, (2, 3, 32, 32), dtype=jnp.float32)

    logits = cnn_forward(x, prep)
    jax.block_until_ready(logits)
    assert logits.shape == (2, 2), logits.shape

    ref = cnn_reference(x, params)
    np.testing.assert_allclose(np.asarray(logits), np.asarray(ref), atol=2e-2, rtol=2e-2)
    print("KERNEL_OK")
</pallas_src>

<mosaic_0001>
module attributes {stable_mosaic.version = 11 : i64} {
  func.func @_conv_pool_relu_kernel(%arg0: i32, %arg1: memref<1x8x1024xbf16, #tpu.memory_space<vmem>>, %arg2: memref<2x3x512x384xbf16, #tpu.memory_space<vmem>>, %arg3: memref<1x384xf32, #tpu.memory_space<vmem>>, %arg4: memref<1x6x384xbf16, #tpu.memory_space<vmem>>) attributes {dimension_semantics = [#tpu.dimension_semantics<parallel>], iteration_bounds = array<i64: 2>, scalar_prefetch = 0 : i64, scratch_operands = 0 : i64, tpu.core_type = #tpu.core_type<tc>, window_params = [{transform_indices = @transform_0, window_bounds = array<i64: 1, 8, 1024>}, {pipeline_mode = #tpu.pipeline_mode<synchronous>, transform_indices = @transform_1, window_bounds = array<i64: 2, 3, 512, 384>}, {pipeline_mode = #tpu.pipeline_mode<synchronous>, transform_indices = @transform_2, window_bounds = array<i64: 1, 384>}, {transform_indices = @transform_3, window_bounds = array<i64: 1, 6, 384>}]} {
    %c0 = arith.constant 0 : index
    %c0_0 = arith.constant 0 : index
    %c0_1 = arith.constant 0 : index
    %0 = vector.load %arg1[%c0, %c0_0, %c0_1] : memref<1x8x1024xbf16, #tpu.memory_space<vmem>>, vector<1x6x512xbf16>
    %1 = vector.shape_cast %0 : vector<1x6x512xbf16> to vector<6x512xbf16>
    %c0_2 = arith.constant 0 : index
    %c0_3 = arith.constant 0 : index
    %c512 = arith.constant 512 : index
    %2 = vector.load %arg1[%c0_2, %c0_3, %c512] : memref<1x8x1024xbf16, #tpu.memory_space<vmem>>, vector<1x6x512xbf16>
    %3 = vector.shape_cast %2 : vector<1x6x512xbf16> to vector<6x512xbf16>
    %c0_4 = arith.constant 0 : index
    %c1 = arith.constant 1 : index
    %c0_5 = arith.constant 0 : index
    %4 = vector.load %arg1[%c0_4, %c1, %c0_5] : memref<1x8x1024xbf16, #tpu.memory_space<vmem>>, vector<1x6x512xbf16>
    %5 = vector.shape_cast %4 : vector<1x6x512xbf16> to vector<6x512xbf16>
    %c0_6 = arith.constant 0 : index
    %c1_7 = arith.constant 1 : index
    %c512_8 = arith.constant 512 : index
    %6 = vector.load %arg1[%c0_6, %c1_7, %c512_8] : memref<1x8x1024xbf16, #tpu.memory_space<vmem>>, vector<1x6x512xbf16>
    %7 = vector.shape_cast %6 : vector<1x6x512xbf16> to vector<6x512xbf16>
    %c0_9 = arith.constant 0 : index
    %c0_10 = arith.constant 0 : index
    %c0_11 = arith.constant 0 : index
    %c0_12 = arith.constant 0 : index
    %8 = vector.load %arg2[%c0_9, %c0_10, %c0_11, %c0_12] : memref<2x3x512x384xbf16, #tpu.memory_space<vmem>>, vector<1x1x512x384xbf16>
    %9 = vector.shape_cast %8 : vector<1x1x512x384xbf16> to vector<512x384xbf16>
    %cst = arith.constant dense<0.000000e+00> : vector<6x384xf32>
    %10 = tpu.matmul %1, %9, %cst {dimension_numbers = #tpu.dot_dimension_numbers<[1], [0], [0], [1], [0, 0, 1, 1], [], []>} : vector<6x512xbf16>, vector<512x384xbf16>, vector<6x384xf32> -> vector<6x384xf32>
    %c0_13 = arith.constant 0 : index
    %c1_14 = arith.constant 1 : index
    %c0_15 = arith.constant 0 : index
    %c0_16 = arith.constant 0 : index
    %11 = vector.load %arg2[%c0_13, %c1_14, %c0_15, %c0_16] : memref<2x3x512x384xbf16, #tpu.memory_space<vmem>>, vector<1x1x512x384xbf16>
    %12 = vector.shape_cast %11 : vector<1x1x512x384xbf16> to vector<512x384xbf16>
    %cst_17 = arith.constant dense<0.000000e+00> : vector<6x384xf32>
    %13 = tpu.matmul %3, %12, %cst_17 {dimension_numbers = #tpu.dot_dimension_numbers<[1], [0], [0], [1], [0, 0, 1, 1], [], []>} : vector<6x512xbf16>, vector<512x384xbf16>, vector<6x384xf32> -> vector<6x384xf32>
    %14 = arith.addf %10, %13 : vector<6x384xf32>
    %c0_18 = arith.constant 0 : index
    %c2 = arith.constant 2 : index
    %c0_19 = arith.constant 0 : index
    %c0_20 = arith.constant 0 : index
    %15 = vector.load %arg2[%c0_18, %c2, %c0_19, %c0_20] : memref<2x3x512x384xbf16, #tpu.memory_space<vmem>>, vector<1x1x512x384xbf16>
    %16 = vector.shape_cast %15 : vector<1x1x512x384xbf16> to vector<512x384xbf16>
    %cst_21 = arith.constant dense<0.000000e+00> : vector<6x384xf32>
    %17 = tpu.matmul %5, %16, %cst_21 {dimension_numbers = #tpu.dot_dimension_numbers<[1], [0], [0], [1], [0, 0, 1, 1], [], []>} : vector<6x512xbf16>, vector<512x384xbf16>, vector<6x384xf32> -> vector<6x384xf32>
    %18 = arith.addf %14, %17 : vector<6x384xf32>
    %c1_22 = arith.constant 1 : index
    %c0_23 = arith.constant 0 : index
    %c0_24 = arith.constant 0 : index
    %c0_25 = arith.constant 0 : index
    %19 = vector.load %arg2[%c1_22, %c0_23, %c0_24, %c0_25] : memref<2x3x512x384xbf16, #tpu.memory_space<vmem>>, vector<1x1x512x384xbf16>
    %20 = vector.shape_cast %19 : vector<1x1x512x384xbf16> to vector<512x384xbf16>
    %cst_26 = arith.constant dense<0.000000e+00> : vector<6x384xf32>
    %21 = tpu.matmul %1, %20, %cst_26 {dimension_numbers = #tpu.dot_dimension_numbers<[1], [0], [0], [1], [0, 0, 1, 1], [], []>} : vector<6x512xbf16>, vector<512x384xbf16>, vector<6x384xf32> -> vector<6x384xf32>
    %c1_27 = arith.constant 1 : index
    %c1_28 = arith.constant 1 : index
    %c0_29 = arith.constant 0 : index
    %c0_30 = arith.constant 0 : index
    %22 = vector.load %arg2[%c1_27, %c1_28, %c0_29, %c0_30] : memref<2x3x512x384xbf16, #tpu.memory_space<vmem>>, vector<1x1x512x384xbf16>
    %23 = vector.shape_cast %22 : vector<1x1x512x384xbf16> to vector<512x384xbf16>
    %cst_31 = arith.constant dense<0.000000e+00> : vector<6x384xf32>
    %24 = tpu.matmul %3, %23, %cst_31 {dimension_numbers = #tpu.dot_dimension_numbers<[1], [0], [0], [1], [0, 0, 1, 1], [], []>} : vector<6x512xbf16>, vector<512x384xbf16>, vector<6x384xf32> -> vector<6x384xf32>
    %25 = arith.addf %21, %24 : vector<6x384xf32>
    %c1_32 = arith.constant 1 : index
    %c2_33 = arith.constant 2 : index
    %c0_34 = arith.constant 0 : index
    %c0_35 = arith.constant 0 : index
    %26 = vector.load %arg2[%c1_32, %c2_33, %c0_34, %c0_35] : memref<2x3x512x384xbf16, #tpu.memory_space<vmem>>, vector<1x1x512x384xbf16>
    %27 = vector.shape_cast %26 : vector<1x1x512x384xbf16> to vector<512x384xbf16>
    %cst_36 = arith.constant dense<0.000000e+00> : vector<6x384xf32>
    %28 = tpu.matmul %5, %27, %cst_36 {dimension_numbers = #tpu.dot_dimension_numbers<[1], [0], [0], [1], [0, 0, 1, 1], [], []>} : vector<6x512xbf16>, vector<512x384xbf16>, vector<6x384xf32> -> vector<6x384xf32>
    %29 = arith.addf %25, %28 : vector<6x384xf32>
    %30 = arith.maximumf %18, %29 : vector<6x384xf32>
    %c0_37 = arith.constant 0 : index
    %c0_38 = arith.constant 0 : index
    %c0_39 = arith.constant 0 : index
    %c0_40 = arith.constant 0 : index
    %31 = vector.load %arg2[%c0_37, %c0_38, %c0_39, %c0_40] : memref<2x3x512x384xbf16, #tpu.memory_space<vmem>>, vector<1x1x512x384xbf16>
    %32 = vector.shape_cast %31 : vector<1x1x512x384xbf16> to vector<512x384xbf16>
    %cst_41 = arith.constant dense<0.000000e+00> : vector<6x384xf32>
    %33 = tpu.matmul %3, %32, %cst_41 {dimension_numbers = #tpu.dot_dimension_numbers<[1], [0], [0], [1], [0, 0, 1, 1], [], []>} : vector<6x512xbf16>, vector<512x384xbf16>, vector<6x384xf32> -> vector<6x384xf32>
    %c0_42 = arith.constant 0 : index
    %c1_43 = arith.constant 1 : index
    %c0_44 = arith.constant 0 : index
    %c0_45 = arith.constant 0 : index
    %34 = vector.load %arg2[%c0_42, %c1_43, %c0_44, %c0_45] : memref<2x3x512x384xbf16, #tpu.memory_space<vmem>>, vector<1x1x512x384xbf16>
    %35 = vector.shape_cast %34 : vector<1x1x512x384xbf16> to vector<512x384xbf16>
    %cst_46 = arith.constant dense<0.000000e+00> : vector<6x384xf32>
    %36 = tpu.matmul %5, %35, %cst_46 {dimension_numbers = #tpu.dot_dimension_numbers<[1], [0], [0], [1], [0, 0, 1, 1], [], []>} : vector<6x512xbf16>, vector<512x384xbf16>, vector<6x384xf32> -> vector<6x384xf32>
    %37 = arith.addf %33, %36 : vector<6x384xf32>
    %c0_47 = arith.constant 0 : index
    %c2_48 = arith.constant 2 : index
    %c0_49 = arith.constant 0 : index
    %c0_50 = arith.constant 0 : index
    %38 = vector.load %arg2[%c0_47, %c2_48, %c0_49, %c0_50] : memref<2x3x512x384xbf16, #tpu.memory_space<vmem>>, vector<1x1x512x384xbf16>
    %39 = vector.shape_cast %38 : vector<1x1x512x384xbf16> to vector<512x384xbf16>
    %cst_51 = arith.constant dense<0.000000e+00> : vector<6x384xf32>
    %40 = tpu.matmul %7, %39, %cst_51 {dimension_numbers = #tpu.dot_dimension_numbers<[1], [0], [0], [1], [0, 0, 1, 1], [], []>} : vector<6x512xbf16>, vector<512x384xbf16>, vector<6x384xf32> -> vector<6x384xf32>
    %41 = arith.addf %37, %40 : vector<6x384xf32>
    %c1_52 = arith.constant 1 : index
    %c0_53 = arith.constant 0 : index
    %c0_54 = arith.constant 0 : index
    %c0_55 = arith.constant 0 : index
    %42 = vector.load %arg2[%c1_52, %c0_53, %c0_54, %c0_55] : memref<2x3x512x384xbf16, #tpu.memory_space<vmem>>, vector<1x1x512x384xbf16>
    %43 = vector.shape_cast %42 : vector<1x1x512x384xbf16> to vector<512x384xbf16>
    %cst_56 = arith.constant dense<0.000000e+00> : vector<6x384xf32>
    %44 = tpu.matmul %3, %43, %cst_56 {dimension_numbers = #tpu.dot_dimension_numbers<[1], [0], [0], [1], [0, 0, 1, 1], [], []>} : vector<6x512xbf16>, vector<512x384xbf16>, vector<6x384xf32> -> vector<6x384xf32>
    %c1_57 = arith.constant 1 : index
    %c1_58 = arith.constant 1 : index
    %c0_59 = arith.constant 0 : index
    %c0_60 = arith.constant 0 : index
    %45 = vector.load %arg2[%c1_57, %c1_58, %c0_59, %c0_60] : memref<2x3x512x384xbf16, #tpu.memory_space<vmem>>, vector<1x1x512x384xbf16>
    %46 = vector.shape_cast %45 : vector<1x1x512x384xbf16> to vector<512x384xbf16>
    %cst_61 = arith.constant dense<0.000000e+00> : vector<6x384xf32>
    %47 = tpu.matmul %5, %46, %cst_61 {dimension_numbers = #tpu.dot_dimension_numbers<[1], [0], [0], [1], [0, 0, 1, 1], [], []>} : vector<6x512xbf16>, vector<512x384xbf16>, vector<6x384xf32> -> vector<6x384xf32>
    %48 = arith.addf %44, %47 : vector<6x384xf32>
    %c1_62 = arith.constant 1 : index
    %c2_63 = arith.constant 2 : index
    %c0_64 = arith.constant 0 : index
    %c0_65 = arith.constant 0 : index
    %49 = vector.load %arg2[%c1_62, %c2_63, %c0_64, %c0_65] : memref<2x3x512x384xbf16, #tpu.memory_space<vmem>>, vector<1x1x512x384xbf16>
    %50 = vector.shape_cast %49 : vector<1x1x512x384xbf16> to vector<512x384xbf16>
    %cst_66 = arith.constant dense<0.000000e+00> : vector<6x384xf32>
    %51 = tpu.matmul %7, %50, %cst_66 {dimension_numbers = #tpu.dot_dimension_numbers<[1], [0], [0], [1], [0, 0, 1, 1], [], []>} : vector<6x512xbf16>, vector<512x384xbf16>, vector<6x384xf32> -> vector<6x384xf32>
    %52 = arith.addf %48, %51 : vector<6x384xf32>
    %53 = arith.maximumf %41, %52 : vector<6x384xf32>
    %54 = arith.maximumf %30, %53 : vector<6x384xf32>
    %c0_67 = arith.constant 0 : index
    %c0_68 = arith.constant 0 : index
    %55 = vector.load %arg3[%c0_67, %c0_68] : memref<1x384xf32, #tpu.memory_space<vmem>>, vector<1x384xf32>
    %56 = vector.broadcast %55 : vector<1x384xf32> to vector<6x384xf32>
    %57 = arith.addf %54, %56 : vector<6x384xf32>
    %cst_69 = arith.constant 0.000000e+00 : f32
    %58 = vector.broadcast %cst_69 : f32 to vector<6x384xf32>
    %59 = arith.maximumf %57, %58 : vector<6x384xf32>
    %60 = arith.truncf %59 : vector<6x384xf32> to vector<6x384xbf16>
    %c0_70 = arith.constant 0 : index
    %c0_71 = arith.constant 0 : index
    %c0_72 = arith.constant 0 : index
    %61 = vector.load %arg4[%c0_70, %c0_71, %c0_72] : memref<1x6x384xbf16, #tpu.memory_space<vmem>>, vector<1x6x384xbf16>
    %62 = vector.shape_cast %61 : vector<1x6x384xbf16> to vector<6x384xbf16>
    %63 = vector.shape_cast %60 : vector<6x384xbf16> to vector<1x6x384xbf16>
    tpu.vector_store %arg4[%c0_70, %c0_71, %c0_72], %63 {strides = array<i32>} : memref<1x6x384xbf16, #tpu.memory_space<vmem>>, vector<1x6x384xbf16>,
    return
  }
  func.func @transform_0(%arg0: i32) -> (i32, i32, i32) {
    %c0_i32 = arith.constant 0 : i32
    %c0_i32_0 = arith.constant 0 : i32
    %c0_i32_1 = arith.constant 0 : i32
    return %arg0, %c0_i32, %c0_i32_0 : i32, i32, i32
  }
  func.func @transform_1(%arg0: i32) -> (i32, i32, i32, i32) {
    %c0_i32 = arith.constant 0 : i32
    %c0_i32_0 = arith.constant 0 : i32
    %c0_i32_1 = arith.constant 0 : i32
    %c0_i32_2 = arith.constant 0 : i32
    %c0_i32_3 = arith.constant 0 : i32
    return %c0_i32, %c0_i32_0, %c0_i32_1, %c0_i32_2 : i32, i32, i32, i32
  }
  func.func @transform_2(%arg0: i32) -> (i32, i32) {
    %c0_i32 = arith.constant 0 : i32
    %c0_i32_0 = arith.constant 0 : i32
    %c0_i32_1 = arith.constant 0 : i32
    return %c0_i32, %c0_i32_0 : i32, i32
  }
  func.func @transform_3(%arg0: i32) -> (i32, i32, i32) {
    %c0_i32 = arith.constant 0 : i32
    %c0_i32_0 = arith.constant 0 : i32
    %c0_i32_1 = arith.constant 0 : i32
    return %arg0, %c0_i32, %c0_i32_0 : i32, i32, i32
  }
}

module attributes {stable_mosaic.version = 11 : i64} {
  func.func @_conv_pool_relu_kernel(%arg0: i32, %arg1: memref<1x16x256xbf16, #tpu.memory_space<vmem>>, %arg2: memref<2x3x128x480xbf16, #tpu.memory_space<vmem>>, %arg3: memref<1x480xf32, #tpu.memory_space<vmem>>, %arg4: memref<1x16x512xbf16, #tpu.memory_space<vmem>>) attributes {dimension_semantics = [#tpu.dimension_semantics<parallel>], iteration_bounds = array<i64: 2>, scalar_prefetch = 0 : i64, scratch_operands = 0 : i64, tpu.core_type = #tpu.core_type<tc>, window_params = [{transform_indices = @transform_0, window_bounds = array<i64: 1, 16, 256>}, {pipeline_mode = #tpu.pipeline_mode<synchronous>, transform_indices = @transform_1, window_bounds = array<i64: 2, 3, 128, 480>}, {pipeline_mode = #tpu.pipeline_mode<synchronous>, transform_indices = @transform_2, window_bounds = array<i64: 1, 480>}, {transform_indices = @transform_3, window_bounds = array<i64: 1, 16, 512>}]} {
    %c0 = arith.constant 0 : index
    %c0_0 = arith.constant 0 : index
    %c0_1 = arith.constant 0 : index
    %0 = vector.load %arg1[%c0, %c0_0, %c0_1] : memref<1x16x256xbf16, #tpu.memory_space<vmem>>, vector<1x15x128xbf16>
    %1 = vector.shape_cast %0 : vector<1x15x128xbf16> to vector<15x128xbf16>
    %c0_2 = arith.constant 0 : index
    %c0_3 = arith.constant 0 : index
    %c128 = arith.constant 128 : index
    %2 = vector.load %arg1[%c0_2, %c0_3, %c128] : memref<1x16x256xbf16, #tpu.memory_space<vmem>>, vector<1x15x128xbf16>
    %3 = vector.shape_cast %2 : vector<1x15x128xbf16> to vector<15x128xbf16>
    %c0_4 = arith.constant 0 : index
    %c1 = arith.constant 1 : index
    %c0_5 = arith.constant 0 : index
    %4 = vector.load %arg1[%c0_4, %c1, %c0_5] : memref<1x16x256xbf16, #tpu.memory_space<vmem>>, vector<1x15x128xbf16>
    %5 = vector.shape_cast %4 : vector<1x15x128xbf16> to vector<15x128xbf16>
    %c0_6 = arith.constant 0 : index
    %c1_7 = arith.constant 1 : index
    %c128_8 = arith.constant 128 : index
    %6 = vector.load %arg1[%c0_6, %c1_7, %c128_8] : memref<1x16x256xbf16, #tpu.memory_space<vmem>>, vector<1x15x128xbf16>
    %7 = vector.shape_cast %6 : vector<1x15x128xbf16> to vector<15x128xbf16>
    %c0_9 = arith.constant 0 : index
    %c0_10 = arith.constant 0 : index
    %c0_11 = arith.constant 0 : index
    %c0_12 = arith.constant 0 : index
    %8 = vector.load %arg2[%c0_9, %c0_10, %c0_11, %c0_12] : memref<2x3x128x480xbf16, #tpu.memory_space<vmem>>, vector<1x1x128x480xbf16>
    %9 = vector.shape_cast %8 : vector<1x1x128x480xbf16> to vector<128x480xbf16>
    %cst = arith.constant dense<0.000000e+00> : vector<15x480xf32>
    %10 = tpu.matmul %1, %9, %cst {dimension_numbers = #tpu.dot_dimension_numbers<[1], [0], [0], [1], [0, 0, 1, 1], [], []>} : vector<15x128xbf16>, vector<128x480xbf16>, vector<15x480xf32> -> vector<15x480xf32>
    %c0_13 = arith.constant 0 : index
    %c1_14 = arith.constant 1 : index
    %c0_15 = arith.constant 0 : index
    %c0_16 = arith.constant 0 : index
    %11 = vector.load %arg2[%c0_13, %c1_14, %c0_15, %c0_16] : memref<2x3x128x480xbf16, #tpu.memory_space<vmem>>, vector<1x1x128x480xbf16>
    %12 = vector.shape_cast %11 : vector<1x1x128x480xbf16> to vector<128x480xbf16>
    %cst_17 = arith.constant dense<0.000000e+00> : vector<15x480xf32>
    %13 = tpu.matmul %3, %12, %cst_17 {dimension_numbers = #tpu.dot_dimension_numbers<[1], [0], [0], [1], [0, 0, 1, 1], [], []>} : vector<15x128xbf16>, vector<128x480xbf16>, vector<15x480xf32> -> vector<15x480xf32>
    %14 = arith.addf %10, %13 : vector<15x480xf32>
    %c0_18 = arith.constant 0 : index
    %c2 = arith.constant 2 : index
    %c0_19 = arith.constant 0 : index
    %c0_20 = arith.constant 0 : index
    %15 = vector.load %arg2[%c0_18, %c2, %c0_19, %c0_20] : memref<2x3x128x480xbf16, #tpu.memory_space<vmem>>, vector<1x1x128x480xbf16>
    %16 = vector.shape_cast %15 : vector<1x1x128x480xbf16> to vector<128x480xbf16>
    %cst_21 = arith.constant dense<0.000000e+00> : vector<15x480xf32>
    %17 = tpu.matmul %5, %16, %cst_21 {dimension_numbers = #tpu.dot_dimension_numbers<[1], [0], [0], [1], [0, 0, 1, 1], [], []>} : vector<15x128xbf16>, vector<128x480xbf16>, vector<15x480xf32> -> vector<15x480xf32>
    %18 = arith.addf %14, %17 : vector<15x480xf32>
    %c1_22 = arith.constant 1 : index
    %c0_23 = arith.constant 0 : index
    %c0_24 = arith.constant 0 : index
    %c0_25 = arith.constant 0 : index
    %19 = vector.load %arg2[%c1_22, %c0_23, %c0_24, %c0_25] : memref<2x3x128x480xbf16, #tpu.memory_space<vmem>>, vector<1x1x128x480xbf16>
    %20 = vector.shape_cast %19 : vector<1x1x128x480xbf16> to vector<128x480xbf16>
    %cst_26 = arith.constant dense<0.000000e+00> : vector<15x480xf32>
    %21 = tpu.matmul %1, %20, %cst_26 {dimension_numbers = #tpu.dot_dimension_numbers<[1], [0], [0], [1], [0, 0, 1, 1], [], []>} : vector<15x128xbf16>, vector<128x480xbf16>, vector<15x480xf32> -> vector<15x480xf32>
    %c1_27 = arith.constant 1 : index
    %c1_28 = arith.constant 1 : index
    %c0_29 = arith.constant 0 : index
    %c0_30 = arith.constant 0 : index
    %22 = vector.load %arg2[%c1_27, %c1_28, %c0_29, %c0_30] : memref<2x3x128x480xbf16, #tpu.memory_space<vmem>>, vector<1x1x128x480xbf16>
    %23 = vector.shape_cast %22 : vector<1x1x128x480xbf16> to vector<128x480xbf16>
    %cst_31 = arith.constant dense<0.000000e+00> : vector<15x480xf32>
    %24 = tpu.matmul %3, %23, %cst_31 {dimension_numbers = #tpu.dot_dimension_numbers<[1], [0], [0], [1], [0, 0, 1, 1], [], []>} : vector<15x128xbf16>, vector<128x480xbf16>, vector<15x480xf32> -> vector<15x480xf32>
    %25 = arith.addf %21, %24 : vector<15x480xf32>
    %c1_32 = arith.constant 1 : index
    %c2_33 = arith.constant 2 : index
    %c0_34 = arith.constant 0 : index
    %c0_35 = arith.constant 0 : index
    %26 = vector.load %arg2[%c1_32, %c2_33, %c0_34, %c0_35] : memref<2x3x128x480xbf16, #tpu.memory_space<vmem>>, vector<1x1x128x480xbf16>
    %27 = vector.shape_cast %26 : vector<1x1x128x480xbf16> to vector<128x480xbf16>
    %cst_36 = arith.constant dense<0.000000e+00> : vector<15x480xf32>
    %28 = tpu.matmul %5, %27, %cst_36 {dimension_numbers = #tpu.dot_dimension_numbers<[1], [0], [0], [1], [0, 0, 1, 1], [], []>} : vector<15x128xbf16>, vector<128x480xbf16>, vector<15x480xf32> -> vector<15x480xf32>
    %29 = arith.addf %25, %28 : vector<15x480xf32>
    %30 = arith.maximumf %18, %29 : vector<15x480xf32>
    %c0_37 = arith.constant 0 : index
    %c0_38 = arith.constant 0 : index
    %c0_39 = arith.constant 0 : index
    %c0_40 = arith.constant 0 : index
    %31 = vector.load %arg2[%c0_37, %c0_38, %c0_39, %c0_40] : memref<2x3x128x480xbf16, #tpu.memory_space<vmem>>, vector<1x1x128x480xbf16>
    %32 = vector.shape_cast %31 : vector<1x1x128x480xbf16> to vector<128x480xbf16>
    %cst_41 = arith.constant dense<0.000000e+00> : vector<15x480xf32>
    %33 = tpu.matmul %3, %32, %cst_41 {dimension_numbers = #tpu.dot_dimension_numbers<[1], [0], [0], [1], [0, 0, 1, 1], [], []>} : vector<15x128xbf16>, vector<128x480xbf16>, vector<15x480xf32> -> vector<15x480xf32>
    %c0_42 = arith.constant 0 : index
    %c1_43 = arith.constant 1 : index
    %c0_44 = arith.constant 0 : index
    %c0_45 = arith.constant 0 : index
    %34 = vector.load %arg2[%c0_42, %c1_43, %c0_44, %c0_45] : memref<2x3x128x480xbf16, #tpu.memory_space<vmem>>, vector<1x1x128x480xbf16>
    %35 = vector.shape_cast %34 : vector<1x1x128x480xbf16> to vector<128x480xbf16>
    %cst_46 = arith.constant dense<0.000000e+00> : vector<15x480xf32>
    %36 = tpu.matmul %5, %35, %cst_46 {dimension_numbers = #tpu.dot_dimension_numbers<[1], [0], [0], [1], [0, 0, 1, 1], [], []>} : vector<15x128xbf16>, vector<128x480xbf16>, vector<15x480xf32> -> vector<15x480xf32>
    %37 = arith.addf %33, %36 : vector<15x480xf32>
    %c0_47 = arith.constant 0 : index
    %c2_48 = arith.constant 2 : index
    %c0_49 = arith.constant 0 : index
    %c0_50 = arith.constant 0 : index
    %38 = vector.load %arg2[%c0_47, %c2_48, %c0_49, %c0_50] : memref<2x3x128x480xbf16, #tpu.memory_space<vmem>>, vector<1x1x128x480xbf16>
    %39 = vector.shape_cast %38 : vector<1x1x128x480xbf16> to vector<128x480xbf16>
    %cst_51 = arith.constant dense<0.000000e+00> : vector<15x480xf32>
    %40 = tpu.matmul %7, %39, %cst_51 {dimension_numbers = #tpu.dot_dimension_numbers<[1], [0], [0], [1], [0, 0, 1, 1], [], []>} : vector<15x128xbf16>, vector<128x480xbf16>, vector<15x480xf32> -> vector<15x480xf32>
    %41 = arith.addf %37, %40 : vector<15x480xf32>
    %c1_52 = arith.constant 1 : index
    %c0_53 = arith.constant 0 : index
    %c0_54 = arith.constant 0 : index
    %c0_55 = arith.constant 0 : index
    %42 = vector.load %arg2[%c1_52, %c0_53, %c0_54, %c0_55] : memref<2x3x128x480xbf16, #tpu.memory_space<vmem>>, vector<1x1x128x480xbf16>
    %43 = vector.shape_cast %42 : vector<1x1x128x480xbf16> to vector<128x480xbf16>
    %cst_56 = arith.constant dense<0.000000e+00> : vector<15x480xf32>
    %44 = tpu.matmul %3, %43, %cst_56 {dimension_numbers = #tpu.dot_dimension_numbers<[1], [0], [0], [1], [0, 0, 1, 1], [], []>} : vector<15x128xbf16>, vector<128x480xbf16>, vector<15x480xf32> -> vector<15x480xf32>
    %c1_57 = arith.constant 1 : index
    %c1_58 = arith.constant 1 : index
    %c0_59 = arith.constant 0 : index
    %c0_60 = arith.constant 0 : index
    %45 = vector.load %arg2[%c1_57, %c1_58, %c0_59, %c0_60] : memref<2x3x128x480xbf16, #tpu.memory_space<vmem>>, vector<1x1x128x480xbf16>
    %46 = vector.shape_cast %45 : vector<1x1x128x480xbf16> to vector<128x480xbf16>
    %cst_61 = arith.constant dense<0.000000e+00> : vector<15x480xf32>
    %47 = tpu.matmul %5, %46, %cst_61 {dimension_numbers = #tpu.dot_dimension_numbers<[1], [0], [0], [1], [0, 0, 1, 1], [], []>} : vector<15x128xbf16>, vector<128x480xbf16>, vector<15x480xf32> -> vector<15x480xf32>
    %48 = arith.addf %44, %47 : vector<15x480xf32>
    %c1_62 = arith.constant 1 : index
    %c2_63 = arith.constant 2 : index
    %c0_64 = arith.constant 0 : index
    %c0_65 = arith.constant 0 : index
    %49 = vector.load %arg2[%c1_62, %c2_63, %c0_64, %c0_65] : memref<2x3x128x480xbf16, #tpu.memory_space<vmem>>, vector<1x1x128x480xbf16>
    %50 = vector.shape_cast %49 : vector<1x1x128x480xbf16> to vector<128x480xbf16>
    %cst_66 = arith.constant dense<0.000000e+00> : vector<15x480xf32>
    %51 = tpu.matmul %7, %50, %cst_66 {dimension_numbers = #tpu.dot_dimension_numbers<[1], [0], [0], [1], [0, 0, 1, 1], [], []>} : vector<15x128xbf16>, vector<128x480xbf16>, vector<15x480xf32> -> vector<15x480xf32>
    %52 = arith.addf %48, %51 : vector<15x480xf32>
    %53 = arith.maximumf %41, %52 : vector<15x480xf32>
    %54 = arith.maximumf %30, %53 : vector<15x480xf32>
    %c0_67 = arith.constant 0 : index
    %c0_68 = arith.constant 0 : index
    %55 = vector.load %arg3[%c0_67, %c0_68] : memref<1x480xf32, #tpu.memory_space<vmem>>, vector<1x480xf32>
    %56 = vector.broadcast %55 : vector<1x480xf32> to vector<15x480xf32>
    %57 = arith.addf %54, %56 : vector<15x480xf32>
    %cst_69 = arith.constant 0.000000e+00 : f32
    %58 = vector.broadcast %cst_69 : f32 to vector<15x480xf32>
    %59 = arith.maximumf %57, %58 : vector<15x480xf32>
    %60 = arith.truncf %59 : vector<15x480xf32> to vector<15x480xbf16>
    %cst_70 = arith.constant 0.000000e+00 : bf16
    %61 = vector.broadcast %cst_70 : bf16 to vector<16x512xbf16>
    %c0_71 = arith.constant 0 : index
    %c0_72 = arith.constant 0 : index
    %c0_73 = arith.constant 0 : index
    %62 = vector.load %arg4[%c0_71, %c0_72, %c0_73] : memref<1x16x512xbf16, #tpu.memory_space<vmem>>, vector<1x16x512xbf16>
    %63 = vector.shape_cast %62 : vector<1x16x512xbf16> to vector<16x512xbf16>
    %64 = vector.shape_cast %61 : vector<16x512xbf16> to vector<1x16x512xbf16>
    tpu.vector_store %arg4[%c0_71, %c0_72, %c0_73], %64 {strides = array<i32>} : memref<1x16x512xbf16, #tpu.memory_space<vmem>>, vector<1x16x512xbf16>,
    %c0_74 = arith.constant 0 : index
    %c0_75 = arith.constant 0 : index
    %c0_76 = arith.constant 0 : index
    %65 = vector.load %arg4[%c0_74, %c0_75, %c0_76] : memref<1x16x512xbf16, #tpu.memory_space<vmem>>, vector<1x15x480xbf16>
    %66 = vector.shape_cast %65 : vector<1x15x480xbf16> to vector<15x480xbf16>
    %67 = vector.shape_cast %60 : vector<15x480xbf16> to vector<1x15x480xbf16>
    tpu.vector_store %arg4[%c0_74, %c0_75, %c0_76], %67 {strides = array<i32>} : memref<1x16x512xbf16, #tpu.memory_space<vmem>>, vector<1x15x480xbf16>,
    return
  }
  func.func @transform_0(%arg0: i32) -> (i32, i32, i32) {
    %c0_i32 = arith.constant 0 : i32
    %c0_i32_0 = arith.constant 0 : i32
    %c0_i32_1 = arith.constant 0 : i32
    return %arg0, %c0_i32, %c0_i32_0 : i32, i32, i32
  }
  func.func @transform_1(%arg0: i32) -> (i32, i32, i32, i32) {
    %c0_i32 = arith.constant 0 : i32
    %c0_i32_0 = arith.constant 0 : i32
    %c0_i32_1 = arith.constant 0 : i32
    %c0_i32_2 = arith.constant 0 : i32
    %c0_i32_3 = arith.constant 0 : i32
    return %c0_i32, %c0_i32_0, %c0_i32_1, %c0_i32_2 : i32, i32, i32, i32
  }
  func.func @transform_2(%arg0: i32) -> (i32, i32) {
    %c0_i32 = arith.constant 0 : i32
    %c0_i32_0 = arith.constant 0 : i32
    %c0_i32_1 = arith.constant 0 : i32
    return %c0_i32, %c0_i32_0 : i32, i32
  }
  func.func @transform_3(%arg0: i32) -> (i32, i32, i32) {
    %c0_i32 = arith.constant 0 : i32
    %c0_i32_0 = arith.constant 0 : i32
    %c0_i32_1 = arith.constant 0 : i32
    return %arg0, %c0_i32, %c0_i32_0 : i32, i32, i32
  }
}

module attributes {stable_mosaic.version = 11 : i64} {
  func.func @_conv3_fc_kernel(%arg0: i32, %arg1: memref<1x6x384xbf16, #tpu.memory_space<vmem>>, %arg2: memref<3x384x512xbf16, #tpu.memory_space<vmem>>, %arg3: memref<1x512xf32, #tpu.memory_space<vmem>>, %arg4: memref<4x512x128xbf16, #tpu.memory_space<vmem>>, %arg5: memref<1x128xf32, #tpu.memory_space<vmem>>, %arg6: memref<128x128xbf16, #tpu.memory_space<vmem>>, %arg7: memref<1x128xf32, #tpu.memory_space<vmem>>, %arg8: memref<1x8x128xf32, #tpu.memory_space<vmem>>) attributes {dimension_semantics = [#tpu.dimension_semantics<parallel>], iteration_bounds = array<i64: 2>, scalar_prefetch = 0 : i64, scratch_operands = 0 : i64, tpu.core_type = #tpu.core_type<tc>, window_params = [{transform_indices = @transform_0, window_bounds = array<i64: 1, 6, 384>}, {pipeline_mode = #tpu.pipeline_mode<synchronous>, transform_indices = @transform_1, window_bounds = array<i64: 3, 384, 512>}, {pipeline_mode = #tpu.pipeline_mode<synchronous>, transform_indices = @transform_2, window_bounds = array<i64: 1, 512>}, {pipeline_mode = #tpu.pipeline_mode<synchronous>, transform_indices = @transform_3, window_bounds = array<i64: 4, 512, 128>}, {pipeline_mode = #tpu.pipeline_mode<synchronous>, transform_indices = @transform_4, window_bounds = array<i64: 1, 128>}, {pipeline_mode = #tpu.pipeline_mode<synchronous>, transform_indices = @transform_5, window_bounds = array<i64: 128, 128>}, {pipeline_mode = #tpu.pipeline_mode<synchronous>, transform_indices = @transform_6, window_bounds = array<i64: 1, 128>}, {transform_indices = @transform_7, window_bounds = array<i64: 1, 8, 128>}]} {
    %c0 = arith.constant 0 : index
    %c0_0 = arith.constant 0 : index
    %c0_1 = arith.constant 0 : index
    %0 = vector.load %arg1[%c0, %c0_0, %c0_1] : memref<1x6x384xbf16, #tpu.memory_space<vmem>>, vector<1x4x384xbf16>
    %1 = vector.shape_cast %0 : vector<1x4x384xbf16> to vector<4x384xbf16>
    %c0_2 = arith.constant 0 : index
    %c0_3 = arith.constant 0 : index
    %c0_4 = arith.constant 0 : index
    %2 = vector.load %arg2[%c0_2, %c0_3, %c0_4] : memref<3x384x512xbf16, #tpu.memory_space<vmem>>, vector<1x384x512xbf16>
    %3 = vector.shape_cast %2 : vector<1x384x512xbf16> to vector<384x512xbf16>
    %cst = arith.constant dense<0.000000e+00> : vector<4x512xf32>
    %4 = tpu.matmul %1, %3, %cst {dimension_numbers = #tpu.dot_dimension_numbers<[1], [0], [0], [1], [0, 0, 1, 1], [], []>} : vector<4x384xbf16>, vector<384x512xbf16>, vector<4x512xf32> -> vector<4x512xf32>
    %c0_5 = arith.constant 0 : index
    %c1 = arith.constant 1 : index
    %c0_6 = arith.constant 0 : index
    %5 = vector.load %arg1[%c0_5, %c1, %c0_6] : memref<1x6x384xbf16, #tpu.memory_space<vmem>>, vector<1x4x384xbf16>
    %6 = vector.shape_cast %5 : vector<1x4x384xbf16> to vector<4x384xbf16>
    %c1_7 = arith.constant 1 : index
    %c0_8 = arith.constant 0 : index
    %c0_9 = arith.constant 0 : index
    %7 = vector.load %arg2[%c1_7, %c0_8, %c0_9] : memref<3x384x512xbf16, #tpu.memory_space<vmem>>, vector<1x384x512xbf16>
    %8 = vector.shape_cast %7 : vector<1x384x512xbf16> to vector<384x512xbf16>
    %cst_10 = arith.constant dense<0.000000e+00> : vector<4x512xf32>
    %9 = tpu.matmul %6, %8, %cst_10 {dimension_numbers = #tpu.dot_dimension_numbers<[1], [0], [0], [1], [0, 0, 1, 1], [], []>} : vector<4x384xbf16>, vector<384x512xbf16>, vector<4x512xf32> -> vector<4x512xf32>
    %10 = arith.addf %4, %9 : vector<4x512xf32>
    %c0_11 = arith.constant 0 : index
    %c2 = arith.constant 2 : index
    %c0_12 = arith.constant 0 : index
    %11 = vector.load %arg1[%c0_11, %c2, %c0_12] : memref<1x6x384xbf16, #tpu.memory_space<vmem>>, vector<1x4x384xbf16>
    %12 = vector.shape_cast %11 : vector<1x4x384xbf16> to vector<4x384xbf16>
    %c2_13 = arith.constant 2 : index
    %c0_14 = arith.constant 0 : index
    %c0_15 = arith.constant 0 : index
    %13 = vector.load %arg2[%c2_13, %c0_14, %c0_15] : memref<3x384x512xbf16, #tpu.memory_space<vmem>>, vector<1x384x512xbf16>
    %14 = vector.shape_cast %13 : vector<1x384x512xbf16> to vector<384x512xbf16>
    %cst_16 = arith.constant dense<0.000000e+00> : vector<4x512xf32>
    %15 = tpu.matmul %12, %14, %cst_16 {dimension_numbers = #tpu.dot_dimension_numbers<[1], [0], [0], [1], [0, 0, 1, 1], [], []>} : vector<4x384xbf16>, vector<384x512xbf16>, vector<4x512xf32> -> vector<4x512xf32>
    %16 = arith.addf %10, %15 : vector<4x512xf32>
    %c0_17 = arith.constant 0 : index
    %c0_18 = arith.constant 0 : index
    %17 = vector.load %arg3[%c0_17, %c0_18] : memref<1x512xf32, #tpu.memory_space<vmem>>, vector<1x512xf32>
    %18 = vector.broadcast %17 : vector<1x512xf32> to vector<4x512xf32>
    %19 = arith.addf %16, %18 : vector<4x512xf32>
    %cst_19 = arith.constant 0.000000e+00 : f32
    %20 = vector.broadcast %cst_19 : f32 to vector<4x512xf32>
    %21 = arith.maximumf %19, %20 : vector<4x512xf32>
    %22 = arith.truncf %21 : vector<4x512xf32> to vector<4x512xbf16>
    %23 = vector.extract_strided_slice %22 {offsets = [0, 0], sizes = [1, 512], strides = [1, 1]} : vector<4x512xbf16> to vector<1x512xbf16>
    %c0_20 = arith.constant 0 : index
    %c0_21 = arith.constant 0 : index
    %c0_22 = arith.constant 0 : index
    %24 = vector.load %arg4[%c0_20, %c0_21, %c0_22] : memref<4x512x128xbf16, #tpu.memory_space<vmem>>, vector<1x512x128xbf16>
    %25 = vector.shape_cast %24 : vector<1x512x128xbf16> to vector<512x128xbf16>
    %cst_23 = arith.constant dense<0.000000e+00> : vector<1x128xf32>
    %26 = tpu.matmul %23, %25, %cst_23 {dimension_numbers = #tpu.dot_dimension_numbers<[1], [0], [0], [1], [0, 0, 1, 1], [], []>} : vector<1x512xbf16>, vector<512x128xbf16>, vector<1x128xf32> -> vector<1x128xf32>
    %27 = vector.extract_strided_slice %22 {offsets = [1, 0], sizes = [1, 512], strides = [1, 1]} : vector<4x512xbf16> to vector<1x512xbf16>
    %c1_24 = arith.constant 1 : index
    %c0_25 = arith.constant 0 : index
    %c0_26 = arith.constant 0 : index
    %28 = vector.load %arg4[%c1_24, %c0_25, %c0_26] : memref<4x512x128xbf16, #tpu.memory_space<vmem>>, vector<1x512x128xbf16>
    %29 = vector.shape_cast %28 : vector<1x512x128xbf16> to vector<512x128xbf16>
    %cst_27 = arith.constant dense<0.000000e+00> : vector<1x128xf32>
    %30 = tpu.matmul %27, %29, %cst_27 {dimension_numbers = #tpu.dot_dimension_numbers<[1], [0], [0], [1], [0, 0, 1, 1], [], []>} : vector<1x512xbf16>, vector<512x128xbf16>, vector<1x128xf32> -> vector<1x128xf32>
    %31 = arith.addf %26, %30 : vector<1x128xf32>
    %32 = vector.extract_strided_slice %22 {offsets = [2, 0], sizes = [1, 512], strides = [1, 1]} : vector<4x512xbf16> to vector<1x512xbf16>
    %c2_28 = arith.constant 2 : index
    %c0_29 = arith.constant 0 : index
    %c0_30 = arith.constant 0 : index
    %33 = vector.load %arg4[%c2_28, %c0_29, %c0_30] : memref<4x512x128xbf16, #tpu.memory_space<vmem>>, vector<1x512x128xbf16>
    %34 = vector.shape_cast %33 : vector<1x512x128xbf16> to vector<512x128xbf16>
    %cst_31 = arith.constant dense<0.000000e+00> : vector<1x128xf32>
    %35 = tpu.matmul %32, %34, %cst_31 {dimension_numbers = #tpu.dot_dimension_numbers<[1], [0], [0], [1], [0, 0, 1, 1], [], []>} : vector<1x512xbf16>, vector<512x128xbf16>, vector<1x128xf32> -> vector<1x128xf32>
    %36 = arith.addf %31, %35 : vector<1x128xf32>
    %37 = vector.extract_strided_slice %22 {offsets = [3, 0], sizes = [1, 512], strides = [1, 1]} : vector<4x512xbf16> to vector<1x512xbf16>
    %c3 = arith.constant 3 : index
    %c0_32 = arith.constant 0 : index
    %c0_33 = arith.constant 0 : index
    %38 = vector.load %arg4[%c3, %c0_32, %c0_33] : memref<4x512x128xbf16, #tpu.memory_space<vmem>>, vector<1x512x128xbf16>
    %39 = vector.shape_cast %38 : vector<1x512x128xbf16> to vector<512x128xbf16>
    %cst_34 = arith.constant dense<0.000000e+00> : vector<1x128xf32>
    %40 = tpu.matmul %37, %39, %cst_34 {dimension_numbers = #tpu.dot_dimension_numbers<[1], [0], [0], [1], [0, 0, 1, 1], [], []>} : vector<1x512xbf16>, vector<512x128xbf16>, vector<1x128xf32> -> vector<1x128xf32>
    %41 = arith.addf %36, %40 : vector<1x128xf32>
    %c0_35 = arith.constant 0 : index
    %c0_36 = arith.constant 0 : index
    %42 = vector.load %arg5[%c0_35, %c0_36] : memref<1x128xf32, #tpu.memory_space<vmem>>, vector<1x128xf32>
    %43 = arith.addf %41, %42 : vector<1x128xf32>
    %cst_37 = arith.constant 0.000000e+00 : f32
    %44 = vector.broadcast %cst_37 : f32 to vector<1x128xf32>
    %45 = arith.maximumf %43, %44 : vector<1x128xf32>
    %46 = arith.truncf %45 : vector<1x128xf32> to vector<1x128xbf16>
    %c0_38 = arith.constant 0 : index
    %c0_39 = arith.constant 0 : index
    %47 = vector.load %arg6[%c0_38, %c0_39] : memref<128x128xbf16, #tpu.memory_space<vmem>>, vector<128x128xbf16>
    %cst_40 = arith.constant dense<0.000000e+00> : vector<1x128xf32>
    %48 = tpu.matmul %46, %47, %cst_40 {dimension_numbers = #tpu.dot_dimension_numbers<[1], [0], [0], [1], [0, 0, 1, 1], [], []>} : vector<1x128xbf16>, vector<128x128xbf16>, vector<1x128xf32> -> vector<1x128xf32>
    %c0_41 = arith.constant 0 : index
    %c0_42 = arith.constant 0 : index
    %49 = vector.load %arg7[%c0_41, %c0_42] : memref<1x128xf32, #tpu.memory_space<vmem>>, vector<1x128xf32>
    %50 = arith.addf %48, %49 : vector<1x128xf32>
    %51 = vector.shape_cast %50 : vector<1x128xf32> to vector<1x128xf32>
    %52 = vector.broadcast %51 : vector<1x128xf32> to vector<8x128xf32>
    %c0_43 = arith.constant 0 : index
    %c0_44 = arith.constant 0 : index
    %c0_45 = arith.constant 0 : index
    %53 = vector.load %arg8[%c0_43, %c0_44, %c0_45] : memref<1x8x128xf32, #tpu.memory_space<vmem>>, vector<1x8x128xf32>
    %54 = vector.shape_cast %53 : vector<1x8x128xf32> to vector<8x128xf32>
    %55 = vector.shape_cast %52 : vector<8x128xf32> to vector<1x8x128xf32>
    tpu.vector_store %arg8[%c0_43, %c0_44, %c0_45], %55 {strides = array<i32>} : memref<1x8x128xf32, #tpu.memory_space<vmem>>, vector<1x8x128xf32>,
    return
  }
  func.func @transform_0(%arg0: i32) -> (i32, i32, i32) {
    %c0_i32 = arith.constant 0 : i32
    %c0_i32_0 = arith.constant 0 : i32
    %c0_i32_1 = arith.constant 0 : i32
    return %arg0, %c0_i32, %c0_i32_0 : i32, i32, i32
  }
  func.func @transform_1(%arg0: i32) -> (i32, i32, i32) {
    %c0_i32 = arith.constant 0 : i32
    %c0_i32_0 = arith.constant 0 : i32
    %c0_i32_1 = arith.constant 0 : i32
    %c0_i32_2 = arith.constant 0 : i32
    return %c0_i32, %c0_i32_0, %c0_i32_1 : i32, i32, i32
  }
  func.func @transform_2(%arg0: i32) -> (i32, i32) {
    %c0_i32 = arith.constant 0 : i32
    %c0_i32_0 = arith.constant 0 : i32
    %c0_i32_1 = arith.constant 0 : i32
    return %c0_i32, %c0_i32_0 : i32, i32
  }
  func.func @transform_3(%arg0: i32) -> (i32, i32, i32) {
    %c0_i32 = arith.constant 0 : i32
    %c0_i32_0 = arith.constant 0 : i32
    %c0_i32_1 = arith.constant 0 : i32
    %c0_i32_2 = arith.constant 0 : i32
    return %c0_i32, %c0_i32_0, %c0_i32_1 : i32, i32, i32
  }
  func.func @transform_4(%arg0: i32) -> (i32, i32) {
    %c0_i32 = arith.constant 0 : i32
    %c0_i32_0 = arith.constant 0 : i32
    %c0_i32_1 = arith.constant 0 : i32
    return %c0_i32, %c0_i32_0 : i32, i32
  }
  func.func @transform_5(%arg0: i32) -> (i32, i32) {
    %c0_i32 = arith.constant 0 : i32
    %c0_i32_0 = arith.constant 0 : i32
    %c0_i32_1 = arith.constant 0 : i32
    return %c0_i32, %c0_i32_0 : i32, i32
  }
  func.func @transform_6(%arg0: i32) -> (i32, i32) {
    %c0_i32 = arith.constant 0 : i32
    %c0_i32_0 = arith.constant 0 : i32
    %c0_i32_1 = arith.constant 0 : i32
    return %c0_i32, %c0_i32_0 : i32, i32
  }
  func.func @transform_7(%arg0: i32) -> (i32, i32, i32) {
    %c0_i32 = arith.constant 0 : i32
    %c0_i32_0 = arith.constant 0 : i32
    %c0_i32_1 = arith.constant 0 : i32
    return %arg0, %c0_i32, %c0_i32_0 : i32, i32, i32
  }
}

</mosaic_0001>

<llo_original>
// kernel: cnn_forward.3
$region0: #{cnn_forward.3}
  #allocation0 [shape = 'u32[]', space=smem, size = 0x4, offset = 0x4, fixed_abs, tag = 'smem constant byte address 0x4 - core index']
  #allocation1 [shape = 'u32[72,128]{1,0:T(1,128)}', space=vmem, size = 0x9000, scoped, tag = 'internal scratch']
  %s0 = inlined_call_operand.vmem [shape: bf16[2,16,256], index: 0, kind: input, shape index: {}]
  %s1 = inlined_call_operand.vmem [shape: bf16[2,3,128,480], index: 1, kind: input, shape index: {}]
  %s2 = inlined_call_operand.hbm [shape: f32[1,480], index: 2, kind: input, shape index: {}]
  %s3 = inlined_call_operand.vmem [shape: bf16[2,16,512], index: 3, kind: output, shape index: {}]
  %s4 = sld [smem:[#allocation0]]
  $region49: #{cnn_forward.3} parent=0
    _
  %s6 = ssub.s32 1, %s4
  %s7 = scalar_select 0, %s6, %s4
  $region1: #{cnn_forward.3} parent=0
    #allocation2 [shape = 'u8[2048]{0}', space=vmem, size = 0x800, scoped, tag = 'input window, operand 2, single buffered']
    #allocation3 [shape = 's32[2]{0}', space=sflag, size = 0x8, scoped, tag = 'scoped memory for cnn_forward.3']
    %8 = vsyncpa [#allocation3], 0
    loop: start=0, step=1, limit=4
    $region2: #{cnn_forward.3} parent=1 // loop_pre_header
      _
    $region3: #{cnn_forward.3} parent=1 // loop_header
      %s10 = sphi 0, %s14
      %p11 = scmp.ge.s32.totalorder %s10, 4
      %s20 = sphi 0, %s22
      %s23 = sphi 0, %s20
      %s24 = sphi 0, %s23
      %s40 = sphi 0, %s24
      %s44 = sphi 0, %s44
      %s46 = sphi 0, %s44
      %s47 = sphi 0, %s46
      %s61 = sphi 0, %s47
      %s65 = sphi 0, %s65
      %s67 = sphi 0, %s65
      %s68 = sphi 0, %s67
      %s82 = sphi 0, %s68
      %s88 = sphi 0, %s90
      %s91 = sphi 0, %s88
      %s92 = sphi 0, %s91
      %s108 = sphi 0, %s92
    $region4: #{cnn_forward.3} parent=1 // loop_header_branch
      %13 = sbr.rel (%p11) target = $region8
    $region5: #{cnn_forward.3} parent=1 // loop_body
      %s15 = ssub.s32 %s10, 1
      %s16 = ssub.s32 %s10, 2
      %s17 = sadd.s32 %s10, 1
      %s18 = ssub.s32 %s10, %s17
      %p19 = scmp.eq.s32.totalorder %s18, 0
      %s21 = sadd.s32 %s20, 1
      %s22 = scalar_select %p19, %s20, %s21
      %p25 = pneg %p19
      %p26 = scmp.eq.s32.totalorder %s10, 1
      %p27 = por %p25, %p26
      %p28 = scmp.ne.s32.totalorder %s20, %s23
      %p29 = scmp.eq.s32.totalorder %s10, 0
      %p30 = por %p28, %p29
      %p31 = scmp.ne.s32.totalorder %s20, %s23
      %p32 = scmp.eq.s32.totalorder %s15, 1
      %p33 = por %p31, %p32
      %p34 = scmp.ne.s32.totalorder %s23, %s24
      %p35 = scmp.eq.s32.totalorder %s15, 0
      %p36 = por %p34, %p35
      %p37 = scmp.ne.s32.totalorder %s23, %s24
      %p38 = scmp.eq.s32.totalorder %s16, 1
      %p39 = por %p37, %p38
      %p41 = scmp.ne.s32.totalorder %s24, %s40
      %p42 = scmp.eq.s32.totalorder %s16, 0
      %p43 = por %p41, %p42
      %s45 = sadd.s32 %s44, 1
      %p48 = scmp.eq.s32.totalorder %s10, 1
      %p49 = scmp.ne.s32.totalorder %s44, %s46
      %p50 = scmp.eq.s32.totalorder %s10, 0
      %p51 = por %p49, %p50
      %p52 = scmp.ne.s32.totalorder %s44, %s46
      %p53 = scmp.eq.s32.totalorder %s15, 1
      %p54 = por %p52, %p53
      %p55 = scmp.ne.s32.totalorder %s46, %s47
      %p56 = scmp.eq.s32.totalorder %s15, 0
      %p57 = por %p55, %p56
      %p58 = scmp.ne.s32.totalorder %s46, %s47
      %p59 = scmp.eq.s32.totalorder %s16, 1
      %p60 = por %p58, %p59
      %p62 = scmp.ne.s32.totalorder %s47, %s61
      %p63 = scmp.eq.s32.totalorder %s16, 0
      %p64 = por %p62, %p63
      %s66 = sadd.s32 %s65, 1
      %p69 = scmp.eq.s32.totalorder %s10, 1
      %p70 = scmp.ne.s32.totalorder %s65, %s67
      %p71 = scmp.eq.s32.totalorder %s10, 0
      %p72 = por %p70, %p71
      %p73 = scmp.ne.s32.totalorder %s65, %s67
      %p74 = scmp.eq.s32.totalorder %s15, 1
      %p75 = por %p73, %p74
      %p76 = scmp.ne.s32.totalorder %s67, %s68
      %p77 = scmp.eq.s32.totalorder %s15, 0
      %p78 = por %p76, %p77
      %p79 = scmp.ne.s32.totalorder %s67, %s68
      %p80 = scmp.eq.s32.totalorder %s16, 1
      %p81 = por %p79, %p80
      %p83 = scmp.ne.s32.totalorder %s68, %s82
      %p84 = scmp.eq.s32.totalorder %s16, 0
      %p85 = por %p83, %p84
      %s86 = ssub.s32 %s10, %s17
      %p87 = scmp.eq.s32.totalorder %s86, 0
      %s89 = sadd.s32 %s88, 1
      %s90 = scalar_select %p87, %s88, %s89
      %p93 = pneg %p87
      %p94 = scmp.eq.s32.totalorder %s10, 1
      %p95 = por %p93, %p94
      %p96 = scmp.ne.s32.totalorder %s88, %s91
      %p97 = scmp.eq.s32.totalorder %s10, 0
      %p98 = por %p96, %p97
      %p99 = scmp.ne.s32.totalorder %s88, %s91
      %p100 = scmp.eq.s32.totalorder %s15, 1
      %p101 = por %p99, %p100
      %p102 = scmp.ne.s32.totalorder %s91, %s92
      %p103 = scmp.eq.s32.totalorder %s15, 0
      %p104 = por %p102, %p103
      %p105 = scmp.ne.s32.totalorder %s91, %s92
      %p106 = scmp.eq.s32.totalorder %s16, 1
      %p107 = por %p105, %p106
      %p109 = scmp.ne.s32.totalorder %s92, %s108
      %p110 = scmp.eq.s32.totalorder %s16, 0
      %p111 = por %p109, %p110
      %p112 = scmp.le.s32.totalorder 1, %s10
      %p113 = scmp.lt.s32.totalorder %s10, 3
      %p114 = pnand %p112, %p113
      %p115 = pneg %p114
      // Predicated region
      $region9: #{cnn_forward.3} parent=5 // pred_check
        _
      $region10: #{cnn_forward.3} parent=5 // pred_check_branch
        %117 = sbr.rel (%p114) target = $region12
      $region11: #{cnn_forward.3} parent=5 // pred_region
        %s118 = ssub.s32 %s10, 1
        // Predicated region
        $region13: #{cnn_forward.3} parent=11 // pred_check
          %p119 = pneg %p57
        $region14: #{cnn_forward.3} parent=11 // pred_check_branch
          %121 = sbr.rel (%p119) target = $region16
        $region15: #{cnn_forward.3} parent=11 // pred_region
          _
        $region16: #{cnn_forward.3} parent=11 // pred_fallthru
          _
        // Predicated region
        $region17: #{cnn_forward.3} parent=11 // pred_check
          %p122 = pneg %p78
        $region18: #{cnn_forward.3} parent=11 // pred_check_branch
          %124 = sbr.rel (%p122) target = $region20
        $region19: #{cnn_forward.3} parent=11 // pred_region
          %126 = vsyncadd [#allocation3], 0
          %s128 = sshll.u32 %s2, 4
          %s129 = int_to_ptr.hbm [resolvable:$true] %s128
          %s130 = sshll.u32 [#allocation2], 4
          %s131 = int_to_ptr.vmem [resolvable:$true] %s130
          %133 = dma.hbm_to_vmem [thread:$0]  %s129, 64, %s131, [#allocation3]
        $region20: #{cnn_forward.3} parent=11 // pred_fallthru
          _
      $region12: #{cnn_forward.3} parent=5 // pred_fallthru
        _
      %p134 = scmp.lt.s32.totalorder %s10, 2
      // Predicated region
      $region21: #{cnn_forward.3} parent=5 // pred_check
        %p135 = pneg %p134
      $region22: #{cnn_forward.3} parent=5 // pred_check_branch
        %137 = sbr.rel (%p135) target = $region24
      $region23: #{cnn_forward.3} parent=5 // pred_region
        // Predicated region
        $region25: #{cnn_forward.3} parent=23 // pred_check
          %p138 = pneg %p30
        $region26: #{cnn_forward.3} parent=23 // pred_check_branch
          %140 = sbr.rel (%p138) target = $region28
        $region27: #{cnn_forward.3} parent=23 // pred_region
          %p141 = scmp.lt.s32.totalorder %s10, 1
          %s142 = scalar_select %p141, %s10, 1
          %s143 = smul.addr %s142, 4
          %s144 = smul.addr %s143, 4
          %s145 = scalar_lea.vmem %s0, %s144
        $region28: #{cnn_forward.3} parent=23 // pred_fallthru
          _
      $region24: #{cnn_forward.3} parent=5 // pred_fallthru
        _
      %p146 = scmp.le.s32.totalorder 1, %s10
      %p147 = scmp.lt.s32.totalorder %s10, 3
      %p148 = pnand %p146, %p147
      %p149 = pneg %p148
      // Predicated region
      $region29: #{cnn_forward.3} parent=5 // pred_check
        _
      $region30: #{cnn_forward.3} parent=5 // pred_check_branch
        %151 = sbr.rel (%p148) target = $region32
      $region31: #{cnn_forward.3} parent=5 // pred_region
        %s152 = ssub.s32 %s10, 1
        // Predicated region
        $region33: #{cnn_forward.3} parent=31 // pred_check
          %p153 = pneg %p78
        $region34: #{cnn_forward.3} parent=31 // pred_check_branch
          %155 = sbr.rel (%p153) target = $region36
        $region35: #{cnn_forward.3} parent=31 // pred_region
          %157 = dma.done [#allocation3], 64
        $region36: #{cnn_forward.3} parent=31 // pred_fallthru
          _
        %p158 = scmp.lt.s32.totalorder %s15, 1
        %s159 = scalar_select %p158, %s15, 1
        %s160 = smul.addr %s159, 4
        %s161 = smul.addr %s160, 4
        %s162 = scalar_lea.vmem %s0, %s161
        %p163 = pneg %p36
        %p164 = pneg %p33
        %p165 = pneg %p57
        %p166 = pneg %p54
        %p167 = pneg %p78
        %p168 = pneg %p75
        %p169 = pneg %p104
        %p170 = pneg %p101
        %p171 = scmp.lt.s32.totalorder %s15, 1
        %s172 = scalar_select %p171, %s15, 1
        %s173 = smul.addr %s172, 8
        %s174 = smul.addr %s173, 4
        %s175 = scalar_lea.vmem %s3, %s174
        %p176 = scmp.lt.s32.totalorder %s15, 1
        %s177 = scalar_select %p176, %s15, 1
        %s178 = smul.addr %s177, 4
        %s179 = smul.addr %s178, 4
        %s180 = scalar_lea.vmem %s0, %s179
        %p181 = scmp.lt.s32.totalorder %s15, 1
        %s182 = scalar_select %p181, %s15, 1
        %s183 = smul.addr %s182, 8
        %s184 = smul.addr %s183, 4
        %s185 = scalar_lea.vmem %s3, %s184
        %v187 = vld [vmem:[%s180] sm:$0xf]
        %v188 = vld [vmem:[%s180 + $0x8] sm:$0xf]
        %v189 = vld [vmem:[%s180 + $0x4] sm:$0xf]
        %v190 = vld [vmem:[%s180 + $0xc] sm:$0xf]
        %v191 = vld [vmem:[%s1] sm:$0xff]
        %v192 = vld [vmem:[%s1 + $0x8] sm:$0xff]
        %v193 = vld [vmem:[%s1 + $0x10] sm:$0xff]
        %v194 = vld [vmem:[%s1 + $0x18] sm:$0xff]
        %v195 = vld [vmem:[%s1 + $0x20] sm:$0xff]
        %v196 = vld [vmem:[%s1 + $0x28] sm:$0xff]
        %v197 = vld [vmem:[%s1 + $0x30] sm:$0xff]
        %v198 = vld [vmem:[%s1 + $0x38] sm:$0xff]
        %v199 = vld [vmem:[%s1 + $0x40] sm:$0xff]
        %v200 = vld [vmem:[%s1 + $0x48] sm:$0xff]
        %v201 = vld [vmem:[%s1 + $0x50] sm:$0xff]
        %v202 = vld [vmem:[%s1 + $0x58] sm:$0xff]
        %v203 = vld [vmem:[%s1 + $0x60] sm:$0xff]
        %v204 = vld [vmem:[%s1 + $0x68] sm:$0xff]
        %v205 = vld [vmem:[%s1 + $0x70] sm:$0xff]
        %v206 = vld [vmem:[%s1 + $0x78] sm:$0xff]
        %v207 = vld [vmem:[%s1 + $0x80] sm:$0xff]
        %v208 = vld [vmem:[%s1 + $0x88] sm:$0xff]
        %v209 = vld [vmem:[%s1 + $0x90] sm:$0xff]
        %v210 = vld [vmem:[%s1 + $0x98] sm:$0xff]
        %v211 = vld [vmem:[%s1 + $0xa0] sm:$0xff]
        %v212 = vld [vmem:[%s1 + $0xa8] sm:$0xff]
        %v213 = vld [vmem:[%s1 + $0xb0] sm:$0xff]
        %v214 = vld [vmem:[%s1 + $0xb8] sm:$0xff]
        %v215 = vld [vmem:[%s1 + $0xc0] sm:$0xff]
        %v216 = vld [vmem:[%s1 + $0xc8] sm:$0xff]
        %v217 = vld [vmem:[%s1 + $0xd0] sm:$0xff]
        %v218 = vld [vmem:[%s1 + $0xd8] sm:$0xff]
        %v219 = vld [vmem:[%s1 + $0xe0] sm:$0xff]
        %v220 = vld [vmem:[%s1 + $0xe8] sm:$0xff]
        %v221 = vld [vmem:[%s1 + $0xf0] sm:$0xff]
        %v222 = vld [vmem:[%s1 + $0xf8] sm:$0xff]
        %s223 = scalar_lea.vmem %s1, 256
        %v224 = vld [vmem:[%s223] sm:$0xff]
        %v225 = vld [vmem:[%s223 + $0x8] sm:$0xff]
        %v226 = vld [vmem:[%s223 + $0x10] sm:$0xff]
        %v227 = vld [vmem:[%s223 + $0x18] sm:$0xff]
        %v228 = vld [vmem:[%s223 + $0x20] sm:$0xff]
        %v229 = vld [vmem:[%s223 + $0x28] sm:$0xff]
        %v230 = vld [vmem:[%s223 + $0x30] sm:$0xff]
        %v231 = vld [vmem:[%s223 + $0x38] sm:$0xff]
        %v232 = vld [vmem:[%s223 + $0x40] sm:$0xff]
        %v233 = vld [vmem:[%s223 + $0x48] sm:$0xff]
        %v234 = vld [vmem:[%s223 + $0x50] sm:$0xff]
        %v235 = vld [vmem:[%s223 + $0x58] sm:$0xff]
        %v236 = vld [vmem:[%s223 + $0x60] sm:$0xff]
        %v237 = vld [vmem:[%s223 + $0x68] sm:$0xff]
        %v238 = vld [vmem:[%s223 + $0x70] sm:$0xff]
        %v239 = vld [vmem:[%s223 + $0x78] sm:$0xff]
        %v240 = vld [vmem:[%s223 + $0x80] sm:$0xff]
        %v241 = vld [vmem:[%s223 + $0x88] sm:$0xff]
        %v242 = vld [vmem:[%s223 + $0x90] sm:$0xff]
        %v243 = vld [vmem:[%s223 + $0x98] sm:$0xff]
        %v244 = vld [vmem:[%s223 + $0xa0] sm:$0xff]
        %v245 = vld [vmem:[%s223 + $0xa8] sm:$0xff]
        %v246 = vld [vmem:[%s223 + $0xb0] sm:$0xff]
        %v247 = vld [vmem:[%s223 + $0xb8] sm:$0xff]
        %v248 = vld [vmem:[%s223 + $0xc0] sm:$0xff]
        %v249 = vld [vmem:[%s223 + $0xc8] sm:$0xff]
        %v250 = vld [vmem:[%s223 + $0xd0] sm:$0xff]
        %v251 = vld [vmem:[%s223 + $0xd8] sm:$0xff]
        %v252 = vld [vmem:[%s223 + $0xe0] sm:$0xff]
        %v253 = vld [vmem:[%s223 + $0xe8] sm:$0xff]
        %v254 = vld [vmem:[%s223 + $0xf0] sm:$0xff]
        %v255 = vld [vmem:[%s223 + $0xf8] sm:$0xff]
        %v258 = vunpack.c.l.b16 %v189
        %v259 = vunpack.c.l.b16 %v190
        %v260 = vpack.c.b16 %v259, %v258
        %v294 = vunpack.c.l.b16 %v224
        %v295 = vunpack.c.h.b16 %v224
        %v296 = vunpack.c.l.b16 %v225
        %v297 = vunpack.c.h.b16 %v225
        %v298 = vunpack.c.l.b16 %v226
        %v299 = vunpack.c.h.b16 %v226
        %v300 = vunpack.c.l.b16 %v227
        %v301 = vunpack.c.h.b16 %v227
        %v302 = vunpack.c.l.b16 %v228
        %v303 = vunpack.c.h.b16 %v228
        %v304 = vunpack.c.l.b16 %v229
        %v305 = vunpack.c.h.b16 %v229
        %v306 = vunpack.c.l.b16 %v230
        %v307 = vunpack.c.h.b16 %v230
        %v308 = vunpack.c.l.b16 %v231
        %v309 = vunpack.c.h.b16 %v231
        %v310 = vunpack.c.l.b16 %v232
        %v311 = vunpack.c.h.b16 %v232
        %v312 = vunpack.c.l.b16 %v233
        %v313 = vunpack.c.h.b16 %v233
        %v314 = vunpack.c.l.b16 %v234
        %v315 = vunpack.c.h.b16 %v234
        %v316 = vunpack.c.l.b16 %v235
        %v317 = vunpack.c.h.b16 %v235
        %v318 = vunpack.c.l.b16 %v236
        %v319 = vunpack.c.h.b16 %v236
        %v320 = vunpack.c.l.b16 %v237
        %v321 = vunpack.c.h.b16 %v237
        %v322 = vunpack.c.l.b16 %v238
        %v323 = vunpack.c.h.b16 %v238
        %v324 = vunpack.c.l.b16 %v239
        %v325 = vunpack.c.h.b16 %v239
        %v326 = vunpack.c.l.b16 %v240
        %v327 = vunpack.c.h.b16 %v240
        %v328 = vunpack.c.l.b16 %v241
        %v329 = vunpack.c.h.b16 %v241
        %v330 = vunpack.c.l.b16 %v242
        %v331 = vunpack.c.h.b16 %v242
        %v332 = vunpack.c.l.b16 %v243
        %v333 = vunpack.c.h.b16 %v243
        %v334 = vunpack.c.l.b16 %v244
        %v335 = vunpack.c.h.b16 %v244
        %v336 = vunpack.c.l.b16 %v245
        %v337 = vunpack.c.h.b16 %v245
        %v338 = vunpack.c.l.b16 %v246
        %v339 = vunpack.c.h.b16 %v246
        %v340 = vunpack.c.l.b16 %v247
        %v341 = vunpack.c.h.b16 %v247
        %v342 = vunpack.c.l.b16 %v248
        %v343 = vunpack.c.h.b16 %v248
        %v344 = vunpack.c.l.b16 %v249
        %v345 = vunpack.c.h.b16 %v249
        %v346 = vunpack.c.l.b16 %v250
        %v347 = vunpack.c.h.b16 %v250
        %v348 = vunpack.c.l.b16 %v251
        %v349 = vunpack.c.h.b16 %v251
        %v350 = vunpack.c.l.b16 %v252
        %v351 = vunpack.c.h.b16 %v252
        %v352 = vunpack.c.l.b16 %v253
        %v353 = vunpack.c.h.b16 %v253
        %v354 = vunpack.c.l.b16 %v254
        %v355 = vunpack.c.h.b16 %v254
        %v356 = vunpack.c.l.b16 %v255
        %v357 = vunpack.c.h.b16 %v255
        %v358 = vpack.c.b16 %v298, %v294
        %v359 = vpack.c.b16 %v299, %v295
        %v360 = vpack.c.b16 %v300, %v296
        %v361 = vpack.c.b16 %v301, %v297
        %v362 = vpack.c.b16 %v306, %v302
        %v363 = vpack.c.b16 %v307, %v303
        %v364 = vpack.c.b16 %v308, %v304
        %v365 = vpack.c.b16 %v309, %v305
        %v366 = vpack.c.b16 %v314, %v310
        %v367 = vpack.c.b16 %v315, %v311
        %v368 = vpack.c.b16 %v316, %v312
        %v369 = vpack.c.b16 %v317, %v313
        %v370 = vpack.c.b16 %v322, %v318
        %v371 = vpack.c.b16 %v323, %v319
        %v372 = vpack.c.b16 %v324, %v320
        %v373 = vpack.c.b16 %v325, %v321
        %v374 = vpack.c.b16 %v330, %v326
        %v375 = vpack.c.b16 %v331, %v327
        %v376 = vpack.c.b16 %v332, %v328
        %v377 = vpack.c.b16 %v333, %v329
        %v378 = vpack.c.b16 %v338, %v334
        %v379 = vpack.c.b16 %v339, %v335
        %v380 = vpack.c.b16 %v340, %v336
        %v381 = vpack.c.b16 %v341, %v337
        %v382 = vpack.c.b16 %v346, %v342
        %v383 = vpack.c.b16 %v347, %v343
        %v384 = vpack.c.b16 %v348, %v344
        %v385 = vpack.c.b16 %v349, %v345
        %v386 = vpack.c.b16 %v354, %v350
        %v387 = vpack.c.b16 %v355, %v351
        %v388 = vpack.c.b16 %v356, %v352
        %v389 = vpack.c.b16 %v357, %v353
        %422 = vmatpush.bf16.msra.mxu0 %v386
        %423 = vmatpush.bf16.msra.mxu0 %v382
        %424 = vmatpush.bf16.msra.mxu0 %v378
        %425 = vmatpush.bf16.msra.mxu0 %v374
        %426 = vmatpush.bf16.msra.mxu0 %v370
        %427 = vmatpush.bf16.msra.mxu0 %v366
        %428 = vmatpush.bf16.msra.mxu0 %v362
        %429 = vmatpush.bf16.msra.mxu0 %v358
        %430 = vmatmul.bf16.gmra.mxu0 %v260
        %v431 = vpop.f32.mrf.mxu0
        %v432 = vadd.f32 0.0, %v431
        %v433 = vpop.f32.mrf.mxu0
        %v434 = vadd.f32 0.0, %v433
        %435 = vdwg.mxu0
        %436 = vmatpush.bf16.msra.mxu0 %v387
        %437 = vmatpush.bf16.msra.mxu0 %v383
        %438 = vmatpush.bf16.msra.mxu0 %v379
        %439 = vmatpush.bf16.msra.mxu0 %v375
        %440 = vmatpush.bf16.msra.mxu0 %v371
        %441 = vmatpush.bf16.msra.mxu0 %v367
        %442 = vmatpush.bf16.msra.mxu0 %v363
        %443 = vmatpush.bf16.msra.mxu0 %v359
        %444 = vmatmul.bf16.gmra.mxu0 %v260
        %v445 = vpop.f32.mrf.mxu0
        %v446 = vadd.f32 0.0, %v445
        %v447 = vpop.f32.mrf.mxu0
        %v448 = vadd.f32 0.0, %v447
        %449 = vdwg.mxu0
        %450 = vmatpush.bf16.msra.mxu0 %v388
        %451 = vmatpush.bf16.msra.mxu0 %v384
        %452 = vmatpush.bf16.msra.mxu0 %v380
        %453 = vmatpush.bf16.msra.mxu0 %v376
        %454 = vmatpush.bf16.msra.mxu0 %v372
        %455 = vmatpush.bf16.msra.mxu0 %v368
        %456 = vmatpush.bf16.msra.mxu0 %v364
        %457 = vmatpush.bf16.msra.mxu0 %v360
        %458 = vmatmul.bf16.gmra.mxu0 %v260
        %v459 = vpop.f32.mrf.mxu0
        %v460 = vadd.f32 0.0, %v459
        %v461 = vpop.f32.mrf.mxu0
        %v462 = vadd.f32 0.0, %v461
        %463 = vdwg.mxu0
        %464 = vmatpush.bf16.msra.mxu0 %v389
        %465 = vmatpush.bf16.msra.mxu0 %v385
        %466 = vmatpush.bf16.msra.mxu0 %v381
        %467 = vmatpush.bf16.msra.mxu0 %v377
        %468 = vmatpush.bf16.msra.mxu0 %v373
        %469 = vmatpush.bf16.msra.mxu0 %v369
        %470 = vmatpush.bf16.msra.mxu0 %v365
        %471 = vmatpush.bf16.msra.mxu0 %v361
        %472 = vmatmul.bf16.gmra.mxu0 %v260
        %v473 = vpop.f32.mrf.mxu0
        %v474 = vadd.f32 0.0, %v473
        %v475 = vpop.f32.mrf.mxu0
        %v476 = vadd.f32 0.0, %v475
        %477 = vdwg.mxu0
        %v480 = vunpack.c.l.b16 %v187
        %v481 = vunpack.c.l.b16 %v188
        %v482 = vpack.c.b16 %v481, %v480
        %v516 = vunpack.c.l.b16 %v191
        %v517 = vunpack.c.h.b16 %v191
        %v518 = vunpack.c.l.b16 %v192
        %v519 = vunpack.c.h.b16 %v192
        %v520 = vunpack.c.l.b16 %v193
        %v521 = vunpack.c.h.b16 %v193
        %v522 = vunpack.c.l.b16 %v194
        %v523 = vunpack.c.h.b16 %v194
        %v524 = vunpack.c.l.b16 %v195
        %v525 = vunpack.c.h.b16 %v195
        %v526 = vunpack.c.l.b16 %v196
        %v527 = vunpack.c.h.b16 %v196
        %v528 = vunpack.c.l.b16 %v197
        %v529 = vunpack.c.h.b16 %v197
        %v530 = vunpack.c.l.b16 %v198
        %v531 = vunpack.c.h.b16 %v198
        %v532 = vunpack.c.l.b16 %v199
        %v533 = vunpack.c.h.b16 %v199
        %v534 = vunpack.c.l.b16 %v200
        %v535 = vunpack.c.h.b16 %v200
        %v536 = vunpack.c.l.b16 %v201
        %v537 = vunpack.c.h.b16 %v201
        %v538 = vunpack.c.l.b16 %v202
        %v539 = vunpack.c.h.b16 %v202
        %v540 = vunpack.c.l.b16 %v203
        %v541 = vunpack.c.h.b16 %v203
        %v542 = vunpack.c.l.b16 %v204
        %v543 = vunpack.c.h.b16 %v204
        %v544 = vunpack.c.l.b16 %v205
        %v545 = vunpack.c.h.b16 %v205
        %v546 = vunpack.c.l.b16 %v206
        %v547 = vunpack.c.h.b16 %v206
        %v548 = vunpack.c.l.b16 %v207
        %v549 = vunpack.c.h.b16 %v207
        %v550 = vunpack.c.l.b16 %v208
        %v551 = vunpack.c.h.b16 %v208
        %v552 = vunpack.c.l.b16 %v209
        %v553 = vunpack.c.h.b16 %v209
        %v554 = vunpack.c.l.b16 %v210
        %v555 = vunpack.c.h.b16 %v210
        %v556 = vunpack.c.l.b16 %v211
        %v557 = vunpack.c.h.b16 %v211
        %v558 = vunpack.c.l.b16 %v212
        %v559 = vunpack.c.h.b16 %v212
        %v560 = vunpack.c.l.b16 %v213
        %v561 = vunpack.c.h.b16 %v213
        %v562 = vunpack.c.l.b16 %v214
        %v563 = vunpack.c.h.b16 %v214
        %v564 = vunpack.c.l.b16 %v215
        %v565 = vunpack.c.h.b16 %v215
        %v566 = vunpack.c.l.b16 %v216
        %v567 = vunpack.c.h.b16 %v216
        %v568 = vunpack.c.l.b16 %v217
        %v569 = vunpack.c.h.b16 %v217
        %v570 = vunpack.c.l.b16 %v218
        %v571 = vunpack.c.h.b16 %v218
        %v572 = vunpack.c.l.b16 %v219
        %v573 = vunpack.c.h.b16 %v219
        %v574 = vunpack.c.l.b16 %v220
        %v575 = vunpack.c.h.b16 %v220
        %v576 = vunpack.c.l.b16 %v221
        %v577 = vunpack.c.h.b16 %v221
        %v578 = vunpack.c.l.b16 %v222
        %v579 = vunpack.c.h.b16 %v222
        %v580 = vpack.c.b16 %v520, %v516
        %v581 = vpack.c.b16 %v521, %v517
        %v582 = vpack.c.b16 %v522, %v518
        %v583 = vpack.c.b16 %v523, %v519
        %v584 = vpack.c.b16 %v528, %v524
        %v585 = vpack.c.b16 %v529, %v525
        %v586 = vpack.c.b16 %v530, %v526
        %v587 = vpack.c.b16 %v531, %v527
        %v588 = vpack.c.b16 %v536, %v532
        %v589 = vpack.c.b16 %v537, %v533
        %v590 = vpack.c.b16 %v538, %v534
        %v591 = vpack.c.b16 %v539, %v535
        %v592 = vpack.c.b16 %v544, %v540
        %v593 = vpack.c.b16 %v545, %v541
        %v594 = vpack.c.b16 %v546, %v542
        %v595 = vpack.c.b16 %v547, %v543
        %v596 = vpack.c.b16 %v552, %v548
        %v597 = vpack.c.b16 %v553, %v549
        %v598 = vpack.c.b16 %v554, %v550
        %v599 = vpack.c.b16 %v555, %v551
        %v600 = vpack.c.b16 %v560, %v556
        %v601 = vpack.c.b16 %v561, %v557
        %v602 = vpack.c.b16 %v562, %v558
        %v603 = vpack.c.b16 %v563, %v559
        %v604 = vpack.c.b16 %v568, %v564
        %v605 = vpack.c.b16 %v569, %v565
        %v606 = vpack.c.b16 %v570, %v566
        %v607 = vpack.c.b16 %v571, %v567
        %v608 = vpack.c.b16 %v576, %v572
        %v609 = vpack.c.b16 %v577, %v573
        %v610 = vpack.c.b16 %v578, %v574
        %v611 = vpack.c.b16 %v579, %v575
        %644 = vmatpush.bf16.msra.mxu0 %v608
        %645 = vmatpush.bf16.msra.mxu0 %v604
        %646 = vmatpush.bf16.msra.mxu0 %v600
        %647 = vmatpush.bf16.msra.mxu0 %v596
        %648 = vmatpush.bf16.msra.mxu0 %v592
        %649 = vmatpush.bf16.msra.mxu0 %v588
        %650 = vmatpush.bf16.msra.mxu0 %v584
        %651 = vmatpush.bf16.msra.mxu0 %v580
        %652 = vmatmul.bf16.gmra.mxu0 %v482
        %v653 = vpop.f32.mrf.mxu0
        %v654 = vadd.f32 %v432, %v653
        %v655 = vpop.f32.mrf.mxu0
        %v656 = vadd.f32 %v434, %v655
        %657 = vdwg.mxu0
        %658 = vmatpush.bf16.msra.mxu0 %v609
        %659 = vmatpush.bf16.msra.mxu0 %v605
        %660 = vmatpush.bf16.msra.mxu0 %v601
        %661 = vmatpush.bf16.msra.mxu0 %v597
        %662 = vmatpush.bf16.msra.mxu0 %v593
        %663 = vmatpush.bf16.msra.mxu0 %v589
        %664 = vmatpush.bf16.msra.mxu0 %v585
        %665 = vmatpush.bf16.msra.mxu0 %v581
        %666 = vmatmul.bf16.gmra.mxu0 %v482
        %v667 = vpop.f32.mrf.mxu0
        %v668 = vadd.f32 %v446, %v667
        %v669 = vpop.f32.mrf.mxu0
        %v670 = vadd.f32 %v448, %v669
        %671 = vdwg.mxu0
        %672 = vmatpush.bf16.msra.mxu0 %v610
        %673 = vmatpush.bf16.msra.mxu0 %v606
        %674 = vmatpush.bf16.msra.mxu0 %v602
        %675 = vmatpush.bf16.msra.mxu0 %v598
        %676 = vmatpush.bf16.msra.mxu0 %v594
        %677 = vmatpush.bf16.msra.mxu0 %v590
        %678 = vmatpush.bf16.msra.mxu0 %v586
        %679 = vmatpush.bf16.msra.mxu0 %v582
        %680 = vmatmul.bf16.gmra.mxu0 %v482
        %v681 = vpop.f32.mrf.mxu0
        %v682 = vadd.f32 %v460, %v681
        %v683 = vpop.f32.mrf.mxu0
        %v684 = vadd.f32 %v462, %v683
        %685 = vdwg.mxu0
        %686 = vmatpush.bf16.msra.mxu0 %v611
        %687 = vmatpush.bf16.msra.mxu0 %v607
        %688 = vmatpush.bf16.msra.mxu0 %v603
        %689 = vmatpush.bf16.msra.mxu0 %v599
        %690 = vmatpush.bf16.msra.mxu0 %v595
        %691 = vmatpush.bf16.msra.mxu0 %v591
        %692 = vmatpush.bf16.msra.mxu0 %v587
        %693 = vmatpush.bf16.msra.mxu0 %v583
        %694 = vmatmul.bf16.gmra.mxu0 %v482
        %v695 = vpop.f32.mrf.mxu0
        %v696 = vadd.f32 %v474, %v695
        %v697 = vpop.f32.mrf.mxu0
        %v698 = vadd.f32 %v476, %v697
        %699 = vdwg.mxu0
        %s700 = scalar_lea.vmem %s1, 512
        %v701 = vld [vmem:[%s700] sm:$0xff]
        %v702 = vld [vmem:[%s700 + $0x8] sm:$0xff]
        %v703 = vld [vmem:[%s700 + $0x10] sm:$0xff]
        %v704 = vld [vmem:[%s700 + $0x18] sm:$0xff]
        %v705 = vld [vmem:[%s700 + $0x20] sm:$0xff]
        %v706 = vld [vmem:[%s700 + $0x28] sm:$0xff]
        %v707 = vld [vmem:[%s700 + $0x30] sm:$0xff]
        %v708 = vld [vmem:[%s700 + $0x38] sm:$0xff]
        %v709 = vld [vmem:[%s700 + $0x40] sm:$0xff]
        %v710 = vld [vmem:[%s700 + $0x48] sm:$0xff]
        %v711 = vld [vmem:[%s700 + $0x50] sm:$0xff]
        %v712 = vld [vmem:[%s700 + $0x58] sm:$0xff]
        %v713 = vld [vmem:[%s700 + $0x60] sm:$0xff]
        %v714 = vld [vmem:[%s700 + $0x68] sm:$0xff]
        %v715 = vld [vmem:[%s700 + $0x70] sm:$0xff]
        %v716 = vld [vmem:[%s700 + $0x78] sm:$0xff]
        %v717 = vld [vmem:[%s700 + $0x80] sm:$0xff]
        %v718 = vld [vmem:[%s700 + $0x88] sm:$0xff]
        %v719 = vld [vmem:[%s700 + $0x90] sm:$0xff]
        %v720 = vld [vmem:[%s700 + $0x98] sm:$0xff]
        %v721 = vld [vmem:[%s700 + $0xa0] sm:$0xff]
        %v722 = vld [vmem:[%s700 + $0xa8] sm:$0xff]
        %v723 = vld [vmem:[%s700 + $0xb0] sm:$0xff]
        %v724 = vld [vmem:[%s700 + $0xb8] sm:$0xff]
        %v725 = vld [vmem:[%s700 + $0xc0] sm:$0xff]
        %v726 = vld [vmem:[%s700 + $0xc8] sm:$0xff]
        %v727 = vld [vmem:[%s700 + $0xd0] sm:$0xff]
        %v728 = vld [vmem:[%s700 + $0xd8] sm:$0xff]
        %v729 = vld [vmem:[%s700 + $0xe0] sm:$0xff]
        %v730 = vld [vmem:[%s700 + $0xe8] sm:$0xff]
        %v731 = vld [vmem:[%s700 + $0xf0] sm:$0xff]
        %v732 = vld [vmem:[%s700 + $0xf8] sm:$0xff]
        %v734 = vshrl.u32 %v482, 16
        %v736 = vshll.u32 %v482, 16
        %v738 = vrot.slane %v736, 1
        %v739 = vor.u32 %v734, %v738
        %v773 = vunpack.c.l.b16 %v701
        %v774 = vunpack.c.h.b16 %v701
        %v775 = vunpack.c.l.b16 %v702
        %v776 = vunpack.c.h.b16 %v702
        %v777 = vunpack.c.l.b16 %v703
        %v778 = vunpack.c.h.b16 %v703
        %v779 = vunpack.c.l.b16 %v704
        %v780 = vunpack.c.h.b16 %v704
        %v781 = vunpack.c.l.b16 %v705
        %v782 = vunpack.c.h.b16 %v705
        %v783 = vunpack.c.l.b16 %v706
        %v784 = vunpack.c.h.b16 %v706
        %v785 = vunpack.c.l.b16 %v707
        %v786 = vunpack.c.h.b16 %v707
        %v787 = vunpack.c.l.b16 %v708
        %v788 = vunpack.c.h.b16 %v708
        %v789 = vunpack.c.l.b16 %v709
        %v790 = vunpack.c.h.b16 %v709
        %v791 = vunpack.c.l.b16 %v710
        %v792 = vunpack.c.h.b16 %v710
        %v793 = vunpack.c.l.b16 %v711
        %v794 = vunpack.c.h.b16 %v711
        %v795 = vunpack.c.l.b16 %v712
        %v796 = vunpack.c.h.b16 %v712
        %v797 = vunpack.c.l.b16 %v713
        %v798 = vunpack.c.h.b16 %v713
        %v799 = vunpack.c.l.b16 %v714
        %v800 = vunpack.c.h.b16 %v714
        %v801 = vunpack.c.l.b16 %v715
        %v802 = vunpack.c.h.b16 %v715
        %v803 = vunpack.c.l.b16 %v716
        %v804 = vunpack.c.h.b16 %v716
        %v805 = vunpack.c.l.b16 %v717
        %v806 = vunpack.c.h.b16 %v717
        %v807 = vunpack.c.l.b16 %v718
        %v808 = vunpack.c.h.b16 %v718
        %v809 = vunpack.c.l.b16 %v719
        %v810 = vunpack.c.h.b16 %v719
        %v811 = vunpack.c.l.b16 %v720
        %v812 = vunpack.c.h.b16 %v720
        %v813 = vunpack.c.l.b16 %v721
        %v814 = vunpack.c.h.b16 %v721
        %v815 = vunpack.c.l.b16 %v722
        %v816 = vunpack.c.h.b16 %v722
        %v817 = vunpack.c.l.b16 %v723
        %v818 = vunpack.c.h.b16 %v723
        %v819 = vunpack.c.l.b16 %v724
        %v820 = vunpack.c.h.b16 %v724
        %v821 = vunpack.c.l.b16 %v725
        %v822 = vunpack.c.h.b16 %v725
        %v823 = vunpack.c.l.b16 %v726
        %v824 = vunpack.c.h.b16 %v726
        %v825 = vunpack.c.l.b16 %v727
        %v826 = vunpack.c.h.b16 %v727
        %v827 = vunpack.c.l.b16 %v728
        %v828 = vunpack.c.h.b16 %v728
        %v829 = vunpack.c.l.b16 %v729
        %v830 = vunpack.c.h.b16 %v729
        %v831 = vunpack.c.l.b16 %v730
        %v832 = vunpack.c.h.b16 %v730
        %v833 = vunpack.c.l.b16 %v731
        %v834 = vunpack.c.h.b16 %v731
        %v835 = vunpack.c.l.b16 %v732
        %v836 = vunpack.c.h.b16 %v732
        %v837 = vpack.c.b16 %v777, %v773
        %v838 = vpack.c.b16 %v778, %v774
        %v839 = vpack.c.b16 %v779, %v775
        %v840 = vpack.c.b16 %v780, %v776
        %v841 = vpack.c.b16 %v785, %v781
        %v842 = vpack.c.b16 %v786, %v782
        %v843 = vpack.c.b16 %v787, %v783
        %v844 = vpack.c.b16 %v788, %v784
        %v845 = vpack.c.b16 %v793, %v789
        %v846 = vpack.c.b16 %v794, %v790
        %v847 = vpack.c.b16 %v795, %v791
        %v848 = vpack.c.b16 %v796, %v792
        %v849 = vpack.c.b16 %v801, %v797
        %v850 = vpack.c.b16 %v802, %v798
        %v851 = vpack.c.b16 %v803, %v799
        %v852 = vpack.c.b16 %v804, %v800
        %v853 = vpack.c.b16 %v809, %v805
        %v854 = vpack.c.b16 %v810, %v806
        %v855 = vpack.c.b16 %v811, %v807
        %v856 = vpack.c.b16 %v812, %v808
        %v857 = vpack.c.b16 %v817, %v813
        %v858 = vpack.c.b16 %v818, %v814
        %v859 = vpack.c.b16 %v819, %v815
        %v860 = vpack.c.b16 %v820, %v816
        %v861 = vpack.c.b16 %v825, %v821
        %v862 = vpack.c.b16 %v826, %v822
        %v863 = vpack.c.b16 %v827, %v823
        %v864 = vpack.c.b16 %v828, %v824
        %v865 = vpack.c.b16 %v833, %v829
        %v866 = vpack.c.b16 %v834, %v830
        %v867 = vpack.c.b16 %v835, %v831
        %v868 = vpack.c.b16 %v836, %v832
        %901 = vmatpush.bf16.msra.mxu0 %v865
        %902 = vmatpush.bf16.msra.mxu0 %v861
        %903 = vmatpush.bf16.msra.mxu0 %v857
        %904 = vmatpush.bf16.msra.mxu0 %v853
        %905 = vmatpush.bf16.msra.mxu0 %v849
        %906 = vmatpush.bf16.msra.mxu0 %v845
        %907 = vmatpush.bf16.msra.mxu0 %v841
        %908 = vmatpush.bf16.msra.mxu0 %v837
        %909 = vmatmul.bf16.gmra.mxu0 %v739
        %v910 = vpop.f32.mrf.mxu0
        %v911 = vadd.f32 0.0, %v910
        %v912 = vpop.f32.mrf.mxu0
        %v913 = vadd.f32 0.0, %v912
        %914 = vdwg.mxu0
        %915 = vmatpush.bf16.msra.mxu0 %v866
        %916 = vmatpush.bf16.msra.mxu0 %v862
        %917 = vmatpush.bf16.msra.mxu0 %v858
        %918 = vmatpush.bf16.msra.mxu0 %v854
        %919 = vmatpush.bf16.msra.mxu0 %v850
        %920 = vmatpush.bf16.msra.mxu0 %v846
        %921 = vmatpush.bf16.msra.mxu0 %v842
        %922 = vmatpush.bf16.msra.mxu0 %v838
        %923 = vmatmul.bf16.gmra.mxu0 %v739
        %v924 = vpop.f32.mrf.mxu0
        %v925 = vadd.f32 0.0, %v924
        %v926 = vpop.f32.mrf.mxu0
        %v927 = vadd.f32 0.0, %v926
        %928 = vdwg.mxu0
        %929 = vmatpush.bf16.msra.mxu0 %v867
        %930 = vmatpush.bf16.msra.mxu0 %v863
        %931 = vmatpush.bf16.msra.mxu0 %v859
        %932 = vmatpush.bf16.msra.mxu0 %v855
        %933 = vmatpush.bf16.msra.mxu0 %v851
        %934 = vmatpush.bf16.msra.mxu0 %v847
        %935 = vmatpush.bf16.msra.mxu0 %v843
        %936 = vmatpush.bf16.msra.mxu0 %v839
        %937 = vmatmul.bf16.gmra.mxu0 %v739
        %v938 = vpop.f32.mrf.mxu0
        %v939 = vadd.f32 0.0, %v938
        %v940 = vpop.f32.mrf.mxu0
        %v941 = vadd.f32 0.0, %v940
        %942 = vdwg.mxu0
        %943 = vmatpush.bf16.msra.mxu0 %v868
        %944 = vmatpush.bf16.msra.mxu0 %v864
        %945 = vmatpush.bf16.msra.mxu0 %v860
        %946 = vmatpush.bf16.msra.mxu0 %v856
        %947 = vmatpush.bf16.msra.mxu0 %v852
        %948 = vmatpush.bf16.msra.mxu0 %v848
        %949 = vmatpush.bf16.msra.mxu0 %v844
        %950 = vmatpush.bf16.msra.mxu0 %v840
        %951 = vmatmul.bf16.gmra.mxu0 %v739
        %v952 = vpop.f32.mrf.mxu0
        %v953 = vadd.f32 0.0, %v952
        %v954 = vpop.f32.mrf.mxu0
        %v955 = vadd.f32 0.0, %v954
        %956 = vdwg.mxu0
        %v957 = vadd.f32 %v654, %v911
        %v958 = vadd.f32 %v668, %v925
        %v959 = vadd.f32 %v682, %v939
        %v960 = vadd.f32 %v696, %v953
        %v961 = vadd.f32 %v656, %v913
        %v962 = vadd.f32 %v670, %v927
        %v963 = vadd.f32 %v684, %v941
        %v964 = vadd.f32 %v698, %v955
        %s965 = scalar_lea.vmem %s1, 768
        %v966 = vld [vmem:[%s965] sm:$0xff]
        %v967 = vld [vmem:[%s965 + $0x8] sm:$0xff]
        %v968 = vld [vmem:[%s965 + $0x10] sm:$0xff]
        %v969 = vld [vmem:[%s965 + $0x18] sm:$0xff]
        %v970 = vld [vmem:[%s965 + $0x20] sm:$0xff]
        %v971 = vld [vmem:[%s965 + $0x28] sm:$0xff]
        %v972 = vld [vmem:[%s965 + $0x30] sm:$0xff]
        %v973 = vld [vmem:[%s965 + $0x38] sm:$0xff]
        %v974 = vld [vmem:[%s965 + $0x40] sm:$0xff]
        %v975 = vld [vmem:[%s965 + $0x48] sm:$0xff]
        %v976 = vld [vmem:[%s965 + $0x50] sm:$0xff]
        %v977 = vld [vmem:[%s965 + $0x58] sm:$0xff]
        %v978 = vld [vmem:[%s965 + $0x60] sm:$0xff]
        %v979 = vld [vmem:[%s965 + $0x68] sm:$0xff]
        %v980 = vld [vmem:[%s965 + $0x70] sm:$0xff]
        %v981 = vld [vmem:[%s965 + $0x78] sm:$0xff]
        %v982 = vld [vmem:[%s965 + $0x80] sm:$0xff]
        %v983 = vld [vmem:[%s965 + $0x88] sm:$0xff]
        %v984 = vld [vmem:[%s965 + $0x90] sm:$0xff]
        %v985 = vld [vmem:[%s965 + $0x98] sm:$0xff]
        %v986 = vld [vmem:[%s965 + $0xa0] sm:$0xff]
        %v987 = vld [vmem:[%s965 + $0xa8] sm:$0xff]
        %v988 = vld [vmem:[%s965 + $0xb0] sm:$0xff]
        %v989 = vld [vmem:[%s965 + $0xb8] sm:$0xff]
        %v990 = vld [vmem:[%s965 + $0xc0] sm:$0xff]
        %v991 = vld [vmem:[%s965 + $0xc8] sm:$0xff]
        %v992 = vld [vmem:[%s965 + $0xd0] sm:$0xff]
        %v993 = vld [vmem:[%s965 + $0xd8] sm:$0xff]
        %v994 = vld [vmem:[%s965 + $0xe0] sm:$0xff]
        %v995 = vld [vmem:[%s965 + $0xe8] sm:$0xff]
        %v996 = vld [vmem:[%s965 + $0xf0] sm:$0xff]
        %v997 = vld [vmem:[%s965 + $0xf8] sm:$0xff]
        %s998 = scalar_lea.vmem %s1, 1024
        %v999 = vld [vmem:[%s998] sm:$0xff]
        %v1000 = vld [vmem:[%s998 + $0x8] sm:$0xff]
        %v1001 = vld [vmem:[%s998 + $0x10] sm:$0xff]
        %v1002 = vld [vmem:[%s998 + $0x18] sm:$0xff]
        %v1003 = vld [vmem:[%s998 + $0x20] sm:$0xff]
        %v1004 = vld [vmem:[%s998 + $0x28] sm:$0xff]
        %v1005 = vld [vmem:[%s998 + $0x30] sm:$0xff]
        %v1006 = vld [vmem:[%s998 + $0x38] sm:$0xff]
        %v1007 = vld [vmem:[%s998 + $0x40] sm:$0xff]
        %v1008 = vld [vmem:[%s998 + $0x48] sm:$0xff]
        %v1009 = vld [vmem:[%s998 + $0x50] sm:$0xff]
        %v1010 = vld [vmem:[%s998 + $0x58] sm:$0xff]
        %v1011 = vld [vmem:[%s998 + $0x60] sm:$0xff]
        %v1012 = vld [vmem:[%s998 + $0x68] sm:$0xff]
        %v1013 = vld [vmem:[%s998 + $0x70] sm:$0xff]
        %v1014 = vld [vmem:[%s998 + $0x78] sm:$0xff]
        %v1015 = vld [vmem:[%s998 + $0x80] sm:$0xff]
        %v1016 = vld [vmem:[%s998 + $0x88] sm:$0xff]
        %v1017 = vld [vmem:[%s998 + $0x90] sm:$0xff]
        %v1018 = vld [vmem:[%s998 + $0x98] sm:$0xff]
        %v1019 = vld [vmem:[%s998 + $0xa0] sm:$0xff]
        %v1020 = vld [vmem:[%s998 + $0xa8] sm:$0xff]
        %v1021 = vld [vmem:[%s998 + $0xb0] sm:$0xff]
        %v1022 = vld [vmem:[%s998 + $0xb8] sm:$0xff]
        %v1023 = vld [vmem:[%s998 + $0xc0] sm:$0xff]
        %v1024 = vld [vmem:[%s998 + $0xc8] sm:$0xff]
        %v1025 = vld [vmem:[%s998 + $0xd0] sm:$0xff]
        %v1026 = vld [vmem:[%s998 + $0xd8] sm:$0xff]
        %v1027 = vld [vmem:[%s998 + $0xe0] sm:$0xff]
        %v1028 = vld [vmem:[%s998 + $0xe8] sm:$0xff]
        %v1029 = vld [vmem:[%s998 + $0xf0] sm:$0xff]
        %v1030 = vld [vmem:[%s998 + $0xf8] sm:$0xff]
        %v1063 = vunpack.c.l.b16 %v999
        %v1064 = vunpack.c.h.b16 %v999
        %v1065 = vunpack.c.l.b16 %v1000
        %v1066 = vunpack.c.h.b16 %v1000
        %v1067 = vunpack.c.l.b16 %v1001
        %v1068 = vunpack.c.h.b16 %v1001
        %v1069 = vunpack.c.l.b16 %v1002
        %v1070 = vunpack.c.h.b16 %v1002
        %v1071 = vunpack.c.l.b16 %v1003
        %v1072 = vunpack.c.h.b16 %v1003
        %v1073 = vunpack.c.l.b16 %v1004
        %v1074 = vunpack.c.h.b16 %v1004
        %v1075 = vunpack.c.l.b16 %v1005
        %v1076 = vunpack.c.h.b16 %v1005
        %v1077 = vunpack.c.l.b16 %v1006
        %v1078 = vunpack.c.h.b16 %v1006
        %v1079 = vunpack.c.l.b16 %v1007
        %v1080 = vunpack.c.h.b16 %v1007
        %v1081 = vunpack.c.l.b16 %v1008
        %v1082 = vunpack.c.h.b16 %v1008
        %v1083 = vunpack.c.l.b16 %v1009
        %v1084 = vunpack.c.h.b16 %v1009
        %v1085 = vunpack.c.l.b16 %v1010
        %v1086 = vunpack.c.h.b16 %v1010
        %v1087 = vunpack.c.l.b16 %v1011
        %v1088 = vunpack.c.h.b16 %v1011
        %v1089 = vunpack.c.l.b16 %v1012
        %v1090 = vunpack.c.h.b16 %v1012
        %v1091 = vunpack.c.l.b16 %v1013
        %v1092 = vunpack.c.h.b16 %v1013
        %v1093 = vunpack.c.l.b16 %v1014
        %v1094 = vunpack.c.h.b16 %v1014
        %v1095 = vunpack.c.l.b16 %v1015
        %v1096 = vunpack.c.h.b16 %v1015
        %v1097 = vunpack.c.l.b16 %v1016
        %v1098 = vunpack.c.h.b16 %v1016
        %v1099 = vunpack.c.l.b16 %v1017
        %v1100 = vunpack.c.h.b16 %v1017
        %v1101 = vunpack.c.l.b16 %v1018
        %v1102 = vunpack.c.h.b16 %v1018
        %v1103 = vunpack.c.l.b16 %v1019
        %v1104 = vunpack.c.h.b16 %v1019
        %v1105 = vunpack.c.l.b16 %v1020
        %v1106 = vunpack.c.h.b16 %v1020
        %v1107 = vunpack.c.l.b16 %v1021
        %v1108 = vunpack.c.h.b16 %v1021
        %v1109 = vunpack.c.l.b16 %v1022
        %v1110 = vunpack.c.h.b16 %v1022
        %v1111 = vunpack.c.l.b16 %v1023
        %v1112 = vunpack.c.h.b16 %v1023
        %v1113 = vunpack.c.l.b16 %v1024
        %v1114 = vunpack.c.h.b16 %v1024
        %v1115 = vunpack.c.l.b16 %v1025
        %v1116 = vunpack.c.h.b16 %v1025
        %v1117 = vunpack.c.l.b16 %v1026
        %v1118 = vunpack.c.h.b16 %v1026
        %v1119 = vunpack.c.l.b16 %v1027
        %v1120 = vunpack.c.h.b16 %v1027
        %v1121 = vunpack.c.l.b16 %v1028
        %v1122 = vunpack.c.h.b16 %v1028
        %v1123 = vunpack.c.l.b16 %v1029
        %v1124 = vunpack.c.h.b16 %v1029
        %v1125 = vunpack.c.l.b16 %v1030
        %v1126 = vunpack.c.h.b16 %v1030
        %v1127 = vpack.c.b16 %v1067, %v1063
        %v1128 = vpack.c.b16 %v1068, %v1064
        %v1129 = vpack.c.b16 %v1069, %v1065
        %v1130 = vpack.c.b16 %v1070, %v1066
        %v1131 = vpack.c.b16 %v1075, %v1071
        %v1132 = vpack.c.b16 %v1076, %v1072
        %v1133 = vpack.c.b16 %v1077, %v1073
        %v1134 = vpack.c.b16 %v1078, %v1074
        %v1135 = vpack.c.b16 %v1083, %v1079
        %v1136 = vpack.c.b16 %v1084, %v1080
        %v1137 = vpack.c.b16 %v1085, %v1081
        %v1138 = vpack.c.b16 %v1086, %v1082
        %v1139 = vpack.c.b16 %v1091, %v1087
        %v1140 = vpack.c.b16 %v1092, %v1088
        %v1141 = vpack.c.b16 %v1093, %v1089
        %v1142 = vpack.c.b16 %v1094, %v1090
        %v1143 = vpack.c.b16 %v1099, %v1095
        %v1144 = vpack.c.b16 %v1100, %v1096
        %v1145 = vpack.c.b16 %v1101, %v1097
        %v1146 = vpack.c.b16 %v1102, %v1098
        %v1147 = vpack.c.b16 %v1107, %v1103
        %v1148 = vpack.c.b16 %v1108, %v1104
        %v1149 = vpack.c.b16 %v1109, %v1105
        %v1150 = vpack.c.b16 %v1110, %v1106
        %v1151 = vpack.c.b16 %v1115, %v1111
        %v1152 = vpack.c.b16 %v1116, %v1112
        %v1153 = vpack.c.b16 %v1117, %v1113
        %v1154 = vpack.c.b16 %v1118, %v1114
        %v1155 = vpack.c.b16 %v1123, %v1119
        %v1156 = vpack.c.b16 %v1124, %v1120
        %v1157 = vpack.c.b16 %v1125, %v1121
        %v1158 = vpack.c.b16 %v1126, %v1122
        %1191 = vmatpush.bf16.msra.mxu0 %v1155
        %1192 = vmatpush.bf16.msra.mxu0 %v1151
        %1193 = vmatpush.bf16.msra.mxu0 %v1147
        %1194 = vmatpush.bf16.msra.mxu0 %v1143
        %1195 = vmatpush.bf16.msra.mxu0 %v1139
        %1196 = vmatpush.bf16.msra.mxu0 %v1135
        %1197 = vmatpush.bf16.msra.mxu0 %v1131
        %1198 = vmatpush.bf16.msra.mxu0 %v1127
        %1199 = vmatmul.bf16.gmra.mxu0 %v260
        %v1200 = vpop.f32.mrf.mxu0
        %v1201 = vadd.f32 0.0, %v1200
        %v1202 = vpop.f32.mrf.mxu0
        %v1203 = vadd.f32 0.0, %v1202
        %1204 = vdwg.mxu0
        %1205 = vmatpush.bf16.msra.mxu0 %v1156
        %1206 = vmatpush.bf16.msra.mxu0 %v1152
        %1207 = vmatpush.bf16.msra.mxu0 %v1148
        %1208 = vmatpush.bf16.msra.mxu0 %v1144
        %1209 = vmatpush.bf16.msra.mxu0 %v1140
        %1210 = vmatpush.bf16.msra.mxu0 %v1136
        %1211 = vmatpush.bf16.msra.mxu0 %v1132
        %1212 = vmatpush.bf16.msra.mxu0 %v1128
        %1213 = vmatmul.bf16.gmra.mxu0 %v260
        %v1214 = vpop.f32.mrf.mxu0
        %v1215 = vadd.f32 0.0, %v1214
        %v1216 = vpop.f32.mrf.mxu0
        %v1217 = vadd.f32 0.0, %v1216
        %1218 = vdwg.mxu0
        %1219 = vmatpush.bf16.msra.mxu0 %v1157
        %1220 = vmatpush.bf16.msra.mxu0 %v1153
        %1221 = vmatpush.bf16.msra.mxu0 %v1149
        %1222 = vmatpush.bf16.msra.mxu0 %v1145
        %1223 = vmatpush.bf16.msra.mxu0 %v1141
        %1224 = vmatpush.bf16.msra.mxu0 %v1137
        %1225 = vmatpush.bf16.msra.mxu0 %v1133
        %1226 = vmatpush.bf16.msra.mxu0 %v1129
        %1227 = vmatmul.bf16.gmra.mxu0 %v260
        %v1228 = vpop.f32.mrf.mxu0
        %v1229 = vadd.f32 0.0, %v1228
        %v1230 = vpop.f32.mrf.mxu0
        %v1231 = vadd.f32 0.0, %v1230
        %1232 = vdwg.mxu0
        %1233 = vmatpush.bf16.msra.mxu0 %v1158
        %1234 = vmatpush.bf16.msra.mxu0 %v1154
        %1235 = vmatpush.bf16.msra.mxu0 %v1150
        %1236 = vmatpush.bf16.msra.mxu0 %v1146
        %1237 = vmatpush.bf16.msra.mxu0 %v1142
        %1238 = vmatpush.bf16.msra.mxu0 %v1138
        %1239 = vmatpush.bf16.msra.mxu0 %v1134
        %1240 = vmatpush.bf16.msra.mxu0 %v1130
        %1241 = vmatmul.bf16.gmra.mxu0 %v260
        %v1242 = vpop.f32.mrf.mxu0
        %v1243 = vadd.f32 0.0, %v1242
        %v1244 = vpop.f32.mrf.mxu0
        %v1245 = vadd.f32 0.0, %v1244
        %1246 = vdwg.mxu0
        %v1279 = vunpack.c.l.b16 %v966
        %v1280 = vunpack.c.h.b16 %v966
        %v1281 = vunpack.c.l.b16 %v967
        %v1282 = vunpack.c.h.b16 %v967
        %v1283 = vunpack.c.l.b16 %v968
        %v1284 = vunpack.c.h.b16 %v968
        %v1285 = vunpack.c.l.b16 %v969
        %v1286 = vunpack.c.h.b16 %v969
        %v1287 = vunpack.c.l.b16 %v970
        %v1288 = vunpack.c.h.b16 %v970
        %v1289 = vunpack.c.l.b16 %v971
        %v1290 = vunpack.c.h.b16 %v971
        %v1291 = vunpack.c.l.b16 %v972
        %v1292 = vunpack.c.h.b16 %v972
        %v1293 = vunpack.c.l.b16 %v973
        %v1294 = vunpack.c.h.b16 %v973
        %v1295 = vunpack.c.l.b16 %v974
        %v1296 = vunpack.c.h.b16 %v974
        %v1297 = vunpack.c.l.b16 %v975
        %v1298 = vunpack.c.h.b16 %v975
        %v1299 = vunpack.c.l.b16 %v976
        %v1300 = vunpack.c.h.b16 %v976
        %v1301 = vunpack.c.l.b16 %v977
        %v1302 = vunpack.c.h.b16 %v977
        %v1303 = vunpack.c.l.b16 %v978
        %v1304 = vunpack.c.h.b16 %v978
        %v1305 = vunpack.c.l.b16 %v979
        %v1306 = vunpack.c.h.b16 %v979
        %v1307 = vunpack.c.l.b16 %v980
        %v1308 = vunpack.c.h.b16 %v980
        %v1309 = vunpack.c.l.b16 %v981
        %v1310 = vunpack.c.h.b16 %v981
        %v1311 = vunpack.c.l.b16 %v982
        %v1312 = vunpack.c.h.b16 %v982
        %v1313 = vunpack.c.l.b16 %v983
        %v1314 = vunpack.c.h.b16 %v983
        %v1315 = vunpack.c.l.b16 %v984
        %v1316 = vunpack.c.h.b16 %v984
        %v1317 = vunpack.c.l.b16 %v985
        %v1318 = vunpack.c.h.b16 %v985
        %v1319 = vunpack.c.l.b16 %v986
        %v1320 = vunpack.c.h.b16 %v986
        %v1321 = vunpack.c.l.b16 %v987
        %v1322 = vunpack.c.h.b16 %v987
        %v1323 = vunpack.c.l.b16 %v988
        %v1324 = vunpack.c.h.b16 %v988
        %v1325 = vunpack.c.l.b16 %v989
        %v1326 = vunpack.c.h.b16 %v989
        %v1327 = vunpack.c.l.b16 %v990
        %v1328 = vunpack.c.h.b16 %v990
        %v1329 = vunpack.c.l.b16 %v991
        %v1330 = vunpack.c.h.b16 %v991
        %v1331 = vunpack.c.l.b16 %v992
        %v1332 = vunpack.c.h.b16 %v992
        %v1333 = vunpack.c.l.b16 %v993
        %v1334 = vunpack.c.h.b16 %v993
        %v1335 = vunpack.c.l.b16 %v994
        %v1336 = vunpack.c.h.b16 %v994
        %v1337 = vunpack.c.l.b16 %v995
        %v1338 = vunpack.c.h.b16 %v995
        %v1339 = vunpack.c.l.b16 %v996
        %v1340 = vunpack.c.h.b16 %v996
        %v1341 = vunpack.c.l.b16 %v997
        %v1342 = vunpack.c.h.b16 %v997
        %v1343 = vpack.c.b16 %v1283, %v1279
        %v1344 = vpack.c.b16 %v1284, %v1280
        %v1345 = vpack.c.b16 %v1285, %v1281
        %v1346 = vpack.c.b16 %v1286, %v1282
        %v1347 = vpack.c.b16 %v1291, %v1287
        %v1348 = vpack.c.b16 %v1292, %v1288
        %v1349 = vpack.c.b16 %v1293, %v1289
        %v1350 = vpack.c.b16 %v1294, %v1290
        %v1351 = vpack.c.b16 %v1299, %v1295
        %v1352 = vpack.c.b16 %v1300, %v1296
        %v1353 = vpack.c.b16 %v1301, %v1297
        %v1354 = vpack.c.b16 %v1302, %v1298
        %v1355 = vpack.c.b16 %v1307, %v1303
        %v1356 = vpack.c.b16 %v1308, %v1304
        %v1357 = vpack.c.b16 %v1309, %v1305
        %v1358 = vpack.c.b16 %v1310, %v1306
        %v1359 = vpack.c.b16 %v1315, %v1311
        %v1360 = vpack.c.b16 %v1316, %v1312
        %v1361 = vpack.c.b16 %v1317, %v1313
        %v1362 = vpack.c.b16 %v1318, %v1314
        %v1363 = vpack.c.b16 %v1323, %v1319
        %v1364 = vpack.c.b16 %v1324, %v1320
        %v1365 = vpack.c.b16 %v1325, %v1321
        %v1366 = vpack.c.b16 %v1326, %v1322
        %v1367 = vpack.c.b16 %v1331, %v1327
        %v1368 = vpack.c.b16 %v1332, %v1328
        %v1369 = vpack.c.b16 %v1333, %v1329
        %v1370 = vpack.c.b16 %v1334, %v1330
        %v1371 = vpack.c.b16 %v1339, %v1335
        %v1372 = vpack.c.b16 %v1340, %v1336
        %v1373 = vpack.c.b16 %v1341, %v1337
        %v1374 = vpack.c.b16 %v1342, %v1338
        %1407 = vmatpush.bf16.msra.mxu0 %v1371
        %1408 = vmatpush.bf16.msra.mxu0 %v1367
        %1409 = vmatpush.bf16.msra.mxu0 %v1363
        %1410 = vmatpush.bf16.msra.mxu0 %v1359
        %1411 = vmatpush.bf16.msra.mxu0 %v1355
        %1412 = vmatpush.bf16.msra.mxu0 %v1351
        %1413 = vmatpush.bf16.msra.mxu0 %v1347
        %1414 = vmatpush.bf16.msra.mxu0 %v1343
        %1415 = vmatmul.bf16.gmra.mxu0 %v482
        %v1416 = vpop.f32.mrf.mxu0
        %v1417 = vadd.f32 %v1201, %v1416
        %v1418 = vpop.f32.mrf.mxu0
        %v1419 = vadd.f32 %v1203, %v1418
        %1420 = vdwg.mxu0
        %1421 = vmatpush.bf16.msra.mxu0 %v1372
        %1422 = vmatpush.bf16.msra.mxu0 %v1368
        %1423 = vmatpush.bf16.msra.mxu0 %v1364
        %1424 = vmatpush.bf16.msra.mxu0 %v1360
        %1425 = vmatpush.bf16.msra.mxu0 %v1356
        %1426 = vmatpush.bf16.msra.mxu0 %v1352
        %1427 = vmatpush.bf16.msra.mxu0 %v1348
        %1428 = vmatpush.bf16.msra.mxu0 %v1344
        %1429 = vmatmul.bf16.gmra.mxu0 %v482
        %v1430 = vpop.f32.mrf.mxu0
        %v1431 = vadd.f32 %v1215, %v1430
        %v1432 = vpop.f32.mrf.mxu0
        %v1433 = vadd.f32 %v1217, %v1432
        %1434 = vdwg.mxu0
        %1435 = vmatpush.bf16.msra.mxu0 %v1373
        %1436 = vmatpush.bf16.msra.mxu0 %v1369
        %1437 = vmatpush.bf16.msra.mxu0 %v1365
        %1438 = vmatpush.bf16.msra.mxu0 %v1361
        %1439 = vmatpush.bf16.msra.mxu0 %v1357
        %1440 = vmatpush.bf16.msra.mxu0 %v1353
        %1441 = vmatpush.bf16.msra.mxu0 %v1349
        %1442 = vmatpush.bf16.msra.mxu0 %v1345
        %1443 = vmatmul.bf16.gmra.mxu0 %v482
        %v1444 = vpop.f32.mrf.mxu0
        %v1445 = vadd.f32 %v1229, %v1444
        %v1446 = vpop.f32.mrf.mxu0
        %v1447 = vadd.f32 %v1231, %v1446
        %1448 = vdwg.mxu0
        %1449 = vmatpush.bf16.msra.mxu0 %v1374
        %1450 = vmatpush.bf16.msra.mxu0 %v1370
        %1451 = vmatpush.bf16.msra.mxu0 %v1366
        %1452 = vmatpush.bf16.msra.mxu0 %v1362
        %1453 = vmatpush.bf16.msra.mxu0 %v1358
        %1454 = vmatpush.bf16.msra.mxu0 %v1354
        %1455 = vmatpush.bf16.msra.mxu0 %v1350
        %1456 = vmatpush.bf16.msra.mxu0 %v1346
        %1457 = vmatmul.bf16.gmra.mxu0 %v482
        %v1458 = vpop.f32.mrf.mxu0
        %v1459 = vadd.f32 %v1243, %v1458
        %v1460 = vpop.f32.mrf.mxu0
        %v1461 = vadd.f32 %v1245, %v1460
        %1462 = vdwg.mxu0
        %s1463 = scalar_lea.vmem %s1, 1280
        %v1464 = vld [vmem:[%s1463] sm:$0xff]
        %v1465 = vld [vmem:[%s1463 + $0x8] sm:$0xff]
        %v1466 = vld [vmem:[%s1463 + $0x10] sm:$0xff]
        %v1467 = vld [vmem:[%s1463 + $0x18] sm:$0xff]
        %v1468 = vld [vmem:[%s1463 + $0x20] sm:$0xff]
        %v1469 = vld [vmem:[%s1463 + $0x28] sm:$0xff]
        %v1470 = vld [vmem:[%s1463 + $0x30] sm:$0xff]
        %v1471 = vld [vmem:[%s1463 + $0x38] sm:$0xff]
        %v1472 = vld [vmem:[%s1463 + $0x40] sm:$0xff]
        %v1473 = vld [vmem:[%s1463 + $0x48] sm:$0xff]
        %v1474 = vld [vmem:[%s1463 + $0x50] sm:$0xff]
        %v1475 = vld [vmem:[%s1463 + $0x58] sm:$0xff]
        %v1476 = vld [vmem:[%s1463 + $0x60] sm:$0xff]
        %v1477 = vld [vmem:[%s1463 + $0x68] sm:$0xff]
        %v1478 = vld [vmem:[%s1463 + $0x70] sm:$0xff]
        %v1479 = vld [vmem:[%s1463 + $0x78] sm:$0xff]
        %v1480 = vld [vmem:[%s1463 + $0x80] sm:$0xff]
        %v1481 = vld [vmem:[%s1463 + $0x88] sm:$0xff]
        %v1482 = vld [vmem:[%s1463 + $0x90] sm:$0xff]
        %v1483 = vld [vmem:[%s1463 + $0x98] sm:$0xff]
        %v1484 = vld [vmem:[%s1463 + $0xa0] sm:$0xff]
        %v1485 = vld [vmem:[%s1463 + $0xa8] sm:$0xff]
        %v1486 = vld [vmem:[%s1463 + $0xb0] sm:$0xff]
        %v1487 = vld [vmem:[%s1463 + $0xb8] sm:$0xff]
        %v1488 = vld [vmem:[%s1463 + $0xc0] sm:$0xff]
        %v1489 = vld [vmem:[%s1463 + $0xc8] sm:$0xff]
        %v1490 = vld [vmem:[%s1463 + $0xd0] sm:$0xff]
        %v1491 = vld [vmem:[%s1463 + $0xd8] sm:$0xff]
        %v1492 = vld [vmem:[%s1463 + $0xe0] sm:$0xff]
        %v1493 = vld [vmem:[%s1463 + $0xe8] sm:$0xff]
        %v1494 = vld [vmem:[%s1463 + $0xf0] sm:$0xff]
        %v1495 = vld [vmem:[%s1463 + $0xf8] sm:$0xff]
        %v1528 = vunpack.c.l.b16 %v1464
        %v1529 = vunpack.c.h.b16 %v1464
        %v1530 = vunpack.c.l.b16 %v1465
        %v1531 = vunpack.c.h.b16 %v1465
        %v1532 = vunpack.c.l.b16 %v1466
        %v1533 = vunpack.c.h.b16 %v1466
        %v1534 = vunpack.c.l.b16 %v1467
        %v1535 = vunpack.c.h.b16 %v1467
        %v1536 = vunpack.c.l.b16 %v1468
        %v1537 = vunpack.c.h.b16 %v1468
        %v1538 = vunpack.c.l.b16 %v1469
        %v1539 = vunpack.c.h.b16 %v1469
        %v1540 = vunpack.c.l.b16 %v1470
        %v1541 = vunpack.c.h.b16 %v1470
        %v1542 = vunpack.c.l.b16 %v1471
        %v1543 = vunpack.c.h.b16 %v1471
        %v1544 = vunpack.c.l.b16 %v1472
        %v1545 = vunpack.c.h.b16 %v1472
        %v1546 = vunpack.c.l.b16 %v1473
        %v1547 = vunpack.c.h.b16 %v1473
        %v1548 = vunpack.c.l.b16 %v1474
        %v1549 = vunpack.c.h.b16 %v1474
        %v1550 = vunpack.c.l.b16 %v1475
        %v1551 = vunpack.c.h.b16 %v1475
        %v1552 = vunpack.c.l.b16 %v1476
        %v1553 = vunpack.c.h.b16 %v1476
        %v1554 = vunpack.c.l.b16 %v1477
        %v1555 = vunpack.c.h.b16 %v1477
        %v1556 = vunpack.c.l.b16 %v1478
        %v1557 = vunpack.c.h.b16 %v1478
        %v1558 = vunpack.c.l.b16 %v1479
        %v1559 = vunpack.c.h.b16 %v1479
        %v1560 = vunpack.c.l.b16 %v1480
        %v1561 = vunpack.c.h.b16 %v1480
        %v1562 = vunpack.c.l.b16 %v1481
        %v1563 = vunpack.c.h.b16 %v1481
        %v1564 = vunpack.c.l.b16 %v1482
        %v1565 = vunpack.c.h.b16 %v1482
        %v1566 = vunpack.c.l.b16 %v1483
        %v1567 = vunpack.c.h.b16 %v1483
        %v1568 = vunpack.c.l.b16 %v1484
        %v1569 = vunpack.c.h.b16 %v1484
        %v1570 = vunpack.c.l.b16 %v1485
        %v1571 = vunpack.c.h.b16 %v1485
        %v1572 = vunpack.c.l.b16 %v1486
        %v1573 = vunpack.c.h.b16 %v1486
        %v1574 = vunpack.c.l.b16 %v1487
        %v1575 = vunpack.c.h.b16 %v1487
        %v1576 = vunpack.c.l.b16 %v1488
        %v1577 = vunpack.c.h.b16 %v1488
        %v1578 = vunpack.c.l.b16 %v1489
        %v1579 = vunpack.c.h.b16 %v1489
        %v1580 = vunpack.c.l.b16 %v1490
        %v1581 = vunpack.c.h.b16 %v1490
        %v1582 = vunpack.c.l.b16 %v1491
        %v1583 = vunpack.c.h.b16 %v1491
        %v1584 = vunpack.c.l.b16 %v1492
        %v1585 = vunpack.c.h.b16 %v1492
        %v1586 = vunpack.c.l.b16 %v1493
        %v1587 = vunpack.c.h.b16 %v1493
        %v1588 = vunpack.c.l.b16 %v1494
        %v1589 = vunpack.c.h.b16 %v1494
        %v1590 = vunpack.c.l.b16 %v1495
        %v1591 = vunpack.c.h.b16 %v1495
        %v1592 = vpack.c.b16 %v1532, %v1528
        %v1593 = vpack.c.b16 %v1533, %v1529
        %v1594 = vpack.c.b16 %v1534, %v1530
        %v1595 = vpack.c.b16 %v1535, %v1531
        %v1596 = vpack.c.b16 %v1540, %v1536
        %v1597 = vpack.c.b16 %v1541, %v1537
        %v1598 = vpack.c.b16 %v1542, %v1538
        %v1599 = vpack.c.b16 %v1543, %v1539
        %v1600 = vpack.c.b16 %v1548, %v1544
        %v1601 = vpack.c.b16 %v1549, %v1545
        %v1602 = vpack.c.b16 %v1550, %v1546
        %v1603 = vpack.c.b16 %v1551, %v1547
        %v1604 = vpack.c.b16 %v1556, %v1552
        %v1605 = vpack.c.b16 %v1557, %v1553
        %v1606 = vpack.c.b16 %v1558, %v1554
        %v1607 = vpack.c.b16 %v1559, %v1555
        %v1608 = vpack.c.b16 %v1564, %v1560
        %v1609 = vpack.c.b16 %v1565, %v1561
        %v1610 = vpack.c.b16 %v1566, %v1562
        %v1611 = vpack.c.b16 %v1567, %v1563
        %v1612 = vpack.c.b16 %v1572, %v1568
        %v1613 = vpack.c.b16 %v1573, %v1569
        %v1614 = vpack.c.b16 %v1574, %v1570
        %v1615 = vpack.c.b16 %v1575, %v1571
        %v1616 = vpack.c.b16 %v1580, %v1576
        %v1617 = vpack.c.b16 %v1581, %v1577
        %v1618 = vpack.c.b16 %v1582, %v1578
        %v1619 = vpack.c.b16 %v1583, %v1579
        %v1620 = vpack.c.b16 %v1588, %v1584
        %v1621 = vpack.c.b16 %v1589, %v1585
        %v1622 = vpack.c.b16 %v1590, %v1586
        %v1623 = vpack.c.b16 %v1591, %v1587
        %1656 = vmatpush.bf16.msra.mxu0 %v1620
        %1657 = vmatpush.bf16.msra.mxu0 %v1616
        %1658 = vmatpush.bf16.msra.mxu0 %v1612
        %1659 = vmatpush.bf16.msra.mxu0 %v1608
        %1660 = vmatpush.bf16.msra.mxu0 %v1604
        %1661 = vmatpush.bf16.msra.mxu0 %v1600
        %1662 = vmatpush.bf16.msra.mxu0 %v1596
        %1663 = vmatpush.bf16.msra.mxu0 %v1592
        %1664 = vmatmul.bf16.gmra.mxu0 %v739
        %v1665 = vpop.f32.mrf.mxu0
        %v1666 = vadd.f32 0.0, %v1665
        %v1667 = vpop.f32.mrf.mxu0
        %v1668 = vadd.f32 0.0, %v1667
        %1669 = vdwg.mxu0
        %1670 = vmatpush.bf16.msra.mxu0 %v1621
        %1671 = vmatpush.bf16.msra.mxu0 %v1617
        %1672 = vmatpush.bf16.msra.mxu0 %v1613
        %1673 = vmatpush.bf16.msra.mxu0 %v1609
        %1674 = vmatpush.bf16.msra.mxu0 %v1605
        %1675 = vmatpush.bf16.msra.mxu0 %v1601
        %1676 = vmatpush.bf16.msra.mxu0 %v1597
        %1677 = vmatpush.bf16.msra.mxu0 %v1593
        %1678 = vmatmul.bf16.gmra.mxu0 %v739
        %v1679 = vpop.f32.mrf.mxu0
        %v1680 = vadd.f32 0.0, %v1679
        %v1681 = vpop.f32.mrf.mxu0
        %v1682 = vadd.f32 0.0, %v1681
        %1683 = vdwg.mxu0
        %1684 = vmatpush.bf16.msra.mxu0 %v1622
        %1685 = vmatpush.bf16.msra.mxu0 %v1618
        %1686 = vmatpush.bf16.msra.mxu0 %v1614
        %1687 = vmatpush.bf16.msra.mxu0 %v1610
        %1688 = vmatpush.bf16.msra.mxu0 %v1606
        %1689 = vmatpush.bf16.msra.mxu0 %v1602
        %1690 = vmatpush.bf16.msra.mxu0 %v1598
        %1691 = vmatpush.bf16.msra.mxu0 %v1594
        %1692 = vmatmul.bf16.gmra.mxu0 %v739
        %v1693 = vpop.f32.mrf.mxu0
        %v1694 = vadd.f32 0.0, %v1693
        %v1695 = vpop.f32.mrf.mxu0
        %v1696 = vadd.f32 0.0, %v1695
        %1697 = vdwg.mxu0
        %1698 = vmatpush.bf16.msra.mxu0 %v1623
        %1699 = vmatpush.bf16.msra.mxu0 %v1619
        %1700 = vmatpush.bf16.msra.mxu0 %v1615
        %1701 = vmatpush.bf16.msra.mxu0 %v1611
        %1702 = vmatpush.bf16.msra.mxu0 %v1607
        %1703 = vmatpush.bf16.msra.mxu0 %v1603
        %1704 = vmatpush.bf16.msra.mxu0 %v1599
        %1705 = vmatpush.bf16.msra.mxu0 %v1595
        %1706 = vmatmul.bf16.gmra.mxu0 %v739
        %v1707 = vpop.f32.mrf.mxu0
        %v1708 = vadd.f32 0.0, %v1707
        %v1709 = vpop.f32.mrf.mxu0
        %v1710 = vadd.f32 0.0, %v1709
        %1711 = vdwg.mxu0
        %v1712 = vadd.f32 %v1417, %v1666
        %v1713 = vadd.f32 %v1431, %v1680
        %v1714 = vadd.f32 %v1445, %v1694
        %v1715 = vadd.f32 %v1459, %v1708
        %v1716 = vadd.f32 %v1419, %v1668
        %v1717 = vadd.f32 %v1433, %v1682
        %v1718 = vadd.f32 %v1447, %v1696
        %v1719 = vadd.f32 %v1461, %v1710
        %v1720 = vmax.f32 %v957, %v1712
        %v1721 = vmax.f32 %v958, %v1713
        %v1722 = vmax.f32 %v959, %v1714
        %v1723 = vmax.f32 %v960, %v1715
        %v1724 = vmax.f32 %v961, %v1716
        %v1725 = vmax.f32 %v962, %v1717
        %v1726 = vmax.f32 %v963, %v1718
        %v1727 = vmax.f32 %v964, %v1719
        %1728 = vmatpush.bf16.msra.mxu0 %v386
        %1729 = vmatpush.bf16.msra.mxu0 %v382
        %1730 = vmatpush.bf16.msra.mxu0 %v378
        %1731 = vmatpush.bf16.msra.mxu0 %v374
        %1732 = vmatpush.bf16.msra.mxu0 %v370
        %1733 = vmatpush.bf16.msra.mxu0 %v366
        %1734 = vmatpush.bf16.msra.mxu0 %v362
        %1735 = vmatpush.bf16.msra.mxu0 %v358
        %1736 = vmatmul.bf16.gmra.mxu0 %v739
        %v1737 = vpop.f32.mrf.mxu0
        %v1738 = vadd.f32 0.0, %v1737
        %v1739 = vpop.f32.mrf.mxu0
        %v1740 = vadd.f32 0.0, %v1739
        %1741 = vdwg.mxu0
        %1742 = vmatpush.bf16.msra.mxu0 %v387
        %1743 = vmatpush.bf16.msra.mxu0 %v383
        %1744 = vmatpush.bf16.msra.mxu0 %v379
        %1745 = vmatpush.bf16.msra.mxu0 %v375
        %1746 = vmatpush.bf16.msra.mxu0 %v371
        %1747 = vmatpush.bf16.msra.mxu0 %v367
        %1748 = vmatpush.bf16.msra.mxu0 %v363
        %1749 = vmatpush.bf16.msra.mxu0 %v359
        %1750 = vmatmul.bf16.gmra.mxu0 %v739
        %v1751 = vpop.f32.mrf.mxu0
        %v1752 = vadd.f32 0.0, %v1751
        %v1753 = vpop.f32.mrf.mxu0
        %v1754 = vadd.f32 0.0, %v1753
        %1755 = vdwg.mxu0
        %1756 = vmatpush.bf16.msra.mxu0 %v388
        %1757 = vmatpush.bf16.msra.mxu0 %v384
        %1758 = vmatpush.bf16.msra.mxu0 %v380
        %1759 = vmatpush.bf16.msra.mxu0 %v376
        %1760 = vmatpush.bf16.msra.mxu0 %v372
        %1761 = vmatpush.bf16.msra.mxu0 %v368
        %1762 = vmatpush.bf16.msra.mxu0 %v364
        %1763 = vmatpush.bf16.msra.mxu0 %v360
        %1764 = vmatmul.bf16.gmra.mxu0 %v739
        %v1765 = vpop.f32.mrf.mxu0
        %v1766 = vadd.f32 0.0, %v1765
        %v1767 = vpop.f32.mrf.mxu0
        %v1768 = vadd.f32 0.0, %v1767
        %1769 = vdwg.mxu0
        %1770 = vmatpush.bf16.msra.mxu0 %v389
        %1771 = vmatpush.bf16.msra.mxu0 %v385
        %1772 = vmatpush.bf16.msra.mxu0 %v381
        %1773 = vmatpush.bf16.msra.mxu0 %v377
        %1774 = vmatpush.bf16.msra.mxu0 %v373
        %1775 = vmatpush.bf16.msra.mxu0 %v369
        %1776 = vmatpush.bf16.msra.mxu0 %v365
        %1777 = vmatpush.bf16.msra.mxu0 %v361
        %1778 = vmatmul.bf16.gmra.mxu0 %v739
        %v1779 = vpop.f32.mrf.mxu0
        %v1780 = vadd.f32 0.0, %v1779
        %v1781 = vpop.f32.mrf.mxu0
        %v1782 = vadd.f32 0.0, %v1781
        %1783 = vdwg.mxu0
        %1784 = vmatpush.bf16.msra.mxu0 %v608
        %1785 = vmatpush.bf16.msra.mxu0 %v604
        %1786 = vmatpush.bf16.msra.mxu0 %v600
        %1787 = vmatpush.bf16.msra.mxu0 %v596
        %1788 = vmatpush.bf16.msra.mxu0 %v592
        %1789 = vmatpush.bf16.msra.mxu0 %v588
        %1790 = vmatpush.bf16.msra.mxu0 %v584
        %1791 = vmatpush.bf16.msra.mxu0 %v580
        %1792 = vmatmul.bf16.gmra.mxu0 %v260
        %v1793 = vpop.f32.mrf.mxu0
        %v1794 = vadd.f32 %v1738, %v1793
        %v1795 = vpop.f32.mrf.mxu0
        %v1796 = vadd.f32 %v1740, %v1795
        %1797 = vdwg.mxu0
        %1798 = vmatpush.bf16.msra.mxu0 %v609
        %1799 = vmatpush.bf16.msra.mxu0 %v605
        %1800 = vmatpush.bf16.msra.mxu0 %v601
        %1801 = vmatpush.bf16.msra.mxu0 %v597
        %1802 = vmatpush.bf16.msra.mxu0 %v593
        %1803 = vmatpush.bf16.msra.mxu0 %v589
        %1804 = vmatpush.bf16.msra.mxu0 %v585
        %1805 = vmatpush.bf16.msra.mxu0 %v581
        %1806 = vmatmul.bf16.gmra.mxu0 %v260
        %v1807 = vpop.f32.mrf.mxu0
        %v1808 = vadd.f32 %v1752, %v1807
        %v1809 = vpop.f32.mrf.mxu0
        %v1810 = vadd.f32 %v1754, %v1809
        %1811 = vdwg.mxu0
        %1812 = vmatpush.bf16.msra.mxu0 %v610
        %1813 = vmatpush.bf16.msra.mxu0 %v606
        %1814 = vmatpush.bf16.msra.mxu0 %v602
        %1815 = vmatpush.bf16.msra.mxu0 %v598
        %1816 = vmatpush.bf16.msra.mxu0 %v594
        %1817 = vmatpush.bf16.msra.mxu0 %v590
        %1818 = vmatpush.bf16.msra.mxu0 %v586
        %1819 = vmatpush.bf16.msra.mxu0 %v582
        %1820 = vmatmul.bf16.gmra.mxu0 %v260
        %v1821 = vpop.f32.mrf.mxu0
        %v1822 = vadd.f32 %v1766, %v1821
        %v1823 = vpop.f32.mrf.mxu0
        %v1824 = vadd.f32 %v1768, %v1823
        %1825 = vdwg.mxu0
        %1826 = vmatpush.bf16.msra.mxu0 %v611
        %1827 = vmatpush.bf16.msra.mxu0 %v607
        %1828 = vmatpush.bf16.msra.mxu0 %v603
        %1829 = vmatpush.bf16.msra.mxu0 %v599
        %1830 = vmatpush.bf16.msra.mxu0 %v595
        %1831 = vmatpush.bf16.msra.mxu0 %v591
        %1832 = vmatpush.bf16.msra.mxu0 %v587
        %1833 = vmatpush.bf16.msra.mxu0 %v583
        %1834 = vmatmul.bf16.gmra.mxu0 %v260
        %v1835 = vpop.f32.mrf.mxu0
        %v1836 = vadd.f32 %v1780, %v1835
        %v1837 = vpop.f32.mrf.mxu0
        %v1838 = vadd.f32 %v1782, %v1837
        %1839 = vdwg.mxu0
        %v1841 = vshrl.u32 %v260, 16
        %v1843 = vshll.u32 %v260, 16
        %v1845 = vrot.slane %v1843, 1
        %v1846 = vor.u32 %v1841, %v1845
        %1848 = vmatpush.bf16.msra.mxu0 %v865
        %1849 = vmatpush.bf16.msra.mxu0 %v861
        %1850 = vmatpush.bf16.msra.mxu0 %v857
        %1851 = vmatpush.bf16.msra.mxu0 %v853
        %1852 = vmatpush.bf16.msra.mxu0 %v849
        %1853 = vmatpush.bf16.msra.mxu0 %v845
        %1854 = vmatpush.bf16.msra.mxu0 %v841
        %1855 = vmatpush.bf16.msra.mxu0 %v837
        %1856 = vmatmul.bf16.gmra.mxu0 %v1846
        %v1857 = vpop.f32.mrf.mxu0
        %v1858 = vadd.f32 0.0, %v1857
        %v1859 = vpop.f32.mrf.mxu0
        %v1860 = vadd.f32 0.0, %v1859
        %1861 = vdwg.mxu0
        %1862 = vmatpush.bf16.msra.mxu0 %v866
        %1863 = vmatpush.bf16.msra.mxu0 %v862
        %1864 = vmatpush.bf16.msra.mxu0 %v858
        %1865 = vmatpush.bf16.msra.mxu0 %v854
        %1866 = vmatpush.bf16.msra.mxu0 %v850
        %1867 = vmatpush.bf16.msra.mxu0 %v846
        %1868 = vmatpush.bf16.msra.mxu0 %v842
        %1869 = vmatpush.bf16.msra.mxu0 %v838
        %1870 = vmatmul.bf16.gmra.mxu0 %v1846
        %v1871 = vpop.f32.mrf.mxu0
        %v1872 = vadd.f32 0.0, %v1871
        %v1873 = vpop.f32.mrf.mxu0
        %v1874 = vadd.f32 0.0, %v1873
        %1875 = vdwg.mxu0
        %1876 = vmatpush.bf16.msra.mxu0 %v867
        %1877 = vmatpush.bf16.msra.mxu0 %v863
        %1878 = vmatpush.bf16.msra.mxu0 %v859
        %1879 = vmatpush.bf16.msra.mxu0 %v855
        %1880 = vmatpush.bf16.msra.mxu0 %v851
        %1881 = vmatpush.bf16.msra.mxu0 %v847
        %1882 = vmatpush.bf16.msra.mxu0 %v843
        %1883 = vmatpush.bf16.msra.mxu0 %v839
        %1884 = vmatmul.bf16.gmra.mxu0 %v1846
        %v1885 = vpop.f32.mrf.mxu0
        %v1886 = vadd.f32 0.0, %v1885
        %v1887 = vpop.f32.mrf.mxu0
        %v1888 = vadd.f32 0.0, %v1887
        %1889 = vdwg.mxu0
        %1890 = vmatpush.bf16.msra.mxu0 %v868
        %1891 = vmatpush.bf16.msra.mxu0 %v864
        %1892 = vmatpush.bf16.msra.mxu0 %v860
        %1893 = vmatpush.bf16.msra.mxu0 %v856
        %1894 = vmatpush.bf16.msra.mxu0 %v852
        %1895 = vmatpush.bf16.msra.mxu0 %v848
        %1896 = vmatpush.bf16.msra.mxu0 %v844
        %1897 = vmatpush.bf16.msra.mxu0 %v840
        %1898 = vmatmul.bf16.gmra.mxu0 %v1846
        %v1899 = vpop.f32.mrf.mxu0
        %v1900 = vadd.f32 0.0, %v1899
        %v1901 = vpop.f32.mrf.mxu0
        %v1902 = vadd.f32 0.0, %v1901
        %1903 = vdwg.mxu0
        %v1904 = vadd.f32 %v1794, %v1858
        %v1905 = vadd.f32 %v1808, %v1872
        %v1906 = vadd.f32 %v1822, %v1886
        %v1907 = vadd.f32 %v1836, %v1900
        %v1908 = vadd.f32 %v1796, %v1860
        %v1909 = vadd.f32 %v1810, %v1874
        %v1910 = vadd.f32 %v1824, %v1888
        %v1911 = vadd.f32 %v1838, %v1902
        %1912 = vmatpush.bf16.msra.mxu0 %v1155
        %1913 = vmatpush.bf16.msra.mxu0 %v1151
        %1914 = vmatpush.bf16.msra.mxu0 %v1147
        %1915 = vmatpush.bf16.msra.mxu0 %v1143
        %1916 = vmatpush.bf16.msra.mxu0 %v1139
        %1917 = vmatpush.bf16.msra.mxu0 %v1135
        %1918 = vmatpush.bf16.msra.mxu0 %v1131
        %1919 = vmatpush.bf16.msra.mxu0 %v1127
        %1920 = vmatmul.bf16.gmra.mxu0 %v739
        %v1921 = vpop.f32.mrf.mxu0
        %v1922 = vadd.f32 0.0, %v1921
        %v1923 = vpop.f32.mrf.mxu0
        %v1924 = vadd.f32 0.0, %v1923
        %1925 = vdwg.mxu0
        %1926 = vmatpush.bf16.msra.mxu0 %v1156
        %1927 = vmatpush.bf16.msra.mxu0 %v1152
        %1928 = vmatpush.bf16.msra.mxu0 %v1148
        %1929 = vmatpush.bf16.msra.mxu0 %v1144
        %1930 = vmatpush.bf16.msra.mxu0 %v1140
        %1931 = vmatpush.bf16.msra.mxu0 %v1136
        %1932 = vmatpush.bf16.msra.mxu0 %v1132
        %1933 = vmatpush.bf16.msra.mxu0 %v1128
        %1934 = vmatmul.bf16.gmra.mxu0 %v739
        %v1935 = vpop.f32.mrf.mxu0
        %v1936 = vadd.f32 0.0, %v1935
        %v1937 = vpop.f32.mrf.mxu0
        %v1938 = vadd.f32 0.0, %v1937
        %1939 = vdwg.mxu0
        %1940 = vmatpush.bf16.msra.mxu0 %v1157
        %1941 = vmatpush.bf16.msra.mxu0 %v1153
        %1942 = vmatpush.bf16.msra.mxu0 %v1149
        %1943 = vmatpush.bf16.msra.mxu0 %v1145
        %1944 = vmatpush.bf16.msra.mxu0 %v1141
        %1945 = vmatpush.bf16.msra.mxu0 %v1137
        %1946 = vmatpush.bf16.msra.mxu0 %v1133
        %1947 = vmatpush.bf16.msra.mxu0 %v1129
        %1948 = vmatmul.bf16.gmra.mxu0 %v739
        %v1949 = vpop.f32.mrf.mxu0
        %v1950 = vadd.f32 0.0, %v1949
        %v1951 = vpop.f32.mrf.mxu0
        %v1952 = vadd.f32 0.0, %v1951
        %1953 = vdwg.mxu0
        %1954 = vmatpush.bf16.msra.mxu0 %v1158
        %1955 = vmatpush.bf16.msra.mxu0 %v1154
        %1956 = vmatpush.bf16.msra.mxu0 %v1150
        %1957 = vmatpush.bf16.msra.mxu0 %v1146
        %1958 = vmatpush.bf16.msra.mxu0 %v1142
        %1959 = vmatpush.bf16.msra.mxu0 %v1138
        %1960 = vmatpush.bf16.msra.mxu0 %v1134
        %1961 = vmatpush.bf16.msra.mxu0 %v1130
        %1962 = vmatmul.bf16.gmra.mxu0 %v739
        %v1963 = vpop.f32.mrf.mxu0
        %v1964 = vadd.f32 0.0, %v1963
        %v1965 = vpop.f32.mrf.mxu0
        %v1966 = vadd.f32 0.0, %v1965
        %1967 = vdwg.mxu0
        %1968 = vmatpush.bf16.msra.mxu0 %v1371
        %1969 = vmatpush.bf16.msra.mxu0 %v1367
        %1970 = vmatpush.bf16.msra.mxu0 %v1363
        %1971 = vmatpush.bf16.msra.mxu0 %v1359
        %1972 = vmatpush.bf16.msra.mxu0 %v1355
        %1973 = vmatpush.bf16.msra.mxu0 %v1351
        %1974 = vmatpush.bf16.msra.mxu0 %v1347
        %1975 = vmatpush.bf16.msra.mxu0 %v1343
        %1976 = vmatmul.bf16.gmra.mxu0 %v260
        %v1977 = vpop.f32.mrf.mxu0
        %v1978 = vadd.f32 %v1922, %v1977
        %v1979 = vpop.f32.mrf.mxu0
        %v1980 = vadd.f32 %v1924, %v1979
        %1981 = vdwg.mxu0
        %1982 = vmatpush.bf16.msra.mxu0 %v1372
        %1983 = vmatpush.bf16.msra.mxu0 %v1368
        %1984 = vmatpush.bf16.msra.mxu0 %v1364
        %1985 = vmatpush.bf16.msra.mxu0 %v1360
        %1986 = vmatpush.bf16.msra.mxu0 %v1356
        %1987 = vmatpush.bf16.msra.mxu0 %v1352
        %1988 = vmatpush.bf16.msra.mxu0 %v1348
        %1989 = vmatpush.bf16.msra.mxu0 %v1344
        %1990 = vmatmul.bf16.gmra.mxu0 %v260
        %v1991 = vpop.f32.mrf.mxu0
        %v1992 = vadd.f32 %v1936, %v1991
        %v1993 = vpop.f32.mrf.mxu0
        %v1994 = vadd.f32 %v1938, %v1993
        %1995 = vdwg.mxu0
        %1996 = vmatpush.bf16.msra.mxu0 %v1373
        %1997 = vmatpush.bf16.msra.mxu0 %v1369
        %1998 = vmatpush.bf16.msra.mxu0 %v1365
        %1999 = vmatpush.bf16.msra.mxu0 %v1361
        %2000 = vmatpush.bf16.msra.mxu0 %v1357
        %2001 = vmatpush.bf16.msra.mxu0 %v1353
        %2002 = vmatpush.bf16.msra.mxu0 %v1349
        %2003 = vmatpush.bf16.msra.mxu0 %v1345
        %2004 = vmatmul.bf16.gmra.mxu0 %v260
        %v2005 = vpop.f32.mrf.mxu0
        %v2006 = vadd.f32 %v1950, %v2005
        %v2007 = vpop.f32.mrf.mxu0
        %v2008 = vadd.f32 %v1952, %v2007
        %2009 = vdwg.mxu0
        %2010 = vmatpush.bf16.msra.mxu0 %v1374
        %2011 = vmatpush.bf16.msra.mxu0 %v1370
        %2012 = vmatpush.bf16.msra.mxu0 %v1366
        %2013 = vmatpush.bf16.msra.mxu0 %v1362
        %2014 = vmatpush.bf16.msra.mxu0 %v1358
        %2015 = vmatpush.bf16.msra.mxu0 %v1354
        %2016 = vmatpush.bf16.msra.mxu0 %v1350
        %2017 = vmatpush.bf16.msra.mxu0 %v1346
        %2018 = vmatmul.bf16.gmra.mxu0 %v260
        %v2019 = vpop.f32.mrf.mxu0
        %v2020 = vadd.f32 %v1964, %v2019
        %v2021 = vpop.f32.mrf.mxu0
        %v2022 = vadd.f32 %v1966, %v2021
        %2023 = vdwg.mxu0
        %2024 = vmatpush.bf16.msra.mxu0 %v1620
        %2025 = vmatpush.bf16.msra.mxu0 %v1616
        %2026 = vmatpush.bf16.msra.mxu0 %v1612
        %2027 = vmatpush.bf16.msra.mxu0 %v1608
        %2028 = vmatpush.bf16.msra.mxu0 %v1604
        %2029 = vmatpush.bf16.msra.mxu0 %v1600
        %2030 = vmatpush.bf16.msra.mxu0 %v1596
        %2031 = vmatpush.bf16.msra.mxu0 %v1592
        %2032 = vmatmul.bf16.gmra.mxu0 %v1846
        %v2033 = vpop.f32.mrf.mxu0
        %v2034 = vadd.f32 0.0, %v2033
        %v2035 = vpop.f32.mrf.mxu0
        %v2036 = vadd.f32 0.0, %v2035
        %2037 = vdwg.mxu0
        %2038 = vmatpush.bf16.msra.mxu0 %v1621
        %2039 = vmatpush.bf16.msra.mxu0 %v1617
        %2040 = vmatpush.bf16.msra.mxu0 %v1613
        %2041 = vmatpush.bf16.msra.mxu0 %v1609
        %2042 = vmatpush.bf16.msra.mxu0 %v1605
        %2043 = vmatpush.bf16.msra.mxu0 %v1601
        %2044 = vmatpush.bf16.msra.mxu0 %v1597
        %2045 = vmatpush.bf16.msra.mxu0 %v1593
        %2046 = vmatmul.bf16.gmra.mxu0 %v1846
        %v2047 = vpop.f32.mrf.mxu0
        %v2048 = vadd.f32 0.0, %v2047
        %v2049 = vpop.f32.mrf.mxu0
        %v2050 = vadd.f32 0.0, %v2049
        %2051 = vdwg.mxu0
        %2052 = vmatpush.bf16.msra.mxu0 %v1622
        %2053 = vmatpush.bf16.msra.mxu0 %v1618
        %2054 = vmatpush.bf16.msra.mxu0 %v1614
        %2055 = vmatpush.bf16.msra.mxu0 %v1610
        %2056 = vmatpush.bf16.msra.mxu0 %v1606
        %2057 = vmatpush.bf16.msra.mxu0 %v1602
        %2058 = vmatpush.bf16.msra.mxu0 %v1598
        %2059 = vmatpush.bf16.msra.mxu0 %v1594
        %2060 = vmatmul.bf16.gmra.mxu0 %v1846
        %v2061 = vpop.f32.mrf.mxu0
        %v2062 = vadd.f32 0.0, %v2061
        %v2063 = vpop.f32.mrf.mxu0
        %v2064 = vadd.f32 0.0, %v2063
        %2065 = vdwg.mxu0
        %2066 = vmatpush.bf16.msra.mxu0 %v1623
        %2067 = vmatpush.bf16.msra.mxu0 %v1619
        %2068 = vmatpush.bf16.msra.mxu0 %v1615
        %2069 = vmatpush.bf16.msra.mxu0 %v1611
        %2070 = vmatpush.bf16.msra.mxu0 %v1607
        %2071 = vmatpush.bf16.msra.mxu0 %v1603
        %2072 = vmatpush.bf16.msra.mxu0 %v1599
        %2073 = vmatpush.bf16.msra.mxu0 %v1595
        %2074 = vmatmul.bf16.gmra.mxu0 %v1846
        %v2075 = vpop.f32.mrf.mxu0
        %v2076 = vadd.f32 0.0, %v2075
        %v2077 = vpop.f32.mrf.mxu0
        %v2078 = vadd.f32 0.0, %v2077
        %2079 = vdwg.mxu0
        %v2080 = vadd.f32 %v1978, %v2034
        %v2081 = vadd.f32 %v1992, %v2048
        %v2082 = vadd.f32 %v2006, %v2062
        %v2083 = vadd.f32 %v2020, %v2076
        %v2084 = vadd.f32 %v1980, %v2036
        %v2085 = vadd.f32 %v1994, %v2050
        %v2086 = vadd.f32 %v2008, %v2064
        %v2087 = vadd.f32 %v2022, %v2078
        %v2088 = vmax.f32 %v1904, %v2080
        %v2089 = vmax.f32 %v1905, %v2081
        %v2090 = vmax.f32 %v1906, %v2082
        %v2091 = vmax.f32 %v1907, %v2083
        %v2092 = vmax.f32 %v1908, %v2084
        %v2093 = vmax.f32 %v1909, %v2085
        %v2094 = vmax.f32 %v1910, %v2086
        %v2095 = vmax.f32 %v1911, %v2087
        %v2096 = vmax.f32 %v1720, %v2088
        %v2097 = vmax.f32 %v1721, %v2089
        %v2098 = vmax.f32 %v1722, %v2090
        %v2099 = vmax.f32 %v1723, %v2091
        %v2100 = vmax.f32 %v1724, %v2092
        %v2101 = vmax.f32 %v1725, %v2093
        %v2102 = vmax.f32 %v1726, %v2094
        %v2103 = vmax.f32 %v1727, %v2095
        %v2104 = vld [vmem:[#allocation2] sm:$0xf]
        %v2106 = vperm.slane %v2104, 0
        %v2107 = vperm.slane %v2104, 1
        %v2108 = vperm.slane %v2104, 2
        %v2109 = vperm.slane %v2104, 3
        %v2114 = vadd.f32 %v2096, %v2106
        %v2115 = vadd.f32 %v2097, %v2107
        %v2116 = vadd.f32 %v2098, %v2108
        %v2117 = vadd.f32 %v2099, %v2109
        %v2118 = vadd.f32 %v2100, %v2106
        %v2119 = vadd.f32 %v2101, %v2107
        %v2120 = vadd.f32 %v2102, %v2108
        %v2121 = vadd.f32 %v2103, %v2109
        %v2122 = vmax.f32 %v2114, 0.0
        %v2123 = vmax.f32 %v2115, 0.0
        %v2124 = vmax.f32 %v2116, 0.0
        %v2125 = vmax.f32 %v2117, 0.0
        %v2126 = vmax.f32 %v2118, 0.0
        %v2127 = vmax.f32 %v2119, 0.0
        %v2128 = vmax.f32 %v2120, 0.0
        %v2129 = vmax.f32 %v2121, 0.0
        %v2130 = vpack.c.bf16 %v2123, %v2122
        %v2131 = vpack.c.bf16 %v2125, %v2124
        %v2132 = vpack.c.bf16 %v2127, %v2126
        %v2133 = vpack.c.bf16 %v2129, %v2128
        %2134 = vst [vmem:[%s185] sm:$0xff] 0
        %2135 = vst [vmem:[%s185 + $0x8] sm:$0xff] 0
        %2136 = vst [vmem:[%s185 + $0x10] sm:$0xff] 0
        %2137 = vst [vmem:[%s185 + $0x18] sm:$0xff] 0
        %2138 = vst [vmem:[%s185] sm:$0xff] %v2130
        %vm2139 = vcmask 1043456
        %vm2140 = vcmask 785412
        %vm2141 = vmor %vm2140, %vm2139
        %2142 = vst.msk [vmem:[%s185 + $0x8] sm:$0xff] %vm2141, %v2131
        %vm2143 = vcmask 1043456
        %vm2144 = vsmask.f32 3328
        %vm2145 = vmand %vm2143, %vm2144
        %vm2146 = vcmask 1047556
        %vm2147 = vsmask.f32 7424
        %vm2148 = vmand %vm2146, %vm2147
        %vm2149 = vmor %vm2148, %vm2145
        %v2150 = vld [vmem:[%s185 + $0x10] sm:$0xff]
        %v2151 = vsel %vm2149, %v2132, %v2150
        %2152 = vst [vmem:[%s185 + $0x10] sm:$0xff] %v2151
        %vm2153 = vcmask 785412
        %vm2154 = vmand %vm2153, %vm2147
        %vm2155 = vmor %vm2154, %vm2145
        %v2156 = vld [vmem:[%s185 + $0x18] sm:$0xff]
        %v2157 = vsel %vm2155, %v2133, %v2156
        %2158 = vst [vmem:[%s185 + $0x18] sm:$0xff] %v2157
        %p2159 = scmp.lt.s32.totalorder %s15, 1
        %s2160 = scalar_select %p2159, %s15, 1
        %s2161 = smul.addr %s2160, 8
        %s2162 = smul.addr %s2161, 4
        %s2163 = scalar_lea.vmem %s3, %s2162
        // Predicated region
        $region37: #{cnn_forward.3} parent=31 // pred_check
          %p2164 = pneg %p101
        $region38: #{cnn_forward.3} parent=31 // pred_check_branch
          %2166 = sbr.rel (%p2164) target = $region40
        $region39: #{cnn_forward.3} parent=31 // pred_region
          _
        $region40: #{cnn_forward.3} parent=31 // pred_fallthru
          _
      $region32: #{cnn_forward.3} parent=5 // pred_fallthru
        _
      %p2167 = scmp.le.s32.totalorder 2, %s10
      // Predicated region
      $region41: #{cnn_forward.3} parent=5 // pred_check
        %p2168 = pneg %p2167
      $region42: #{cnn_forward.3} parent=5 // pred_check_branch
        %2170 = sbr.rel (%p2168) target = $region44
      $region43: #{cnn_forward.3} parent=5 // pred_region
        %s2171 = ssub.s32 %s10, 2
        // Predicated region
        $region45: #{cnn_forward.3} parent=43 // pred_check
          %p2172 = pneg %p107
        $region46: #{cnn_forward.3} parent=43 // pred_check_branch
          %2174 = sbr.rel (%p2172) target = $region48
        $region47: #{cnn_forward.3} parent=43 // pred_region
          %p2175 = scmp.lt.s32.totalorder %s16, 1
          %s2176 = scalar_select %p2175, %s16, 1
          %s2177 = smul.addr %s2176, 8
          %s2178 = smul.addr %s2177, 4
          %s2179 = scalar_lea.vmem %s3, %s2178
        $region48: #{cnn_forward.3} parent=43 // pred_fallthru
          _
      $region44: #{cnn_forward.3} parent=5 // pred_fallthru
        _
    $region6: #{cnn_forward.3} parent=1 // loop_footer
      %s14 = sadd.s32 1, %s10
    $region7: #{cnn_forward.3} parent=1 // loop_footer_branch
      %9 = sbr.rel target = $region3
    $region8: #{cnn_forward.3} parent=1 // loop_exit
      _
    %2180 = vsyncpa [#allocation3], 1
    %s2181 = scalar_lea.sflag [#allocation3], 1
    %2182 = vsyncpa %s2181, 1

// kernel: cnn_forward.5
$region0: #{cnn_forward.5}
  #allocation0 [shape = 'u32[]', space=smem, size = 0x4, offset = 0x4, fixed_abs, tag = 'smem constant byte address 0x4 - core index']
  #allocation1 [shape = 'u32[72,128]{1,0:T(1,128)}', space=vmem, size = 0x9000, scoped, tag = 'internal scratch']
  %s0 = inlined_call_operand.vmem [shape: bf16[2,6,384], index: 0, kind: input, shape index: {}]
  %s1 = inlined_call_operand.hbm [shape: bf16[3,384,512], index: 1, kind: input, shape index: {}]
  %s2 = inlined_call_operand.hbm [shape: f32[1,512], index: 2, kind: input, shape index: {}]
  %s3 = inlined_call_operand.hbm [shape: bf16[4,512,128], index: 3, kind: input, shape index: {}]
  %s4 = inlined_call_operand.hbm [shape: f32[1,128], index: 4, kind: input, shape index: {}]
  %s5 = inlined_call_operand.hbm [shape: bf16[128,128], index: 5, kind: input, shape index: {}]
  %s6 = inlined_call_operand.hbm [shape: f32[1,128], index: 6, kind: input, shape index: {}]
  %s7 = inlined_call_operand.vmem [shape: f32[2,8,128], index: 7, kind: output, shape index: {}]
  %s8 = sld [smem:[#allocation0]]
  $region85: #{cnn_forward.5} parent=0
    _
  %s10 = ssub.s32 1, %s8
  %s11 = scalar_select 0, %s10, %s8
  $region1: #{cnn_forward.5} parent=0
    #allocation2 [shape = 'u8[1179648]{0}', space=vmem, size = 0x120000, scoped, tag = 'input window, operand 1, single buffered']
    #allocation3 [shape = 's32[2]{0}', space=sflag, size = 0x8, scoped, tag = 'scoped memory for cnn_forward.5']
    #allocation4 [shape = 'u8[2048]{0}', space=vmem, size = 0x800, scoped, tag = 'input window, operand 2, single buffered']
    #allocation5 [shape = 's32[1]{0}', space=sflag, size = 0x4, scoped, tag = 'scoped memory for cnn_forward.5']
    #allocation6 [shape = 'u8[524288]{0}', space=vmem, size = 0x80000, scoped, tag = 'input window, operand 3, single buffered']
    #allocation7 [shape = 'u8[512]{0}', space=vmem, size = 0x400, scoped, tag = 'input window, operand 4, single buffered']
    #allocation8 [shape = 's32[1]{0}', space=sflag, size = 0x4, scoped, tag = 'scoped memory for cnn_forward.5']
    #allocation9 [shape = 'u8[32768]{0}', space=vmem, size = 0x8000, scoped, tag = 'input window, operand 5, single buffered']
    #allocation10 [shape = 'u8[512]{0}', space=vmem, size = 0x400, scoped, tag = 'input window, operand 6, single buffered']
    #allocation11 [shape = 's32[1]{0}', space=sflag, size = 0x4, scoped, tag = 'scoped memory for cnn_forward.5']
    %12 = vsyncpa [#allocation3], 0
    %13 = vsyncpa [#allocation5], 0
    %14 = vsyncpa [#allocation8], 0
    %15 = vsyncpa [#allocation11], 0
    loop: start=0, step=1, limit=4
    $region2: #{cnn_forward.5} parent=1 // loop_pre_header
      _
    $region3: #{cnn_forward.5} parent=1 // loop_header
      %s17 = sphi 0, %s21
      %p18 = scmp.ge.s32.totalorder %s17, 4
      %s27 = sphi 0, %s29
      %s30 = sphi 0, %s27
      %s31 = sphi 0, %s30
      %s47 = sphi 0, %s31
      %s51 = sphi 0, %s51
      %s53 = sphi 0, %s51
      %s54 = sphi 0, %s53
      %s68 = sphi 0, %s54
      %s72 = sphi 0, %s72
      %s74 = sphi 0, %s72
      %s75 = sphi 0, %s74
      %s89 = sphi 0, %s75
      %s93 = sphi 0, %s93
      %s95 = sphi 0, %s93
      %s96 = sphi 0, %s95
      %s110 = sphi 0, %s96
      %s114 = sphi 0, %s114
      %s116 = sphi 0, %s114
      %s117 = sphi 0, %s116
      %s131 = sphi 0, %s117
      %s135 = sphi 0, %s135
      %s137 = sphi 0, %s135
      %s138 = sphi 0, %s137
      %s152 = sphi 0, %s138
      %s156 = sphi 0, %s156
      %s158 = sphi 0, %s156
      %s159 = sphi 0, %s158
      %s173 = sphi 0, %s159
      %s179 = sphi 0, %s181
      %s182 = sphi 0, %s179
      %s183 = sphi 0, %s182
      %s199 = sphi 0, %s183
    $region4: #{cnn_forward.5} parent=1 // loop_header_branch
      %20 = sbr.rel (%p18) target = $region8
    $region5: #{cnn_forward.5} parent=1 // loop_body
      %s22 = ssub.s32 %s17, 1
      %s23 = ssub.s32 %s17, 2
      %s24 = sadd.s32 %s17, 1
      %s25 = ssub.s32 %s17, %s24
      %p26 = scmp.eq.s32.totalorder %s25, 0
      %s28 = sadd.s32 %s27, 1
      %s29 = scalar_select %p26, %s27, %s28
      %p32 = pneg %p26
      %p33 = scmp.eq.s32.totalorder %s17, 1
      %p34 = por %p32, %p33
      %p35 = scmp.ne.s32.totalorder %s27, %s30
      %p36 = scmp.eq.s32.totalorder %s17, 0
      %p37 = por %p35, %p36
      %p38 = scmp.ne.s32.totalorder %s27, %s30
      %p39 = scmp.eq.s32.totalorder %s22, 1
      %p40 = por %p38, %p39
      %p41 = scmp.ne.s32.totalorder %s30, %s31
      %p42 = scmp.eq.s32.totalorder %s22, 0
      %p43 = por %p41, %p42
      %p44 = scmp.ne.s32.totalorder %s30, %s31
      %p45 = scmp.eq.s32.totalorder %s23, 1
      %p46 = por %p44, %p45
      %p48 = scmp.ne.s32.totalorder %s31, %s47
      %p49 = scmp.eq.s32.totalorder %s23, 0
      %p50 = por %p48, %p49
      %s52 = sadd.s32 %s51, 1
      %p55 = scmp.eq.s32.totalorder %s17, 1
      %p56 = scmp.ne.s32.totalorder %s51, %s53
      %p57 = scmp.eq.s32.totalorder %s17, 0
      %p58 = por %p56, %p57
      %p59 = scmp.ne.s32.totalorder %s51, %s53
      %p60 = scmp.eq.s32.totalorder %s22, 1
      %p61 = por %p59, %p60
      %p62 = scmp.ne.s32.totalorder %s53, %s54
      %p63 = scmp.eq.s32.totalorder %s22, 0
      %p64 = por %p62, %p63
      %p65 = scmp.ne.s32.totalorder %s53, %s54
      %p66 = scmp.eq.s32.totalorder %s23, 1
      %p67 = por %p65, %p66
      %p69 = scmp.ne.s32.totalorder %s54, %s68
      %p70 = scmp.eq.s32.totalorder %s23, 0
      %p71 = por %p69, %p70
      %s73 = sadd.s32 %s72, 1
      %p76 = scmp.eq.s32.totalorder %s17, 1
      %p77 = scmp.ne.s32.totalorder %s72, %s74
      %p78 = scmp.eq.s32.totalorder %s17, 0
      %p79 = por %p77, %p78
      %p80 = scmp.ne.s32.totalorder %s72, %s74
      %p81 = scmp.eq.s32.totalorder %s22, 1
      %p82 = por %p80, %p81
      %p83 = scmp.ne.s32.totalorder %s74, %s75
      %p84 = scmp.eq.s32.totalorder %s22, 0
      %p85 = por %p83, %p84
      %p86 = scmp.ne.s32.totalorder %s74, %s75
      %p87 = scmp.eq.s32.totalorder %s23, 1
      %p88 = por %p86, %p87
      %p90 = scmp.ne.s32.totalorder %s75, %s89
      %p91 = scmp.eq.s32.totalorder %s23, 0
      %p92 = por %p90, %p91
      %s94 = sadd.s32 %s93, 1
      %p97 = scmp.eq.s32.totalorder %s17, 1
      %p98 = scmp.ne.s32.totalorder %s93, %s95
      %p99 = scmp.eq.s32.totalorder %s17, 0
      %p100 = por %p98, %p99
      %p101 = scmp.ne.s32.totalorder %s93, %s95
      %p102 = scmp.eq.s32.totalorder %s22, 1
      %p103 = por %p101, %p102
      %p104 = scmp.ne.s32.totalorder %s95, %s96
      %p105 = scmp.eq.s32.totalorder %s22, 0
      %p106 = por %p104, %p105
      %p107 = scmp.ne.s32.totalorder %s95, %s96
      %p108 = scmp.eq.s32.totalorder %s23, 1
      %p109 = por %p107, %p108
      %p111 = scmp.ne.s32.totalorder %s96, %s110
      %p112 = scmp.eq.s32.totalorder %s23, 0
      %p113 = por %p111, %p112
      %s115 = sadd.s32 %s114, 1
      %p118 = scmp.eq.s32.totalorder %s17, 1
      %p119 = scmp.ne.s32.totalorder %s114, %s116
      %p120 = scmp.eq.s32.totalorder %s17, 0
      %p121 = por %p119, %p120
      %p122 = scmp.ne.s32.totalorder %s114, %s116
      %p123 = scmp.eq.s32.totalorder %s22, 1
      %p124 = por %p122, %p123
      %p125 = scmp.ne.s32.totalorder %s116, %s117
      %p126 = scmp.eq.s32.totalorder %s22, 0
      %p127 = por %p125, %p126
      %p128 = scmp.ne.s32.totalorder %s116, %s117
      %p129 = scmp.eq.s32.totalorder %s23, 1
      %p130 = por %p128, %p129
      %p132 = scmp.ne.s32.totalorder %s117, %s131
      %p133 = scmp.eq.s32.totalorder %s23, 0
      %p134 = por %p132, %p133
      %s136 = sadd.s32 %s135, 1
      %p139 = scmp.eq.s32.totalorder %s17, 1
      %p140 = scmp.ne.s32.totalorder %s135, %s137
      %p141 = scmp.eq.s32.totalorder %s17, 0
      %p142 = por %p140, %p141
      %p143 = scmp.ne.s32.totalorder %s135, %s137
      %p144 = scmp.eq.s32.totalorder %s22, 1
      %p145 = por %p143, %p144
      %p146 = scmp.ne.s32.totalorder %s137, %s138
      %p147 = scmp.eq.s32.totalorder %s22, 0
      %p148 = por %p146, %p147
      %p149 = scmp.ne.s32.totalorder %s137, %s138
      %p150 = scmp.eq.s32.totalorder %s23, 1
      %p151 = por %p149, %p150
      %p153 = scmp.ne.s32.totalorder %s138, %s152
      %p154 = scmp.eq.s32.totalorder %s23, 0
      %p155 = por %p153, %p154
      %s157 = sadd.s32 %s156, 1
      %p160 = scmp.eq.s32.totalorder %s17, 1
      %p161 = scmp.ne.s32.totalorder %s156, %s158
      %p162 = scmp.eq.s32.totalorder %s17, 0
      %p163 = por %p161, %p162
      %p164 = scmp.ne.s32.totalorder %s156, %s158
      %p165 = scmp.eq.s32.totalorder %s22, 1
      %p166 = por %p164, %p165
      %p167 = scmp.ne.s32.totalorder %s158, %s159
      %p168 = scmp.eq.s32.totalorder %s22, 0
      %p169 = por %p167, %p168
      %p170 = scmp.ne.s32.totalorder %s158, %s159
      %p171 = scmp.eq.s32.totalorder %s23, 1
      %p172 = por %p170, %p171
      %p174 = scmp.ne.s32.totalorder %s159, %s173
      %p175 = scmp.eq.s32.totalorder %s23, 0
      %p176 = por %p174, %p175
      %s177 = ssub.s32 %s17, %s24
      %p178 = scmp.eq.s32.totalorder %s177, 0
      %s180 = sadd.s32 %s179, 1
      %s181 = scalar_select %p178, %s179, %s180
      %p184 = pneg %p178
      %p185 = scmp.eq.s32.totalorder %s17, 1
      %p186 = por %p184, %p185
      %p187 = scmp.ne.s32.totalorder %s179, %s182
      %p188 = scmp.eq.s32.totalorder %s17, 0
      %p189 = por %p187, %p188
      %p190 = scmp.ne.s32.totalorder %s179, %s182
      %p191 = scmp.eq.s32.totalorder %s22, 1
      %p192 = por %p190, %p191
      %p193 = scmp.ne.s32.totalorder %s182, %s183
      %p194 = scmp.eq.s32.totalorder %s22, 0
      %p195 = por %p193, %p194
      %p196 = scmp.ne.s32.totalorder %s182, %s183
      %p197 = scmp.eq.s32.totalorder %s23, 1
      %p198 = por %p196, %p197
      %p200 = scmp.ne.s32.totalorder %s183, %s199
      %p201 = scmp.eq.s32.totalorder %s23, 0
      %p202 = por %p200, %p201
      %p203 = scmp.le.s32.totalorder 1, %s17
      %p204 = scmp.lt.s32.totalorder %s17, 3
      %p205 = pnand %p203, %p204
      %p206 = pneg %p205
      // Predicated region
      $region9: #{cnn_forward.5} parent=5 // pred_check
        _
      $region10: #{cnn_forward.5} parent=5 // pred_check_branch
        %208 = sbr.rel (%p205) target = $region12
      $region11: #{cnn_forward.5} parent=5 // pred_region
        %s209 = ssub.s32 %s17, 1
        // Predicated region
        $region13: #{cnn_forward.5} parent=11 // pred_check
          %p210 = pneg %p64
        $region14: #{cnn_forward.5} parent=11 // pred_check_branch
          %212 = sbr.rel (%p210) target = $region16
        $region15: #{cnn_forward.5} parent=11 // pred_region
          %214 = vsyncadd [#allocation3], 0
          %s215 = sshll.u32 %s1, 4
          %s216 = int_to_ptr.hbm [resolvable:$true] %s215
          %s217 = sshll.u32 [#allocation2], 4
          %s218 = int_to_ptr.vmem [resolvable:$true] %s217
          %223 = dma.hbm_to_vmem [thread:$0]  %s216, 36864, %s218, [#allocation3], 256, 256, 16
        $region16: #{cnn_forward.5} parent=11 // pred_fallthru
          _
        // Predicated region
        $region17: #{cnn_forward.5} parent=11 // pred_check
          %p224 = pneg %p85
        $region18: #{cnn_forward.5} parent=11 // pred_check_branch
          %226 = sbr.rel (%p224) target = $region20
        $region19: #{cnn_forward.5} parent=11 // pred_region
          %228 = vsyncadd [#allocation5], 0
          %s230 = sshll.u32 %s2, 4
          %s231 = int_to_ptr.hbm [resolvable:$true] %s230
          %s232 = sshll.u32 [#allocation4], 4
          %s233 = int_to_ptr.vmem [resolvable:$true] %s232
          %235 = dma.hbm_to_vmem [thread:$0]  %s231, 64, %s233, [#allocation5]
        $region20: #{cnn_forward.5} parent=11 // pred_fallthru
          _
        // Predicated region
        $region21: #{cnn_forward.5} parent=11 // pred_check
          %p236 = pneg %p106
        $region22: #{cnn_forward.5} parent=11 // pred_check_branch
          %238 = sbr.rel (%p236) target = $region24
        $region23: #{cnn_forward.5} parent=11 // pred_region
          %240 = vsyncadd [#allocation5], 0
          %s241 = sshll.u32 %s3, 4
          %s242 = int_to_ptr.hbm [resolvable:$true] %s241
          %s243 = sshll.u32 [#allocation6], 4
          %s244 = int_to_ptr.vmem [resolvable:$true] %s243
          %249 = dma.hbm_to_vmem [thread:$0]  %s242, 16384, %s244, [#allocation5], 64, 64, 4
        $region24: #{cnn_forward.5} parent=11 // pred_fallthru
          _
        // Predicated region
        $region25: #{cnn_forward.5} parent=11 // pred_check
          %p250 = pneg %p127
        $region26: #{cnn_forward.5} parent=11 // pred_check_branch
          %252 = sbr.rel (%p250) target = $region28
        $region27: #{cnn_forward.5} parent=11 // pred_region
          %254 = vsyncadd [#allocation8], 0
          %s256 = sshll.u32 %s4, 4
          %s257 = int_to_ptr.hbm [resolvable:$true] %s256
          %s258 = sshll.u32 [#allocation7], 4
          %s259 = int_to_ptr.vmem [resolvable:$true] %s258
          %261 = dma.hbm_to_vmem [thread:$0]  %s257, 16, %s259, [#allocation8]
        $region28: #{cnn_forward.5} parent=11 // pred_fallthru
          _
        // Predicated region
        $region29: #{cnn_forward.5} parent=11 // pred_check
          %p262 = pneg %p148
        $region30: #{cnn_forward.5} parent=11 // pred_check_branch
          %264 = sbr.rel (%p262) target = $region32
        $region31: #{cnn_forward.5} parent=11 // pred_region
          %266 = vsyncadd [#allocation8], 0
          %s267 = sshll.u32 %s5, 4
          %s268 = int_to_ptr.hbm [resolvable:$true] %s267
          %s269 = sshll.u32 [#allocation9], 4
          %s270 = int_to_ptr.vmem [resolvable:$true] %s269
          %275 = dma.hbm_to_vmem [thread:$0]  %s268, 1024, %s270, [#allocation8], 64, 64, 4
        $region32: #{cnn_forward.5} parent=11 // pred_fallthru
          _
        // Predicated region
        $region33: #{cnn_forward.5} parent=11 // pred_check
          %p276 = pneg %p169
        $region34: #{cnn_forward.5} parent=11 // pred_check_branch
          %278 = sbr.rel (%p276) target = $region36
        $region35: #{cnn_forward.5} parent=11 // pred_region
          %280 = vsyncadd [#allocation11], 0
          %s282 = sshll.u32 %s6, 4
          %s283 = int_to_ptr.hbm [resolvable:$true] %s282
          %s284 = sshll.u32 [#allocation10], 4
          %s285 = int_to_ptr.vmem [resolvable:$true] %s284
          %287 = dma.hbm_to_vmem [thread:$0]  %s283, 16, %s285, [#allocation11]
        $region36: #{cnn_forward.5} parent=11 // pred_fallthru
          _
      $region12: #{cnn_forward.5} parent=5 // pred_fallthru
        _
      %p288 = scmp.lt.s32.totalorder %s17, 2
      // Predicated region
      $region37: #{cnn_forward.5} parent=5 // pred_check
        %p289 = pneg %p288
      $region38: #{cnn_forward.5} parent=5 // pred_check_branch
        %291 = sbr.rel (%p289) target = $region40
      $region39: #{cnn_forward.5} parent=5 // pred_region
        // Predicated region
        $region41: #{cnn_forward.5} parent=39 // pred_check
          %p292 = pneg %p37
        $region42: #{cnn_forward.5} parent=39 // pred_check_branch
          %294 = sbr.rel (%p292) target = $region44
        $region43: #{cnn_forward.5} parent=39 // pred_region
          %p295 = scmp.lt.s32.totalorder %s17, 1
          %s296 = scalar_select %p295, %s17, 1
          %s297 = smul.addr %s296, 3
          %s298 = smul.addr %s297, 4
          %s299 = scalar_lea.vmem %s0, %s298
        $region44: #{cnn_forward.5} parent=39 // pred_fallthru
          _
      $region40: #{cnn_forward.5} parent=5 // pred_fallthru
        _
      %p300 = scmp.le.s32.totalorder 1, %s17
      %p301 = scmp.lt.s32.totalorder %s17, 3
      %p302 = pnand %p300, %p301
      %p303 = pneg %p302
      // Predicated region
      $region45: #{cnn_forward.5} parent=5 // pred_check
        _
      $region46: #{cnn_forward.5} parent=5 // pred_check_branch
        %305 = sbr.rel (%p302) target = $region48
      $region47: #{cnn_forward.5} parent=5 // pred_region
        %s306 = ssub.s32 %s17, 1
        // Predicated region
        $region49: #{cnn_forward.5} parent=47 // pred_check
          %p307 = pneg %p64
        $region50: #{cnn_forward.5} parent=47 // pred_check_branch
          %309 = sbr.rel (%p307) target = $region52
        $region51: #{cnn_forward.5} parent=47 // pred_region
          %311 = dma.done [#allocation3], 36864
        $region52: #{cnn_forward.5} parent=47 // pred_fallthru
          _
        // Predicated region
        $region53: #{cnn_forward.5} parent=47 // pred_check
          %p312 = pneg %p85
        $region54: #{cnn_forward.5} parent=47 // pred_check_branch
          %314 = sbr.rel (%p312) target = $region56
        $region55: #{cnn_forward.5} parent=47 // pred_region
          %316 = dma.done [#allocation5], 64
        $region56: #{cnn_forward.5} parent=47 // pred_fallthru
          _
        // Predicated region
        $region57: #{cnn_forward.5} parent=47 // pred_check
          %p317 = pneg %p106
        $region58: #{cnn_forward.5} parent=47 // pred_check_branch
          %319 = sbr.rel (%p317) target = $region60
        $region59: #{cnn_forward.5} parent=47 // pred_region
          %321 = dma.done [#allocation5], 16384
        $region60: #{cnn_forward.5} parent=47 // pred_fallthru
          _
        // Predicated region
        $region61: #{cnn_forward.5} parent=47 // pred_check
          %p322 = pneg %p127
        $region62: #{cnn_forward.5} parent=47 // pred_check_branch
          %324 = sbr.rel (%p322) target = $region64
        $region63: #{cnn_forward.5} parent=47 // pred_region
          %326 = dma.done [#allocation8], 16
        $region64: #{cnn_forward.5} parent=47 // pred_fallthru
          _
        // Predicated region
        $region65: #{cnn_forward.5} parent=47 // pred_check
          %p327 = pneg %p148
        $region66: #{cnn_forward.5} parent=47 // pred_check_branch
          %329 = sbr.rel (%p327) target = $region68
        $region67: #{cnn_forward.5} parent=47 // pred_region
          %331 = dma.done [#allocation8], 1024
        $region68: #{cnn_forward.5} parent=47 // pred_fallthru
          _
        // Predicated region
        $region69: #{cnn_forward.5} parent=47 // pred_check
          %p332 = pneg %p169
        $region70: #{cnn_forward.5} parent=47 // pred_check_branch
          %334 = sbr.rel (%p332) target = $region72
        $region71: #{cnn_forward.5} parent=47 // pred_region
          %336 = dma.done [#allocation11], 16
        $region72: #{cnn_forward.5} parent=47 // pred_fallthru
          _
        %p337 = scmp.lt.s32.totalorder %s22, 1
        %s338 = scalar_select %p337, %s22, 1
        %s339 = smul.addr %s338, 3
        %s340 = smul.addr %s339, 4
        %s341 = scalar_lea.vmem %s0, %s340
        %p342 = pneg %p43
        %p343 = pneg %p40
        %p344 = pneg %p64
        %p345 = pneg %p61
        %p346 = pneg %p85
        %p347 = pneg %p82
        %p348 = pneg %p106
        %p349 = pneg %p103
        %p350 = pneg %p127
        %p351 = pneg %p124
        %p352 = pneg %p148
        %p353 = pneg %p145
        %p354 = pneg %p169
        %p355 = pneg %p166
        %p356 = pneg %p195
        %p357 = pneg %p192
        %p358 = scmp.lt.s32.totalorder %s22, 1
        %s359 = scalar_select %p358, %s22, 1
        %s360 = smul.addr %s359, 8
        %s361 = scalar_lea.vmem %s7, %s360
        %p362 = scmp.lt.s32.totalorder %s22, 1
        %s363 = scalar_select %p362, %s22, 1
        %s364 = smul.addr %s363, 3
        %s365 = smul.addr %s364, 4
        %s366 = scalar_lea.vmem %s0, %s365
        %p367 = scmp.lt.s32.totalorder %s22, 1
        %s368 = scalar_select %p367, %s22, 1
        %s369 = smul.addr %s368, 8
        %s370 = scalar_lea.vmem %s7, %s369
        %v371 = vld [vmem:[%s366] sm:$0x33]
        %v372 = vld [vmem:[%s366 + $0x8] sm:$0x3]
        %v373 = vld [vmem:[#allocation2] sm:$0xff]
        %v374 = vld [vmem:[#allocation2 + $0x8] sm:$0xff]
        %v375 = vld [vmem:[#allocation2 + $0x10] sm:$0xff]
        %v376 = vld [vmem:[#allocation2 + $0x18] sm:$0xff]
        %v377 = vld [vmem:[#allocation2 + $0x20] sm:$0xff]
        %v378 = vld [vmem:[#allocation2 + $0x28] sm:$0xff]
        %v379 = vld [vmem:[#allocation2 + $0x30] sm:$0xff]
        %v380 = vld [vmem:[#allocation2 + $0x38] sm:$0xff]
        %v381 = vld [vmem:[#allocation2 + $0x40] sm:$0xff]
        %v382 = vld [vmem:[#allocation2 + $0x48] sm:$0xff]
        %v383 = vld [vmem:[#allocation2 + $0x50] sm:$0xff]
        %v384 = vld [vmem:[#allocation2 + $0x58] sm:$0xff]
        %v385 = vld [vmem:[#allocation2 + $0x60] sm:$0xff]
        %v386 = vld [vmem:[#allocation2 + $0x68] sm:$0xff]
        %v387 = vld [vmem:[#allocation2 + $0x70] sm:$0xff]
        %v388 = vld [vmem:[#allocation2 + $0x78] sm:$0xff]
        %v389 = vld [vmem:[#allocation2 + $0x80] sm:$0xff]
        %v390 = vld [vmem:[#allocation2 + $0x88] sm:$0xff]
        %v391 = vld [vmem:[#allocation2 + $0x90] sm:$0xff]
        %v392 = vld [vmem:[#allocation2 + $0x98] sm:$0xff]
        %v393 = vld [vmem:[#allocation2 + $0xa0] sm:$0xff]
        %v394 = vld [vmem:[#allocation2 + $0xa8] sm:$0xff]
        %v395 = vld [vmem:[#allocation2 + $0xb0] sm:$0xff]
        %v396 = vld [vmem:[#allocation2 + $0xb8] sm:$0xff]
        %v397 = vld [vmem:[#allocation2 + $0xc0] sm:$0xff]
        %v398 = vld [vmem:[#allocation2 + $0xc8] sm:$0xff]
        %v399 = vld [vmem:[#allocation2 + $0xd0] sm:$0xff]
        %v400 = vld [vmem:[#allocation2 + $0xd8] sm:$0xff]
        %v401 = vld [vmem:[#allocation2 + $0xe0] sm:$0xff]
        %v402 = vld [vmem:[#allocation2 + $0xe8] sm:$0xff]
        %v403 = vld [vmem:[#allocation2 + $0xf0] sm:$0xff]
        %v404 = vld [vmem:[#allocation2 + $0xf8] sm:$0xff]
        %v405 = vld [vmem:[#allocation2 + $0x100] sm:$0xff]
        %v406 = vld [vmem:[#allocation2 + $0x108] sm:$0xff]
        %v407 = vld [vmem:[#allocation2 + $0x110] sm:$0xff]
        %v408 = vld [vmem:[#allocation2 + $0x118] sm:$0xff]
        %v409 = vld [vmem:[#allocation2 + $0x120] sm:$0xff]
        %v410 = vld [vmem:[#allocation2 + $0x128] sm:$0xff]
        %v411 = vld [vmem:[#allocation2 + $0x130] sm:$0xff]
        %v412 = vld [vmem:[#allocation2 + $0x138] sm:$0xff]
        %v413 = vld [vmem:[#allocation2 + $0x140] sm:$0xff]
        %v414 = vld [vmem:[#allocation2 + $0x148] sm:$0xff]
        %v415 = vld [vmem:[#allocation2 + $0x150] sm:$0xff]
        %v416 = vld [vmem:[#allocation2 + $0x158] sm:$0xff]
        %v417 = vld [vmem:[#allocation2 + $0x160] sm:$0xff]
        %v418 = vld [vmem:[#allocation2 + $0x168] sm:$0xff]
        %v419 = vld [vmem:[#allocation2 + $0x170] sm:$0xff]
        %v420 = vld [vmem:[#allocation2 + $0x178] sm:$0xff]
        %v421 = vld [vmem:[#allocation2 + $0x180] sm:$0xff]
        %v422 = vld [vmem:[#allocation2 + $0x188] sm:$0xff]
        %v423 = vld [vmem:[#allocation2 + $0x190] sm:$0xff]
        %v424 = vld [vmem:[#allocation2 + $0x198] sm:$0xff]
        %v425 = vld [vmem:[#allocation2 + $0x1a0] sm:$0xff]
        %v426 = vld [vmem:[#allocation2 + $0x1a8] sm:$0xff]
        %v427 = vld [vmem:[#allocation2 + $0x1b0] sm:$0xff]
        %v428 = vld [vmem:[#allocation2 + $0x1b8] sm:$0xff]
        %v429 = vld [vmem:[#allocation2 + $0x1c0] sm:$0xff]
        %v430 = vld [vmem:[#allocation2 + $0x1c8] sm:$0xff]
        %v431 = vld [vmem:[#allocation2 + $0x1d0] sm:$0xff]
        %v432 = vld [vmem:[#allocation2 + $0x1d8] sm:$0xff]
        %v433 = vld [vmem:[#allocation2 + $0x1e0] sm:$0xff]
        %v434 = vld [vmem:[#allocation2 + $0x1e8] sm:$0xff]
        %v435 = vld [vmem:[#allocation2 + $0x1f0] sm:$0xff]
        %v436 = vld [vmem:[#allocation2 + $0x1f8] sm:$0xff]
        %v437 = vld [vmem:[#allocation2 + $0x200] sm:$0xff]
        %v438 = vld [vmem:[#allocation2 + $0x208] sm:$0xff]
        %v439 = vld [vmem:[#allocation2 + $0x210] sm:$0xff]
        %v440 = vld [vmem:[#allocation2 + $0x218] sm:$0xff]
        %v441 = vld [vmem:[#allocation2 + $0x220] sm:$0xff]
        %v442 = vld [vmem:[#allocation2 + $0x228] sm:$0xff]
        %v443 = vld [vmem:[#allocation2 + $0x230] sm:$0xff]
        %v444 = vld [vmem:[#allocation2 + $0x238] sm:$0xff]
        %v445 = vld [vmem:[#allocation2 + $0x240] sm:$0xff]
        %v446 = vld [vmem:[#allocation2 + $0x248] sm:$0xff]
        %v447 = vld [vmem:[#allocation2 + $0x250] sm:$0xff]
        %v448 = vld [vmem:[#allocation2 + $0x258] sm:$0xff]
        %v449 = vld [vmem:[#allocation2 + $0x260] sm:$0xff]
        %v450 = vld [vmem:[#allocation2 + $0x268] sm:$0xff]
        %v451 = vld [vmem:[#allocation2 + $0x270] sm:$0xff]
        %v452 = vld [vmem:[#allocation2 + $0x278] sm:$0xff]
        %v453 = vld [vmem:[#allocation2 + $0x280] sm:$0xff]
        %v454 = vld [vmem:[#allocation2 + $0x288] sm:$0xff]
        %v455 = vld [vmem:[#allocation2 + $0x290] sm:$0xff]
        %v456 = vld [vmem:[#allocation2 + $0x298] sm:$0xff]
        %v457 = vld [vmem:[#allocation2 + $0x2a0] sm:$0xff]
        %v458 = vld [vmem:[#allocation2 + $0x2a8] sm:$0xff]
        %v459 = vld [vmem:[#allocation2 + $0x2b0] sm:$0xff]
        %v460 = vld [vmem:[#allocation2 + $0x2b8] sm:$0xff]
        %v461 = vld [vmem:[#allocation2 + $0x2c0] sm:$0xff]
        %v462 = vld [vmem:[#allocation2 + $0x2c8] sm:$0xff]
        %v463 = vld [vmem:[#allocation2 + $0x2d0] sm:$0xff]
        %v464 = vld [vmem:[#allocation2 + $0x2d8] sm:$0xff]
        %v465 = vld [vmem:[#allocation2 + $0x2e0] sm:$0xff]
        %v466 = vld [vmem:[#allocation2 + $0x2e8] sm:$0xff]
        %v467 = vld [vmem:[#allocation2 + $0x2f0] sm:$0xff]
        %v468 = vld [vmem:[#allocation2 + $0x2f8] sm:$0xff]
        %v469 = vld [vmem:[%s366] sm:$0x77]
        %v470 = vld [vmem:[%s366 + $0x8] sm:$0x7]
        %s471 = scalar_lea.vmem [#allocation2], 768
        %v472 = vld [vmem:[%s471] sm:$0xff]
        %v473 = vld [vmem:[%s471 + $0x8] sm:$0xff]
        %v474 = vld [vmem:[%s471 + $0x10] sm:$0xff]
        %v475 = vld [vmem:[%s471 + $0x18] sm:$0xff]
        %v476 = vld [vmem:[%s471 + $0x20] sm:$0xff]
        %v477 = vld [vmem:[%s471 + $0x28] sm:$0xff]
        %v478 = vld [vmem:[%s471 + $0x30] sm:$0xff]
        %v479 = vld [vmem:[%s471 + $0x38] sm:$0xff]
        %v480 = vld [vmem:[%s471 + $0x40] sm:$0xff]
        %v481 = vld [vmem:[%s471 + $0x48] sm:$0xff]
        %v482 = vld [vmem:[%s471 + $0x50] sm:$0xff]
        %v483 = vld [vmem:[%s471 + $0x58] sm:$0xff]
        %v484 = vld [vmem:[%s471 + $0x60] sm:$0xff]
        %v485 = vld [vmem:[%s471 + $0x68] sm:$0xff]
        %v486 = vld [vmem:[%s471 + $0x70] sm:$0xff]
        %v487 = vld [vmem:[%s471 + $0x78] sm:$0xff]
        %v488 = vld [vmem:[%s471 + $0x80] sm:$0xff]
        %v489 = vld [vmem:[%s471 + $0x88] sm:$0xff]
        %v490 = vld [vmem:[%s471 + $0x90] sm:$0xff]
        %v491 = vld [vmem:[%s471 + $0x98] sm:$0xff]
        %v492 = vld [vmem:[%s471 + $0xa0] sm:$0xff]
        %v493 = vld [vmem:[%s471 + $0xa8] sm:$0xff]
        %v494 = vld [vmem:[%s471 + $0xb0] sm:$0xff]
        %v495 = vld [vmem:[%s471 + $0xb8] sm:$0xff]
        %v496 = vld [vmem:[%s471 + $0xc0] sm:$0xff]
        %v497 = vld [vmem:[%s471 + $0xc8] sm:$0xff]
        %v498 = vld [vmem:[%s471 + $0xd0] sm:$0xff]
        %v499 = vld [vmem:[%s471 + $0xd8] sm:$0xff]
        %v500 = vld [vmem:[%s471 + $0xe0] sm:$0xff]
        %v501 = vld [vmem:[%s471 + $0xe8] sm:$0xff]
        %v502 = vld [vmem:[%s471 + $0xf0] sm:$0xff]
        %v503 = vld [vmem:[%s471 + $0xf8] sm:$0xff]
        %v504 = vld [vmem:[%s471 + $0x100] sm:$0xff]
        %v505 = vld [vmem:[%s471 + $0x108] sm:$0xff]
        %v506 = vld [vmem:[%s471 + $0x110] sm:$0xff]
        %v507 = vld [vmem:[%s471 + $0x118] sm:$0xff]
        %v508 = vld [vmem:[%s471 + $0x120] sm:$0xff]
        %v509 = vld [vmem:[%s471 + $0x128] sm:$0xff]
        %v510 = vld [vmem:[%s471 + $0x130] sm:$0xff]
        %v511 = vld [vmem:[%s471 + $0x138] sm:$0xff]
        %v512 = vld [vmem:[%s471 + $0x140] sm:$0xff]
        %v513 = vld [vmem:[%s471 + $0x148] sm:$0xff]
        %v514 = vld [vmem:[%s471 + $0x150] sm:$0xff]
        %v515 = vld [vmem:[%s471 + $0x158] sm:$0xff]
        %v516 = vld [vmem:[%s471 + $0x160] sm:$0xff]
        %v517 = vld [vmem:[%s471 + $0x168] sm:$0xff]
        %v518 = vld [vmem:[%s471 + $0x170] sm:$0xff]
        %v519 = vld [vmem:[%s471 + $0x178] sm:$0xff]
        %v520 = vld [vmem:[%s471 + $0x180] sm:$0xff]
        %v521 = vld [vmem:[%s471 + $0x188] sm:$0xff]
        %v522 = vld [vmem:[%s471 + $0x190] sm:$0xff]
        %v523 = vld [vmem:[%s471 + $0x198] sm:$0xff]
        %v524 = vld [vmem:[%s471 + $0x1a0] sm:$0xff]
        %v525 = vld [vmem:[%s471 + $0x1a8] sm:$0xff]
        %v526 = vld [vmem:[%s471 + $0x1b0] sm:$0xff]
        %v527 = vld [vmem:[%s471 + $0x1b8] sm:$0xff]
        %v528 = vld [vmem:[%s471 + $0x1c0] sm:$0xff]
        %v529 = vld [vmem:[%s471 + $0x1c8] sm:$0xff]
        %v530 = vld [vmem:[%s471 + $0x1d0] sm:$0xff]
        %v531 = vld [vmem:[%s471 + $0x1d8] sm:$0xff]
        %v532 = vld [vmem:[%s471 + $0x1e0] sm:$0xff]
        %v533 = vld [vmem:[%s471 + $0x1e8] sm:$0xff]
        %v534 = vld [vmem:[%s471 + $0x1f0] sm:$0xff]
        %v535 = vld [vmem:[%s471 + $0x1f8] sm:$0xff]
        %v536 = vld [vmem:[%s471 + $0x200] sm:$0xff]
        %v537 = vld [vmem:[%s471 + $0x208] sm:$0xff]
        %v538 = vld [vmem:[%s471 + $0x210] sm:$0xff]
        %v539 = vld [vmem:[%s471 + $0x218] sm:$0xff]
        %v540 = vld [vmem:[%s471 + $0x220] sm:$0xff]
        %v541 = vld [vmem:[%s471 + $0x228] sm:$0xff]
        %v542 = vld [vmem:[%s471 + $0x230] sm:$0xff]
        %v543 = vld [vmem:[%s471 + $0x238] sm:$0xff]
        %v544 = vld [vmem:[%s471 + $0x240] sm:$0xff]
        %v545 = vld [vmem:[%s471 + $0x248] sm:$0xff]
        %v546 = vld [vmem:[%s471 + $0x250] sm:$0xff]
        %v547 = vld [vmem:[%s471 + $0x258] sm:$0xff]
        %v548 = vld [vmem:[%s471 + $0x260] sm:$0xff]
        %v549 = vld [vmem:[%s471 + $0x268] sm:$0xff]
        %v550 = vld [vmem:[%s471 + $0x270] sm:$0xff]
        %v551 = vld [vmem:[%s471 + $0x278] sm:$0xff]
        %v552 = vld [vmem:[%s471 + $0x280] sm:$0xff]
        %v553 = vld [vmem:[%s471 + $0x288] sm:$0xff]
        %v554 = vld [vmem:[%s471 + $0x290] sm:$0xff]
        %v555 = vld [vmem:[%s471 + $0x298] sm:$0xff]
        %v556 = vld [vmem:[%s471 + $0x2a0] sm:$0xff]
        %v557 = vld [vmem:[%s471 + $0x2a8] sm:$0xff]
        %v558 = vld [vmem:[%s471 + $0x2b0] sm:$0xff]
        %v559 = vld [vmem:[%s471 + $0x2b8] sm:$0xff]
        %v560 = vld [vmem:[%s471 + $0x2c0] sm:$0xff]
        %v561 = vld [vmem:[%s471 + $0x2c8] sm:$0xff]
        %v562 = vld [vmem:[%s471 + $0x2d0] sm:$0xff]
        %v563 = vld [vmem:[%s471 + $0x2d8] sm:$0xff]
        %v564 = vld [vmem:[%s471 + $0x2e0] sm:$0xff]
        %v565 = vld [vmem:[%s471 + $0x2e8] sm:$0xff]
        %v566 = vld [vmem:[%s471 + $0x2f0] sm:$0xff]
        %v567 = vld [vmem:[%s471 + $0x2f8] sm:$0xff]
        %v570 = vunpack.c.l.b16 %v469
        %v571 = vunpack.c.h.b16 %v469
        %v572 = vunpack.c.l.b16 %v470
        %v573 = vpack.c.b16 %v570, %v570
        %v574 = vpack.c.b16 %v571, %v571
        %v575 = vpack.c.b16 %v572, %v572
        %v577 = vshrl.u32 %v573, 16
        %v579 = vshll.u32 %v573, 16
        %v581 = vrot.slane %v579, 1
        %v582 = vor.u32 %v577, %v581
        %v584 = vshrl.u32 %v574, 16
        %v586 = vshll.u32 %v574, 16
        %v588 = vrot.slane %v586, 1
        %v589 = vor.u32 %v584, %v588
        %v591 = vshrl.u32 %v575, 16
        %v593 = vshll.u32 %v575, 16
        %v595 = vrot.slane %v593, 1
        %v596 = vor.u32 %v591, %v595
        %v696 = vunpack.c.l.b16 %v472
        %v697 = vunpack.c.h.b16 %v472
        %v698 = vunpack.c.l.b16 %v473
        %v699 = vunpack.c.h.b16 %v473
        %v700 = vunpack.c.l.b16 %v474
        %v701 = vunpack.c.h.b16 %v474
        %v702 = vunpack.c.l.b16 %v475
        %v703 = vunpack.c.h.b16 %v475
        %v704 = vunpack.c.l.b16 %v476
        %v705 = vunpack.c.h.b16 %v476
        %v706 = vunpack.c.l.b16 %v477
        %v707 = vunpack.c.h.b16 %v477
        %v708 = vunpack.c.l.b16 %v478
        %v709 = vunpack.c.h.b16 %v478
        %v710 = vunpack.c.l.b16 %v479
        %v711 = vunpack.c.h.b16 %v479
        %v712 = vunpack.c.l.b16 %v480
        %v713 = vunpack.c.h.b16 %v480
        %v714 = vunpack.c.l.b16 %v481
        %v715 = vunpack.c.h.b16 %v481
        %v716 = vunpack.c.l.b16 %v482
        %v717 = vunpack.c.h.b16 %v482
        %v718 = vunpack.c.l.b16 %v483
        %v719 = vunpack.c.h.b16 %v483
        %v720 = vunpack.c.l.b16 %v484
        %v721 = vunpack.c.h.b16 %v484
        %v722 = vunpack.c.l.b16 %v485
        %v723 = vunpack.c.h.b16 %v485
        %v724 = vunpack.c.l.b16 %v486
        %v725 = vunpack.c.h.b16 %v486
        %v726 = vunpack.c.l.b16 %v487
        %v727 = vunpack.c.h.b16 %v487
        %v728 = vunpack.c.l.b16 %v488
        %v729 = vunpack.c.h.b16 %v488
        %v730 = vunpack.c.l.b16 %v489
        %v731 = vunpack.c.h.b16 %v489
        %v732 = vunpack.c.l.b16 %v490
        %v733 = vunpack.c.h.b16 %v490
        %v734 = vunpack.c.l.b16 %v491
        %v735 = vunpack.c.h.b16 %v491
        %v736 = vunpack.c.l.b16 %v492
        %v737 = vunpack.c.h.b16 %v492
        %v738 = vunpack.c.l.b16 %v493
        %v739 = vunpack.c.h.b16 %v493
        %v740 = vunpack.c.l.b16 %v494
        %v741 = vunpack.c.h.b16 %v494
        %v742 = vunpack.c.l.b16 %v495
        %v743 = vunpack.c.h.b16 %v495
        %v744 = vunpack.c.l.b16 %v496
        %v745 = vunpack.c.h.b16 %v496
        %v746 = vunpack.c.l.b16 %v497
        %v747 = vunpack.c.h.b16 %v497
        %v748 = vunpack.c.l.b16 %v498
        %v749 = vunpack.c.h.b16 %v498
        %v750 = vunpack.c.l.b16 %v499
        %v751 = vunpack.c.h.b16 %v499
        %v752 = vunpack.c.l.b16 %v500
        %v753 = vunpack.c.h.b16 %v500
        %v754 = vunpack.c.l.b16 %v501
        %v755 = vunpack.c.h.b16 %v501
        %v756 = vunpack.c.l.b16 %v502
        %v757 = vunpack.c.h.b16 %v502
        %v758 = vunpack.c.l.b16 %v503
        %v759 = vunpack.c.h.b16 %v503
        %v760 = vunpack.c.l.b16 %v504
        %v761 = vunpack.c.h.b16 %v504
        %v762 = vunpack.c.l.b16 %v505
        %v763 = vunpack.c.h.b16 %v505
        %v764 = vunpack.c.l.b16 %v506
        %v765 = vunpack.c.h.b16 %v506
        %v766 = vunpack.c.l.b16 %v507
        %v767 = vunpack.c.h.b16 %v507
        %v768 = vunpack.c.l.b16 %v508
        %v769 = vunpack.c.h.b16 %v508
        %v770 = vunpack.c.l.b16 %v509
        %v771 = vunpack.c.h.b16 %v509
        %v772 = vunpack.c.l.b16 %v510
        %v773 = vunpack.c.h.b16 %v510
        %v774 = vunpack.c.l.b16 %v511
        %v775 = vunpack.c.h.b16 %v511
        %v776 = vunpack.c.l.b16 %v512
        %v777 = vunpack.c.h.b16 %v512
        %v778 = vunpack.c.l.b16 %v513
        %v779 = vunpack.c.h.b16 %v513
        %v780 = vunpack.c.l.b16 %v514
        %v781 = vunpack.c.h.b16 %v514
        %v782 = vunpack.c.l.b16 %v515
        %v783 = vunpack.c.h.b16 %v515
        %v784 = vunpack.c.l.b16 %v516
        %v785 = vunpack.c.h.b16 %v516
        %v786 = vunpack.c.l.b16 %v517
        %v787 = vunpack.c.h.b16 %v517
        %v788 = vunpack.c.l.b16 %v518
        %v789 = vunpack.c.h.b16 %v518
        %v790 = vunpack.c.l.b16 %v519
        %v791 = vunpack.c.h.b16 %v519
        %v792 = vunpack.c.l.b16 %v520
        %v793 = vunpack.c.h.b16 %v520
        %v794 = vunpack.c.l.b16 %v521
        %v795 = vunpack.c.h.b16 %v521
        %v796 = vunpack.c.l.b16 %v522
        %v797 = vunpack.c.h.b16 %v522
        %v798 = vunpack.c.l.b16 %v523
        %v799 = vunpack.c.h.b16 %v523
        %v800 = vunpack.c.l.b16 %v524
        %v801 = vunpack.c.h.b16 %v524
        %v802 = vunpack.c.l.b16 %v525
        %v803 = vunpack.c.h.b16 %v525
        %v804 = vunpack.c.l.b16 %v526
        %v805 = vunpack.c.h.b16 %v526
        %v806 = vunpack.c.l.b16 %v527
        %v807 = vunpack.c.h.b16 %v527
        %v808 = vunpack.c.l.b16 %v528
        %v809 = vunpack.c.h.b16 %v528
        %v810 = vunpack.c.l.b16 %v529
        %v811 = vunpack.c.h.b16 %v529
        %v812 = vunpack.c.l.b16 %v530
        %v813 = vunpack.c.h.b16 %v530
        %v814 = vunpack.c.l.b16 %v531
        %v815 = vunpack.c.h.b16 %v531
        %v816 = vunpack.c.l.b16 %v532
        %v817 = vunpack.c.h.b16 %v532
        %v818 = vunpack.c.l.b16 %v533
        %v819 = vunpack.c.h.b16 %v533
        %v820 = vunpack.c.l.b16 %v534
        %v821 = vunpack.c.h.b16 %v534
        %v822 = vunpack.c.l.b16 %v535
        %v823 = vunpack.c.h.b16 %v535
        %v824 = vunpack.c.l.b16 %v536
        %v825 = vunpack.c.h.b16 %v536
        %v826 = vunpack.c.l.b16 %v537
        %v827 = vunpack.c.h.b16 %v537
        %v828 = vunpack.c.l.b16 %v538
        %v829 = vunpack.c.h.b16 %v538
        %v830 = vunpack.c.l.b16 %v539
        %v831 = vunpack.c.h.b16 %v539
        %v832 = vunpack.c.l.b16 %v540
        %v833 = vunpack.c.h.b16 %v540
        %v834 = vunpack.c.l.b16 %v541
        %v835 = vunpack.c.h.b16 %v541
        %v836 = vunpack.c.l.b16 %v542
        %v837 = vunpack.c.h.b16 %v542
        %v838 = vunpack.c.l.b16 %v543
        %v839 = vunpack.c.h.b16 %v543
        %v840 = vunpack.c.l.b16 %v544
        %v841 = vunpack.c.h.b16 %v544
        %v842 = vunpack.c.l.b16 %v545
        %v843 = vunpack.c.h.b16 %v545
        %v844 = vunpack.c.l.b16 %v546
        %v845 = vunpack.c.h.b16 %v546
        %v846 = vunpack.c.l.b16 %v547
        %v847 = vunpack.c.h.b16 %v547
        %v848 = vunpack.c.l.b16 %v548
        %v849 = vunpack.c.h.b16 %v548
        %v850 = vunpack.c.l.b16 %v549
        %v851 = vunpack.c.h.b16 %v549
        %v852 = vunpack.c.l.b16 %v550
        %v853 = vunpack.c.h.b16 %v550
        %v854 = vunpack.c.l.b16 %v551
        %v855 = vunpack.c.h.b16 %v551
        %v856 = vunpack.c.l.b16 %v552
        %v857 = vunpack.c.h.b16 %v552
        %v858 = vunpack.c.l.b16 %v553
        %v859 = vunpack.c.h.b16 %v553
        %v860 = vunpack.c.l.b16 %v554
        %v861 = vunpack.c.h.b16 %v554
        %v862 = vunpack.c.l.b16 %v555
        %v863 = vunpack.c.h.b16 %v555
        %v864 = vunpack.c.l.b16 %v556
        %v865 = vunpack.c.h.b16 %v556
        %v866 = vunpack.c.l.b16 %v557
        %v867 = vunpack.c.h.b16 %v557
        %v868 = vunpack.c.l.b16 %v558
        %v869 = vunpack.c.h.b16 %v558
        %v870 = vunpack.c.l.b16 %v559
        %v871 = vunpack.c.h.b16 %v559
        %v872 = vunpack.c.l.b16 %v560
        %v873 = vunpack.c.h.b16 %v560
        %v874 = vunpack.c.l.b16 %v561
        %v875 = vunpack.c.h.b16 %v561
        %v876 = vunpack.c.l.b16 %v562
        %v877 = vunpack.c.h.b16 %v562
        %v878 = vunpack.c.l.b16 %v563
        %v879 = vunpack.c.h.b16 %v563
        %v880 = vunpack.c.l.b16 %v564
        %v881 = vunpack.c.h.b16 %v564
        %v882 = vunpack.c.l.b16 %v565
        %v883 = vunpack.c.h.b16 %v565
        %v884 = vunpack.c.l.b16 %v566
        %v885 = vunpack.c.h.b16 %v566
        %v886 = vunpack.c.l.b16 %v567
        %v887 = vunpack.c.h.b16 %v567
        %v888 = vpack.c.b16 %v700, %v696
        %v889 = vpack.c.b16 %v701, %v697
        %v890 = vpack.c.b16 %v702, %v698
        %v891 = vpack.c.b16 %v703, %v699
        %v892 = vpack.c.b16 %v708, %v704
        %v893 = vpack.c.b16 %v709, %v705
        %v894 = vpack.c.b16 %v710, %v706
        %v895 = vpack.c.b16 %v711, %v707
        %v896 = vpack.c.b16 %v716, %v712
        %v897 = vpack.c.b16 %v717, %v713
        %v898 = vpack.c.b16 %v718, %v714
        %v899 = vpack.c.b16 %v719, %v715
        %v900 = vpack.c.b16 %v724, %v720
        %v901 = vpack.c.b16 %v725, %v721
        %v902 = vpack.c.b16 %v726, %v722
        %v903 = vpack.c.b16 %v727, %v723
        %v904 = vpack.c.b16 %v732, %v728
        %v905 = vpack.c.b16 %v733, %v729
        %v906 = vpack.c.b16 %v734, %v730
        %v907 = vpack.c.b16 %v735, %v731
        %v908 = vpack.c.b16 %v740, %v736
        %v909 = vpack.c.b16 %v741, %v737
        %v910 = vpack.c.b16 %v742, %v738
        %v911 = vpack.c.b16 %v743, %v739
        %v912 = vpack.c.b16 %v748, %v744
        %v913 = vpack.c.b16 %v749, %v745
        %v914 = vpack.c.b16 %v750, %v746
        %v915 = vpack.c.b16 %v751, %v747
        %v916 = vpack.c.b16 %v756, %v752
        %v917 = vpack.c.b16 %v757, %v753
        %v918 = vpack.c.b16 %v758, %v754
        %v919 = vpack.c.b16 %v759, %v755
        %v920 = vpack.c.b16 %v764, %v760
        %v921 = vpack.c.b16 %v765, %v761
        %v922 = vpack.c.b16 %v766, %v762
        %v923 = vpack.c.b16 %v767, %v763
        %v924 = vpack.c.b16 %v772, %v768
        %v925 = vpack.c.b16 %v773, %v769
        %v926 = vpack.c.b16 %v774, %v770
        %v927 = vpack.c.b16 %v775, %v771
        %v928 = vpack.c.b16 %v780, %v776
        %v929 = vpack.c.b16 %v781, %v777
        %v930 = vpack.c.b16 %v782, %v778
        %v931 = vpack.c.b16 %v783, %v779
        %v932 = vpack.c.b16 %v788, %v784
        %v933 = vpack.c.b16 %v789, %v785
        %v934 = vpack.c.b16 %v790, %v786
        %v935 = vpack.c.b16 %v791, %v787
        %v936 = vpack.c.b16 %v796, %v792
        %v937 = vpack.c.b16 %v797, %v793
        %v938 = vpack.c.b16 %v798, %v794
        %v939 = vpack.c.b16 %v799, %v795
        %v940 = vpack.c.b16 %v804, %v800
        %v941 = vpack.c.b16 %v805, %v801
        %v942 = vpack.c.b16 %v806, %v802
        %v943 = vpack.c.b16 %v807, %v803
        %v944 = vpack.c.b16 %v812, %v808
        %v945 = vpack.c.b16 %v813, %v809
        %v946 = vpack.c.b16 %v814, %v810
        %v947 = vpack.c.b16 %v815, %v811
        %v948 = vpack.c.b16 %v820, %v816
        %v949 = vpack.c.b16 %v821, %v817
        %v950 = vpack.c.b16 %v822, %v818
        %v951 = vpack.c.b16 %v823, %v819
        %v952 = vpack.c.b16 %v828, %v824
        %v953 = vpack.c.b16 %v829, %v825
        %v954 = vpack.c.b16 %v830, %v826
        %v955 = vpack.c.b16 %v831, %v827
        %v956 = vpack.c.b16 %v836, %v832
        %v957 = vpack.c.b16 %v837, %v833
        %v958 = vpack.c.b16 %v838, %v834
        %v959 = vpack.c.b16 %v839, %v835
        %v960 = vpack.c.b16 %v844, %v840
        %v961 = vpack.c.b16 %v845, %v841
        %v962 = vpack.c.b16 %v846, %v842
        %v963 = vpack.c.b16 %v847, %v843
        %v964 = vpack.c.b16 %v852, %v848
        %v965 = vpack.c.b16 %v853, %v849
        %v966 = vpack.c.b16 %v854, %v850
        %v967 = vpack.c.b16 %v855, %v851
        %v968 = vpack.c.b16 %v860, %v856
        %v969 = vpack.c.b16 %v861, %v857
        %v970 = vpack.c.b16 %v862, %v858
        %v971 = vpack.c.b16 %v863, %v859
        %v972 = vpack.c.b16 %v868, %v864
        %v973 = vpack.c.b16 %v869, %v865
        %v974 = vpack.c.b16 %v870, %v866
        %v975 = vpack.c.b16 %v871, %v867
        %v976 = vpack.c.b16 %v876, %v872
        %v977 = vpack.c.b16 %v877, %v873
        %v978 = vpack.c.b16 %v878, %v874
        %v979 = vpack.c.b16 %v879, %v875
        %v980 = vpack.c.b16 %v884, %v880
        %v981 = vpack.c.b16 %v885, %v881
        %v982 = vpack.c.b16 %v886, %v882
        %v983 = vpack.c.b16 %v887, %v883
        %1080 = vmatpush.bf16.msra.mxu0 %v916
        %1081 = vmatpush.bf16.msra.mxu0 %v912
        %1082 = vmatpush.bf16.msra.mxu0 %v908
        %1083 = vmatpush.bf16.msra.mxu0 %v904
        %1084 = vmatpush.bf16.msra.mxu0 %v900
        %1085 = vmatpush.bf16.msra.mxu0 %v896
        %1086 = vmatpush.bf16.msra.mxu0 %v892
        %1087 = vmatpush.bf16.msra.mxu0 %v888
        %1088 = vmatmul.bf16.gmra.mxu0 %v582
        %v1089 = vpop.f32.mrf.mxu0
        %v1090 = vadd.f32 0.0, %v1089
        %v1091 = vpop.f32.mrf.mxu0
        %1092 = vdwg.mxu0
        %1093 = vmatpush.bf16.msra.mxu0 %v948
        %1094 = vmatpush.bf16.msra.mxu0 %v944
        %1095 = vmatpush.bf16.msra.mxu0 %v940
        %1096 = vmatpush.bf16.msra.mxu0 %v936
        %1097 = vmatpush.bf16.msra.mxu0 %v932
        %1098 = vmatpush.bf16.msra.mxu0 %v928
        %1099 = vmatpush.bf16.msra.mxu0 %v924
        %1100 = vmatpush.bf16.msra.mxu0 %v920
        %1101 = vmatmul.bf16.gmra.mxu0 %v589
        %v1102 = vpop.f32.mrf.mxu0
        %v1103 = vadd.f32 %v1090, %v1102
        %v1104 = vpop.f32.mrf.mxu0
        %1105 = vdwg.mxu0
        %1106 = vmatpush.bf16.msra.mxu0 %v980
        %1107 = vmatpush.bf16.msra.mxu0 %v976
        %1108 = vmatpush.bf16.msra.mxu0 %v972
        %1109 = vmatpush.bf16.msra.mxu0 %v968
        %1110 = vmatpush.bf16.msra.mxu0 %v964
        %1111 = vmatpush.bf16.msra.mxu0 %v960
        %1112 = vmatpush.bf16.msra.mxu0 %v956
        %1113 = vmatpush.bf16.msra.mxu0 %v952
        %1114 = vmatmul.bf16.gmra.mxu0 %v596
        %v1115 = vpop.f32.mrf.mxu0
        %v1116 = vadd.f32 %v1103, %v1115
        %v1117 = vpop.f32.mrf.mxu0
        %1118 = vdwg.mxu0
        %1119 = vmatpush.bf16.msra.mxu0 %v917
        %1120 = vmatpush.bf16.msra.mxu0 %v913
        %1121 = vmatpush.bf16.msra.mxu0 %v909
        %1122 = vmatpush.bf16.msra.mxu0 %v905
        %1123 = vmatpush.bf16.msra.mxu0 %v901
        %1124 = vmatpush.bf16.msra.mxu0 %v897
        %1125 = vmatpush.bf16.msra.mxu0 %v893
        %1126 = vmatpush.bf16.msra.mxu0 %v889
        %1127 = vmatmul.bf16.gmra.mxu0 %v582
        %v1128 = vpop.f32.mrf.mxu0
        %v1129 = vadd.f32 0.0, %v1128
        %v1130 = vpop.f32.mrf.mxu0
        %1131 = vdwg.mxu0
        %1132 = vmatpush.bf16.msra.mxu0 %v949
        %1133 = vmatpush.bf16.msra.mxu0 %v945
        %1134 = vmatpush.bf16.msra.mxu0 %v941
        %1135 = vmatpush.bf16.msra.mxu0 %v937
        %1136 = vmatpush.bf16.msra.mxu0 %v933
        %1137 = vmatpush.bf16.msra.mxu0 %v929
        %1138 = vmatpush.bf16.msra.mxu0 %v925
        %1139 = vmatpush.bf16.msra.mxu0 %v921
        %1140 = vmatmul.bf16.gmra.mxu0 %v589
        %v1141 = vpop.f32.mrf.mxu0
        %v1142 = vadd.f32 %v1129, %v1141
        %v1143 = vpop.f32.mrf.mxu0
        %1144 = vdwg.mxu0
        %1145 = vmatpush.bf16.msra.mxu0 %v981
        %1146 = vmatpush.bf16.msra.mxu0 %v977
        %1147 = vmatpush.bf16.msra.mxu0 %v973
        %1148 = vmatpush.bf16.msra.mxu0 %v969
        %1149 = vmatpush.bf16.msra.mxu0 %v965
        %1150 = vmatpush.bf16.msra.mxu0 %v961
        %1151 = vmatpush.bf16.msra.mxu0 %v957
        %1152 = vmatpush.bf16.msra.mxu0 %v953
        %1153 = vmatmul.bf16.gmra.mxu0 %v596
        %v1154 = vpop.f32.mrf.mxu0
        %v1155 = vadd.f32 %v1142, %v1154
        %v1156 = vpop.f32.mrf.mxu0
        %1157 = vdwg.mxu0
        %1158 = vmatpush.bf16.msra.mxu0 %v918
        %1159 = vmatpush.bf16.msra.mxu0 %v914
        %1160 = vmatpush.bf16.msra.mxu0 %v910
        %1161 = vmatpush.bf16.msra.mxu0 %v906
        %1162 = vmatpush.bf16.msra.mxu0 %v902
        %1163 = vmatpush.bf16.msra.mxu0 %v898
        %1164 = vmatpush.bf16.msra.mxu0 %v894
        %1165 = vmatpush.bf16.msra.mxu0 %v890
        %1166 = vmatmul.bf16.gmra.mxu0 %v582
        %v1167 = vpop.f32.mrf.mxu0
        %v1168 = vadd.f32 0.0, %v1167
        %v1169 = vpop.f32.mrf.mxu0
        %1170 = vdwg.mxu0
        %1171 = vmatpush.bf16.msra.mxu0 %v950
        %1172 = vmatpush.bf16.msra.mxu0 %v946
        %1173 = vmatpush.bf16.msra.mxu0 %v942
        %1174 = vmatpush.bf16.msra.mxu0 %v938
        %1175 = vmatpush.bf16.msra.mxu0 %v934
        %1176 = vmatpush.bf16.msra.mxu0 %v930
        %1177 = vmatpush.bf16.msra.mxu0 %v926
        %1178 = vmatpush.bf16.msra.mxu0 %v922
        %1179 = vmatmul.bf16.gmra.mxu0 %v589
        %v1180 = vpop.f32.mrf.mxu0
        %v1181 = vadd.f32 %v1168, %v1180
        %v1182 = vpop.f32.mrf.mxu0
        %1183 = vdwg.mxu0
        %1184 = vmatpush.bf16.msra.mxu0 %v982
        %1185 = vmatpush.bf16.msra.mxu0 %v978
        %1186 = vmatpush.bf16.msra.mxu0 %v974
        %1187 = vmatpush.bf16.msra.mxu0 %v970
        %1188 = vmatpush.bf16.msra.mxu0 %v966
        %1189 = vmatpush.bf16.msra.mxu0 %v962
        %1190 = vmatpush.bf16.msra.mxu0 %v958
        %1191 = vmatpush.bf16.msra.mxu0 %v954
        %1192 = vmatmul.bf16.gmra.mxu0 %v596
        %v1193 = vpop.f32.mrf.mxu0
        %v1194 = vadd.f32 %v1181, %v1193
        %v1195 = vpop.f32.mrf.mxu0
        %1196 = vdwg.mxu0
        %1197 = vmatpush.bf16.msra.mxu0 %v919
        %1198 = vmatpush.bf16.msra.mxu0 %v915
        %1199 = vmatpush.bf16.msra.mxu0 %v911
        %1200 = vmatpush.bf16.msra.mxu0 %v907
        %1201 = vmatpush.bf16.msra.mxu0 %v903
        %1202 = vmatpush.bf16.msra.mxu0 %v899
        %1203 = vmatpush.bf16.msra.mxu0 %v895
        %1204 = vmatpush.bf16.msra.mxu0 %v891
        %1205 = vmatmul.bf16.gmra.mxu0 %v582
        %v1206 = vpop.f32.mrf.mxu0
        %v1207 = vadd.f32 0.0, %v1206
        %v1208 = vpop.f32.mrf.mxu0
        %1209 = vdwg.mxu0
        %1210 = vmatpush.bf16.msra.mxu0 %v951
        %1211 = vmatpush.bf16.msra.mxu0 %v947
        %1212 = vmatpush.bf16.msra.mxu0 %v943
        %1213 = vmatpush.bf16.msra.mxu0 %v939
        %1214 = vmatpush.bf16.msra.mxu0 %v935
        %1215 = vmatpush.bf16.msra.mxu0 %v931
        %1216 = vmatpush.bf16.msra.mxu0 %v927
        %1217 = vmatpush.bf16.msra.mxu0 %v923
        %1218 = vmatmul.bf16.gmra.mxu0 %v589
        %v1219 = vpop.f32.mrf.mxu0
        %v1220 = vadd.f32 %v1207, %v1219
        %v1221 = vpop.f32.mrf.mxu0
        %1222 = vdwg.mxu0
        %1223 = vmatpush.bf16.msra.mxu0 %v983
        %1224 = vmatpush.bf16.msra.mxu0 %v979
        %1225 = vmatpush.bf16.msra.mxu0 %v975
        %1226 = vmatpush.bf16.msra.mxu0 %v971
        %1227 = vmatpush.bf16.msra.mxu0 %v967
        %1228 = vmatpush.bf16.msra.mxu0 %v963
        %1229 = vmatpush.bf16.msra.mxu0 %v959
        %1230 = vmatpush.bf16.msra.mxu0 %v955
        %1231 = vmatmul.bf16.gmra.mxu0 %v596
        %v1232 = vpop.f32.mrf.mxu0
        %v1233 = vadd.f32 %v1220, %v1232
        %v1234 = vpop.f32.mrf.mxu0
        %1235 = vdwg.mxu0
        %v1238 = vunpack.c.l.b16 %v371
        %v1239 = vunpack.c.h.b16 %v371
        %v1240 = vunpack.c.l.b16 %v372
        %v1241 = vpack.c.b16 %v1238, %v1238
        %v1242 = vpack.c.b16 %v1239, %v1239
        %v1243 = vpack.c.b16 %v1240, %v1240
        %v1343 = vunpack.c.l.b16 %v373
        %v1344 = vunpack.c.h.b16 %v373
        %v1345 = vunpack.c.l.b16 %v374
        %v1346 = vunpack.c.h.b16 %v374
        %v1347 = vunpack.c.l.b16 %v375
        %v1348 = vunpack.c.h.b16 %v375
        %v1349 = vunpack.c.l.b16 %v376
        %v1350 = vunpack.c.h.b16 %v376
        %v1351 = vunpack.c.l.b16 %v377
        %v1352 = vunpack.c.h.b16 %v377
        %v1353 = vunpack.c.l.b16 %v378
        %v1354 = vunpack.c.h.b16 %v378
        %v1355 = vunpack.c.l.b16 %v379
        %v1356 = vunpack.c.h.b16 %v379
        %v1357 = vunpack.c.l.b16 %v380
        %v1358 = vunpack.c.h.b16 %v380
        %v1359 = vunpack.c.l.b16 %v381
        %v1360 = vunpack.c.h.b16 %v381
        %v1361 = vunpack.c.l.b16 %v382
        %v1362 = vunpack.c.h.b16 %v382
        %v1363 = vunpack.c.l.b16 %v383
        %v1364 = vunpack.c.h.b16 %v383
        %v1365 = vunpack.c.l.b16 %v384
        %v1366 = vunpack.c.h.b16 %v384
        %v1367 = vunpack.c.l.b16 %v385
        %v1368 = vunpack.c.h.b16 %v385
        %v1369 = vunpack.c.l.b16 %v386
        %v1370 = vunpack.c.h.b16 %v386
        %v1371 = vunpack.c.l.b16 %v387
        %v1372 = vunpack.c.h.b16 %v387
        %v1373 = vunpack.c.l.b16 %v388
        %v1374 = vunpack.c.h.b16 %v388
        %v1375 = vunpack.c.l.b16 %v389
        %v1376 = vunpack.c.h.b16 %v389
        %v1377 = vunpack.c.l.b16 %v390
        %v1378 = vunpack.c.h.b16 %v390
        %v1379 = vunpack.c.l.b16 %v391
        %v1380 = vunpack.c.h.b16 %v391
        %v1381 = vunpack.c.l.b16 %v392
        %v1382 = vunpack.c.h.b16 %v392
        %v1383 = vunpack.c.l.b16 %v393
        %v1384 = vunpack.c.h.b16 %v393
        %v1385 = vunpack.c.l.b16 %v394
        %v1386 = vunpack.c.h.b16 %v394
        %v1387 = vunpack.c.l.b16 %v395
        %v1388 = vunpack.c.h.b16 %v395
        %v1389 = vunpack.c.l.b16 %v396
        %v1390 = vunpack.c.h.b16 %v396
        %v1391 = vunpack.c.l.b16 %v397
        %v1392 = vunpack.c.h.b16 %v397
        %v1393 = vunpack.c.l.b16 %v398
        %v1394 = vunpack.c.h.b16 %v398
        %v1395 = vunpack.c.l.b16 %v399
        %v1396 = vunpack.c.h.b16 %v399
        %v1397 = vunpack.c.l.b16 %v400
        %v1398 = vunpack.c.h.b16 %v400
        %v1399 = vunpack.c.l.b16 %v401
        %v1400 = vunpack.c.h.b16 %v401
        %v1401 = vunpack.c.l.b16 %v402
        %v1402 = vunpack.c.h.b16 %v402
        %v1403 = vunpack.c.l.b16 %v403
        %v1404 = vunpack.c.h.b16 %v403
        %v1405 = vunpack.c.l.b16 %v404
        %v1406 = vunpack.c.h.b16 %v404
        %v1407 = vunpack.c.l.b16 %v405
        %v1408 = vunpack.c.h.b16 %v405
        %v1409 = vunpack.c.l.b16 %v406
        %v1410 = vunpack.c.h.b16 %v406
        %v1411 = vunpack.c.l.b16 %v407
        %v1412 = vunpack.c.h.b16 %v407
        %v1413 = vunpack.c.l.b16 %v408
        %v1414 = vunpack.c.h.b16 %v408
        %v1415 = vunpack.c.l.b16 %v409
        %v1416 = vunpack.c.h.b16 %v409
        %v1417 = vunpack.c.l.b16 %v410
        %v1418 = vunpack.c.h.b16 %v410
        %v1419 = vunpack.c.l.b16 %v411
        %v1420 = vunpack.c.h.b16 %v411
        %v1421 = vunpack.c.l.b16 %v412
        %v1422 = vunpack.c.h.b16 %v412
        %v1423 = vunpack.c.l.b16 %v413
        %v1424 = vunpack.c.h.b16 %v413
        %v1425 = vunpack.c.l.b16 %v414
        %v1426 = vunpack.c.h.b16 %v414
        %v1427 = vunpack.c.l.b16 %v415
        %v1428 = vunpack.c.h.b16 %v415
        %v1429 = vunpack.c.l.b16 %v416
        %v1430 = vunpack.c.h.b16 %v416
        %v1431 = vunpack.c.l.b16 %v417
        %v1432 = vunpack.c.h.b16 %v417
        %v1433 = vunpack.c.l.b16 %v418
        %v1434 = vunpack.c.h.b16 %v418
        %v1435 = vunpack.c.l.b16 %v419
        %v1436 = vunpack.c.h.b16 %v419
        %v1437 = vunpack.c.l.b16 %v420
        %v1438 = vunpack.c.h.b16 %v420
        %v1439 = vunpack.c.l.b16 %v421
        %v1440 = vunpack.c.h.b16 %v421
        %v1441 = vunpack.c.l.b16 %v422
        %v1442 = vunpack.c.h.b16 %v422
        %v1443 = vunpack.c.l.b16 %v423
        %v1444 = vunpack.c.h.b16 %v423
        %v1445 = vunpack.c.l.b16 %v424
        %v1446 = vunpack.c.h.b16 %v424
        %v1447 = vunpack.c.l.b16 %v425
        %v1448 = vunpack.c.h.b16 %v425
        %v1449 = vunpack.c.l.b16 %v426
        %v1450 = vunpack.c.h.b16 %v426
        %v1451 = vunpack.c.l.b16 %v427
        %v1452 = vunpack.c.h.b16 %v427
        %v1453 = vunpack.c.l.b16 %v428
        %v1454 = vunpack.c.h.b16 %v428
        %v1455 = vunpack.c.l.b16 %v429
        %v1456 = vunpack.c.h.b16 %v429
        %v1457 = vunpack.c.l.b16 %v430
        %v1458 = vunpack.c.h.b16 %v430
        %v1459 = vunpack.c.l.b16 %v431
        %v1460 = vunpack.c.h.b16 %v431
        %v1461 = vunpack.c.l.b16 %v432
        %v1462 = vunpack.c.h.b16 %v432
        %v1463 = vunpack.c.l.b16 %v433
        %v1464 = vunpack.c.h.b16 %v433
        %v1465 = vunpack.c.l.b16 %v434
        %v1466 = vunpack.c.h.b16 %v434
        %v1467 = vunpack.c.l.b16 %v435
        %v1468 = vunpack.c.h.b16 %v435
        %v1469 = vunpack.c.l.b16 %v436
        %v1470 = vunpack.c.h.b16 %v436
        %v1471 = vunpack.c.l.b16 %v437
        %v1472 = vunpack.c.h.b16 %v437
        %v1473 = vunpack.c.l.b16 %v438
        %v1474 = vunpack.c.h.b16 %v438
        %v1475 = vunpack.c.l.b16 %v439
        %v1476 = vunpack.c.h.b16 %v439
        %v1477 = vunpack.c.l.b16 %v440
        %v1478 = vunpack.c.h.b16 %v440
        %v1479 = vunpack.c.l.b16 %v441
        %v1480 = vunpack.c.h.b16 %v441
        %v1481 = vunpack.c.l.b16 %v442
        %v1482 = vunpack.c.h.b16 %v442
        %v1483 = vunpack.c.l.b16 %v443
        %v1484 = vunpack.c.h.b16 %v443
        %v1485 = vunpack.c.l.b16 %v444
        %v1486 = vunpack.c.h.b16 %v444
        %v1487 = vunpack.c.l.b16 %v445
        %v1488 = vunpack.c.h.b16 %v445
        %v1489 = vunpack.c.l.b16 %v446
        %v1490 = vunpack.c.h.b16 %v446
        %v1491 = vunpack.c.l.b16 %v447
        %v1492 = vunpack.c.h.b16 %v447
        %v1493 = vunpack.c.l.b16 %v448
        %v1494 = vunpack.c.h.b16 %v448
        %v1495 = vunpack.c.l.b16 %v449
        %v1496 = vunpack.c.h.b16 %v449
        %v1497 = vunpack.c.l.b16 %v450
        %v1498 = vunpack.c.h.b16 %v450
        %v1499 = vunpack.c.l.b16 %v451
        %v1500 = vunpack.c.h.b16 %v451
        %v1501 = vunpack.c.l.b16 %v452
        %v1502 = vunpack.c.h.b16 %v452
        %v1503 = vunpack.c.l.b16 %v453
        %v1504 = vunpack.c.h.b16 %v453
        %v1505 = vunpack.c.l.b16 %v454
        %v1506 = vunpack.c.h.b16 %v454
        %v1507 = vunpack.c.l.b16 %v455
        %v1508 = vunpack.c.h.b16 %v455
        %v1509 = vunpack.c.l.b16 %v456
        %v1510 = vunpack.c.h.b16 %v456
        %v1511 = vunpack.c.l.b16 %v457
        %v1512 = vunpack.c.h.b16 %v457
        %v1513 = vunpack.c.l.b16 %v458
        %v1514 = vunpack.c.h.b16 %v458
        %v1515 = vunpack.c.l.b16 %v459
        %v1516 = vunpack.c.h.b16 %v459
        %v1517 = vunpack.c.l.b16 %v460
        %v1518 = vunpack.c.h.b16 %v460
        %v1519 = vunpack.c.l.b16 %v461
        %v1520 = vunpack.c.h.b16 %v461
        %v1521 = vunpack.c.l.b16 %v462
        %v1522 = vunpack.c.h.b16 %v462
        %v1523 = vunpack.c.l.b16 %v463
        %v1524 = vunpack.c.h.b16 %v463
        %v1525 = vunpack.c.l.b16 %v464
        %v1526 = vunpack.c.h.b16 %v464
        %v1527 = vunpack.c.l.b16 %v465
        %v1528 = vunpack.c.h.b16 %v465
        %v1529 = vunpack.c.l.b16 %v466
        %v1530 = vunpack.c.h.b16 %v466
        %v1531 = vunpack.c.l.b16 %v467
        %v1532 = vunpack.c.h.b16 %v467
        %v1533 = vunpack.c.l.b16 %v468
        %v1534 = vunpack.c.h.b16 %v468
        %v1535 = vpack.c.b16 %v1347, %v1343
        %v1536 = vpack.c.b16 %v1348, %v1344
        %v1537 = vpack.c.b16 %v1349, %v1345
        %v1538 = vpack.c.b16 %v1350, %v1346
        %v1539 = vpack.c.b16 %v1355, %v1351
        %v1540 = vpack.c.b16 %v1356, %v1352
        %v1541 = vpack.c.b16 %v1357, %v1353
        %v1542 = vpack.c.b16 %v1358, %v1354
        %v1543 = vpack.c.b16 %v1363, %v1359
        %v1544 = vpack.c.b16 %v1364, %v1360
        %v1545 = vpack.c.b16 %v1365, %v1361
        %v1546 = vpack.c.b16 %v1366, %v1362
        %v1547 = vpack.c.b16 %v1371, %v1367
        %v1548 = vpack.c.b16 %v1372, %v1368
        %v1549 = vpack.c.b16 %v1373, %v1369
        %v1550 = vpack.c.b16 %v1374, %v1370
        %v1551 = vpack.c.b16 %v1379, %v1375
        %v1552 = vpack.c.b16 %v1380, %v1376
        %v1553 = vpack.c.b16 %v1381, %v1377
        %v1554 = vpack.c.b16 %v1382, %v1378
        %v1555 = vpack.c.b16 %v1387, %v1383
        %v1556 = vpack.c.b16 %v1388, %v1384
        %v1557 = vpack.c.b16 %v1389, %v1385
        %v1558 = vpack.c.b16 %v1390, %v1386
        %v1559 = vpack.c.b16 %v1395, %v1391
        %v1560 = vpack.c.b16 %v1396, %v1392
        %v1561 = vpack.c.b16 %v1397, %v1393
        %v1562 = vpack.c.b16 %v1398, %v1394
        %v1563 = vpack.c.b16 %v1403, %v1399
        %v1564 = vpack.c.b16 %v1404, %v1400
        %v1565 = vpack.c.b16 %v1405, %v1401
        %v1566 = vpack.c.b16 %v1406, %v1402
        %v1567 = vpack.c.b16 %v1411, %v1407
        %v1568 = vpack.c.b16 %v1412, %v1408
        %v1569 = vpack.c.b16 %v1413, %v1409
        %v1570 = vpack.c.b16 %v1414, %v1410
        %v1571 = vpack.c.b16 %v1419, %v1415
        %v1572 = vpack.c.b16 %v1420, %v1416
        %v1573 = vpack.c.b16 %v1421, %v1417
        %v1574 = vpack.c.b16 %v1422, %v1418
        %v1575 = vpack.c.b16 %v1427, %v1423
        %v1576 = vpack.c.b16 %v1428, %v1424
        %v1577 = vpack.c.b16 %v1429, %v1425
        %v1578 = vpack.c.b16 %v1430, %v1426
        %v1579 = vpack.c.b16 %v1435, %v1431
        %v1580 = vpack.c.b16 %v1436, %v1432
        %v1581 = vpack.c.b16 %v1437, %v1433
        %v1582 = vpack.c.b16 %v1438, %v1434
        %v1583 = vpack.c.b16 %v1443, %v1439
        %v1584 = vpack.c.b16 %v1444, %v1440
        %v1585 = vpack.c.b16 %v1445, %v1441
        %v1586 = vpack.c.b16 %v1446, %v1442
        %v1587 = vpack.c.b16 %v1451, %v1447
        %v1588 = vpack.c.b16 %v1452, %v1448
        %v1589 = vpack.c.b16 %v1453, %v1449
        %v1590 = vpack.c.b16 %v1454, %v1450
        %v1591 = vpack.c.b16 %v1459, %v1455
        %v1592 = vpack.c.b16 %v1460, %v1456
        %v1593 = vpack.c.b16 %v1461, %v1457
        %v1594 = vpack.c.b16 %v1462, %v1458
        %v1595 = vpack.c.b16 %v1467, %v1463
        %v1596 = vpack.c.b16 %v1468, %v1464
        %v1597 = vpack.c.b16 %v1469, %v1465
        %v1598 = vpack.c.b16 %v1470, %v1466
        %v1599 = vpack.c.b16 %v1475, %v1471
        %v1600 = vpack.c.b16 %v1476, %v1472
        %v1601 = vpack.c.b16 %v1477, %v1473
        %v1602 = vpack.c.b16 %v1478, %v1474
        %v1603 = vpack.c.b16 %v1483, %v1479
        %v1604 = vpack.c.b16 %v1484, %v1480
        %v1605 = vpack.c.b16 %v1485, %v1481
        %v1606 = vpack.c.b16 %v1486, %v1482
        %v1607 = vpack.c.b16 %v1491, %v1487
        %v1608 = vpack.c.b16 %v1492, %v1488
        %v1609 = vpack.c.b16 %v1493, %v1489
        %v1610 = vpack.c.b16 %v1494, %v1490
        %v1611 = vpack.c.b16 %v1499, %v1495
        %v1612 = vpack.c.b16 %v1500, %v1496
        %v1613 = vpack.c.b16 %v1501, %v1497
        %v1614 = vpack.c.b16 %v1502, %v1498
        %v1615 = vpack.c.b16 %v1507, %v1503
        %v1616 = vpack.c.b16 %v1508, %v1504
        %v1617 = vpack.c.b16 %v1509, %v1505
        %v1618 = vpack.c.b16 %v1510, %v1506
        %v1619 = vpack.c.b16 %v1515, %v1511
        %v1620 = vpack.c.b16 %v1516, %v1512
        %v1621 = vpack.c.b16 %v1517, %v1513
        %v1622 = vpack.c.b16 %v1518, %v1514
        %v1623 = vpack.c.b16 %v1523, %v1519
        %v1624 = vpack.c.b16 %v1524, %v1520
        %v1625 = vpack.c.b16 %v1525, %v1521
        %v1626 = vpack.c.b16 %v1526, %v1522
        %v1627 = vpack.c.b16 %v1531, %v1527
        %v1628 = vpack.c.b16 %v1532, %v1528
        %v1629 = vpack.c.b16 %v1533, %v1529
        %v1630 = vpack.c.b16 %v1534, %v1530
        %1727 = vmatpush.bf16.msra.mxu0 %v1563
        %1728 = vmatpush.bf16.msra.mxu0 %v1559
        %1729 = vmatpush.bf16.msra.mxu0 %v1555
        %1730 = vmatpush.bf16.msra.mxu0 %v1551
        %1731 = vmatpush.bf16.msra.mxu0 %v1547
        %1732 = vmatpush.bf16.msra.mxu0 %v1543
        %1733 = vmatpush.bf16.msra.mxu0 %v1539
        %1734 = vmatpush.bf16.msra.mxu0 %v1535
        %1735 = vmatmul.bf16.gmra.mxu0 %v1241
        %v1736 = vpop.f32.mrf.mxu0
        %v1737 = vadd.f32 %v1116, %v1736
        %v1738 = vpop.f32.mrf.mxu0
        %1739 = vdwg.mxu0
        %1740 = vmatpush.bf16.msra.mxu0 %v1595
        %1741 = vmatpush.bf16.msra.mxu0 %v1591
        %1742 = vmatpush.bf16.msra.mxu0 %v1587
        %1743 = vmatpush.bf16.msra.mxu0 %v1583
        %1744 = vmatpush.bf16.msra.mxu0 %v1579
        %1745 = vmatpush.bf16.msra.mxu0 %v1575
        %1746 = vmatpush.bf16.msra.mxu0 %v1571
        %1747 = vmatpush.bf16.msra.mxu0 %v1567
        %1748 = vmatmul.bf16.gmra.mxu0 %v1242
        %v1749 = vpop.f32.mrf.mxu0
        %v1750 = vadd.f32 %v1737, %v1749
        %v1751 = vpop.f32.mrf.mxu0
        %1752 = vdwg.mxu0
        %1753 = vmatpush.bf16.msra.mxu0 %v1627
        %1754 = vmatpush.bf16.msra.mxu0 %v1623
        %1755 = vmatpush.bf16.msra.mxu0 %v1619
        %1756 = vmatpush.bf16.msra.mxu0 %v1615
        %1757 = vmatpush.bf16.msra.mxu0 %v1611
        %1758 = vmatpush.bf16.msra.mxu0 %v1607
        %1759 = vmatpush.bf16.msra.mxu0 %v1603
        %1760 = vmatpush.bf16.msra.mxu0 %v1599
        %1761 = vmatmul.bf16.gmra.mxu0 %v1243
        %v1762 = vpop.f32.mrf.mxu0
        %v1763 = vadd.f32 %v1750, %v1762
        %v1764 = vpop.f32.mrf.mxu0
        %1765 = vdwg.mxu0
        %1766 = vmatpush.bf16.msra.mxu0 %v1564
        %1767 = vmatpush.bf16.msra.mxu0 %v1560
        %1768 = vmatpush.bf16.msra.mxu0 %v1556
        %1769 = vmatpush.bf16.msra.mxu0 %v1552
        %1770 = vmatpush.bf16.msra.mxu0 %v1548
        %1771 = vmatpush.bf16.msra.mxu0 %v1544
        %1772 = vmatpush.bf16.msra.mxu0 %v1540
        %1773 = vmatpush.bf16.msra.mxu0 %v1536
        %1774 = vmatmul.bf16.gmra.mxu0 %v1241
        %v1775 = vpop.f32.mrf.mxu0
        %v1776 = vadd.f32 %v1155, %v1775
        %v1777 = vpop.f32.mrf.mxu0
        %1778 = vdwg.mxu0
        %1779 = vmatpush.bf16.msra.mxu0 %v1596
        %1780 = vmatpush.bf16.msra.mxu0 %v1592
        %1781 = vmatpush.bf16.msra.mxu0 %v1588
        %1782 = vmatpush.bf16.msra.mxu0 %v1584
        %1783 = vmatpush.bf16.msra.mxu0 %v1580
        %1784 = vmatpush.bf16.msra.mxu0 %v1576
        %1785 = vmatpush.bf16.msra.mxu0 %v1572
        %1786 = vmatpush.bf16.msra.mxu0 %v1568
        %1787 = vmatmul.bf16.gmra.mxu0 %v1242
        %v1788 = vpop.f32.mrf.mxu0
        %v1789 = vadd.f32 %v1776, %v1788
        %v1790 = vpop.f32.mrf.mxu0
        %1791 = vdwg.mxu0
        %1792 = vmatpush.bf16.msra.mxu0 %v1628
        %1793 = vmatpush.bf16.msra.mxu0 %v1624
        %1794 = vmatpush.bf16.msra.mxu0 %v1620
        %1795 = vmatpush.bf16.msra.mxu0 %v1616
        %1796 = vmatpush.bf16.msra.mxu0 %v1612
        %1797 = vmatpush.bf16.msra.mxu0 %v1608
        %1798 = vmatpush.bf16.msra.mxu0 %v1604
        %1799 = vmatpush.bf16.msra.mxu0 %v1600
        %1800 = vmatmul.bf16.gmra.mxu0 %v1243
        %v1801 = vpop.f32.mrf.mxu0
        %v1802 = vadd.f32 %v1789, %v1801
        %v1803 = vpop.f32.mrf.mxu0
        %1804 = vdwg.mxu0
        %1805 = vmatpush.bf16.msra.mxu0 %v1565
        %1806 = vmatpush.bf16.msra.mxu0 %v1561
        %1807 = vmatpush.bf16.msra.mxu0 %v1557
        %1808 = vmatpush.bf16.msra.mxu0 %v1553
        %1809 = vmatpush.bf16.msra.mxu0 %v1549
        %1810 = vmatpush.bf16.msra.mxu0 %v1545
        %1811 = vmatpush.bf16.msra.mxu0 %v1541
        %1812 = vmatpush.bf16.msra.mxu0 %v1537
        %1813 = vmatmul.bf16.gmra.mxu0 %v1241
        %v1814 = vpop.f32.mrf.mxu0
        %v1815 = vadd.f32 %v1194, %v1814
        %v1816 = vpop.f32.mrf.mxu0
        %1817 = vdwg.mxu0
        %1818 = vmatpush.bf16.msra.mxu0 %v1597
        %1819 = vmatpush.bf16.msra.mxu0 %v1593
        %1820 = vmatpush.bf16.msra.mxu0 %v1589
        %1821 = vmatpush.bf16.msra.mxu0 %v1585
        %1822 = vmatpush.bf16.msra.mxu0 %v1581
        %1823 = vmatpush.bf16.msra.mxu0 %v1577
        %1824 = vmatpush.bf16.msra.mxu0 %v1573
        %1825 = vmatpush.bf16.msra.mxu0 %v1569
        %1826 = vmatmul.bf16.gmra.mxu0 %v1242
        %v1827 = vpop.f32.mrf.mxu0
        %v1828 = vadd.f32 %v1815, %v1827
        %v1829 = vpop.f32.mrf.mxu0
        %1830 = vdwg.mxu0
        %1831 = vmatpush.bf16.msra.mxu0 %v1629
        %1832 = vmatpush.bf16.msra.mxu0 %v1625
        %1833 = vmatpush.bf16.msra.mxu0 %v1621
        %1834 = vmatpush.bf16.msra.mxu0 %v1617
        %1835 = vmatpush.bf16.msra.mxu0 %v1613
        %1836 = vmatpush.bf16.msra.mxu0 %v1609
        %1837 = vmatpush.bf16.msra.mxu0 %v1605
        %1838 = vmatpush.bf16.msra.mxu0 %v1601
        %1839 = vmatmul.bf16.gmra.mxu0 %v1243
        %v1840 = vpop.f32.mrf.mxu0
        %v1841 = vadd.f32 %v1828, %v1840
        %v1842 = vpop.f32.mrf.mxu0
        %1843 = vdwg.mxu0
        %1844 = vmatpush.bf16.msra.mxu0 %v1566
        %1845 = vmatpush.bf16.msra.mxu0 %v1562
        %1846 = vmatpush.bf16.msra.mxu0 %v1558
        %1847 = vmatpush.bf16.msra.mxu0 %v1554
        %1848 = vmatpush.bf16.msra.mxu0 %v1550
        %1849 = vmatpush.bf16.msra.mxu0 %v1546
        %1850 = vmatpush.bf16.msra.mxu0 %v1542
        %1851 = vmatpush.bf16.msra.mxu0 %v1538
        %1852 = vmatmul.bf16.gmra.mxu0 %v1241
        %v1853 = vpop.f32.mrf.mxu0
        %v1854 = vadd.f32 %v1233, %v1853
        %v1855 = vpop.f32.mrf.mxu0
        %1856 = vdwg.mxu0
        %1857 = vmatpush.bf16.msra.mxu0 %v1598
        %1858 = vmatpush.bf16.msra.mxu0 %v1594
        %1859 = vmatpush.bf16.msra.mxu0 %v1590
        %1860 = vmatpush.bf16.msra.mxu0 %v1586
        %1861 = vmatpush.bf16.msra.mxu0 %v1582
        %1862 = vmatpush.bf16.msra.mxu0 %v1578
        %1863 = vmatpush.bf16.msra.mxu0 %v1574
        %1864 = vmatpush.bf16.msra.mxu0 %v1570
        %1865 = vmatmul.bf16.gmra.mxu0 %v1242
        %v1866 = vpop.f32.mrf.mxu0
        %v1867 = vadd.f32 %v1854, %v1866
        %v1868 = vpop.f32.mrf.mxu0
        %1869 = vdwg.mxu0
        %1870 = vmatpush.bf16.msra.mxu0 %v1630
        %1871 = vmatpush.bf16.msra.mxu0 %v1626
        %1872 = vmatpush.bf16.msra.mxu0 %v1622
        %1873 = vmatpush.bf16.msra.mxu0 %v1618
        %1874 = vmatpush.bf16.msra.mxu0 %v1614
        %1875 = vmatpush.bf16.msra.mxu0 %v1610
        %1876 = vmatpush.bf16.msra.mxu0 %v1606
        %1877 = vmatpush.bf16.msra.mxu0 %v1602
        %1878 = vmatmul.bf16.gmra.mxu0 %v1243
        %v1879 = vpop.f32.mrf.mxu0
        %v1880 = vadd.f32 %v1867, %v1879
        %v1881 = vpop.f32.mrf.mxu0
        %1882 = vdwg.mxu0
        %v1883 = vld [vmem:[%s366] sm:$0x66]
        %v1884 = vld [vmem:[%s366 + $0x8] sm:$0x6]
        %s1885 = scalar_lea.vmem [#allocation2], 1536
        %v1886 = vld [vmem:[%s1885] sm:$0xff]
        %v1887 = vld [vmem:[%s1885 + $0x8] sm:$0xff]
        %v1888 = vld [vmem:[%s1885 + $0x10] sm:$0xff]
        %v1889 = vld [vmem:[%s1885 + $0x18] sm:$0xff]
        %v1890 = vld [vmem:[%s1885 + $0x20] sm:$0xff]
        %v1891 = vld [vmem:[%s1885 + $0x28] sm:$0xff]
        %v1892 = vld [vmem:[%s1885 + $0x30] sm:$0xff]
        %v1893 = vld [vmem:[%s1885 + $0x38] sm:$0xff]
        %v1894 = vld [vmem:[%s1885 + $0x40] sm:$0xff]
        %v1895 = vld [vmem:[%s1885 + $0x48] sm:$0xff]
        %v1896 = vld [vmem:[%s1885 + $0x50] sm:$0xff]
        %v1897 = vld [vmem:[%s1885 + $0x58] sm:$0xff]
        %v1898 = vld [vmem:[%s1885 + $0x60] sm:$0xff]
        %v1899 = vld [vmem:[%s1885 + $0x68] sm:$0xff]
        %v1900 = vld [vmem:[%s1885 + $0x70] sm:$0xff]
        %v1901 = vld [vmem:[%s1885 + $0x78] sm:$0xff]
        %v1902 = vld [vmem:[%s1885 + $0x80] sm:$0xff]
        %v1903 = vld [vmem:[%s1885 + $0x88] sm:$0xff]
        %v1904 = vld [vmem:[%s1885 + $0x90] sm:$0xff]
        %v1905 = vld [vmem:[%s1885 + $0x98] sm:$0xff]
        %v1906 = vld [vmem:[%s1885 + $0xa0] sm:$0xff]
        %v1907 = vld [vmem:[%s1885 + $0xa8] sm:$0xff]
        %v1908 = vld [vmem:[%s1885 + $0xb0] sm:$0xff]
        %v1909 = vld [vmem:[%s1885 + $0xb8] sm:$0xff]
        %v1910 = vld [vmem:[%s1885 + $0xc0] sm:$0xff]
        %v1911 = vld [vmem:[%s1885 + $0xc8] sm:$0xff]
        %v1912 = vld [vmem:[%s1885 + $0xd0] sm:$0xff]
        %v1913 = vld [vmem:[%s1885 + $0xd8] sm:$0xff]
        %v1914 = vld [vmem:[%s1885 + $0xe0] sm:$0xff]
        %v1915 = vld [vmem:[%s1885 + $0xe8] sm:$0xff]
        %v1916 = vld [vmem:[%s1885 + $0xf0] sm:$0xff]
        %v1917 = vld [vmem:[%s1885 + $0xf8] sm:$0xff]
        %v1918 = vld [vmem:[%s1885 + $0x100] sm:$0xff]
        %v1919 = vld [vmem:[%s1885 + $0x108] sm:$0xff]
        %v1920 = vld [vmem:[%s1885 + $0x110] sm:$0xff]
        %v1921 = vld [vmem:[%s1885 + $0x118] sm:$0xff]
        %v1922 = vld [vmem:[%s1885 + $0x120] sm:$0xff]
        %v1923 = vld [vmem:[%s1885 + $0x128] sm:$0xff]
        %v1924 = vld [vmem:[%s1885 + $0x130] sm:$0xff]
        %v1925 = vld [vmem:[%s1885 + $0x138] sm:$0xff]
        %v1926 = vld [vmem:[%s1885 + $0x140] sm:$0xff]
        %v1927 = vld [vmem:[%s1885 + $0x148] sm:$0xff]
        %v1928 = vld [vmem:[%s1885 + $0x150] sm:$0xff]
        %v1929 = vld [vmem:[%s1885 + $0x158] sm:$0xff]
        %v1930 = vld [vmem:[%s1885 + $0x160] sm:$0xff]
        %v1931 = vld [vmem:[%s1885 + $0x168] sm:$0xff]
        %v1932 = vld [vmem:[%s1885 + $0x170] sm:$0xff]
        %v1933 = vld [vmem:[%s1885 + $0x178] sm:$0xff]
        %v1934 = vld [vmem:[%s1885 + $0x180] sm:$0xff]
        %v1935 = vld [vmem:[%s1885 + $0x188] sm:$0xff]
        %v1936 = vld [vmem:[%s1885 + $0x190] sm:$0xff]
        %v1937 = vld [vmem:[%s1885 + $0x198] sm:$0xff]
        %v1938 = vld [vmem:[%s1885 + $0x1a0] sm:$0xff]
        %v1939 = vld [vmem:[%s1885 + $0x1a8] sm:$0xff]
        %v1940 = vld [vmem:[%s1885 + $0x1b0] sm:$0xff]
        %v1941 = vld [vmem:[%s1885 + $0x1b8] sm:$0xff]
        %v1942 = vld [vmem:[%s1885 + $0x1c0] sm:$0xff]
        %v1943 = vld [vmem:[%s1885 + $0x1c8] sm:$0xff]
        %v1944 = vld [vmem:[%s1885 + $0x1d0] sm:$0xff]
        %v1945 = vld [vmem:[%s1885 + $0x1d8] sm:$0xff]
        %v1946 = vld [vmem:[%s1885 + $0x1e0] sm:$0xff]
        %v1947 = vld [vmem:[%s1885 + $0x1e8] sm:$0xff]
        %v1948 = vld [vmem:[%s1885 + $0x1f0] sm:$0xff]
        %v1949 = vld [vmem:[%s1885 + $0x1f8] sm:$0xff]
        %v1950 = vld [vmem:[%s1885 + $0x200] sm:$0xff]
        %v1951 = vld [vmem:[%s1885 + $0x208] sm:$0xff]
        %v1952 = vld [vmem:[%s1885 + $0x210] sm:$0xff]
        %v1953 = vld [vmem:[%s1885 + $0x218] sm:$0xff]
        %v1954 = vld [vmem:[%s1885 + $0x220] sm:$0xff]
        %v1955 = vld [vmem:[%s1885 + $0x228] sm:$0xff]
        %v1956 = vld [vmem:[%s1885 + $0x230] sm:$0xff]
        %v1957 = vld [vmem:[%s1885 + $0x238] sm:$0xff]
        %v1958 = vld [vmem:[%s1885 + $0x240] sm:$0xff]
        %v1959 = vld [vmem:[%s1885 + $0x248] sm:$0xff]
        %v1960 = vld [vmem:[%s1885 + $0x250] sm:$0xff]
        %v1961 = vld [vmem:[%s1885 + $0x258] sm:$0xff]
        %v1962 = vld [vmem:[%s1885 + $0x260] sm:$0xff]
        %v1963 = vld [vmem:[%s1885 + $0x268] sm:$0xff]
        %v1964 = vld [vmem:[%s1885 + $0x270] sm:$0xff]
        %v1965 = vld [vmem:[%s1885 + $0x278] sm:$0xff]
        %v1966 = vld [vmem:[%s1885 + $0x280] sm:$0xff]
        %v1967 = vld [vmem:[%s1885 + $0x288] sm:$0xff]
        %v1968 = vld [vmem:[%s1885 + $0x290] sm:$0xff]
        %v1969 = vld [vmem:[%s1885 + $0x298] sm:$0xff]
        %v1970 = vld [vmem:[%s1885 + $0x2a0] sm:$0xff]
        %v1971 = vld [vmem:[%s1885 + $0x2a8] sm:$0xff]
        %v1972 = vld [vmem:[%s1885 + $0x2b0] sm:$0xff]
        %v1973 = vld [vmem:[%s1885 + $0x2b8] sm:$0xff]
        %v1974 = vld [vmem:[%s1885 + $0x2c0] sm:$0xff]
        %v1975 = vld [vmem:[%s1885 + $0x2c8] sm:$0xff]
        %v1976 = vld [vmem:[%s1885 + $0x2d0] sm:$0xff]
        %v1977 = vld [vmem:[%s1885 + $0x2d8] sm:$0xff]
        %v1978 = vld [vmem:[%s1885 + $0x2e0] sm:$0xff]
        %v1979 = vld [vmem:[%s1885 + $0x2e8] sm:$0xff]
        %v1980 = vld [vmem:[%s1885 + $0x2f0] sm:$0xff]
        %v1981 = vld [vmem:[%s1885 + $0x2f8] sm:$0xff]
        %v1984 = vunpack.c.l.b16 %v1883
        %v1985 = vunpack.c.h.b16 %v1883
        %v1986 = vunpack.c.l.b16 %v1884
        %v1987 = vpack.c.b16 %v1984, %v1984
        %v1988 = vpack.c.b16 %v1985, %v1985
        %v1989 = vpack.c.b16 %v1986, %v1986
        %v1990 = vrot.slane %v1987, 1
        %v1991 = vrot.slane %v1988, 1
        %v1992 = vrot.slane %v1989, 1
        %v2092 = vunpack.c.l.b16 %v1886
        %v2093 = vunpack.c.h.b16 %v1886
        %v2094 = vunpack.c.l.b16 %v1887
        %v2095 = vunpack.c.h.b16 %v1887
        %v2096 = vunpack.c.l.b16 %v1888
        %v2097 = vunpack.c.h.b16 %v1888
        %v2098 = vunpack.c.l.b16 %v1889
        %v2099 = vunpack.c.h.b16 %v1889
        %v2100 = vunpack.c.l.b16 %v1890
        %v2101 = vunpack.c.h.b16 %v1890
        %v2102 = vunpack.c.l.b16 %v1891
        %v2103 = vunpack.c.h.b16 %v1891
        %v2104 = vunpack.c.l.b16 %v1892
        %v2105 = vunpack.c.h.b16 %v1892
        %v2106 = vunpack.c.l.b16 %v1893
        %v2107 = vunpack.c.h.b16 %v1893
        %v2108 = vunpack.c.l.b16 %v1894
        %v2109 = vunpack.c.h.b16 %v1894
        %v2110 = vunpack.c.l.b16 %v1895
        %v2111 = vunpack.c.h.b16 %v1895
        %v2112 = vunpack.c.l.b16 %v1896
        %v2113 = vunpack.c.h.b16 %v1896
        %v2114 = vunpack.c.l.b16 %v1897
        %v2115 = vunpack.c.h.b16 %v1897
        %v2116 = vunpack.c.l.b16 %v1898
        %v2117 = vunpack.c.h.b16 %v1898
        %v2118 = vunpack.c.l.b16 %v1899
        %v2119 = vunpack.c.h.b16 %v1899
        %v2120 = vunpack.c.l.b16 %v1900
        %v2121 = vunpack.c.h.b16 %v1900
        %v2122 = vunpack.c.l.b16 %v1901
        %v2123 = vunpack.c.h.b16 %v1901
        %v2124 = vunpack.c.l.b16 %v1902
        %v2125 = vunpack.c.h.b16 %v1902
        %v2126 = vunpack.c.l.b16 %v1903
        %v2127 = vunpack.c.h.b16 %v1903
        %v2128 = vunpack.c.l.b16 %v1904
        %v2129 = vunpack.c.h.b16 %v1904
        %v2130 = vunpack.c.l.b16 %v1905
        %v2131 = vunpack.c.h.b16 %v1905
        %v2132 = vunpack.c.l.b16 %v1906
        %v2133 = vunpack.c.h.b16 %v1906
        %v2134 = vunpack.c.l.b16 %v1907
        %v2135 = vunpack.c.h.b16 %v1907
        %v2136 = vunpack.c.l.b16 %v1908
        %v2137 = vunpack.c.h.b16 %v1908
        %v2138 = vunpack.c.l.b16 %v1909
        %v2139 = vunpack.c.h.b16 %v1909
        %v2140 = vunpack.c.l.b16 %v1910
        %v2141 = vunpack.c.h.b16 %v1910
        %v2142 = vunpack.c.l.b16 %v1911
        %v2143 = vunpack.c.h.b16 %v1911
        %v2144 = vunpack.c.l.b16 %v1912
        %v2145 = vunpack.c.h.b16 %v1912
        %v2146 = vunpack.c.l.b16 %v1913
        %v2147 = vunpack.c.h.b16 %v1913
        %v2148 = vunpack.c.l.b16 %v1914
        %v2149 = vunpack.c.h.b16 %v1914
        %v2150 = vunpack.c.l.b16 %v1915
        %v2151 = vunpack.c.h.b16 %v1915
        %v2152 = vunpack.c.l.b16 %v1916
        %v2153 = vunpack.c.h.b16 %v1916
        %v2154 = vunpack.c.l.b16 %v1917
        %v2155 = vunpack.c.h.b16 %v1917
        %v2156 = vunpack.c.l.b16 %v1918
        %v2157 = vunpack.c.h.b16 %v1918
        %v2158 = vunpack.c.l.b16 %v1919
        %v2159 = vunpack.c.h.b16 %v1919
        %v2160 = vunpack.c.l.b16 %v1920
        %v2161 = vunpack.c.h.b16 %v1920
        %v2162 = vunpack.c.l.b16 %v1921
        %v2163 = vunpack.c.h.b16 %v1921
        %v2164 = vunpack.c.l.b16 %v1922
        %v2165 = vunpack.c.h.b16 %v1922
        %v2166 = vunpack.c.l.b16 %v1923
        %v2167 = vunpack.c.h.b16 %v1923
        %v2168 = vunpack.c.l.b16 %v1924
        %v2169 = vunpack.c.h.b16 %v1924
        %v2170 = vunpack.c.l.b16 %v1925
        %v2171 = vunpack.c.h.b16 %v1925
        %v2172 = vunpack.c.l.b16 %v1926
        %v2173 = vunpack.c.h.b16 %v1926
        %v2174 = vunpack.c.l.b16 %v1927
        %v2175 = vunpack.c.h.b16 %v1927
        %v2176 = vunpack.c.l.b16 %v1928
        %v2177 = vunpack.c.h.b16 %v1928
        %v2178 = vunpack.c.l.b16 %v1929
        %v2179 = vunpack.c.h.b16 %v1929
        %v2180 = vunpack.c.l.b16 %v1930
        %v2181 = vunpack.c.h.b16 %v1930
        %v2182 = vunpack.c.l.b16 %v1931
        %v2183 = vunpack.c.h.b16 %v1931
        %v2184 = vunpack.c.l.b16 %v1932
        %v2185 = vunpack.c.h.b16 %v1932
        %v2186 = vunpack.c.l.b16 %v1933
        %v2187 = vunpack.c.h.b16 %v1933
        %v2188 = vunpack.c.l.b16 %v1934
        %v2189 = vunpack.c.h.b16 %v1934
        %v2190 = vunpack.c.l.b16 %v1935
        %v2191 = vunpack.c.h.b16 %v1935
        %v2192 = vunpack.c.l.b16 %v1936
        %v2193 = vunpack.c.h.b16 %v1936
        %v2194 = vunpack.c.l.b16 %v1937
        %v2195 = vunpack.c.h.b16 %v1937
        %v2196 = vunpack.c.l.b16 %v1938
        %v2197 = vunpack.c.h.b16 %v1938
        %v2198 = vunpack.c.l.b16 %v1939
        %v2199 = vunpack.c.h.b16 %v1939
        %v2200 = vunpack.c.l.b16 %v1940
        %v2201 = vunpack.c.h.b16 %v1940
        %v2202 = vunpack.c.l.b16 %v1941
        %v2203 = vunpack.c.h.b16 %v1941
        %v2204 = vunpack.c.l.b16 %v1942
        %v2205 = vunpack.c.h.b16 %v1942
        %v2206 = vunpack.c.l.b16 %v1943
        %v2207 = vunpack.c.h.b16 %v1943
        %v2208 = vunpack.c.l.b16 %v1944
        %v2209 = vunpack.c.h.b16 %v1944
        %v2210 = vunpack.c.l.b16 %v1945
        %v2211 = vunpack.c.h.b16 %v1945
        %v2212 = vunpack.c.l.b16 %v1946
        %v2213 = vunpack.c.h.b16 %v1946
        %v2214 = vunpack.c.l.b16 %v1947
        %v2215 = vunpack.c.h.b16 %v1947
        %v2216 = vunpack.c.l.b16 %v1948
        %v2217 = vunpack.c.h.b16 %v1948
        %v2218 = vunpack.c.l.b16 %v1949
        %v2219 = vunpack.c.h.b16 %v1949
        %v2220 = vunpack.c.l.b16 %v1950
        %v2221 = vunpack.c.h.b16 %v1950
        %v2222 = vunpack.c.l.b16 %v1951
        %v2223 = vunpack.c.h.b16 %v1951
        %v2224 = vunpack.c.l.b16 %v1952
        %v2225 = vunpack.c.h.b16 %v1952
        %v2226 = vunpack.c.l.b16 %v1953
        %v2227 = vunpack.c.h.b16 %v1953
        %v2228 = vunpack.c.l.b16 %v1954
        %v2229 = vunpack.c.h.b16 %v1954
        %v2230 = vunpack.c.l.b16 %v1955
        %v2231 = vunpack.c.h.b16 %v1955
        %v2232 = vunpack.c.l.b16 %v1956
        %v2233 = vunpack.c.h.b16 %v1956
        %v2234 = vunpack.c.l.b16 %v1957
        %v2235 = vunpack.c.h.b16 %v1957
        %v2236 = vunpack.c.l.b16 %v1958
        %v2237 = vunpack.c.h.b16 %v1958
        %v2238 = vunpack.c.l.b16 %v1959
        %v2239 = vunpack.c.h.b16 %v1959
        %v2240 = vunpack.c.l.b16 %v1960
        %v2241 = vunpack.c.h.b16 %v1960
        %v2242 = vunpack.c.l.b16 %v1961
        %v2243 = vunpack.c.h.b16 %v1961
        %v2244 = vunpack.c.l.b16 %v1962
        %v2245 = vunpack.c.h.b16 %v1962
        %v2246 = vunpack.c.l.b16 %v1963
        %v2247 = vunpack.c.h.b16 %v1963
        %v2248 = vunpack.c.l.b16 %v1964
        %v2249 = vunpack.c.h.b16 %v1964
        %v2250 = vunpack.c.l.b16 %v1965
        %v2251 = vunpack.c.h.b16 %v1965
        %v2252 = vunpack.c.l.b16 %v1966
        %v2253 = vunpack.c.h.b16 %v1966
        %v2254 = vunpack.c.l.b16 %v1967
        %v2255 = vunpack.c.h.b16 %v1967
        %v2256 = vunpack.c.l.b16 %v1968
        %v2257 = vunpack.c.h.b16 %v1968
        %v2258 = vunpack.c.l.b16 %v1969
        %v2259 = vunpack.c.h.b16 %v1969
        %v2260 = vunpack.c.l.b16 %v1970
        %v2261 = vunpack.c.h.b16 %v1970
        %v2262 = vunpack.c.l.b16 %v1971
        %v2263 = vunpack.c.h.b16 %v1971
        %v2264 = vunpack.c.l.b16 %v1972
        %v2265 = vunpack.c.h.b16 %v1972
        %v2266 = vunpack.c.l.b16 %v1973
        %v2267 = vunpack.c.h.b16 %v1973
        %v2268 = vunpack.c.l.b16 %v1974
        %v2269 = vunpack.c.h.b16 %v1974
        %v2270 = vunpack.c.l.b16 %v1975
        %v2271 = vunpack.c.h.b16 %v1975
        %v2272 = vunpack.c.l.b16 %v1976
        %v2273 = vunpack.c.h.b16 %v1976
        %v2274 = vunpack.c.l.b16 %v1977
        %v2275 = vunpack.c.h.b16 %v1977
        %v2276 = vunpack.c.l.b16 %v1978
        %v2277 = vunpack.c.h.b16 %v1978
        %v2278 = vunpack.c.l.b16 %v1979
        %v2279 = vunpack.c.h.b16 %v1979
        %v2280 = vunpack.c.l.b16 %v1980
        %v2281 = vunpack.c.h.b16 %v1980
        %v2282 = vunpack.c.l.b16 %v1981
        %v2283 = vunpack.c.h.b16 %v1981
        %v2284 = vpack.c.b16 %v2096, %v2092
        %v2285 = vpack.c.b16 %v2097, %v2093
        %v2286 = vpack.c.b16 %v2098, %v2094
        %v2287 = vpack.c.b16 %v2099, %v2095
        %v2288 = vpack.c.b16 %v2104, %v2100
        %v2289 = vpack.c.b16 %v2105, %v2101
        %v2290 = vpack.c.b16 %v2106, %v2102
        %v2291 = vpack.c.b16 %v2107, %v2103
        %v2292 = vpack.c.b16 %v2112, %v2108
        %v2293 = vpack.c.b16 %v2113, %v2109
        %v2294 = vpack.c.b16 %v2114, %v2110
        %v2295 = vpack.c.b16 %v2115, %v2111
        %v2296 = vpack.c.b16 %v2120, %v2116
        %v2297 = vpack.c.b16 %v2121, %v2117
        %v2298 = vpack.c.b16 %v2122, %v2118
        %v2299 = vpack.c.b16 %v2123, %v2119
        %v2300 = vpack.c.b16 %v2128, %v2124
        %v2301 = vpack.c.b16 %v2129, %v2125
        %v2302 = vpack.c.b16 %v2130, %v2126
        %v2303 = vpack.c.b16 %v2131, %v2127
        %v2304 = vpack.c.b16 %v2136, %v2132
        %v2305 = vpack.c.b16 %v2137, %v2133
        %v2306 = vpack.c.b16 %v2138, %v2134
        %v2307 = vpack.c.b16 %v2139, %v2135
        %v2308 = vpack.c.b16 %v2144, %v2140
        %v2309 = vpack.c.b16 %v2145, %v2141
        %v2310 = vpack.c.b16 %v2146, %v2142
        %v2311 = vpack.c.b16 %v2147, %v2143
        %v2312 = vpack.c.b16 %v2152, %v2148
        %v2313 = vpack.c.b16 %v2153, %v2149
        %v2314 = vpack.c.b16 %v2154, %v2150
        %v2315 = vpack.c.b16 %v2155, %v2151
        %v2316 = vpack.c.b16 %v2160, %v2156
        %v2317 = vpack.c.b16 %v2161, %v2157
        %v2318 = vpack.c.b16 %v2162, %v2158
        %v2319 = vpack.c.b16 %v2163, %v2159
        %v2320 = vpack.c.b16 %v2168, %v2164
        %v2321 = vpack.c.b16 %v2169, %v2165
        %v2322 = vpack.c.b16 %v2170, %v2166
        %v2323 = vpack.c.b16 %v2171, %v2167
        %v2324 = vpack.c.b16 %v2176, %v2172
        %v2325 = vpack.c.b16 %v2177, %v2173
        %v2326 = vpack.c.b16 %v2178, %v2174
        %v2327 = vpack.c.b16 %v2179, %v2175
        %v2328 = vpack.c.b16 %v2184, %v2180
        %v2329 = vpack.c.b16 %v2185, %v2181
        %v2330 = vpack.c.b16 %v2186, %v2182
        %v2331 = vpack.c.b16 %v2187, %v2183
        %v2332 = vpack.c.b16 %v2192, %v2188
        %v2333 = vpack.c.b16 %v2193, %v2189
        %v2334 = vpack.c.b16 %v2194, %v2190
        %v2335 = vpack.c.b16 %v2195, %v2191
        %v2336 = vpack.c.b16 %v2200, %v2196
        %v2337 = vpack.c.b16 %v2201, %v2197
        %v2338 = vpack.c.b16 %v2202, %v2198
        %v2339 = vpack.c.b16 %v2203, %v2199
        %v2340 = vpack.c.b16 %v2208, %v2204
        %v2341 = vpack.c.b16 %v2209, %v2205
        %v2342 = vpack.c.b16 %v2210, %v2206
        %v2343 = vpack.c.b16 %v2211, %v2207
        %v2344 = vpack.c.b16 %v2216, %v2212
        %v2345 = vpack.c.b16 %v2217, %v2213
        %v2346 = vpack.c.b16 %v2218, %v2214
        %v2347 = vpack.c.b16 %v2219, %v2215
        %v2348 = vpack.c.b16 %v2224, %v2220
        %v2349 = vpack.c.b16 %v2225, %v2221
        %v2350 = vpack.c.b16 %v2226, %v2222
        %v2351 = vpack.c.b16 %v2227, %v2223
        %v2352 = vpack.c.b16 %v2232, %v2228
        %v2353 = vpack.c.b16 %v2233, %v2229
        %v2354 = vpack.c.b16 %v2234, %v2230
        %v2355 = vpack.c.b16 %v2235, %v2231
        %v2356 = vpack.c.b16 %v2240, %v2236
        %v2357 = vpack.c.b16 %v2241, %v2237
        %v2358 = vpack.c.b16 %v2242, %v2238
        %v2359 = vpack.c.b16 %v2243, %v2239
        %v2360 = vpack.c.b16 %v2248, %v2244
        %v2361 = vpack.c.b16 %v2249, %v2245
        %v2362 = vpack.c.b16 %v2250, %v2246
        %v2363 = vpack.c.b16 %v2251, %v2247
        %v2364 = vpack.c.b16 %v2256, %v2252
        %v2365 = vpack.c.b16 %v2257, %v2253
        %v2366 = vpack.c.b16 %v2258, %v2254
        %v2367 = vpack.c.b16 %v2259, %v2255
        %v2368 = vpack.c.b16 %v2264, %v2260
        %v2369 = vpack.c.b16 %v2265, %v2261
        %v2370 = vpack.c.b16 %v2266, %v2262
        %v2371 = vpack.c.b16 %v2267, %v2263
        %v2372 = vpack.c.b16 %v2272, %v2268
        %v2373 = vpack.c.b16 %v2273, %v2269
        %v2374 = vpack.c.b16 %v2274, %v2270
        %v2375 = vpack.c.b16 %v2275, %v2271
        %v2376 = vpack.c.b16 %v2280, %v2276
        %v2377 = vpack.c.b16 %v2281, %v2277
        %v2378 = vpack.c.b16 %v2282, %v2278
        %v2379 = vpack.c.b16 %v2283, %v2279
        %2476 = vmatpush.bf16.msra.mxu0 %v2312
        %2477 = vmatpush.bf16.msra.mxu0 %v2308
        %2478 = vmatpush.bf16.msra.mxu0 %v2304
        %2479 = vmatpush.bf16.msra.mxu0 %v2300
        %2480 = vmatpush.bf16.msra.mxu0 %v2296
        %2481 = vmatpush.bf16.msra.mxu0 %v2292
        %2482 = vmatpush.bf16.msra.mxu0 %v2288
        %2483 = vmatpush.bf16.msra.mxu0 %v2284
        %2484 = vmatmul.bf16.gmra.mxu0 %v1990
        %v2485 = vpop.f32.mrf.mxu0
        %v2486 = vadd.f32 0.0, %v2485
        %v2487 = vpop.f32.mrf.mxu0
        %2488 = vdwg.mxu0
        %2489 = vmatpush.bf16.msra.mxu0 %v2344
        %2490 = vmatpush.bf16.msra.mxu0 %v2340
        %2491 = vmatpush.bf16.msra.mxu0 %v2336
        %2492 = vmatpush.bf16.msra.mxu0 %v2332
        %2493 = vmatpush.bf16.msra.mxu0 %v2328
        %2494 = vmatpush.bf16.msra.mxu0 %v2324
        %2495 = vmatpush.bf16.msra.mxu0 %v2320
        %2496 = vmatpush.bf16.msra.mxu0 %v2316
        %2497 = vmatmul.bf16.gmra.mxu0 %v1991
        %v2498 = vpop.f32.mrf.mxu0
        %v2499 = vadd.f32 %v2486, %v2498
        %v2500 = vpop.f32.mrf.mxu0
        %2501 = vdwg.mxu0
        %2502 = vmatpush.bf16.msra.mxu0 %v2376
        %2503 = vmatpush.bf16.msra.mxu0 %v2372
        %2504 = vmatpush.bf16.msra.mxu0 %v2368
        %2505 = vmatpush.bf16.msra.mxu0 %v2364
        %2506 = vmatpush.bf16.msra.mxu0 %v2360
        %2507 = vmatpush.bf16.msra.mxu0 %v2356
        %2508 = vmatpush.bf16.msra.mxu0 %v2352
        %2509 = vmatpush.bf16.msra.mxu0 %v2348
        %2510 = vmatmul.bf16.gmra.mxu0 %v1992
        %v2511 = vpop.f32.mrf.mxu0
        %v2512 = vadd.f32 %v2499, %v2511
        %v2513 = vpop.f32.mrf.mxu0
        %2514 = vdwg.mxu0
        %2515 = vmatpush.bf16.msra.mxu0 %v2313
        %2516 = vmatpush.bf16.msra.mxu0 %v2309
        %2517 = vmatpush.bf16.msra.mxu0 %v2305
        %2518 = vmatpush.bf16.msra.mxu0 %v2301
        %2519 = vmatpush.bf16.msra.mxu0 %v2297
        %2520 = vmatpush.bf16.msra.mxu0 %v2293
        %2521 = vmatpush.bf16.msra.mxu0 %v2289
        %2522 = vmatpush.bf16.msra.mxu0 %v2285
        %2523 = vmatmul.bf16.gmra.mxu0 %v1990
        %v2524 = vpop.f32.mrf.mxu0
        %v2525 = vadd.f32 0.0, %v2524
        %v2526 = vpop.f32.mrf.mxu0
        %2527 = vdwg.mxu0
        %2528 = vmatpush.bf16.msra.mxu0 %v2345
        %2529 = vmatpush.bf16.msra.mxu0 %v2341
        %2530 = vmatpush.bf16.msra.mxu0 %v2337
        %2531 = vmatpush.bf16.msra.mxu0 %v2333
        %2532 = vmatpush.bf16.msra.mxu0 %v2329
        %2533 = vmatpush.bf16.msra.mxu0 %v2325
        %2534 = vmatpush.bf16.msra.mxu0 %v2321
        %2535 = vmatpush.bf16.msra.mxu0 %v2317
        %2536 = vmatmul.bf16.gmra.mxu0 %v1991
        %v2537 = vpop.f32.mrf.mxu0
        %v2538 = vadd.f32 %v2525, %v2537
        %v2539 = vpop.f32.mrf.mxu0
        %2540 = vdwg.mxu0
        %2541 = vmatpush.bf16.msra.mxu0 %v2377
        %2542 = vmatpush.bf16.msra.mxu0 %v2373
        %2543 = vmatpush.bf16.msra.mxu0 %v2369
        %2544 = vmatpush.bf16.msra.mxu0 %v2365
        %2545 = vmatpush.bf16.msra.mxu0 %v2361
        %2546 = vmatpush.bf16.msra.mxu0 %v2357
        %2547 = vmatpush.bf16.msra.mxu0 %v2353
        %2548 = vmatpush.bf16.msra.mxu0 %v2349
        %2549 = vmatmul.bf16.gmra.mxu0 %v1992
        %v2550 = vpop.f32.mrf.mxu0
        %v2551 = vadd.f32 %v2538, %v2550
        %v2552 = vpop.f32.mrf.mxu0
        %2553 = vdwg.mxu0
        %2554 = vmatpush.bf16.msra.mxu0 %v2314
        %2555 = vmatpush.bf16.msra.mxu0 %v2310
        %2556 = vmatpush.bf16.msra.mxu0 %v2306
        %2557 = vmatpush.bf16.msra.mxu0 %v2302
        %2558 = vmatpush.bf16.msra.mxu0 %v2298
        %2559 = vmatpush.bf16.msra.mxu0 %v2294
        %2560 = vmatpush.bf16.msra.mxu0 %v2290
        %2561 = vmatpush.bf16.msra.mxu0 %v2286
        %2562 = vmatmul.bf16.gmra.mxu0 %v1990
        %v2563 = vpop.f32.mrf.mxu0
        %v2564 = vadd.f32 0.0, %v2563
        %v2565 = vpop.f32.mrf.mxu0
        %2566 = vdwg.mxu0
        %2567 = vmatpush.bf16.msra.mxu0 %v2346
        %2568 = vmatpush.bf16.msra.mxu0 %v2342
        %2569 = vmatpush.bf16.msra.mxu0 %v2338
        %2570 = vmatpush.bf16.msra.mxu0 %v2334
        %2571 = vmatpush.bf16.msra.mxu0 %v2330
        %2572 = vmatpush.bf16.msra.mxu0 %v2326
        %2573 = vmatpush.bf16.msra.mxu0 %v2322
        %2574 = vmatpush.bf16.msra.mxu0 %v2318
        %2575 = vmatmul.bf16.gmra.mxu0 %v1991
        %v2576 = vpop.f32.mrf.mxu0
        %v2577 = vadd.f32 %v2564, %v2576
        %v2578 = vpop.f32.mrf.mxu0
        %2579 = vdwg.mxu0
        %2580 = vmatpush.bf16.msra.mxu0 %v2378
        %2581 = vmatpush.bf16.msra.mxu0 %v2374
        %2582 = vmatpush.bf16.msra.mxu0 %v2370
        %2583 = vmatpush.bf16.msra.mxu0 %v2366
        %2584 = vmatpush.bf16.msra.mxu0 %v2362
        %2585 = vmatpush.bf16.msra.mxu0 %v2358
        %2586 = vmatpush.bf16.msra.mxu0 %v2354
        %2587 = vmatpush.bf16.msra.mxu0 %v2350
        %2588 = vmatmul.bf16.gmra.mxu0 %v1992
        %v2589 = vpop.f32.mrf.mxu0
        %v2590 = vadd.f32 %v2577, %v2589
        %v2591 = vpop.f32.mrf.mxu0
        %2592 = vdwg.mxu0
        %2593 = vmatpush.bf16.msra.mxu0 %v2315
        %2594 = vmatpush.bf16.msra.mxu0 %v2311
        %2595 = vmatpush.bf16.msra.mxu0 %v2307
        %2596 = vmatpush.bf16.msra.mxu0 %v2303
        %2597 = vmatpush.bf16.msra.mxu0 %v2299
        %2598 = vmatpush.bf16.msra.mxu0 %v2295
        %2599 = vmatpush.bf16.msra.mxu0 %v2291
        %2600 = vmatpush.bf16.msra.mxu0 %v2287
        %2601 = vmatmul.bf16.gmra.mxu0 %v1990
        %v2602 = vpop.f32.mrf.mxu0
        %v2603 = vadd.f32 0.0, %v2602
        %v2604 = vpop.f32.mrf.mxu0
        %2605 = vdwg.mxu0
        %2606 = vmatpush.bf16.msra.mxu0 %v2347
        %2607 = vmatpush.bf16.msra.mxu0 %v2343
        %2608 = vmatpush.bf16.msra.mxu0 %v2339
        %2609 = vmatpush.bf16.msra.mxu0 %v2335
        %2610 = vmatpush.bf16.msra.mxu0 %v2331
        %2611 = vmatpush.bf16.msra.mxu0 %v2327
        %2612 = vmatpush.bf16.msra.mxu0 %v2323
        %2613 = vmatpush.bf16.msra.mxu0 %v2319
        %2614 = vmatmul.bf16.gmra.mxu0 %v1991
        %v2615 = vpop.f32.mrf.mxu0
        %v2616 = vadd.f32 %v2603, %v2615
        %v2617 = vpop.f32.mrf.mxu0
        %2618 = vdwg.mxu0
        %2619 = vmatpush.bf16.msra.mxu0 %v2379
        %2620 = vmatpush.bf16.msra.mxu0 %v2375
        %2621 = vmatpush.bf16.msra.mxu0 %v2371
        %2622 = vmatpush.bf16.msra.mxu0 %v2367
        %2623 = vmatpush.bf16.msra.mxu0 %v2363
        %2624 = vmatpush.bf16.msra.mxu0 %v2359
        %2625 = vmatpush.bf16.msra.mxu0 %v2355
        %2626 = vmatpush.bf16.msra.mxu0 %v2351
        %2627 = vmatmul.bf16.gmra.mxu0 %v1992
        %v2628 = vpop.f32.mrf.mxu0
        %v2629 = vadd.f32 %v2616, %v2628
        %v2630 = vpop.f32.mrf.mxu0
        %2631 = vdwg.mxu0
        %v2632 = vadd.f32 %v1763, %v2512
        %v2633 = vadd.f32 %v1802, %v2551
        %v2634 = vadd.f32 %v1841, %v2590
        %v2635 = vadd.f32 %v1880, %v2629
        %v2636 = vld [vmem:[#allocation4] sm:$0xf]
        %v2638 = vperm.slane %v2636, 0
        %v2639 = vperm.slane %v2636, 1
        %v2640 = vperm.slane %v2636, 2
        %v2641 = vperm.slane %v2636, 3
        %v2646 = vadd.f32 %v2632, %v2638
        %v2647 = vadd.f32 %v2633, %v2639
        %v2648 = vadd.f32 %v2634, %v2640
        %v2649 = vadd.f32 %v2635, %v2641
        %v2650 = vmax.f32 %v2646, 0.0
        %v2651 = vmax.f32 %v2647, 0.0
        %v2652 = vmax.f32 %v2648, 0.0
        %v2653 = vmax.f32 %v2649, 0.0
        %v2654 = vpack.c.bf16 %v2651, %v2650
        %v2655 = vpack.c.bf16 %v2653, %v2652
        %v2656 = vld [vmem:[#allocation6] sm:$0xf]
        %v2657 = vld [vmem:[#allocation6 + $0x4] sm:$0xf]
        %v2658 = vld [vmem:[#allocation6 + $0x8] sm:$0xf]
        %v2659 = vld [vmem:[#allocation6 + $0xc] sm:$0xf]
        %v2660 = vld [vmem:[#allocation6 + $0x10] sm:$0xf]
        %v2661 = vld [vmem:[#allocation6 + $0x14] sm:$0xf]
        %v2662 = vld [vmem:[#allocation6 + $0x18] sm:$0xf]
        %v2663 = vld [vmem:[#allocation6 + $0x1c] sm:$0xf]
        %v2664 = vld [vmem:[#allocation6 + $0x20] sm:$0xf]
        %v2665 = vld [vmem:[#allocation6 + $0x24] sm:$0xf]
        %v2666 = vld [vmem:[#allocation6 + $0x28] sm:$0xf]
        %v2667 = vld [vmem:[#allocation6 + $0x2c] sm:$0xf]
        %v2668 = vld [vmem:[#allocation6 + $0x30] sm:$0xf]
        %v2669 = vld [vmem:[#allocation6 + $0x34] sm:$0xf]
        %v2670 = vld [vmem:[#allocation6 + $0x38] sm:$0xf]
        %v2671 = vld [vmem:[#allocation6 + $0x3c] sm:$0xf]
        %v2672 = vld [vmem:[#allocation6 + $0x40] sm:$0xf]
        %v2673 = vld [vmem:[#allocation6 + $0x44] sm:$0xf]
        %v2674 = vld [vmem:[#allocation6 + $0x48] sm:$0xf]
        %v2675 = vld [vmem:[#allocation6 + $0x4c] sm:$0xf]
        %v2676 = vld [vmem:[#allocation6 + $0x50] sm:$0xf]
        %v2677 = vld [vmem:[#allocation6 + $0x54] sm:$0xf]
        %v2678 = vld [vmem:[#allocation6 + $0x58] sm:$0xf]
        %v2679 = vld [vmem:[#allocation6 + $0x5c] sm:$0xf]
        %v2680 = vld [vmem:[#allocation6 + $0x60] sm:$0xf]
        %v2681 = vld [vmem:[#allocation6 + $0x64] sm:$0xf]
        %v2682 = vld [vmem:[#allocation6 + $0x68] sm:$0xf]
        %v2683 = vld [vmem:[#allocation6 + $0x6c] sm:$0xf]
        %v2684 = vld [vmem:[#allocation6 + $0x70] sm:$0xf]
        %v2685 = vld [vmem:[#allocation6 + $0x74] sm:$0xf]
        %v2686 = vld [vmem:[#allocation6 + $0x78] sm:$0xf]
        %v2687 = vld [vmem:[#allocation6 + $0x7c] sm:$0xf]
        %v2688 = vld [vmem:[#allocation6 + $0x80] sm:$0xf]
        %v2689 = vld [vmem:[#allocation6 + $0x84] sm:$0xf]
        %v2690 = vld [vmem:[#allocation6 + $0x88] sm:$0xf]
        %v2691 = vld [vmem:[#allocation6 + $0x8c] sm:$0xf]
        %v2692 = vld [vmem:[#allocation6 + $0x90] sm:$0xf]
        %v2693 = vld [vmem:[#allocation6 + $0x94] sm:$0xf]
        %v2694 = vld [vmem:[#allocation6 + $0x98] sm:$0xf]
        %v2695 = vld [vmem:[#allocation6 + $0x9c] sm:$0xf]
        %v2696 = vld [vmem:[#allocation6 + $0xa0] sm:$0xf]
        %v2697 = vld [vmem:[#allocation6 + $0xa4] sm:$0xf]
        %v2698 = vld [vmem:[#allocation6 + $0xa8] sm:$0xf]
        %v2699 = vld [vmem:[#allocation6 + $0xac] sm:$0xf]
        %v2700 = vld [vmem:[#allocation6 + $0xb0] sm:$0xf]
        %v2701 = vld [vmem:[#allocation6 + $0xb4] sm:$0xf]
        %v2702 = vld [vmem:[#allocation6 + $0xb8] sm:$0xf]
        %v2703 = vld [vmem:[#allocation6 + $0xbc] sm:$0xf]
        %v2704 = vld [vmem:[#allocation6 + $0xc0] sm:$0xf]
        %v2705 = vld [vmem:[#allocation6 + $0xc4] sm:$0xf]
        %v2706 = vld [vmem:[#allocation6 + $0xc8] sm:$0xf]
        %v2707 = vld [vmem:[#allocation6 + $0xcc] sm:$0xf]
        %v2708 = vld [vmem:[#allocation6 + $0xd0] sm:$0xf]
        %v2709 = vld [vmem:[#allocation6 + $0xd4] sm:$0xf]
        %v2710 = vld [vmem:[#allocation6 + $0xd8] sm:$0xf]
        %v2711 = vld [vmem:[#allocation6 + $0xdc] sm:$0xf]
        %v2712 = vld [vmem:[#allocation6 + $0xe0] sm:$0xf]
        %v2713 = vld [vmem:[#allocation6 + $0xe4] sm:$0xf]
        %v2714 = vld [vmem:[#allocation6 + $0xe8] sm:$0xf]
        %v2715 = vld [vmem:[#allocation6 + $0xec] sm:$0xf]
        %v2716 = vld [vmem:[#allocation6 + $0xf0] sm:$0xf]
        %v2717 = vld [vmem:[#allocation6 + $0xf4] sm:$0xf]
        %v2718 = vld [vmem:[#allocation6 + $0xf8] sm:$0xf]
        %v2719 = vld [vmem:[#allocation6 + $0xfc] sm:$0xf]
        %s2720 = scalar_lea.vmem [#allocation6], 256
        %v2721 = vld [vmem:[%s2720] sm:$0xf]
        %v2722 = vld [vmem:[%s2720 + $0x4] sm:$0xf]
        %v2723 = vld [vmem:[%s2720 + $0x8] sm:$0xf]
        %v2724 = vld [vmem:[%s2720 + $0xc] sm:$0xf]
        %v2725 = vld [vmem:[%s2720 + $0x10] sm:$0xf]
        %v2726 = vld [vmem:[%s2720 + $0x14] sm:$0xf]
        %v2727 = vld [vmem:[%s2720 + $0x18] sm:$0xf]
        %v2728 = vld [vmem:[%s2720 + $0x1c] sm:$0xf]
        %v2729 = vld [vmem:[%s2720 + $0x20] sm:$0xf]
        %v2730 = vld [vmem:[%s2720 + $0x24] sm:$0xf]
        %v2731 = vld [vmem:[%s2720 + $0x28] sm:$0xf]
        %v2732 = vld [vmem:[%s2720 + $0x2c] sm:$0xf]
        %v2733 = vld [vmem:[%s2720 + $0x30] sm:$0xf]
        %v2734 = vld [vmem:[%s2720 + $0x34] sm:$0xf]
        %v2735 = vld [vmem:[%s2720 + $0x38] sm:$0xf]
        %v2736 = vld [vmem:[%s2720 + $0x3c] sm:$0xf]
        %v2737 = vld [vmem:[%s2720 + $0x40] sm:$0xf]
        %v2738 = vld [vmem:[%s2720 + $0x44] sm:$0xf]
        %v2739 = vld [vmem:[%s2720 + $0x48] sm:$0xf]
        %v2740 = vld [vmem:[%s2720 + $0x4c] sm:$0xf]
        %v2741 = vld [vmem:[%s2720 + $0x50] sm:$0xf]
        %v2742 = vld [vmem:[%s2720 + $0x54] sm:$0xf]
        %v2743 = vld [vmem:[%s2720 + $0x58] sm:$0xf]
        %v2744 = vld [vmem:[%s2720 + $0x5c] sm:$0xf]
        %v2745 = vld [vmem:[%s2720 + $0x60] sm:$0xf]
        %v2746 = vld [vmem:[%s2720 + $0x64] sm:$0xf]
        %v2747 = vld [vmem:[%s2720 + $0x68] sm:$0xf]
        %v2748 = vld [vmem:[%s2720 + $0x6c] sm:$0xf]
        %v2749 = vld [vmem:[%s2720 + $0x70] sm:$0xf]
        %v2750 = vld [vmem:[%s2720 + $0x74] sm:$0xf]
        %v2751 = vld [vmem:[%s2720 + $0x78] sm:$0xf]
        %v2752 = vld [vmem:[%s2720 + $0x7c] sm:$0xf]
        %v2753 = vld [vmem:[%s2720 + $0x80] sm:$0xf]
        %v2754 = vld [vmem:[%s2720 + $0x84] sm:$0xf]
        %v2755 = vld [vmem:[%s2720 + $0x88] sm:$0xf]
        %v2756 = vld [vmem:[%s2720 + $0x8c] sm:$0xf]
        %v2757 = vld [vmem:[%s2720 + $0x90] sm:$0xf]
        %v2758 = vld [vmem:[%s2720 + $0x94] sm:$0xf]
        %v2759 = vld [vmem:[%s2720 + $0x98] sm:$0xf]
        %v2760 = vld [vmem:[%s2720 + $0x9c] sm:$0xf]
        %v2761 = vld [vmem:[%s2720 + $0xa0] sm:$0xf]
        %v2762 = vld [vmem:[%s2720 + $0xa4] sm:$0xf]
        %v2763 = vld [vmem:[%s2720 + $0xa8] sm:$0xf]
        %v2764 = vld [vmem:[%s2720 + $0xac] sm:$0xf]
        %v2765 = vld [vmem:[%s2720 + $0xb0] sm:$0xf]
        %v2766 = vld [vmem:[%s2720 + $0xb4] sm:$0xf]
        %v2767 = vld [vmem:[%s2720 + $0xb8] sm:$0xf]
        %v2768 = vld [vmem:[%s2720 + $0xbc] sm:$0xf]
        %v2769 = vld [vmem:[%s2720 + $0xc0] sm:$0xf]
        %v2770 = vld [vmem:[%s2720 + $0xc4] sm:$0xf]
        %v2771 = vld [vmem:[%s2720 + $0xc8] sm:$0xf]
        %v2772 = vld [vmem:[%s2720 + $0xcc] sm:$0xf]
        %v2773 = vld [vmem:[%s2720 + $0xd0] sm:$0xf]
        %v2774 = vld [vmem:[%s2720 + $0xd4] sm:$0xf]
        %v2775 = vld [vmem:[%s2720 + $0xd8] sm:$0xf]
        %v2776 = vld [vmem:[%s2720 + $0xdc] sm:$0xf]
        %v2777 = vld [vmem:[%s2720 + $0xe0] sm:$0xf]
        %v2778 = vld [vmem:[%s2720 + $0xe4] sm:$0xf]
        %v2779 = vld [vmem:[%s2720 + $0xe8] sm:$0xf]
        %v2780 = vld [vmem:[%s2720 + $0xec] sm:$0xf]
        %v2781 = vld [vmem:[%s2720 + $0xf0] sm:$0xf]
        %v2782 = vld [vmem:[%s2720 + $0xf4] sm:$0xf]
        %v2783 = vld [vmem:[%s2720 + $0xf8] sm:$0xf]
        %v2784 = vld [vmem:[%s2720 + $0xfc] sm:$0xf]
        %v2787 = vunpack.c.l.b16 %v2654
        %v2788 = vunpack.c.h.b16 %v2654
        %v2789 = vunpack.c.l.b16 %v2655
        %v2790 = vunpack.c.h.b16 %v2655
        %v2791 = vpack.c.b16 %v2787, %v2787
        %v2792 = vpack.c.b16 %v2788, %v2788
        %v2793 = vpack.c.b16 %v2789, %v2789
        %v2794 = vpack.c.b16 %v2790, %v2790
        %v2796 = vshrl.u32 %v2791, 16
        %v2799 = vshrl.u32 %v2792, 16
        %v2802 = vshrl.u32 %v2793, 16
        %v2805 = vshrl.u32 %v2794, 16
        %v2875 = vunpack.c.l.b16 %v2721
        %v2876 = vunpack.c.l.b16 %v2722
        %v2877 = vunpack.c.l.b16 %v2723
        %v2878 = vunpack.c.l.b16 %v2724
        %v2879 = vunpack.c.l.b16 %v2725
        %v2880 = vunpack.c.l.b16 %v2726
        %v2881 = vunpack.c.l.b16 %v2727
        %v2882 = vunpack.c.l.b16 %v2728
        %v2883 = vunpack.c.l.b16 %v2729
        %v2884 = vunpack.c.l.b16 %v2730
        %v2885 = vunpack.c.l.b16 %v2731
        %v2886 = vunpack.c.l.b16 %v2732
        %v2887 = vunpack.c.l.b16 %v2733
        %v2888 = vunpack.c.l.b16 %v2734
        %v2889 = vunpack.c.l.b16 %v2735
        %v2890 = vunpack.c.l.b16 %v2736
        %v2891 = vunpack.c.l.b16 %v2737
        %v2892 = vunpack.c.l.b16 %v2738
        %v2893 = vunpack.c.l.b16 %v2739
        %v2894 = vunpack.c.l.b16 %v2740
        %v2895 = vunpack.c.l.b16 %v2741
        %v2896 = vunpack.c.l.b16 %v2742
        %v2897 = vunpack.c.l.b16 %v2743
        %v2898 = vunpack.c.l.b16 %v2744
        %v2899 = vunpack.c.l.b16 %v2745
        %v2900 = vunpack.c.l.b16 %v2746
        %v2901 = vunpack.c.l.b16 %v2747
        %v2902 = vunpack.c.l.b16 %v2748
        %v2903 = vunpack.c.l.b16 %v2749
        %v2904 = vunpack.c.l.b16 %v2750
        %v2905 = vunpack.c.l.b16 %v2751
        %v2906 = vunpack.c.l.b16 %v2752
        %v2907 = vunpack.c.l.b16 %v2753
        %v2908 = vunpack.c.l.b16 %v2754
        %v2909 = vunpack.c.l.b16 %v2755
        %v2910 = vunpack.c.l.b16 %v2756
        %v2911 = vunpack.c.l.b16 %v2757
        %v2912 = vunpack.c.l.b16 %v2758
        %v2913 = vunpack.c.l.b16 %v2759
        %v2914 = vunpack.c.l.b16 %v2760
        %v2915 = vunpack.c.l.b16 %v2761
        %v2916 = vunpack.c.l.b16 %v2762
        %v2917 = vunpack.c.l.b16 %v2763
        %v2918 = vunpack.c.l.b16 %v2764
        %v2919 = vunpack.c.l.b16 %v2765
        %v2920 = vunpack.c.l.b16 %v2766
        %v2921 = vunpack.c.l.b16 %v2767
        %v2922 = vunpack.c.l.b16 %v2768
        %v2923 = vunpack.c.l.b16 %v2769
        %v2924 = vunpack.c.l.b16 %v2770
        %v2925 = vunpack.c.l.b16 %v2771
        %v2926 = vunpack.c.l.b16 %v2772
        %v2927 = vunpack.c.l.b16 %v2773
        %v2928 = vunpack.c.l.b16 %v2774
        %v2929 = vunpack.c.l.b16 %v2775
        %v2930 = vunpack.c.l.b16 %v2776
        %v2931 = vunpack.c.l.b16 %v2777
        %v2932 = vunpack.c.l.b16 %v2778
        %v2933 = vunpack.c.l.b16 %v2779
        %v2934 = vunpack.c.l.b16 %v2780
        %v2935 = vunpack.c.l.b16 %v2781
        %v2936 = vunpack.c.l.b16 %v2782
        %v2937 = vunpack.c.l.b16 %v2783
        %v2938 = vunpack.c.l.b16 %v2784
        %v2939 = vpack.c.b16 %v2876, %v2875
        %v2940 = vpack.c.b16 %v2878, %v2877
        %v2941 = vpack.c.b16 %v2880, %v2879
        %v2942 = vpack.c.b16 %v2882, %v2881
        %v2943 = vpack.c.b16 %v2884, %v2883
        %v2944 = vpack.c.b16 %v2886, %v2885
        %v2945 = vpack.c.b16 %v2888, %v2887
        %v2946 = vpack.c.b16 %v2890, %v2889
        %v2947 = vpack.c.b16 %v2892, %v2891
        %v2948 = vpack.c.b16 %v2894, %v2893
        %v2949 = vpack.c.b16 %v2896, %v2895
        %v2950 = vpack.c.b16 %v2898, %v2897
        %v2951 = vpack.c.b16 %v2900, %v2899
        %v2952 = vpack.c.b16 %v2902, %v2901
        %v2953 = vpack.c.b16 %v2904, %v2903
        %v2954 = vpack.c.b16 %v2906, %v2905
        %v2955 = vpack.c.b16 %v2908, %v2907
        %v2956 = vpack.c.b16 %v2910, %v2909
        %v2957 = vpack.c.b16 %v2912, %v2911
        %v2958 = vpack.c.b16 %v2914, %v2913
        %v2959 = vpack.c.b16 %v2916, %v2915
        %v2960 = vpack.c.b16 %v2918, %v2917
        %v2961 = vpack.c.b16 %v2920, %v2919
        %v2962 = vpack.c.b16 %v2922, %v2921
        %v2963 = vpack.c.b16 %v2924, %v2923
        %v2964 = vpack.c.b16 %v2926, %v2925
        %v2965 = vpack.c.b16 %v2928, %v2927
        %v2966 = vpack.c.b16 %v2930, %v2929
        %v2967 = vpack.c.b16 %v2932, %v2931
        %v2968 = vpack.c.b16 %v2934, %v2933
        %v2969 = vpack.c.b16 %v2936, %v2935
        %v2970 = vpack.c.b16 %v2938, %v2937
        %3003 = vmatpush.bf16.msra.mxu0 %v2946
        %3004 = vmatpush.bf16.msra.mxu0 %v2945
        %3005 = vmatpush.bf16.msra.mxu0 %v2944
        %3006 = vmatpush.bf16.msra.mxu0 %v2943
        %3007 = vmatpush.bf16.msra.mxu0 %v2942
        %3008 = vmatpush.bf16.msra.mxu0 %v2941
        %3009 = vmatpush.bf16.msra.mxu0 %v2940
        %3010 = vmatpush.bf16.msra.mxu0 %v2939
        %3011 = vmatmul.bf16.gmra.mxu0 %v2796
        %v3012 = vpop.f32.mrf.mxu0
        %v3013 = vadd.f32 0.0, %v3012
        %v3014 = vpop.f32.mrf.mxu0
        %3015 = vdwg.mxu0
        %3016 = vmatpush.bf16.msra.mxu0 %v2954
        %3017 = vmatpush.bf16.msra.mxu0 %v2953
        %3018 = vmatpush.bf16.msra.mxu0 %v2952
        %3019 = vmatpush.bf16.msra.mxu0 %v2951
        %3020 = vmatpush.bf16.msra.mxu0 %v2950
        %3021 = vmatpush.bf16.msra.mxu0 %v2949
        %3022 = vmatpush.bf16.msra.mxu0 %v2948
        %3023 = vmatpush.bf16.msra.mxu0 %v2947
        %3024 = vmatmul.bf16.gmra.mxu0 %v2799
        %v3025 = vpop.f32.mrf.mxu0
        %v3026 = vadd.f32 %v3013, %v3025
        %v3027 = vpop.f32.mrf.mxu0
        %3028 = vdwg.mxu0
        %3029 = vmatpush.bf16.msra.mxu0 %v2962
        %3030 = vmatpush.bf16.msra.mxu0 %v2961
        %3031 = vmatpush.bf16.msra.mxu0 %v2960
        %3032 = vmatpush.bf16.msra.mxu0 %v2959
        %3033 = vmatpush.bf16.msra.mxu0 %v2958
        %3034 = vmatpush.bf16.msra.mxu0 %v2957
        %3035 = vmatpush.bf16.msra.mxu0 %v2956
        %3036 = vmatpush.bf16.msra.mxu0 %v2955
        %3037 = vmatmul.bf16.gmra.mxu0 %v2802
        %v3038 = vpop.f32.mrf.mxu0
        %v3039 = vadd.f32 %v3026, %v3038
        %v3040 = vpop.f32.mrf.mxu0
        %3041 = vdwg.mxu0
        %3042 = vmatpush.bf16.msra.mxu0 %v2970
        %3043 = vmatpush.bf16.msra.mxu0 %v2969
        %3044 = vmatpush.bf16.msra.mxu0 %v2968
        %3045 = vmatpush.bf16.msra.mxu0 %v2967
        %3046 = vmatpush.bf16.msra.mxu0 %v2966
        %3047 = vmatpush.bf16.msra.mxu0 %v2965
        %3048 = vmatpush.bf16.msra.mxu0 %v2964
        %3049 = vmatpush.bf16.msra.mxu0 %v2963
        %3050 = vmatmul.bf16.gmra.mxu0 %v2805
        %v3051 = vpop.f32.mrf.mxu0
        %v3052 = vadd.f32 %v3039, %v3051
        %v3053 = vpop.f32.mrf.mxu0
        %3054 = vdwg.mxu0
        %v3123 = vunpack.c.l.b16 %v2656
        %v3124 = vunpack.c.l.b16 %v2657
        %v3125 = vunpack.c.l.b16 %v2658
        %v3126 = vunpack.c.l.b16 %v2659
        %v3127 = vunpack.c.l.b16 %v2660
        %v3128 = vunpack.c.l.b16 %v2661
        %v3129 = vunpack.c.l.b16 %v2662
        %v3130 = vunpack.c.l.b16 %v2663
        %v3131 = vunpack.c.l.b16 %v2664
        %v3132 = vunpack.c.l.b16 %v2665
        %v3133 = vunpack.c.l.b16 %v2666
        %v3134 = vunpack.c.l.b16 %v2667
        %v3135 = vunpack.c.l.b16 %v2668
        %v3136 = vunpack.c.l.b16 %v2669
        %v3137 = vunpack.c.l.b16 %v2670
        %v3138 = vunpack.c.l.b16 %v2671
        %v3139 = vunpack.c.l.b16 %v2672
        %v3140 = vunpack.c.l.b16 %v2673
        %v3141 = vunpack.c.l.b16 %v2674
        %v3142 = vunpack.c.l.b16 %v2675
        %v3143 = vunpack.c.l.b16 %v2676
        %v3144 = vunpack.c.l.b16 %v2677
        %v3145 = vunpack.c.l.b16 %v2678
        %v3146 = vunpack.c.l.b16 %v2679
        %v3147 = vunpack.c.l.b16 %v2680
        %v3148 = vunpack.c.l.b16 %v2681
        %v3149 = vunpack.c.l.b16 %v2682
        %v3150 = vunpack.c.l.b16 %v2683
        %v3151 = vunpack.c.l.b16 %v2684
        %v3152 = vunpack.c.l.b16 %v2685
        %v3153 = vunpack.c.l.b16 %v2686
        %v3154 = vunpack.c.l.b16 %v2687
        %v3155 = vunpack.c.l.b16 %v2688
        %v3156 = vunpack.c.l.b16 %v2689
        %v3157 = vunpack.c.l.b16 %v2690
        %v3158 = vunpack.c.l.b16 %v2691
        %v3159 = vunpack.c.l.b16 %v2692
        %v3160 = vunpack.c.l.b16 %v2693
        %v3161 = vunpack.c.l.b16 %v2694
        %v3162 = vunpack.c.l.b16 %v2695
        %v3163 = vunpack.c.l.b16 %v2696
        %v3164 = vunpack.c.l.b16 %v2697
        %v3165 = vunpack.c.l.b16 %v2698
        %v3166 = vunpack.c.l.b16 %v2699
        %v3167 = vunpack.c.l.b16 %v2700
        %v3168 = vunpack.c.l.b16 %v2701
        %v3169 = vunpack.c.l.b16 %v2702
        %v3170 = vunpack.c.l.b16 %v2703
        %v3171 = vunpack.c.l.b16 %v2704
        %v3172 = vunpack.c.l.b16 %v2705
        %v3173 = vunpack.c.l.b16 %v2706
        %v3174 = vunpack.c.l.b16 %v2707
        %v3175 = vunpack.c.l.b16 %v2708
        %v3176 = vunpack.c.l.b16 %v2709
        %v3177 = vunpack.c.l.b16 %v2710
        %v3178 = vunpack.c.l.b16 %v2711
        %v3179 = vunpack.c.l.b16 %v2712
        %v3180 = vunpack.c.l.b16 %v2713
        %v3181 = vunpack.c.l.b16 %v2714
        %v3182 = vunpack.c.l.b16 %v2715
        %v3183 = vunpack.c.l.b16 %v2716
        %v3184 = vunpack.c.l.b16 %v2717
        %v3185 = vunpack.c.l.b16 %v2718
        %v3186 = vunpack.c.l.b16 %v2719
        %v3187 = vpack.c.b16 %v3124, %v3123
        %v3188 = vpack.c.b16 %v3126, %v3125
        %v3189 = vpack.c.b16 %v3128, %v3127
        %v3190 = vpack.c.b16 %v3130, %v3129
        %v3191 = vpack.c.b16 %v3132, %v3131
        %v3192 = vpack.c.b16 %v3134, %v3133
        %v3193 = vpack.c.b16 %v3136, %v3135
        %v3194 = vpack.c.b16 %v3138, %v3137
        %v3195 = vpack.c.b16 %v3140, %v3139
        %v3196 = vpack.c.b16 %v3142, %v3141
        %v3197 = vpack.c.b16 %v3144, %v3143
        %v3198 = vpack.c.b16 %v3146, %v3145
        %v3199 = vpack.c.b16 %v3148, %v3147
        %v3200 = vpack.c.b16 %v3150, %v3149
        %v3201 = vpack.c.b16 %v3152, %v3151
        %v3202 = vpack.c.b16 %v3154, %v3153
        %v3203 = vpack.c.b16 %v3156, %v3155
        %v3204 = vpack.c.b16 %v3158, %v3157
        %v3205 = vpack.c.b16 %v3160, %v3159
        %v3206 = vpack.c.b16 %v3162, %v3161
        %v3207 = vpack.c.b16 %v3164, %v3163
        %v3208 = vpack.c.b16 %v3166, %v3165
        %v3209 = vpack.c.b16 %v3168, %v3167
        %v3210 = vpack.c.b16 %v3170, %v3169
        %v3211 = vpack.c.b16 %v3172, %v3171
        %v3212 = vpack.c.b16 %v3174, %v3173
        %v3213 = vpack.c.b16 %v3176, %v3175
        %v3214 = vpack.c.b16 %v3178, %v3177
        %v3215 = vpack.c.b16 %v3180, %v3179
        %v3216 = vpack.c.b16 %v3182, %v3181
        %v3217 = vpack.c.b16 %v3184, %v3183
        %v3218 = vpack.c.b16 %v3186, %v3185
        %3251 = vmatpush.bf16.msra.mxu0 %v3194
        %3252 = vmatpush.bf16.msra.mxu0 %v3193
        %3253 = vmatpush.bf16.msra.mxu0 %v3192
        %3254 = vmatpush.bf16.msra.mxu0 %v3191
        %3255 = vmatpush.bf16.msra.mxu0 %v3190
        %3256 = vmatpush.bf16.msra.mxu0 %v3189
        %3257 = vmatpush.bf16.msra.mxu0 %v3188
        %3258 = vmatpush.bf16.msra.mxu0 %v3187
        %3259 = vmatmul.bf16.gmra.mxu0 %v2791
        %v3260 = vpop.f32.mrf.mxu0
        %v3261 = vadd.f32 %v3052, %v3260
        %v3262 = vpop.f32.mrf.mxu0
        %3263 = vdwg.mxu0
        %3264 = vmatpush.bf16.msra.mxu0 %v3202
        %3265 = vmatpush.bf16.msra.mxu0 %v3201
        %3266 = vmatpush.bf16.msra.mxu0 %v3200
        %3267 = vmatpush.bf16.msra.mxu0 %v3199
        %3268 = vmatpush.bf16.msra.mxu0 %v3198
        %3269 = vmatpush.bf16.msra.mxu0 %v3197
        %3270 = vmatpush.bf16.msra.mxu0 %v3196
        %3271 = vmatpush.bf16.msra.mxu0 %v3195
        %3272 = vmatmul.bf16.gmra.mxu0 %v2792
        %v3273 = vpop.f32.mrf.mxu0
        %v3274 = vadd.f32 %v3261, %v3273
        %v3275 = vpop.f32.mrf.mxu0
        %3276 = vdwg.mxu0
        %3277 = vmatpush.bf16.msra.mxu0 %v3210
        %3278 = vmatpush.bf16.msra.mxu0 %v3209
        %3279 = vmatpush.bf16.msra.mxu0 %v3208
        %3280 = vmatpush.bf16.msra.mxu0 %v3207
        %3281 = vmatpush.bf16.msra.mxu0 %v3206
        %3282 = vmatpush.bf16.msra.mxu0 %v3205
        %3283 = vmatpush.bf16.msra.mxu0 %v3204
        %3284 = vmatpush.bf16.msra.mxu0 %v3203
        %3285 = vmatmul.bf16.gmra.mxu0 %v2793
        %v3286 = vpop.f32.mrf.mxu0
        %v3287 = vadd.f32 %v3274, %v3286
        %v3288 = vpop.f32.mrf.mxu0
        %3289 = vdwg.mxu0
        %3290 = vmatpush.bf16.msra.mxu0 %v3218
        %3291 = vmatpush.bf16.msra.mxu0 %v3217
        %3292 = vmatpush.bf16.msra.mxu0 %v3216
        %3293 = vmatpush.bf16.msra.mxu0 %v3215
        %3294 = vmatpush.bf16.msra.mxu0 %v3214
        %3295 = vmatpush.bf16.msra.mxu0 %v3213
        %3296 = vmatpush.bf16.msra.mxu0 %v3212
        %3297 = vmatpush.bf16.msra.mxu0 %v3211
        %3298 = vmatmul.bf16.gmra.mxu0 %v2794
        %v3299 = vpop.f32.mrf.mxu0
        %v3300 = vadd.f32 %v3287, %v3299
        %v3301 = vpop.f32.mrf.mxu0
        %3302 = vdwg.mxu0
        %s3303 = scalar_lea.vmem [#allocation6], 512
        %v3304 = vld [vmem:[%s3303] sm:$0xf]
        %v3305 = vld [vmem:[%s3303 + $0x4] sm:$0xf]
        %v3306 = vld [vmem:[%s3303 + $0x8] sm:$0xf]
        %v3307 = vld [vmem:[%s3303 + $0xc] sm:$0xf]
        %v3308 = vld [vmem:[%s3303 + $0x10] sm:$0xf]
        %v3309 = vld [vmem:[%s3303 + $0x14] sm:$0xf]
        %v3310 = vld [vmem:[%s3303 + $0x18] sm:$0xf]
        %v3311 = vld [vmem:[%s3303 + $0x1c] sm:$0xf]
        %v3312 = vld [vmem:[%s3303 + $0x20] sm:$0xf]
        %v3313 = vld [vmem:[%s3303 + $0x24] sm:$0xf]
        %v3314 = vld [vmem:[%s3303 + $0x28] sm:$0xf]
        %v3315 = vld [vmem:[%s3303 + $0x2c] sm:$0xf]
        %v3316 = vld [vmem:[%s3303 + $0x30] sm:$0xf]
        %v3317 = vld [vmem:[%s3303 + $0x34] sm:$0xf]
        %v3318 = vld [vmem:[%s3303 + $0x38] sm:$0xf]
        %v3319 = vld [vmem:[%s3303 + $0x3c] sm:$0xf]
        %v3320 = vld [vmem:[%s3303 + $0x40] sm:$0xf]
        %v3321 = vld [vmem:[%s3303 + $0x44] sm:$0xf]
        %v3322 = vld [vmem:[%s3303 + $0x48] sm:$0xf]
        %v3323 = vld [vmem:[%s3303 + $0x4c] sm:$0xf]
        %v3324 = vld [vmem:[%s3303 + $0x50] sm:$0xf]
        %v3325 = vld [vmem:[%s3303 + $0x54] sm:$0xf]
        %v3326 = vld [vmem:[%s3303 + $0x58] sm:$0xf]
        %v3327 = vld [vmem:[%s3303 + $0x5c] sm:$0xf]
        %v3328 = vld [vmem:[%s3303 + $0x60] sm:$0xf]
        %v3329 = vld [vmem:[%s3303 + $0x64] sm:$0xf]
        %v3330 = vld [vmem:[%s3303 + $0x68] sm:$0xf]
        %v3331 = vld [vmem:[%s3303 + $0x6c] sm:$0xf]
        %v3332 = vld [vmem:[%s3303 + $0x70] sm:$0xf]
        %v3333 = vld [vmem:[%s3303 + $0x74] sm:$0xf]
        %v3334 = vld [vmem:[%s3303 + $0x78] sm:$0xf]
        %v3335 = vld [vmem:[%s3303 + $0x7c] sm:$0xf]
        %v3336 = vld [vmem:[%s3303 + $0x80] sm:$0xf]
        %v3337 = vld [vmem:[%s3303 + $0x84] sm:$0xf]
        %v3338 = vld [vmem:[%s3303 + $0x88] sm:$0xf]
        %v3339 = vld [vmem:[%s3303 + $0x8c] sm:$0xf]
        %v3340 = vld [vmem:[%s3303 + $0x90] sm:$0xf]
        %v3341 = vld [vmem:[%s3303 + $0x94] sm:$0xf]
        %v3342 = vld [vmem:[%s3303 + $0x98] sm:$0xf]
        %v3343 = vld [vmem:[%s3303 + $0x9c] sm:$0xf]
        %v3344 = vld [vmem:[%s3303 + $0xa0] sm:$0xf]
        %v3345 = vld [vmem:[%s3303 + $0xa4] sm:$0xf]
        %v3346 = vld [vmem:[%s3303 + $0xa8] sm:$0xf]
        %v3347 = vld [vmem:[%s3303 + $0xac] sm:$0xf]
        %v3348 = vld [vmem:[%s3303 + $0xb0] sm:$0xf]
        %v3349 = vld [vmem:[%s3303 + $0xb4] sm:$0xf]
        %v3350 = vld [vmem:[%s3303 + $0xb8] sm:$0xf]
        %v3351 = vld [vmem:[%s3303 + $0xbc] sm:$0xf]
        %v3352 = vld [vmem:[%s3303 + $0xc0] sm:$0xf]
        %v3353 = vld [vmem:[%s3303 + $0xc4] sm:$0xf]
        %v3354 = vld [vmem:[%s3303 + $0xc8] sm:$0xf]
        %v3355 = vld [vmem:[%s3303 + $0xcc] sm:$0xf]
        %v3356 = vld [vmem:[%s3303 + $0xd0] sm:$0xf]
        %v3357 = vld [vmem:[%s3303 + $0xd4] sm:$0xf]
        %v3358 = vld [vmem:[%s3303 + $0xd8] sm:$0xf]
        %v3359 = vld [vmem:[%s3303 + $0xdc] sm:$0xf]
        %v3360 = vld [vmem:[%s3303 + $0xe0] sm:$0xf]
        %v3361 = vld [vmem:[%s3303 + $0xe4] sm:$0xf]
        %v3362 = vld [vmem:[%s3303 + $0xe8] sm:$0xf]
        %v3363 = vld [vmem:[%s3303 + $0xec] sm:$0xf]
        %v3364 = vld [vmem:[%s3303 + $0xf0] sm:$0xf]
        %v3365 = vld [vmem:[%s3303 + $0xf4] sm:$0xf]
        %v3366 = vld [vmem:[%s3303 + $0xf8] sm:$0xf]
        %v3367 = vld [vmem:[%s3303 + $0xfc] sm:$0xf]
        %v3368 = vrot.slane %v2791, 1
        %v3369 = vrot.slane %v2792, 1
        %v3370 = vrot.slane %v2793, 1
        %v3371 = vrot.slane %v2794, 1
        %v3440 = vunpack.c.l.b16 %v3304
        %v3441 = vunpack.c.l.b16 %v3305
        %v3442 = vunpack.c.l.b16 %v3306
        %v3443 = vunpack.c.l.b16 %v3307
        %v3444 = vunpack.c.l.b16 %v3308
        %v3445 = vunpack.c.l.b16 %v3309
        %v3446 = vunpack.c.l.b16 %v3310
        %v3447 = vunpack.c.l.b16 %v3311
        %v3448 = vunpack.c.l.b16 %v3312
        %v3449 = vunpack.c.l.b16 %v3313
        %v3450 = vunpack.c.l.b16 %v3314
        %v3451 = vunpack.c.l.b16 %v3315
        %v3452 = vunpack.c.l.b16 %v3316
        %v3453 = vunpack.c.l.b16 %v3317
        %v3454 = vunpack.c.l.b16 %v3318
        %v3455 = vunpack.c.l.b16 %v3319
        %v3456 = vunpack.c.l.b16 %v3320
        %v3457 = vunpack.c.l.b16 %v3321
        %v3458 = vunpack.c.l.b16 %v3322
        %v3459 = vunpack.c.l.b16 %v3323
        %v3460 = vunpack.c.l.b16 %v3324
        %v3461 = vunpack.c.l.b16 %v3325
        %v3462 = vunpack.c.l.b16 %v3326
        %v3463 = vunpack.c.l.b16 %v3327
        %v3464 = vunpack.c.l.b16 %v3328
        %v3465 = vunpack.c.l.b16 %v3329
        %v3466 = vunpack.c.l.b16 %v3330
        %v3467 = vunpack.c.l.b16 %v3331
        %v3468 = vunpack.c.l.b16 %v3332
        %v3469 = vunpack.c.l.b16 %v3333
        %v3470 = vunpack.c.l.b16 %v3334
        %v3471 = vunpack.c.l.b16 %v3335
        %v3472 = vunpack.c.l.b16 %v3336
        %v3473 = vunpack.c.l.b16 %v3337
        %v3474 = vunpack.c.l.b16 %v3338
        %v3475 = vunpack.c.l.b16 %v3339
        %v3476 = vunpack.c.l.b16 %v3340
        %v3477 = vunpack.c.l.b16 %v3341
        %v3478 = vunpack.c.l.b16 %v3342
        %v3479 = vunpack.c.l.b16 %v3343
        %v3480 = vunpack.c.l.b16 %v3344
        %v3481 = vunpack.c.l.b16 %v3345
        %v3482 = vunpack.c.l.b16 %v3346
        %v3483 = vunpack.c.l.b16 %v3347
        %v3484 = vunpack.c.l.b16 %v3348
        %v3485 = vunpack.c.l.b16 %v3349
        %v3486 = vunpack.c.l.b16 %v3350
        %v3487 = vunpack.c.l.b16 %v3351
        %v3488 = vunpack.c.l.b16 %v3352
        %v3489 = vunpack.c.l.b16 %v3353
        %v3490 = vunpack.c.l.b16 %v3354
        %v3491 = vunpack.c.l.b16 %v3355
        %v3492 = vunpack.c.l.b16 %v3356
        %v3493 = vunpack.c.l.b16 %v3357
        %v3494 = vunpack.c.l.b16 %v3358
        %v3495 = vunpack.c.l.b16 %v3359
        %v3496 = vunpack.c.l.b16 %v3360
        %v3497 = vunpack.c.l.b16 %v3361
        %v3498 = vunpack.c.l.b16 %v3362
        %v3499 = vunpack.c.l.b16 %v3363
        %v3500 = vunpack.c.l.b16 %v3364
        %v3501 = vunpack.c.l.b16 %v3365
        %v3502 = vunpack.c.l.b16 %v3366
        %v3503 = vunpack.c.l.b16 %v3367
        %v3504 = vpack.c.b16 %v3441, %v3440
        %v3505 = vpack.c.b16 %v3443, %v3442
        %v3506 = vpack.c.b16 %v3445, %v3444
        %v3507 = vpack.c.b16 %v3447, %v3446
        %v3508 = vpack.c.b16 %v3449, %v3448
        %v3509 = vpack.c.b16 %v3451, %v3450
        %v3510 = vpack.c.b16 %v3453, %v3452
        %v3511 = vpack.c.b16 %v3455, %v3454
        %v3512 = vpack.c.b16 %v3457, %v3456
        %v3513 = vpack.c.b16 %v3459, %v3458
        %v3514 = vpack.c.b16 %v3461, %v3460
        %v3515 = vpack.c.b16 %v3463, %v3462
        %v3516 = vpack.c.b16 %v3465, %v3464
        %v3517 = vpack.c.b16 %v3467, %v3466
        %v3518 = vpack.c.b16 %v3469, %v3468
        %v3519 = vpack.c.b16 %v3471, %v3470
        %v3520 = vpack.c.b16 %v3473, %v3472
        %v3521 = vpack.c.b16 %v3475, %v3474
        %v3522 = vpack.c.b16 %v3477, %v3476
        %v3523 = vpack.c.b16 %v3479, %v3478
        %v3524 = vpack.c.b16 %v3481, %v3480
        %v3525 = vpack.c.b16 %v3483, %v3482
        %v3526 = vpack.c.b16 %v3485, %v3484
        %v3527 = vpack.c.b16 %v3487, %v3486
        %v3528 = vpack.c.b16 %v3489, %v3488
        %v3529 = vpack.c.b16 %v3491, %v3490
        %v3530 = vpack.c.b16 %v3493, %v3492
        %v3531 = vpack.c.b16 %v3495, %v3494
        %v3532 = vpack.c.b16 %v3497, %v3496
        %v3533 = vpack.c.b16 %v3499, %v3498
        %v3534 = vpack.c.b16 %v3501, %v3500
        %v3535 = vpack.c.b16 %v3503, %v3502
        %3568 = vmatpush.bf16.msra.mxu0 %v3511
        %3569 = vmatpush.bf16.msra.mxu0 %v3510
        %3570 = vmatpush.bf16.msra.mxu0 %v3509
        %3571 = vmatpush.bf16.msra.mxu0 %v3508
        %3572 = vmatpush.bf16.msra.mxu0 %v3507
        %3573 = vmatpush.bf16.msra.mxu0 %v3506
        %3574 = vmatpush.bf16.msra.mxu0 %v3505
        %3575 = vmatpush.bf16.msra.mxu0 %v3504
        %3576 = vmatmul.bf16.gmra.mxu0 %v3368
        %v3577 = vpop.f32.mrf.mxu0
        %v3578 = vadd.f32 0.0, %v3577
        %v3579 = vpop.f32.mrf.mxu0
        %3580 = vdwg.mxu0
        %3581 = vmatpush.bf16.msra.mxu0 %v3519
        %3582 = vmatpush.bf16.msra.mxu0 %v3518
        %3583 = vmatpush.bf16.msra.mxu0 %v3517
        %3584 = vmatpush.bf16.msra.mxu0 %v3516
        %3585 = vmatpush.bf16.msra.mxu0 %v3515
        %3586 = vmatpush.bf16.msra.mxu0 %v3514
        %3587 = vmatpush.bf16.msra.mxu0 %v3513
        %3588 = vmatpush.bf16.msra.mxu0 %v3512
        %3589 = vmatmul.bf16.gmra.mxu0 %v3369
        %v3590 = vpop.f32.mrf.mxu0
        %v3591 = vadd.f32 %v3578, %v3590
        %v3592 = vpop.f32.mrf.mxu0
        %3593 = vdwg.mxu0
        %3594 = vmatpush.bf16.msra.mxu0 %v3527
        %3595 = vmatpush.bf16.msra.mxu0 %v3526
        %3596 = vmatpush.bf16.msra.mxu0 %v3525
        %3597 = vmatpush.bf16.msra.mxu0 %v3524
        %3598 = vmatpush.bf16.msra.mxu0 %v3523
        %3599 = vmatpush.bf16.msra.mxu0 %v3522
        %3600 = vmatpush.bf16.msra.mxu0 %v3521
        %3601 = vmatpush.bf16.msra.mxu0 %v3520
        %3602 = vmatmul.bf16.gmra.mxu0 %v3370
        %v3603 = vpop.f32.mrf.mxu0
        %v3604 = vadd.f32 %v3591, %v3603
        %v3605 = vpop.f32.mrf.mxu0
        %3606 = vdwg.mxu0
        %3607 = vmatpush.bf16.msra.mxu0 %v3535
        %3608 = vmatpush.bf16.msra.mxu0 %v3534
        %3609 = vmatpush.bf16.msra.mxu0 %v3533
        %3610 = vmatpush.bf16.msra.mxu0 %v3532
        %3611 = vmatpush.bf16.msra.mxu0 %v3531
        %3612 = vmatpush.bf16.msra.mxu0 %v3530
        %3613 = vmatpush.bf16.msra.mxu0 %v3529
        %3614 = vmatpush.bf16.msra.mxu0 %v3528
        %3615 = vmatmul.bf16.gmra.mxu0 %v3371
        %v3616 = vpop.f32.mrf.mxu0
        %v3617 = vadd.f32 %v3604, %v3616
        %v3618 = vpop.f32.mrf.mxu0
        %3619 = vdwg.mxu0
        %v3620 = vadd.f32 %v3300, %v3617
        %s3621 = scalar_lea.vmem [#allocation6], 768
        %v3622 = vld [vmem:[%s3621] sm:$0xf]
        %v3623 = vld [vmem:[%s3621 + $0x4] sm:$0xf]
        %v3624 = vld [vmem:[%s3621 + $0x8] sm:$0xf]
        %v3625 = vld [vmem:[%s3621 + $0xc] sm:$0xf]
        %v3626 = vld [vmem:[%s3621 + $0x10] sm:$0xf]
        %v3627 = vld [vmem:[%s3621 + $0x14] sm:$0xf]
        %v3628 = vld [vmem:[%s3621 + $0x18] sm:$0xf]
        %v3629 = vld [vmem:[%s3621 + $0x1c] sm:$0xf]
        %v3630 = vld [vmem:[%s3621 + $0x20] sm:$0xf]
        %v3631 = vld [vmem:[%s3621 + $0x24] sm:$0xf]
        %v3632 = vld [vmem:[%s3621 + $0x28] sm:$0xf]
        %v3633 = vld [vmem:[%s3621 + $0x2c] sm:$0xf]
        %v3634 = vld [vmem:[%s3621 + $0x30] sm:$0xf]
        %v3635 = vld [vmem:[%s3621 + $0x34] sm:$0xf]
        %v3636 = vld [vmem:[%s3621 + $0x38] sm:$0xf]
        %v3637 = vld [vmem:[%s3621 + $0x3c] sm:$0xf]
        %v3638 = vld [vmem:[%s3621 + $0x40] sm:$0xf]
        %v3639 = vld [vmem:[%s3621 + $0x44] sm:$0xf]
        %v3640 = vld [vmem:[%s3621 + $0x48] sm:$0xf]
        %v3641 = vld [vmem:[%s3621 + $0x4c] sm:$0xf]
        %v3642 = vld [vmem:[%s3621 + $0x50] sm:$0xf]
        %v3643 = vld [vmem:[%s3621 + $0x54] sm:$0xf]
        %v3644 = vld [vmem:[%s3621 + $0x58] sm:$0xf]
        %v3645 = vld [vmem:[%s3621 + $0x5c] sm:$0xf]
        %v3646 = vld [vmem:[%s3621 + $0x60] sm:$0xf]
        %v3647 = vld [vmem:[%s3621 + $0x64] sm:$0xf]
        %v3648 = vld [vmem:[%s3621 + $0x68] sm:$0xf]
        %v3649 = vld [vmem:[%s3621 + $0x6c] sm:$0xf]
        %v3650 = vld [vmem:[%s3621 + $0x70] sm:$0xf]
        %v3651 = vld [vmem:[%s3621 + $0x74] sm:$0xf]
        %v3652 = vld [vmem:[%s3621 + $0x78] sm:$0xf]
        %v3653 = vld [vmem:[%s3621 + $0x7c] sm:$0xf]
        %v3654 = vld [vmem:[%s3621 + $0x80] sm:$0xf]
        %v3655 = vld [vmem:[%s3621 + $0x84] sm:$0xf]
        %v3656 = vld [vmem:[%s3621 + $0x88] sm:$0xf]
        %v3657 = vld [vmem:[%s3621 + $0x8c] sm:$0xf]
        %v3658 = vld [vmem:[%s3621 + $0x90] sm:$0xf]
        %v3659 = vld [vmem:[%s3621 + $0x94] sm:$0xf]
        %v3660 = vld [vmem:[%s3621 + $0x98] sm:$0xf]
        %v3661 = vld [vmem:[%s3621 + $0x9c] sm:$0xf]
        %v3662 = vld [vmem:[%s3621 + $0xa0] sm:$0xf]
        %v3663 = vld [vmem:[%s3621 + $0xa4] sm:$0xf]
        %v3664 = vld [vmem:[%s3621 + $0xa8] sm:$0xf]
        %v3665 = vld [vmem:[%s3621 + $0xac] sm:$0xf]
        %v3666 = vld [vmem:[%s3621 + $0xb0] sm:$0xf]
        %v3667 = vld [vmem:[%s3621 + $0xb4] sm:$0xf]
        %v3668 = vld [vmem:[%s3621 + $0xb8] sm:$0xf]
        %v3669 = vld [vmem:[%s3621 + $0xbc] sm:$0xf]
        %v3670 = vld [vmem:[%s3621 + $0xc0] sm:$0xf]
        %v3671 = vld [vmem:[%s3621 + $0xc4] sm:$0xf]
        %v3672 = vld [vmem:[%s3621 + $0xc8] sm:$0xf]
        %v3673 = vld [vmem:[%s3621 + $0xcc] sm:$0xf]
        %v3674 = vld [vmem:[%s3621 + $0xd0] sm:$0xf]
        %v3675 = vld [vmem:[%s3621 + $0xd4] sm:$0xf]
        %v3676 = vld [vmem:[%s3621 + $0xd8] sm:$0xf]
        %v3677 = vld [vmem:[%s3621 + $0xdc] sm:$0xf]
        %v3678 = vld [vmem:[%s3621 + $0xe0] sm:$0xf]
        %v3679 = vld [vmem:[%s3621 + $0xe4] sm:$0xf]
        %v3680 = vld [vmem:[%s3621 + $0xe8] sm:$0xf]
        %v3681 = vld [vmem:[%s3621 + $0xec] sm:$0xf]
        %v3682 = vld [vmem:[%s3621 + $0xf0] sm:$0xf]
        %v3683 = vld [vmem:[%s3621 + $0xf4] sm:$0xf]
        %v3684 = vld [vmem:[%s3621 + $0xf8] sm:$0xf]
        %v3685 = vld [vmem:[%s3621 + $0xfc] sm:$0xf]
        %v3686 = vrot.slane %v2796, 1
        %v3687 = vrot.slane %v2799, 1
        %v3688 = vrot.slane %v2802, 1
        %v3689 = vrot.slane %v2805, 1
        %v3758 = vunpack.c.l.b16 %v3622
        %v3759 = vunpack.c.l.b16 %v3623
        %v3760 = vunpack.c.l.b16 %v3624
        %v3761 = vunpack.c.l.b16 %v3625
        %v3762 = vunpack.c.l.b16 %v3626
        %v3763 = vunpack.c.l.b16 %v3627
        %v3764 = vunpack.c.l.b16 %v3628
        %v3765 = vunpack.c.l.b16 %v3629
        %v3766 = vunpack.c.l.b16 %v3630
        %v3767 = vunpack.c.l.b16 %v3631
        %v3768 = vunpack.c.l.b16 %v3632
        %v3769 = vunpack.c.l.b16 %v3633
        %v3770 = vunpack.c.l.b16 %v3634
        %v3771 = vunpack.c.l.b16 %v3635
        %v3772 = vunpack.c.l.b16 %v3636
        %v3773 = vunpack.c.l.b16 %v3637
        %v3774 = vunpack.c.l.b16 %v3638
        %v3775 = vunpack.c.l.b16 %v3639
        %v3776 = vunpack.c.l.b16 %v3640
        %v3777 = vunpack.c.l.b16 %v3641
        %v3778 = vunpack.c.l.b16 %v3642
        %v3779 = vunpack.c.l.b16 %v3643
        %v3780 = vunpack.c.l.b16 %v3644
        %v3781 = vunpack.c.l.b16 %v3645
        %v3782 = vunpack.c.l.b16 %v3646
        %v3783 = vunpack.c.l.b16 %v3647
        %v3784 = vunpack.c.l.b16 %v3648
        %v3785 = vunpack.c.l.b16 %v3649
        %v3786 = vunpack.c.l.b16 %v3650
        %v3787 = vunpack.c.l.b16 %v3651
        %v3788 = vunpack.c.l.b16 %v3652
        %v3789 = vunpack.c.l.b16 %v3653
        %v3790 = vunpack.c.l.b16 %v3654
        %v3791 = vunpack.c.l.b16 %v3655
        %v3792 = vunpack.c.l.b16 %v3656
        %v3793 = vunpack.c.l.b16 %v3657
        %v3794 = vunpack.c.l.b16 %v3658
        %v3795 = vunpack.c.l.b16 %v3659
        %v3796 = vunpack.c.l.b16 %v3660
        %v3797 = vunpack.c.l.b16 %v3661
        %v3798 = vunpack.c.l.b16 %v3662
        %v3799 = vunpack.c.l.b16 %v3663
        %v3800 = vunpack.c.l.b16 %v3664
        %v3801 = vunpack.c.l.b16 %v3665
        %v3802 = vunpack.c.l.b16 %v3666
        %v3803 = vunpack.c.l.b16 %v3667
        %v3804 = vunpack.c.l.b16 %v3668
        %v3805 = vunpack.c.l.b16 %v3669
        %v3806 = vunpack.c.l.b16 %v3670
        %v3807 = vunpack.c.l.b16 %v3671
        %v3808 = vunpack.c.l.b16 %v3672
        %v3809 = vunpack.c.l.b16 %v3673
        %v3810 = vunpack.c.l.b16 %v3674
        %v3811 = vunpack.c.l.b16 %v3675
        %v3812 = vunpack.c.l.b16 %v3676
        %v3813 = vunpack.c.l.b16 %v3677
        %v3814 = vunpack.c.l.b16 %v3678
        %v3815 = vunpack.c.l.b16 %v3679
        %v3816 = vunpack.c.l.b16 %v3680
        %v3817 = vunpack.c.l.b16 %v3681
        %v3818 = vunpack.c.l.b16 %v3682
        %v3819 = vunpack.c.l.b16 %v3683
        %v3820 = vunpack.c.l.b16 %v3684
        %v3821 = vunpack.c.l.b16 %v3685
        %v3822 = vpack.c.b16 %v3759, %v3758
        %v3823 = vpack.c.b16 %v3761, %v3760
        %v3824 = vpack.c.b16 %v3763, %v3762
        %v3825 = vpack.c.b16 %v3765, %v3764
        %v3826 = vpack.c.b16 %v3767, %v3766
        %v3827 = vpack.c.b16 %v3769, %v3768
        %v3828 = vpack.c.b16 %v3771, %v3770
        %v3829 = vpack.c.b16 %v3773, %v3772
        %v3830 = vpack.c.b16 %v3775, %v3774
        %v3831 = vpack.c.b16 %v3777, %v3776
        %v3832 = vpack.c.b16 %v3779, %v3778
        %v3833 = vpack.c.b16 %v3781, %v3780
        %v3834 = vpack.c.b16 %v3783, %v3782
        %v3835 = vpack.c.b16 %v3785, %v3784
        %v3836 = vpack.c.b16 %v3787, %v3786
        %v3837 = vpack.c.b16 %v3789, %v3788
        %v3838 = vpack.c.b16 %v3791, %v3790
        %v3839 = vpack.c.b16 %v3793, %v3792
        %v3840 = vpack.c.b16 %v3795, %v3794
        %v3841 = vpack.c.b16 %v3797, %v3796
        %v3842 = vpack.c.b16 %v3799, %v3798
        %v3843 = vpack.c.b16 %v3801, %v3800
        %v3844 = vpack.c.b16 %v3803, %v3802
        %v3845 = vpack.c.b16 %v3805, %v3804
        %v3846 = vpack.c.b16 %v3807, %v3806
        %v3847 = vpack.c.b16 %v3809, %v3808
        %v3848 = vpack.c.b16 %v3811, %v3810
        %v3849 = vpack.c.b16 %v3813, %v3812
        %v3850 = vpack.c.b16 %v3815, %v3814
        %v3851 = vpack.c.b16 %v3817, %v3816
        %v3852 = vpack.c.b16 %v3819, %v3818
        %v3853 = vpack.c.b16 %v3821, %v3820
        %3886 = vmatpush.bf16.msra.mxu0 %v3829
        %3887 = vmatpush.bf16.msra.mxu0 %v3828
        %3888 = vmatpush.bf16.msra.mxu0 %v3827
        %3889 = vmatpush.bf16.msra.mxu0 %v3826
        %3890 = vmatpush.bf16.msra.mxu0 %v3825
        %3891 = vmatpush.bf16.msra.mxu0 %v3824
        %3892 = vmatpush.bf16.msra.mxu0 %v3823
        %3893 = vmatpush.bf16.msra.mxu0 %v3822
        %3894 = vmatmul.bf16.gmra.mxu0 %v3686
        %v3895 = vpop.f32.mrf.mxu0
        %v3896 = vadd.f32 0.0, %v3895
        %v3897 = vpop.f32.mrf.mxu0
        %3898 = vdwg.mxu0
        %3899 = vmatpush.bf16.msra.mxu0 %v3837
        %3900 = vmatpush.bf16.msra.mxu0 %v3836
        %3901 = vmatpush.bf16.msra.mxu0 %v3835
        %3902 = vmatpush.bf16.msra.mxu0 %v3834
        %3903 = vmatpush.bf16.msra.mxu0 %v3833
        %3904 = vmatpush.bf16.msra.mxu0 %v3832
        %3905 = vmatpush.bf16.msra.mxu0 %v3831
        %3906 = vmatpush.bf16.msra.mxu0 %v3830
        %3907 = vmatmul.bf16.gmra.mxu0 %v3687
        %v3908 = vpop.f32.mrf.mxu0
        %v3909 = vadd.f32 %v3896, %v3908
        %v3910 = vpop.f32.mrf.mxu0
        %3911 = vdwg.mxu0
        %3912 = vmatpush.bf16.msra.mxu0 %v3845
        %3913 = vmatpush.bf16.msra.mxu0 %v3844
        %3914 = vmatpush.bf16.msra.mxu0 %v3843
        %3915 = vmatpush.bf16.msra.mxu0 %v3842
        %3916 = vmatpush.bf16.msra.mxu0 %v3841
        %3917 = vmatpush.bf16.msra.mxu0 %v3840
        %3918 = vmatpush.bf16.msra.mxu0 %v3839
        %3919 = vmatpush.bf16.msra.mxu0 %v3838
        %3920 = vmatmul.bf16.gmra.mxu0 %v3688
        %v3921 = vpop.f32.mrf.mxu0
        %v3922 = vadd.f32 %v3909, %v3921
        %v3923 = vpop.f32.mrf.mxu0
        %3924 = vdwg.mxu0
        %3925 = vmatpush.bf16.msra.mxu0 %v3853
        %3926 = vmatpush.bf16.msra.mxu0 %v3852
        %3927 = vmatpush.bf16.msra.mxu0 %v3851
        %3928 = vmatpush.bf16.msra.mxu0 %v3850
        %3929 = vmatpush.bf16.msra.mxu0 %v3849
        %3930 = vmatpush.bf16.msra.mxu0 %v3848
        %3931 = vmatpush.bf16.msra.mxu0 %v3847
        %3932 = vmatpush.bf16.msra.mxu0 %v3846
        %3933 = vmatmul.bf16.gmra.mxu0 %v3689
        %v3934 = vpop.f32.mrf.mxu0
        %v3935 = vadd.f32 %v3922, %v3934
        %v3936 = vpop.f32.mrf.mxu0
        %3937 = vdwg.mxu0
        %v3938 = vadd.f32 %v3620, %v3935
        %v3939 = vld [vmem:[#allocation7] sm:$0x1]
        %v3940 = vadd.f32 %v3938, %v3939
        %v3941 = vmax.f32 %v3940, 0.0
        %v3942 = vpack.c.bf16 %v3941, %v3941
        %v3943 = vld [vmem:[#allocation9] sm:$0xf]
        %v3944 = vld [vmem:[#allocation9 + $0x4] sm:$0xf]
        %v3945 = vld [vmem:[#allocation9 + $0x8] sm:$0xf]
        %v3946 = vld [vmem:[#allocation9 + $0xc] sm:$0xf]
        %v3947 = vld [vmem:[#allocation9 + $0x10] sm:$0xf]
        %v3948 = vld [vmem:[#allocation9 + $0x14] sm:$0xf]
        %v3949 = vld [vmem:[#allocation9 + $0x18] sm:$0xf]
        %v3950 = vld [vmem:[#allocation9 + $0x1c] sm:$0xf]
        %v3951 = vld [vmem:[#allocation9 + $0x20] sm:$0xf]
        %v3952 = vld [vmem:[#allocation9 + $0x24] sm:$0xf]
        %v3953 = vld [vmem:[#allocation9 + $0x28] sm:$0xf]
        %v3954 = vld [vmem:[#allocation9 + $0x2c] sm:$0xf]
        %v3955 = vld [vmem:[#allocation9 + $0x30] sm:$0xf]
        %v3956 = vld [vmem:[#allocation9 + $0x34] sm:$0xf]
        %v3957 = vld [vmem:[#allocation9 + $0x38] sm:$0xf]
        %v3958 = vld [vmem:[#allocation9 + $0x3c] sm:$0xf]
        %v3959 = vld [vmem:[#allocation10] sm:$0x1]
        %v3976 = vunpack.c.l.b16 %v3943
        %v3977 = vunpack.c.l.b16 %v3944
        %v3978 = vunpack.c.l.b16 %v3945
        %v3979 = vunpack.c.l.b16 %v3946
        %v3980 = vunpack.c.l.b16 %v3947
        %v3981 = vunpack.c.l.b16 %v3948
        %v3982 = vunpack.c.l.b16 %v3949
        %v3983 = vunpack.c.l.b16 %v3950
        %v3984 = vunpack.c.l.b16 %v3951
        %v3985 = vunpack.c.l.b16 %v3952
        %v3986 = vunpack.c.l.b16 %v3953
        %v3987 = vunpack.c.l.b16 %v3954
        %v3988 = vunpack.c.l.b16 %v3955
        %v3989 = vunpack.c.l.b16 %v3956
        %v3990 = vunpack.c.l.b16 %v3957
        %v3991 = vunpack.c.l.b16 %v3958
        %v3992 = vpack.c.b16 %v3977, %v3976
        %v3993 = vpack.c.b16 %v3979, %v3978
        %v3994 = vpack.c.b16 %v3981, %v3980
        %v3995 = vpack.c.b16 %v3983, %v3982
        %v3996 = vpack.c.b16 %v3985, %v3984
        %v3997 = vpack.c.b16 %v3987, %v3986
        %v3998 = vpack.c.b16 %v3989, %v3988
        %v3999 = vpack.c.b16 %v3991, %v3990
        %4008 = vmatpush.bf16.msra.mxu0 %v3999
        %4009 = vmatpush.bf16.msra.mxu0 %v3998
        %4010 = vmatpush.bf16.msra.mxu0 %v3997
        %4011 = vmatpush.bf16.msra.mxu0 %v3996
        %4012 = vmatpush.bf16.msra.mxu0 %v3995
        %4013 = vmatpush.bf16.msra.mxu0 %v3994
        %4014 = vmatpush.bf16.msra.mxu0 %v3993
        %4015 = vmatpush.bf16.msra.mxu0 %v3992
        %4016 = vmatmul.bf16.gmra.mxu0 %v3942
        %v4017 = vpop.f32.mrf.mxu0
        %v4018 = vadd.f32 %v3959, %v4017
        %v4019 = vpop.f32.mrf.mxu0
        %4020 = vdwg.mxu0
        %v4021 = vperm.slane %v4018, 0
        %4022 = vst [vmem:[%s370] sm:$0xff] %v4021
        %p4023 = scmp.lt.s32.totalorder %s22, 1
        %s4024 = scalar_select %p4023, %s22, 1
        %s4025 = smul.addr %s4024, 8
        %s4026 = scalar_lea.vmem %s7, %s4025
        // Predicated region
        $region73: #{cnn_forward.5} parent=47 // pred_check
          %p4027 = pneg %p192
        $region74: #{cnn_forward.5} parent=47 // pred_check_branch
          %4029 = sbr.rel (%p4027) target = $region76
        $region75: #{cnn_forward.5} parent=47 // pred_region
          _
        $region76: #{cnn_forward.5} parent=47 // pred_fallthru
          _
      $region48: #{cnn_forward.5} parent=5 // pred_fallthru
        _
      %p4030 = scmp.le.s32.totalorder 2, %s17
      // Predicated region
      $region77: #{cnn_forward.5} parent=5 // pred_check
        %p4031 = pneg %p4030
      $region78: #{cnn_forward.5} parent=5 // pred_check_branch
        %4033 = sbr.rel (%p4031) target = $region80
      $region79: #{cnn_forward.5} parent=5 // pred_region
        %s4034 = ssub.s32 %s17, 2
        // Predicated region
        $region81: #{cnn_forward.5} parent=79 // pred_check
          %p4035 = pneg %p198
        $region82: #{cnn_forward.5} parent=79 // pred_check_branch
          %4037 = sbr.rel (%p4035) target = $region84
        $region83: #{cnn_forward.5} parent=79 // pred_region
          %p4038 = scmp.lt.s32.totalorder %s23, 1
          %s4039 = scalar_select %p4038, %s23, 1
          %s4040 = smul.addr %s4039, 8
          %s4041 = scalar_lea.vmem %s7, %s4040
        $region84: #{cnn_forward.5} parent=79 // pred_fallthru
          _
      $region80: #{cnn_forward.5} parent=5 // pred_fallthru
        _
    $region6: #{cnn_forward.5} parent=1 // loop_footer
      %s21 = sadd.s32 1, %s17
    $region7: #{cnn_forward.5} parent=1 // loop_footer_branch
      %16 = sbr.rel target = $region3
    $region8: #{cnn_forward.5} parent=1 // loop_exit
      _
    %4042 = vsyncpa [#allocation3], 1
    %s4043 = scalar_lea.sflag [#allocation3], 1
    %4044 = vsyncpa %s4043, 1
    %4045 = vsyncpa [#allocation5], 1
    %4046 = vsyncpa [#allocation8], 1
    %4047 = vsyncpa [#allocation11], 1

// kernel: cnn_forward.4
$region0: #{cnn_forward.4}
  #allocation0 [shape = 'u32[]', space=smem, size = 0x4, offset = 0x4, fixed_abs, tag = 'smem constant byte address 0x4 - core index']
  #allocation1 [shape = 'u32[72,128]{1,0:T(1,128)}', space=vmem, size = 0x9000, scoped, tag = 'internal scratch']
  %s0 = inlined_call_operand.vmem [shape: bf16[2,8,1024], index: 0, kind: input, shape index: {}]
  %s1 = inlined_call_operand.hbm [shape: bf16[2,3,512,384], index: 1, kind: input, shape index: {}]
  %s2 = inlined_call_operand.hbm [shape: f32[1,384], index: 2, kind: input, shape index: {}]
  %s3 = inlined_call_operand.vmem [shape: bf16[2,6,384], index: 3, kind: output, shape index: {}]
  %s4 = sld [smem:[#allocation0]]
  $region53: #{cnn_forward.4} parent=0
    _
  %s6 = ssub.s32 1, %s4
  %s7 = scalar_select 0, %s6, %s4
  $region1: #{cnn_forward.4} parent=0
    #allocation2 [shape = 'u8[2359296]{0}', space=vmem, size = 0x240000, scoped, tag = 'input window, operand 1, single buffered']
    #allocation3 [shape = 's32[2]{0}', space=sflag, size = 0x8, scoped, tag = 'scoped memory for cnn_forward.4']
    #allocation4 [shape = 'u8[1536]{0}', space=vmem, size = 0x800, scoped, tag = 'input window, operand 2, single buffered']
    #allocation5 [shape = 's32[1]{0}', space=sflag, size = 0x4, scoped, tag = 'scoped memory for cnn_forward.4']
    %8 = vsyncpa [#allocation3], 0
    %9 = vsyncpa [#allocation5], 0
    loop: start=0, step=1, limit=4
    $region2: #{cnn_forward.4} parent=1 // loop_pre_header
      _
    $region3: #{cnn_forward.4} parent=1 // loop_header
      %s11 = sphi 0, %s15
      %p12 = scmp.ge.s32.totalorder %s11, 4
      %s21 = sphi 0, %s23
      %s24 = sphi 0, %s21
      %s25 = sphi 0, %s24
      %s41 = sphi 0, %s25
      %s45 = sphi 0, %s45
      %s47 = sphi 0, %s45
      %s48 = sphi 0, %s47
      %s62 = sphi 0, %s48
      %s66 = sphi 0, %s66
      %s68 = sphi 0, %s66
      %s69 = sphi 0, %s68
      %s83 = sphi 0, %s69
      %s89 = sphi 0, %s91
      %s92 = sphi 0, %s89
      %s93 = sphi 0, %s92
      %s109 = sphi 0, %s93
    $region4: #{cnn_forward.4} parent=1 // loop_header_branch
      %14 = sbr.rel (%p12) target = $region8
    $region5: #{cnn_forward.4} parent=1 // loop_body
      %s16 = ssub.s32 %s11, 1
      %s17 = ssub.s32 %s11, 2
      %s18 = sadd.s32 %s11, 1
      %s19 = ssub.s32 %s11, %s18
      %p20 = scmp.eq.s32.totalorder %s19, 0
      %s22 = sadd.s32 %s21, 1
      %s23 = scalar_select %p20, %s21, %s22
      %p26 = pneg %p20
      %p27 = scmp.eq.s32.totalorder %s11, 1
      %p28 = por %p26, %p27
      %p29 = scmp.ne.s32.totalorder %s21, %s24
      %p30 = scmp.eq.s32.totalorder %s11, 0
      %p31 = por %p29, %p30
      %p32 = scmp.ne.s32.totalorder %s21, %s24
      %p33 = scmp.eq.s32.totalorder %s16, 1
      %p34 = por %p32, %p33
      %p35 = scmp.ne.s32.totalorder %s24, %s25
      %p36 = scmp.eq.s32.totalorder %s16, 0
      %p37 = por %p35, %p36
      %p38 = scmp.ne.s32.totalorder %s24, %s25
      %p39 = scmp.eq.s32.totalorder %s17, 1
      %p40 = por %p38, %p39
      %p42 = scmp.ne.s32.totalorder %s25, %s41
      %p43 = scmp.eq.s32.totalorder %s17, 0
      %p44 = por %p42, %p43
      %s46 = sadd.s32 %s45, 1
      %p49 = scmp.eq.s32.totalorder %s11, 1
      %p50 = scmp.ne.s32.totalorder %s45, %s47
      %p51 = scmp.eq.s32.totalorder %s11, 0
      %p52 = por %p50, %p51
      %p53 = scmp.ne.s32.totalorder %s45, %s47
      %p54 = scmp.eq.s32.totalorder %s16, 1
      %p55 = por %p53, %p54
      %p56 = scmp.ne.s32.totalorder %s47, %s48
      %p57 = scmp.eq.s32.totalorder %s16, 0
      %p58 = por %p56, %p57
      %p59 = scmp.ne.s32.totalorder %s47, %s48
      %p60 = scmp.eq.s32.totalorder %s17, 1
      %p61 = por %p59, %p60
      %p63 = scmp.ne.s32.totalorder %s48, %s62
      %p64 = scmp.eq.s32.totalorder %s17, 0
      %p65 = por %p63, %p64
      %s67 = sadd.s32 %s66, 1
      %p70 = scmp.eq.s32.totalorder %s11, 1
      %p71 = scmp.ne.s32.totalorder %s66, %s68
      %p72 = scmp.eq.s32.totalorder %s11, 0
      %p73 = por %p71, %p72
      %p74 = scmp.ne.s32.totalorder %s66, %s68
      %p75 = scmp.eq.s32.totalorder %s16, 1
      %p76 = por %p74, %p75
      %p77 = scmp.ne.s32.totalorder %s68, %s69
      %p78 = scmp.eq.s32.totalorder %s16, 0
      %p79 = por %p77, %p78
      %p80 = scmp.ne.s32.totalorder %s68, %s69
      %p81 = scmp.eq.s32.totalorder %s17, 1
      %p82 = por %p80, %p81
      %p84 = scmp.ne.s32.totalorder %s69, %s83
      %p85 = scmp.eq.s32.totalorder %s17, 0
      %p86 = por %p84, %p85
      %s87 = ssub.s32 %s11, %s18
      %p88 = scmp.eq.s32.totalorder %s87, 0
      %s90 = sadd.s32 %s89, 1
      %s91 = scalar_select %p88, %s89, %s90
      %p94 = pneg %p88
      %p95 = scmp.eq.s32.totalorder %s11, 1
      %p96 = por %p94, %p95
      %p97 = scmp.ne.s32.totalorder %s89, %s92
      %p98 = scmp.eq.s32.totalorder %s11, 0
      %p99 = por %p97, %p98
      %p100 = scmp.ne.s32.totalorder %s89, %s92
      %p101 = scmp.eq.s32.totalorder %s16, 1
      %p102 = por %p100, %p101
      %p103 = scmp.ne.s32.totalorder %s92, %s93
      %p104 = scmp.eq.s32.totalorder %s16, 0
      %p105 = por %p103, %p104
      %p106 = scmp.ne.s32.totalorder %s92, %s93
      %p107 = scmp.eq.s32.totalorder %s17, 1
      %p108 = por %p106, %p107
      %p110 = scmp.ne.s32.totalorder %s93, %s109
      %p111 = scmp.eq.s32.totalorder %s17, 0
      %p112 = por %p110, %p111
      %p113 = scmp.le.s32.totalorder 1, %s11
      %p114 = scmp.lt.s32.totalorder %s11, 3
      %p115 = pnand %p113, %p114
      %p116 = pneg %p115
      // Predicated region
      $region9: #{cnn_forward.4} parent=5 // pred_check
        _
      $region10: #{cnn_forward.4} parent=5 // pred_check_branch
        %118 = sbr.rel (%p115) target = $region12
      $region11: #{cnn_forward.4} parent=5 // pred_region
        %s119 = ssub.s32 %s11, 1
        // Predicated region
        $region13: #{cnn_forward.4} parent=11 // pred_check
          %p120 = pneg %p58
        $region14: #{cnn_forward.4} parent=11 // pred_check_branch
          %122 = sbr.rel (%p120) target = $region16
        $region15: #{cnn_forward.4} parent=11 // pred_region
          %124 = vsyncadd [#allocation3], 0
          %s125 = sshll.u32 %s1, 4
          %s126 = int_to_ptr.hbm [resolvable:$true] %s125
          %s127 = sshll.u32 [#allocation2], 4
          %s128 = int_to_ptr.vmem [resolvable:$true] %s127
          %133 = dma.hbm_to_vmem [thread:$0]  %s126, 73728, %s128, [#allocation3], 192, 192, 12
        $region16: #{cnn_forward.4} parent=11 // pred_fallthru
          _
        // Predicated region
        $region17: #{cnn_forward.4} parent=11 // pred_check
          %p134 = pneg %p79
        $region18: #{cnn_forward.4} parent=11 // pred_check_branch
          %136 = sbr.rel (%p134) target = $region20
        $region19: #{cnn_forward.4} parent=11 // pred_region
          %138 = vsyncadd [#allocation5], 0
          %s140 = sshll.u32 %s2, 4
          %s141 = int_to_ptr.hbm [resolvable:$true] %s140
          %s142 = sshll.u32 [#allocation4], 4
          %s143 = int_to_ptr.vmem [resolvable:$true] %s142
          %145 = dma.hbm_to_vmem [thread:$0]  %s141, 48, %s143, [#allocation5]
        $region20: #{cnn_forward.4} parent=11 // pred_fallthru
          _
      $region12: #{cnn_forward.4} parent=5 // pred_fallthru
        _
      %p146 = scmp.lt.s32.totalorder %s11, 2
      // Predicated region
      $region21: #{cnn_forward.4} parent=5 // pred_check
        %p147 = pneg %p146
      $region22: #{cnn_forward.4} parent=5 // pred_check_branch
        %149 = sbr.rel (%p147) target = $region24
      $region23: #{cnn_forward.4} parent=5 // pred_region
        // Predicated region
        $region25: #{cnn_forward.4} parent=23 // pred_check
          %p150 = pneg %p31
        $region26: #{cnn_forward.4} parent=23 // pred_check_branch
          %152 = sbr.rel (%p150) target = $region28
        $region27: #{cnn_forward.4} parent=23 // pred_region
          %p153 = scmp.lt.s32.totalorder %s11, 1
          %s154 = scalar_select %p153, %s11, 1
          %s155 = smul.addr %s154, 8
          %s156 = smul.addr %s155, 4
          %s157 = scalar_lea.vmem %s0, %s156
        $region28: #{cnn_forward.4} parent=23 // pred_fallthru
          _
      $region24: #{cnn_forward.4} parent=5 // pred_fallthru
        _
      %p158 = scmp.le.s32.totalorder 1, %s11
      %p159 = scmp.lt.s32.totalorder %s11, 3
      %p160 = pnand %p158, %p159
      %p161 = pneg %p160
      // Predicated region
      $region29: #{cnn_forward.4} parent=5 // pred_check
        _
      $region30: #{cnn_forward.4} parent=5 // pred_check_branch
        %163 = sbr.rel (%p160) target = $region32
      $region31: #{cnn_forward.4} parent=5 // pred_region
        %s164 = ssub.s32 %s11, 1
        // Predicated region
        $region33: #{cnn_forward.4} parent=31 // pred_check
          %p165 = pneg %p58
        $region34: #{cnn_forward.4} parent=31 // pred_check_branch
          %167 = sbr.rel (%p165) target = $region36
        $region35: #{cnn_forward.4} parent=31 // pred_region
          %169 = dma.done [#allocation3], 73728
        $region36: #{cnn_forward.4} parent=31 // pred_fallthru
          _
        // Predicated region
        $region37: #{cnn_forward.4} parent=31 // pred_check
          %p170 = pneg %p79
        $region38: #{cnn_forward.4} parent=31 // pred_check_branch
          %172 = sbr.rel (%p170) target = $region40
        $region39: #{cnn_forward.4} parent=31 // pred_region
          %174 = dma.done [#allocation5], 48
        $region40: #{cnn_forward.4} parent=31 // pred_fallthru
          _
        %p175 = scmp.lt.s32.totalorder %s16, 1
        %s176 = scalar_select %p175, %s16, 1
        %s177 = smul.addr %s176, 8
        %s178 = smul.addr %s177, 4
        %s179 = scalar_lea.vmem %s0, %s178
        %p180 = pneg %p37
        %p181 = pneg %p34
        %p182 = pneg %p58
        %p183 = pneg %p55
        %p184 = pneg %p79
        %p185 = pneg %p76
        %p186 = pneg %p105
        %p187 = pneg %p102
        %p188 = scmp.lt.s32.totalorder %s16, 1
        %s189 = scalar_select %p188, %s16, 1
        %s190 = smul.addr %s189, 3
        %s191 = smul.addr %s190, 4
        %s192 = scalar_lea.vmem %s3, %s191
        %p193 = scmp.lt.s32.totalorder %s16, 1
        %s194 = scalar_select %p193, %s16, 1
        %s195 = smul.addr %s194, 8
        %s196 = smul.addr %s195, 4
        %s197 = scalar_lea.vmem %s0, %s196
        %p198 = scmp.lt.s32.totalorder %s16, 1
        %s199 = scalar_select %p198, %s16, 1
        %s200 = smul.addr %s199, 3
        %s201 = smul.addr %s200, 4
        %s202 = scalar_lea.vmem %s3, %s201
        %v203 = vld [vmem:[%s197] sm:$0x77]
        %v204 = vld [vmem:[%s197 + $0x8] sm:$0x77]
        %v205 = vld [vmem:[%s197 + $0x10] sm:$0x77]
        %v206 = vld [vmem:[%s197 + $0x18] sm:$0x77]
        %v207 = vld [vmem:[%s197] sm:$0xff]
        %v208 = vld [vmem:[%s197 + $0x8] sm:$0xff]
        %v209 = vld [vmem:[%s197 + $0x10] sm:$0xff]
        %v210 = vld [vmem:[%s197 + $0x18] sm:$0xff]
        %v211 = vld [vmem:[#allocation2] sm:$0xff]
        %v212 = vld [vmem:[#allocation2 + $0x8] sm:$0xf]
        %v213 = vld [vmem:[#allocation2 + $0xc] sm:$0xff]
        %v214 = vld [vmem:[#allocation2 + $0x14] sm:$0xf]
        %v215 = vld [vmem:[#allocation2 + $0x18] sm:$0xff]
        %v216 = vld [vmem:[#allocation2 + $0x20] sm:$0xf]
        %v217 = vld [vmem:[#allocation2 + $0x24] sm:$0xff]
        %v218 = vld [vmem:[#allocation2 + $0x2c] sm:$0xf]
        %v219 = vld [vmem:[#allocation2 + $0x30] sm:$0xff]
        %v220 = vld [vmem:[#allocation2 + $0x38] sm:$0xf]
        %v221 = vld [vmem:[#allocation2 + $0x3c] sm:$0xff]
        %v222 = vld [vmem:[#allocation2 + $0x44] sm:$0xf]
        %v223 = vld [vmem:[#allocation2 + $0x48] sm:$0xff]
        %v224 = vld [vmem:[#allocation2 + $0x50] sm:$0xf]
        %v225 = vld [vmem:[#allocation2 + $0x54] sm:$0xff]
        %v226 = vld [vmem:[#allocation2 + $0x5c] sm:$0xf]
        %v227 = vld [vmem:[#allocation2 + $0x60] sm:$0xff]
        %v228 = vld [vmem:[#allocation2 + $0x68] sm:$0xf]
        %v229 = vld [vmem:[#allocation2 + $0x6c] sm:$0xff]
        %v230 = vld [vmem:[#allocation2 + $0x74] sm:$0xf]
        %v231 = vld [vmem:[#allocation2 + $0x78] sm:$0xff]
        %v232 = vld [vmem:[#allocation2 + $0x80] sm:$0xf]
        %v233 = vld [vmem:[#allocation2 + $0x84] sm:$0xff]
        %v234 = vld [vmem:[#allocation2 + $0x8c] sm:$0xf]
        %v235 = vld [vmem:[#allocation2 + $0x90] sm:$0xff]
        %v236 = vld [vmem:[#allocation2 + $0x98] sm:$0xf]
        %v237 = vld [vmem:[#allocation2 + $0x9c] sm:$0xff]
        %v238 = vld [vmem:[#allocation2 + $0xa4] sm:$0xf]
        %v239 = vld [vmem:[#allocation2 + $0xa8] sm:$0xff]
        %v240 = vld [vmem:[#allocation2 + $0xb0] sm:$0xf]
        %v241 = vld [vmem:[#allocation2 + $0xb4] sm:$0xff]
        %v242 = vld [vmem:[#allocation2 + $0xbc] sm:$0xf]
        %v243 = vld [vmem:[#allocation2 + $0xc0] sm:$0xff]
        %v244 = vld [vmem:[#allocation2 + $0xc8] sm:$0xf]
        %v245 = vld [vmem:[#allocation2 + $0xcc] sm:$0xff]
        %v246 = vld [vmem:[#allocation2 + $0xd4] sm:$0xf]
        %v247 = vld [vmem:[#allocation2 + $0xd8] sm:$0xff]
        %v248 = vld [vmem:[#allocation2 + $0xe0] sm:$0xf]
        %v249 = vld [vmem:[#allocation2 + $0xe4] sm:$0xff]
        %v250 = vld [vmem:[#allocation2 + $0xec] sm:$0xf]
        %v251 = vld [vmem:[#allocation2 + $0xf0] sm:$0xff]
        %v252 = vld [vmem:[#allocation2 + $0xf8] sm:$0xf]
        %v253 = vld [vmem:[#allocation2 + $0xfc] sm:$0xff]
        %v254 = vld [vmem:[#allocation2 + $0x104] sm:$0xf]
        %v255 = vld [vmem:[#allocation2 + $0x108] sm:$0xff]
        %v256 = vld [vmem:[#allocation2 + $0x110] sm:$0xf]
        %v257 = vld [vmem:[#allocation2 + $0x114] sm:$0xff]
        %v258 = vld [vmem:[#allocation2 + $0x11c] sm:$0xf]
        %v259 = vld [vmem:[#allocation2 + $0x120] sm:$0xff]
        %v260 = vld [vmem:[#allocation2 + $0x128] sm:$0xf]
        %v261 = vld [vmem:[#allocation2 + $0x12c] sm:$0xff]
        %v262 = vld [vmem:[#allocation2 + $0x134] sm:$0xf]
        %v263 = vld [vmem:[#allocation2 + $0x138] sm:$0xff]
        %v264 = vld [vmem:[#allocation2 + $0x140] sm:$0xf]
        %v265 = vld [vmem:[#allocation2 + $0x144] sm:$0xff]
        %v266 = vld [vmem:[#allocation2 + $0x14c] sm:$0xf]
        %v267 = vld [vmem:[#allocation2 + $0x150] sm:$0xff]
        %v268 = vld [vmem:[#allocation2 + $0x158] sm:$0xf]
        %v269 = vld [vmem:[#allocation2 + $0x15c] sm:$0xff]
        %v270 = vld [vmem:[#allocation2 + $0x164] sm:$0xf]
        %v271 = vld [vmem:[#allocation2 + $0x168] sm:$0xff]
        %v272 = vld [vmem:[#allocation2 + $0x170] sm:$0xf]
        %v273 = vld [vmem:[#allocation2 + $0x174] sm:$0xff]
        %v274 = vld [vmem:[#allocation2 + $0x17c] sm:$0xf]
        %v275 = vld [vmem:[#allocation2 + $0x180] sm:$0xff]
        %v276 = vld [vmem:[#allocation2 + $0x188] sm:$0xf]
        %v277 = vld [vmem:[#allocation2 + $0x18c] sm:$0xff]
        %v278 = vld [vmem:[#allocation2 + $0x194] sm:$0xf]
        %v279 = vld [vmem:[#allocation2 + $0x198] sm:$0xff]
        %v280 = vld [vmem:[#allocation2 + $0x1a0] sm:$0xf]
        %v281 = vld [vmem:[#allocation2 + $0x1a4] sm:$0xff]
        %v282 = vld [vmem:[#allocation2 + $0x1ac] sm:$0xf]
        %v283 = vld [vmem:[#allocation2 + $0x1b0] sm:$0xff]
        %v284 = vld [vmem:[#allocation2 + $0x1b8] sm:$0xf]
        %v285 = vld [vmem:[#allocation2 + $0x1bc] sm:$0xff]
        %v286 = vld [vmem:[#allocation2 + $0x1c4] sm:$0xf]
        %v287 = vld [vmem:[#allocation2 + $0x1c8] sm:$0xff]
        %v288 = vld [vmem:[#allocation2 + $0x1d0] sm:$0xf]
        %v289 = vld [vmem:[#allocation2 + $0x1d4] sm:$0xff]
        %v290 = vld [vmem:[#allocation2 + $0x1dc] sm:$0xf]
        %v291 = vld [vmem:[#allocation2 + $0x1e0] sm:$0xff]
        %v292 = vld [vmem:[#allocation2 + $0x1e8] sm:$0xf]
        %v293 = vld [vmem:[#allocation2 + $0x1ec] sm:$0xff]
        %v294 = vld [vmem:[#allocation2 + $0x1f4] sm:$0xf]
        %v295 = vld [vmem:[#allocation2 + $0x1f8] sm:$0xff]
        %v296 = vld [vmem:[#allocation2 + $0x200] sm:$0xf]
        %v297 = vld [vmem:[#allocation2 + $0x204] sm:$0xff]
        %v298 = vld [vmem:[#allocation2 + $0x20c] sm:$0xf]
        %v299 = vld [vmem:[#allocation2 + $0x210] sm:$0xff]
        %v300 = vld [vmem:[#allocation2 + $0x218] sm:$0xf]
        %v301 = vld [vmem:[#allocation2 + $0x21c] sm:$0xff]
        %v302 = vld [vmem:[#allocation2 + $0x224] sm:$0xf]
        %v303 = vld [vmem:[#allocation2 + $0x228] sm:$0xff]
        %v304 = vld [vmem:[#allocation2 + $0x230] sm:$0xf]
        %v305 = vld [vmem:[#allocation2 + $0x234] sm:$0xff]
        %v306 = vld [vmem:[#allocation2 + $0x23c] sm:$0xf]
        %v307 = vld [vmem:[#allocation2 + $0x240] sm:$0xff]
        %v308 = vld [vmem:[#allocation2 + $0x248] sm:$0xf]
        %v309 = vld [vmem:[#allocation2 + $0x24c] sm:$0xff]
        %v310 = vld [vmem:[#allocation2 + $0x254] sm:$0xf]
        %v311 = vld [vmem:[#allocation2 + $0x258] sm:$0xff]
        %v312 = vld [vmem:[#allocation2 + $0x260] sm:$0xf]
        %v313 = vld [vmem:[#allocation2 + $0x264] sm:$0xff]
        %v314 = vld [vmem:[#allocation2 + $0x26c] sm:$0xf]
        %v315 = vld [vmem:[#allocation2 + $0x270] sm:$0xff]
        %v316 = vld [vmem:[#allocation2 + $0x278] sm:$0xf]
        %v317 = vld [vmem:[#allocation2 + $0x27c] sm:$0xff]
        %v318 = vld [vmem:[#allocation2 + $0x284] sm:$0xf]
        %v319 = vld [vmem:[#allocation2 + $0x288] sm:$0xff]
        %v320 = vld [vmem:[#allocation2 + $0x290] sm:$0xf]
        %v321 = vld [vmem:[#allocation2 + $0x294] sm:$0xff]
        %v322 = vld [vmem:[#allocation2 + $0x29c] sm:$0xf]
        %v323 = vld [vmem:[#allocation2 + $0x2a0] sm:$0xff]
        %v324 = vld [vmem:[#allocation2 + $0x2a8] sm:$0xf]
        %v325 = vld [vmem:[#allocation2 + $0x2ac] sm:$0xff]
        %v326 = vld [vmem:[#allocation2 + $0x2b4] sm:$0xf]
        %v327 = vld [vmem:[#allocation2 + $0x2b8] sm:$0xff]
        %v328 = vld [vmem:[#allocation2 + $0x2c0] sm:$0xf]
        %v329 = vld [vmem:[#allocation2 + $0x2c4] sm:$0xff]
        %v330 = vld [vmem:[#allocation2 + $0x2cc] sm:$0xf]
        %v331 = vld [vmem:[#allocation2 + $0x2d0] sm:$0xff]
        %v332 = vld [vmem:[#allocation2 + $0x2d8] sm:$0xf]
        %v333 = vld [vmem:[#allocation2 + $0x2dc] sm:$0xff]
        %v334 = vld [vmem:[#allocation2 + $0x2e4] sm:$0xf]
        %v335 = vld [vmem:[#allocation2 + $0x2e8] sm:$0xff]
        %v336 = vld [vmem:[#allocation2 + $0x2f0] sm:$0xf]
        %v337 = vld [vmem:[#allocation2 + $0x2f4] sm:$0xff]
        %v338 = vld [vmem:[#allocation2 + $0x2fc] sm:$0xf]
        %s339 = scalar_lea.vmem [#allocation2], 768
        %v340 = vld [vmem:[%s339] sm:$0xff]
        %v341 = vld [vmem:[%s339 + $0x8] sm:$0xf]
        %v342 = vld [vmem:[%s339 + $0xc] sm:$0xff]
        %v343 = vld [vmem:[%s339 + $0x14] sm:$0xf]
        %v344 = vld [vmem:[%s339 + $0x18] sm:$0xff]
        %v345 = vld [vmem:[%s339 + $0x20] sm:$0xf]
        %v346 = vld [vmem:[%s339 + $0x24] sm:$0xff]
        %v347 = vld [vmem:[%s339 + $0x2c] sm:$0xf]
        %v348 = vld [vmem:[%s339 + $0x30] sm:$0xff]
        %v349 = vld [vmem:[%s339 + $0x38] sm:$0xf]
        %v350 = vld [vmem:[%s339 + $0x3c] sm:$0xff]
        %v351 = vld [vmem:[%s339 + $0x44] sm:$0xf]
        %v352 = vld [vmem:[%s339 + $0x48] sm:$0xff]
        %v353 = vld [vmem:[%s339 + $0x50] sm:$0xf]
        %v354 = vld [vmem:[%s339 + $0x54] sm:$0xff]
        %v355 = vld [vmem:[%s339 + $0x5c] sm:$0xf]
        %v356 = vld [vmem:[%s339 + $0x60] sm:$0xff]
        %v357 = vld [vmem:[%s339 + $0x68] sm:$0xf]
        %v358 = vld [vmem:[%s339 + $0x6c] sm:$0xff]
        %v359 = vld [vmem:[%s339 + $0x74] sm:$0xf]
        %v360 = vld [vmem:[%s339 + $0x78] sm:$0xff]
        %v361 = vld [vmem:[%s339 + $0x80] sm:$0xf]
        %v362 = vld [vmem:[%s339 + $0x84] sm:$0xff]
        %v363 = vld [vmem:[%s339 + $0x8c] sm:$0xf]
        %v364 = vld [vmem:[%s339 + $0x90] sm:$0xff]
        %v365 = vld [vmem:[%s339 + $0x98] sm:$0xf]
        %v366 = vld [vmem:[%s339 + $0x9c] sm:$0xff]
        %v367 = vld [vmem:[%s339 + $0xa4] sm:$0xf]
        %v368 = vld [vmem:[%s339 + $0xa8] sm:$0xff]
        %v369 = vld [vmem:[%s339 + $0xb0] sm:$0xf]
        %v370 = vld [vmem:[%s339 + $0xb4] sm:$0xff]
        %v371 = vld [vmem:[%s339 + $0xbc] sm:$0xf]
        %v372 = vld [vmem:[%s339 + $0xc0] sm:$0xff]
        %v373 = vld [vmem:[%s339 + $0xc8] sm:$0xf]
        %v374 = vld [vmem:[%s339 + $0xcc] sm:$0xff]
        %v375 = vld [vmem:[%s339 + $0xd4] sm:$0xf]
        %v376 = vld [vmem:[%s339 + $0xd8] sm:$0xff]
        %v377 = vld [vmem:[%s339 + $0xe0] sm:$0xf]
        %v378 = vld [vmem:[%s339 + $0xe4] sm:$0xff]
        %v379 = vld [vmem:[%s339 + $0xec] sm:$0xf]
        %v380 = vld [vmem:[%s339 + $0xf0] sm:$0xff]
        %v381 = vld [vmem:[%s339 + $0xf8] sm:$0xf]
        %v382 = vld [vmem:[%s339 + $0xfc] sm:$0xff]
        %v383 = vld [vmem:[%s339 + $0x104] sm:$0xf]
        %v384 = vld [vmem:[%s339 + $0x108] sm:$0xff]
        %v385 = vld [vmem:[%s339 + $0x110] sm:$0xf]
        %v386 = vld [vmem:[%s339 + $0x114] sm:$0xff]
        %v387 = vld [vmem:[%s339 + $0x11c] sm:$0xf]
        %v388 = vld [vmem:[%s339 + $0x120] sm:$0xff]
        %v389 = vld [vmem:[%s339 + $0x128] sm:$0xf]
        %v390 = vld [vmem:[%s339 + $0x12c] sm:$0xff]
        %v391 = vld [vmem:[%s339 + $0x134] sm:$0xf]
        %v392 = vld [vmem:[%s339 + $0x138] sm:$0xff]
        %v393 = vld [vmem:[%s339 + $0x140] sm:$0xf]
        %v394 = vld [vmem:[%s339 + $0x144] sm:$0xff]
        %v395 = vld [vmem:[%s339 + $0x14c] sm:$0xf]
        %v396 = vld [vmem:[%s339 + $0x150] sm:$0xff]
        %v397 = vld [vmem:[%s339 + $0x158] sm:$0xf]
        %v398 = vld [vmem:[%s339 + $0x15c] sm:$0xff]
        %v399 = vld [vmem:[%s339 + $0x164] sm:$0xf]
        %v400 = vld [vmem:[%s339 + $0x168] sm:$0xff]
        %v401 = vld [vmem:[%s339 + $0x170] sm:$0xf]
        %v402 = vld [vmem:[%s339 + $0x174] sm:$0xff]
        %v403 = vld [vmem:[%s339 + $0x17c] sm:$0xf]
        %v404 = vld [vmem:[%s339 + $0x180] sm:$0xff]
        %v405 = vld [vmem:[%s339 + $0x188] sm:$0xf]
        %v406 = vld [vmem:[%s339 + $0x18c] sm:$0xff]
        %v407 = vld [vmem:[%s339 + $0x194] sm:$0xf]
        %v408 = vld [vmem:[%s339 + $0x198] sm:$0xff]
        %v409 = vld [vmem:[%s339 + $0x1a0] sm:$0xf]
        %v410 = vld [vmem:[%s339 + $0x1a4] sm:$0xff]
        %v411 = vld [vmem:[%s339 + $0x1ac] sm:$0xf]
        %v412 = vld [vmem:[%s339 + $0x1b0] sm:$0xff]
        %v413 = vld [vmem:[%s339 + $0x1b8] sm:$0xf]
        %v414 = vld [vmem:[%s339 + $0x1bc] sm:$0xff]
        %v415 = vld [vmem:[%s339 + $0x1c4] sm:$0xf]
        %v416 = vld [vmem:[%s339 + $0x1c8] sm:$0xff]
        %v417 = vld [vmem:[%s339 + $0x1d0] sm:$0xf]
        %v418 = vld [vmem:[%s339 + $0x1d4] sm:$0xff]
        %v419 = vld [vmem:[%s339 + $0x1dc] sm:$0xf]
        %v420 = vld [vmem:[%s339 + $0x1e0] sm:$0xff]
        %v421 = vld [vmem:[%s339 + $0x1e8] sm:$0xf]
        %v422 = vld [vmem:[%s339 + $0x1ec] sm:$0xff]
        %v423 = vld [vmem:[%s339 + $0x1f4] sm:$0xf]
        %v424 = vld [vmem:[%s339 + $0x1f8] sm:$0xff]
        %v425 = vld [vmem:[%s339 + $0x200] sm:$0xf]
        %v426 = vld [vmem:[%s339 + $0x204] sm:$0xff]
        %v427 = vld [vmem:[%s339 + $0x20c] sm:$0xf]
        %v428 = vld [vmem:[%s339 + $0x210] sm:$0xff]
        %v429 = vld [vmem:[%s339 + $0x218] sm:$0xf]
        %v430 = vld [vmem:[%s339 + $0x21c] sm:$0xff]
        %v431 = vld [vmem:[%s339 + $0x224] sm:$0xf]
        %v432 = vld [vmem:[%s339 + $0x228] sm:$0xff]
        %v433 = vld [vmem:[%s339 + $0x230] sm:$0xf]
        %v434 = vld [vmem:[%s339 + $0x234] sm:$0xff]
        %v435 = vld [vmem:[%s339 + $0x23c] sm:$0xf]
        %v436 = vld [vmem:[%s339 + $0x240] sm:$0xff]
        %v437 = vld [vmem:[%s339 + $0x248] sm:$0xf]
        %v438 = vld [vmem:[%s339 + $0x24c] sm:$0xff]
        %v439 = vld [vmem:[%s339 + $0x254] sm:$0xf]
        %v440 = vld [vmem:[%s339 + $0x258] sm:$0xff]
        %v441 = vld [vmem:[%s339 + $0x260] sm:$0xf]
        %v442 = vld [vmem:[%s339 + $0x264] sm:$0xff]
        %v443 = vld [vmem:[%s339 + $0x26c] sm:$0xf]
        %v444 = vld [vmem:[%s339 + $0x270] sm:$0xff]
        %v445 = vld [vmem:[%s339 + $0x278] sm:$0xf]
        %v446 = vld [vmem:[%s339 + $0x27c] sm:$0xff]
        %v447 = vld [vmem:[%s339 + $0x284] sm:$0xf]
        %v448 = vld [vmem:[%s339 + $0x288] sm:$0xff]
        %v449 = vld [vmem:[%s339 + $0x290] sm:$0xf]
        %v450 = vld [vmem:[%s339 + $0x294] sm:$0xff]
        %v451 = vld [vmem:[%s339 + $0x29c] sm:$0xf]
        %v452 = vld [vmem:[%s339 + $0x2a0] sm:$0xff]
        %v453 = vld [vmem:[%s339 + $0x2a8] sm:$0xf]
        %v454 = vld [vmem:[%s339 + $0x2ac] sm:$0xff]
        %v455 = vld [vmem:[%s339 + $0x2b4] sm:$0xf]
        %v456 = vld [vmem:[%s339 + $0x2b8] sm:$0xff]
        %v457 = vld [vmem:[%s339 + $0x2c0] sm:$0xf]
        %v458 = vld [vmem:[%s339 + $0x2c4] sm:$0xff]
        %v459 = vld [vmem:[%s339 + $0x2cc] sm:$0xf]
        %v460 = vld [vmem:[%s339 + $0x2d0] sm:$0xff]
        %v461 = vld [vmem:[%s339 + $0x2d8] sm:$0xf]
        %v462 = vld [vmem:[%s339 + $0x2dc] sm:$0xff]
        %v463 = vld [vmem:[%s339 + $0x2e4] sm:$0xf]
        %v464 = vld [vmem:[%s339 + $0x2e8] sm:$0xff]
        %v465 = vld [vmem:[%s339 + $0x2f0] sm:$0xf]
        %v466 = vld [vmem:[%s339 + $0x2f4] sm:$0xff]
        %v467 = vld [vmem:[%s339 + $0x2fc] sm:$0xf]
        %v470 = vunpack.c.l.b16 %v205
        %v471 = vunpack.c.h.b16 %v205
        %v472 = vunpack.c.l.b16 %v206
        %v473 = vunpack.c.h.b16 %v206
        %v474 = vpack.c.b16 %v470, %v470
        %v475 = vpack.c.b16 %v471, %v471
        %v476 = vpack.c.b16 %v472, %v472
        %v477 = vpack.c.b16 %v473, %v473
        %v610 = vunpack.c.l.b16 %v340
        %v611 = vunpack.c.h.b16 %v340
        %v612 = vunpack.c.l.b16 %v341
        %v613 = vunpack.c.l.b16 %v342
        %v614 = vunpack.c.h.b16 %v342
        %v615 = vunpack.c.l.b16 %v343
        %v616 = vunpack.c.l.b16 %v344
        %v617 = vunpack.c.h.b16 %v344
        %v618 = vunpack.c.l.b16 %v345
        %v619 = vunpack.c.l.b16 %v346
        %v620 = vunpack.c.h.b16 %v346
        %v621 = vunpack.c.l.b16 %v347
        %v622 = vunpack.c.l.b16 %v348
        %v623 = vunpack.c.h.b16 %v348
        %v624 = vunpack.c.l.b16 %v349
        %v625 = vunpack.c.l.b16 %v350
        %v626 = vunpack.c.h.b16 %v350
        %v627 = vunpack.c.l.b16 %v351
        %v628 = vunpack.c.l.b16 %v352
        %v629 = vunpack.c.h.b16 %v352
        %v630 = vunpack.c.l.b16 %v353
        %v631 = vunpack.c.l.b16 %v354
        %v632 = vunpack.c.h.b16 %v354
        %v633 = vunpack.c.l.b16 %v355
        %v634 = vunpack.c.l.b16 %v356
        %v635 = vunpack.c.h.b16 %v356
        %v636 = vunpack.c.l.b16 %v357
        %v637 = vunpack.c.l.b16 %v358
        %v638 = vunpack.c.h.b16 %v358
        %v639 = vunpack.c.l.b16 %v359
        %v640 = vunpack.c.l.b16 %v360
        %v641 = vunpack.c.h.b16 %v360
        %v642 = vunpack.c.l.b16 %v361
        %v643 = vunpack.c.l.b16 %v362
        %v644 = vunpack.c.h.b16 %v362
        %v645 = vunpack.c.l.b16 %v363
        %v646 = vunpack.c.l.b16 %v364
        %v647 = vunpack.c.h.b16 %v364
        %v648 = vunpack.c.l.b16 %v365
        %v649 = vunpack.c.l.b16 %v366
        %v650 = vunpack.c.h.b16 %v366
        %v651 = vunpack.c.l.b16 %v367
        %v652 = vunpack.c.l.b16 %v368
        %v653 = vunpack.c.h.b16 %v368
        %v654 = vunpack.c.l.b16 %v369
        %v655 = vunpack.c.l.b16 %v370
        %v656 = vunpack.c.h.b16 %v370
        %v657 = vunpack.c.l.b16 %v371
        %v658 = vunpack.c.l.b16 %v372
        %v659 = vunpack.c.h.b16 %v372
        %v660 = vunpack.c.l.b16 %v373
        %v661 = vunpack.c.l.b16 %v374
        %v662 = vunpack.c.h.b16 %v374
        %v663 = vunpack.c.l.b16 %v375
        %v664 = vunpack.c.l.b16 %v376
        %v665 = vunpack.c.h.b16 %v376
        %v666 = vunpack.c.l.b16 %v377
        %v667 = vunpack.c.l.b16 %v378
        %v668 = vunpack.c.h.b16 %v378
        %v669 = vunpack.c.l.b16 %v379
        %v670 = vunpack.c.l.b16 %v380
        %v671 = vunpack.c.h.b16 %v380
        %v672 = vunpack.c.l.b16 %v381
        %v673 = vunpack.c.l.b16 %v382
        %v674 = vunpack.c.h.b16 %v382
        %v675 = vunpack.c.l.b16 %v383
        %v676 = vunpack.c.l.b16 %v384
        %v677 = vunpack.c.h.b16 %v384
        %v678 = vunpack.c.l.b16 %v385
        %v679 = vunpack.c.l.b16 %v386
        %v680 = vunpack.c.h.b16 %v386
        %v681 = vunpack.c.l.b16 %v387
        %v682 = vunpack.c.l.b16 %v388
        %v683 = vunpack.c.h.b16 %v388
        %v684 = vunpack.c.l.b16 %v389
        %v685 = vunpack.c.l.b16 %v390
        %v686 = vunpack.c.h.b16 %v390
        %v687 = vunpack.c.l.b16 %v391
        %v688 = vunpack.c.l.b16 %v392
        %v689 = vunpack.c.h.b16 %v392
        %v690 = vunpack.c.l.b16 %v393
        %v691 = vunpack.c.l.b16 %v394
        %v692 = vunpack.c.h.b16 %v394
        %v693 = vunpack.c.l.b16 %v395
        %v694 = vunpack.c.l.b16 %v396
        %v695 = vunpack.c.h.b16 %v396
        %v696 = vunpack.c.l.b16 %v397
        %v697 = vunpack.c.l.b16 %v398
        %v698 = vunpack.c.h.b16 %v398
        %v699 = vunpack.c.l.b16 %v399
        %v700 = vunpack.c.l.b16 %v400
        %v701 = vunpack.c.h.b16 %v400
        %v702 = vunpack.c.l.b16 %v401
        %v703 = vunpack.c.l.b16 %v402
        %v704 = vunpack.c.h.b16 %v402
        %v705 = vunpack.c.l.b16 %v403
        %v706 = vunpack.c.l.b16 %v404
        %v707 = vunpack.c.h.b16 %v404
        %v708 = vunpack.c.l.b16 %v405
        %v709 = vunpack.c.l.b16 %v406
        %v710 = vunpack.c.h.b16 %v406
        %v711 = vunpack.c.l.b16 %v407
        %v712 = vunpack.c.l.b16 %v408
        %v713 = vunpack.c.h.b16 %v408
        %v714 = vunpack.c.l.b16 %v409
        %v715 = vunpack.c.l.b16 %v410
        %v716 = vunpack.c.h.b16 %v410
        %v717 = vunpack.c.l.b16 %v411
        %v718 = vunpack.c.l.b16 %v412
        %v719 = vunpack.c.h.b16 %v412
        %v720 = vunpack.c.l.b16 %v413
        %v721 = vunpack.c.l.b16 %v414
        %v722 = vunpack.c.h.b16 %v414
        %v723 = vunpack.c.l.b16 %v415
        %v724 = vunpack.c.l.b16 %v416
        %v725 = vunpack.c.h.b16 %v416
        %v726 = vunpack.c.l.b16 %v417
        %v727 = vunpack.c.l.b16 %v418
        %v728 = vunpack.c.h.b16 %v418
        %v729 = vunpack.c.l.b16 %v419
        %v730 = vunpack.c.l.b16 %v420
        %v731 = vunpack.c.h.b16 %v420
        %v732 = vunpack.c.l.b16 %v421
        %v733 = vunpack.c.l.b16 %v422
        %v734 = vunpack.c.h.b16 %v422
        %v735 = vunpack.c.l.b16 %v423
        %v736 = vunpack.c.l.b16 %v424
        %v737 = vunpack.c.h.b16 %v424
        %v738 = vunpack.c.l.b16 %v425
        %v739 = vunpack.c.l.b16 %v426
        %v740 = vunpack.c.h.b16 %v426
        %v741 = vunpack.c.l.b16 %v427
        %v742 = vunpack.c.l.b16 %v428
        %v743 = vunpack.c.h.b16 %v428
        %v744 = vunpack.c.l.b16 %v429
        %v745 = vunpack.c.l.b16 %v430
        %v746 = vunpack.c.h.b16 %v430
        %v747 = vunpack.c.l.b16 %v431
        %v748 = vunpack.c.l.b16 %v432
        %v749 = vunpack.c.h.b16 %v432
        %v750 = vunpack.c.l.b16 %v433
        %v751 = vunpack.c.l.b16 %v434
        %v752 = vunpack.c.h.b16 %v434
        %v753 = vunpack.c.l.b16 %v435
        %v754 = vunpack.c.l.b16 %v436
        %v755 = vunpack.c.h.b16 %v436
        %v756 = vunpack.c.l.b16 %v437
        %v757 = vunpack.c.l.b16 %v438
        %v758 = vunpack.c.h.b16 %v438
        %v759 = vunpack.c.l.b16 %v439
        %v760 = vunpack.c.l.b16 %v440
        %v761 = vunpack.c.h.b16 %v440
        %v762 = vunpack.c.l.b16 %v441
        %v763 = vunpack.c.l.b16 %v442
        %v764 = vunpack.c.h.b16 %v442
        %v765 = vunpack.c.l.b16 %v443
        %v766 = vunpack.c.l.b16 %v444
        %v767 = vunpack.c.h.b16 %v444
        %v768 = vunpack.c.l.b16 %v445
        %v769 = vunpack.c.l.b16 %v446
        %v770 = vunpack.c.h.b16 %v446
        %v771 = vunpack.c.l.b16 %v447
        %v772 = vunpack.c.l.b16 %v448
        %v773 = vunpack.c.h.b16 %v448
        %v774 = vunpack.c.l.b16 %v449
        %v775 = vunpack.c.l.b16 %v450
        %v776 = vunpack.c.h.b16 %v450
        %v777 = vunpack.c.l.b16 %v451
        %v778 = vunpack.c.l.b16 %v452
        %v779 = vunpack.c.h.b16 %v452
        %v780 = vunpack.c.l.b16 %v453
        %v781 = vunpack.c.l.b16 %v454
        %v782 = vunpack.c.h.b16 %v454
        %v783 = vunpack.c.l.b16 %v455
        %v784 = vunpack.c.l.b16 %v456
        %v785 = vunpack.c.h.b16 %v456
        %v786 = vunpack.c.l.b16 %v457
        %v787 = vunpack.c.l.b16 %v458
        %v788 = vunpack.c.h.b16 %v458
        %v789 = vunpack.c.l.b16 %v459
        %v790 = vunpack.c.l.b16 %v460
        %v791 = vunpack.c.h.b16 %v460
        %v792 = vunpack.c.l.b16 %v461
        %v793 = vunpack.c.l.b16 %v462
        %v794 = vunpack.c.h.b16 %v462
        %v795 = vunpack.c.l.b16 %v463
        %v796 = vunpack.c.l.b16 %v464
        %v797 = vunpack.c.h.b16 %v464
        %v798 = vunpack.c.l.b16 %v465
        %v799 = vunpack.c.l.b16 %v466
        %v800 = vunpack.c.h.b16 %v466
        %v801 = vunpack.c.l.b16 %v467
        %v802 = vpack.c.b16 %v613, %v610
        %v803 = vpack.c.b16 %v614, %v611
        %v804 = vpack.c.b16 %v615, %v612
        %v805 = vpack.c.b16 %v619, %v616
        %v806 = vpack.c.b16 %v620, %v617
        %v807 = vpack.c.b16 %v621, %v618
        %v808 = vpack.c.b16 %v625, %v622
        %v809 = vpack.c.b16 %v626, %v623
        %v810 = vpack.c.b16 %v627, %v624
        %v811 = vpack.c.b16 %v631, %v628
        %v812 = vpack.c.b16 %v632, %v629
        %v813 = vpack.c.b16 %v633, %v630
        %v814 = vpack.c.b16 %v637, %v634
        %v815 = vpack.c.b16 %v638, %v635
        %v816 = vpack.c.b16 %v639, %v636
        %v817 = vpack.c.b16 %v643, %v640
        %v818 = vpack.c.b16 %v644, %v641
        %v819 = vpack.c.b16 %v645, %v642
        %v820 = vpack.c.b16 %v649, %v646
        %v821 = vpack.c.b16 %v650, %v647
        %v822 = vpack.c.b16 %v651, %v648
        %v823 = vpack.c.b16 %v655, %v652
        %v824 = vpack.c.b16 %v656, %v653
        %v825 = vpack.c.b16 %v657, %v654
        %v826 = vpack.c.b16 %v661, %v658
        %v827 = vpack.c.b16 %v662, %v659
        %v828 = vpack.c.b16 %v663, %v660
        %v829 = vpack.c.b16 %v667, %v664
        %v830 = vpack.c.b16 %v668, %v665
        %v831 = vpack.c.b16 %v669, %v666
        %v832 = vpack.c.b16 %v673, %v670
        %v833 = vpack.c.b16 %v674, %v671
        %v834 = vpack.c.b16 %v675, %v672
        %v835 = vpack.c.b16 %v679, %v676
        %v836 = vpack.c.b16 %v680, %v677
        %v837 = vpack.c.b16 %v681, %v678
        %v838 = vpack.c.b16 %v685, %v682
        %v839 = vpack.c.b16 %v686, %v683
        %v840 = vpack.c.b16 %v687, %v684
        %v841 = vpack.c.b16 %v691, %v688
        %v842 = vpack.c.b16 %v692, %v689
        %v843 = vpack.c.b16 %v693, %v690
        %v844 = vpack.c.b16 %v697, %v694
        %v845 = vpack.c.b16 %v698, %v695
        %v846 = vpack.c.b16 %v699, %v696
        %v847 = vpack.c.b16 %v703, %v700
        %v848 = vpack.c.b16 %v704, %v701
        %v849 = vpack.c.b16 %v705, %v702
        %v850 = vpack.c.b16 %v709, %v706
        %v851 = vpack.c.b16 %v710, %v707
        %v852 = vpack.c.b16 %v711, %v708
        %v853 = vpack.c.b16 %v715, %v712
        %v854 = vpack.c.b16 %v716, %v713
        %v855 = vpack.c.b16 %v717, %v714
        %v856 = vpack.c.b16 %v721, %v718
        %v857 = vpack.c.b16 %v722, %v719
        %v858 = vpack.c.b16 %v723, %v720
        %v859 = vpack.c.b16 %v727, %v724
        %v860 = vpack.c.b16 %v728, %v725
        %v861 = vpack.c.b16 %v729, %v726
        %v862 = vpack.c.b16 %v733, %v730
        %v863 = vpack.c.b16 %v734, %v731
        %v864 = vpack.c.b16 %v735, %v732
        %v865 = vpack.c.b16 %v739, %v736
        %v866 = vpack.c.b16 %v740, %v737
        %v867 = vpack.c.b16 %v741, %v738
        %v868 = vpack.c.b16 %v745, %v742
        %v869 = vpack.c.b16 %v746, %v743
        %v870 = vpack.c.b16 %v747, %v744
        %v871 = vpack.c.b16 %v751, %v748
        %v872 = vpack.c.b16 %v752, %v749
        %v873 = vpack.c.b16 %v753, %v750
        %v874 = vpack.c.b16 %v757, %v754
        %v875 = vpack.c.b16 %v758, %v755
        %v876 = vpack.c.b16 %v759, %v756
        %v877 = vpack.c.b16 %v763, %v760
        %v878 = vpack.c.b16 %v764, %v761
        %v879 = vpack.c.b16 %v765, %v762
        %v880 = vpack.c.b16 %v769, %v766
        %v881 = vpack.c.b16 %v770, %v767
        %v882 = vpack.c.b16 %v771, %v768
        %v883 = vpack.c.b16 %v775, %v772
        %v884 = vpack.c.b16 %v776, %v773
        %v885 = vpack.c.b16 %v777, %v774
        %v886 = vpack.c.b16 %v781, %v778
        %v887 = vpack.c.b16 %v782, %v779
        %v888 = vpack.c.b16 %v783, %v780
        %v889 = vpack.c.b16 %v787, %v784
        %v890 = vpack.c.b16 %v788, %v785
        %v891 = vpack.c.b16 %v789, %v786
        %v892 = vpack.c.b16 %v793, %v790
        %v893 = vpack.c.b16 %v794, %v791
        %v894 = vpack.c.b16 %v795, %v792
        %v895 = vpack.c.b16 %v799, %v796
        %v896 = vpack.c.b16 %v800, %v797
        %v897 = vpack.c.b16 %v801, %v798
        %994 = vmatpush.bf16.msra.mxu0 %v823
        %995 = vmatpush.bf16.msra.mxu0 %v820
        %996 = vmatpush.bf16.msra.mxu0 %v817
        %997 = vmatpush.bf16.msra.mxu0 %v814
        %998 = vmatpush.bf16.msra.mxu0 %v811
        %999 = vmatpush.bf16.msra.mxu0 %v808
        %1000 = vmatpush.bf16.msra.mxu0 %v805
        %1001 = vmatpush.bf16.msra.mxu0 %v802
        %1002 = vmatmul.bf16.gmra.mxu0 %v474
        %v1003 = vpop.f32.mrf.mxu0
        %v1004 = vadd.f32 0.0, %v1003
        %v1005 = vpop.f32.mrf.mxu0
        %1006 = vdwg.mxu0
        %1007 = vmatpush.bf16.msra.mxu0 %v847
        %1008 = vmatpush.bf16.msra.mxu0 %v844
        %1009 = vmatpush.bf16.msra.mxu0 %v841
        %1010 = vmatpush.bf16.msra.mxu0 %v838
        %1011 = vmatpush.bf16.msra.mxu0 %v835
        %1012 = vmatpush.bf16.msra.mxu0 %v832
        %1013 = vmatpush.bf16.msra.mxu0 %v829
        %1014 = vmatpush.bf16.msra.mxu0 %v826
        %1015 = vmatmul.bf16.gmra.mxu0 %v475
        %v1016 = vpop.f32.mrf.mxu0
        %v1017 = vadd.f32 %v1004, %v1016
        %v1018 = vpop.f32.mrf.mxu0
        %1019 = vdwg.mxu0
        %1020 = vmatpush.bf16.msra.mxu0 %v871
        %1021 = vmatpush.bf16.msra.mxu0 %v868
        %1022 = vmatpush.bf16.msra.mxu0 %v865
        %1023 = vmatpush.bf16.msra.mxu0 %v862
        %1024 = vmatpush.bf16.msra.mxu0 %v859
        %1025 = vmatpush.bf16.msra.mxu0 %v856
        %1026 = vmatpush.bf16.msra.mxu0 %v853
        %1027 = vmatpush.bf16.msra.mxu0 %v850
        %1028 = vmatmul.bf16.gmra.mxu0 %v476
        %v1029 = vpop.f32.mrf.mxu0
        %v1030 = vadd.f32 %v1017, %v1029
        %v1031 = vpop.f32.mrf.mxu0
        %1032 = vdwg.mxu0
        %1033 = vmatpush.bf16.msra.mxu0 %v895
        %1034 = vmatpush.bf16.msra.mxu0 %v892
        %1035 = vmatpush.bf16.msra.mxu0 %v889
        %1036 = vmatpush.bf16.msra.mxu0 %v886
        %1037 = vmatpush.bf16.msra.mxu0 %v883
        %1038 = vmatpush.bf16.msra.mxu0 %v880
        %1039 = vmatpush.bf16.msra.mxu0 %v877
        %1040 = vmatpush.bf16.msra.mxu0 %v874
        %1041 = vmatmul.bf16.gmra.mxu0 %v477
        %v1042 = vpop.f32.mrf.mxu0
        %v1043 = vadd.f32 %v1030, %v1042
        %v1044 = vpop.f32.mrf.mxu0
        %1045 = vdwg.mxu0
        %1046 = vmatpush.bf16.msra.mxu0 %v824
        %1047 = vmatpush.bf16.msra.mxu0 %v821
        %1048 = vmatpush.bf16.msra.mxu0 %v818
        %1049 = vmatpush.bf16.msra.mxu0 %v815
        %1050 = vmatpush.bf16.msra.mxu0 %v812
        %1051 = vmatpush.bf16.msra.mxu0 %v809
        %1052 = vmatpush.bf16.msra.mxu0 %v806
        %1053 = vmatpush.bf16.msra.mxu0 %v803
        %1054 = vmatmul.bf16.gmra.mxu0 %v474
        %v1055 = vpop.f32.mrf.mxu0
        %v1056 = vadd.f32 0.0, %v1055
        %v1057 = vpop.f32.mrf.mxu0
        %1058 = vdwg.mxu0
        %1059 = vmatpush.bf16.msra.mxu0 %v848
        %1060 = vmatpush.bf16.msra.mxu0 %v845
        %1061 = vmatpush.bf16.msra.mxu0 %v842
        %1062 = vmatpush.bf16.msra.mxu0 %v839
        %1063 = vmatpush.bf16.msra.mxu0 %v836
        %1064 = vmatpush.bf16.msra.mxu0 %v833
        %1065 = vmatpush.bf16.msra.mxu0 %v830
        %1066 = vmatpush.bf16.msra.mxu0 %v827
        %1067 = vmatmul.bf16.gmra.mxu0 %v475
        %v1068 = vpop.f32.mrf.mxu0
        %v1069 = vadd.f32 %v1056, %v1068
        %v1070 = vpop.f32.mrf.mxu0
        %1071 = vdwg.mxu0
        %1072 = vmatpush.bf16.msra.mxu0 %v872
        %1073 = vmatpush.bf16.msra.mxu0 %v869
        %1074 = vmatpush.bf16.msra.mxu0 %v866
        %1075 = vmatpush.bf16.msra.mxu0 %v863
        %1076 = vmatpush.bf16.msra.mxu0 %v860
        %1077 = vmatpush.bf16.msra.mxu0 %v857
        %1078 = vmatpush.bf16.msra.mxu0 %v854
        %1079 = vmatpush.bf16.msra.mxu0 %v851
        %1080 = vmatmul.bf16.gmra.mxu0 %v476
        %v1081 = vpop.f32.mrf.mxu0
        %v1082 = vadd.f32 %v1069, %v1081
        %v1083 = vpop.f32.mrf.mxu0
        %1084 = vdwg.mxu0
        %1085 = vmatpush.bf16.msra.mxu0 %v896
        %1086 = vmatpush.bf16.msra.mxu0 %v893
        %1087 = vmatpush.bf16.msra.mxu0 %v890
        %1088 = vmatpush.bf16.msra.mxu0 %v887
        %1089 = vmatpush.bf16.msra.mxu0 %v884
        %1090 = vmatpush.bf16.msra.mxu0 %v881
        %1091 = vmatpush.bf16.msra.mxu0 %v878
        %1092 = vmatpush.bf16.msra.mxu0 %v875
        %1093 = vmatmul.bf16.gmra.mxu0 %v477
        %v1094 = vpop.f32.mrf.mxu0
        %v1095 = vadd.f32 %v1082, %v1094
        %v1096 = vpop.f32.mrf.mxu0
        %1097 = vdwg.mxu0
        %1098 = vmatpush.bf16.msra.mxu0 %v825
        %1099 = vmatpush.bf16.msra.mxu0 %v822
        %1100 = vmatpush.bf16.msra.mxu0 %v819
        %1101 = vmatpush.bf16.msra.mxu0 %v816
        %1102 = vmatpush.bf16.msra.mxu0 %v813
        %1103 = vmatpush.bf16.msra.mxu0 %v810
        %1104 = vmatpush.bf16.msra.mxu0 %v807
        %1105 = vmatpush.bf16.msra.mxu0 %v804
        %1106 = vmatmul.bf16.gmra.mxu0 %v474
        %v1107 = vpop.f32.mrf.mxu0
        %v1108 = vadd.f32 0.0, %v1107
        %v1109 = vpop.f32.mrf.mxu0
        %1110 = vdwg.mxu0
        %1111 = vmatpush.bf16.msra.mxu0 %v849
        %1112 = vmatpush.bf16.msra.mxu0 %v846
        %1113 = vmatpush.bf16.msra.mxu0 %v843
        %1114 = vmatpush.bf16.msra.mxu0 %v840
        %1115 = vmatpush.bf16.msra.mxu0 %v837
        %1116 = vmatpush.bf16.msra.mxu0 %v834
        %1117 = vmatpush.bf16.msra.mxu0 %v831
        %1118 = vmatpush.bf16.msra.mxu0 %v828
        %1119 = vmatmul.bf16.gmra.mxu0 %v475
        %v1120 = vpop.f32.mrf.mxu0
        %v1121 = vadd.f32 %v1108, %v1120
        %v1122 = vpop.f32.mrf.mxu0
        %1123 = vdwg.mxu0
        %1124 = vmatpush.bf16.msra.mxu0 %v873
        %1125 = vmatpush.bf16.msra.mxu0 %v870
        %1126 = vmatpush.bf16.msra.mxu0 %v867
        %1127 = vmatpush.bf16.msra.mxu0 %v864
        %1128 = vmatpush.bf16.msra.mxu0 %v861
        %1129 = vmatpush.bf16.msra.mxu0 %v858
        %1130 = vmatpush.bf16.msra.mxu0 %v855
        %1131 = vmatpush.bf16.msra.mxu0 %v852
        %1132 = vmatmul.bf16.gmra.mxu0 %v476
        %v1133 = vpop.f32.mrf.mxu0
        %v1134 = vadd.f32 %v1121, %v1133
        %v1135 = vpop.f32.mrf.mxu0
        %1136 = vdwg.mxu0
        %1137 = vmatpush.bf16.msra.mxu0 %v897
        %1138 = vmatpush.bf16.msra.mxu0 %v894
        %1139 = vmatpush.bf16.msra.mxu0 %v891
        %1140 = vmatpush.bf16.msra.mxu0 %v888
        %1141 = vmatpush.bf16.msra.mxu0 %v885
        %1142 = vmatpush.bf16.msra.mxu0 %v882
        %1143 = vmatpush.bf16.msra.mxu0 %v879
        %1144 = vmatpush.bf16.msra.mxu0 %v876
        %1145 = vmatmul.bf16.gmra.mxu0 %v477
        %v1146 = vpop.f32.mrf.mxu0
        %v1147 = vadd.f32 %v1134, %v1146
        %v1148 = vpop.f32.mrf.mxu0
        %1149 = vdwg.mxu0
        %v1152 = vunpack.c.l.b16 %v203
        %v1153 = vunpack.c.h.b16 %v203
        %v1154 = vunpack.c.l.b16 %v204
        %v1155 = vunpack.c.h.b16 %v204
        %v1156 = vpack.c.b16 %v1152, %v1152
        %v1157 = vpack.c.b16 %v1153, %v1153
        %v1158 = vpack.c.b16 %v1154, %v1154
        %v1159 = vpack.c.b16 %v1155, %v1155
        %v1292 = vunpack.c.l.b16 %v211
        %v1293 = vunpack.c.h.b16 %v211
        %v1294 = vunpack.c.l.b16 %v212
        %v1295 = vunpack.c.l.b16 %v213
        %v1296 = vunpack.c.h.b16 %v213
        %v1297 = vunpack.c.l.b16 %v214
        %v1298 = vunpack.c.l.b16 %v215
        %v1299 = vunpack.c.h.b16 %v215
        %v1300 = vunpack.c.l.b16 %v216
        %v1301 = vunpack.c.l.b16 %v217
        %v1302 = vunpack.c.h.b16 %v217
        %v1303 = vunpack.c.l.b16 %v218
        %v1304 = vunpack.c.l.b16 %v219
        %v1305 = vunpack.c.h.b16 %v219
        %v1306 = vunpack.c.l.b16 %v220
        %v1307 = vunpack.c.l.b16 %v221
        %v1308 = vunpack.c.h.b16 %v221
        %v1309 = vunpack.c.l.b16 %v222
        %v1310 = vunpack.c.l.b16 %v223
        %v1311 = vunpack.c.h.b16 %v223
        %v1312 = vunpack.c.l.b16 %v224
        %v1313 = vunpack.c.l.b16 %v225
        %v1314 = vunpack.c.h.b16 %v225
        %v1315 = vunpack.c.l.b16 %v226
        %v1316 = vunpack.c.l.b16 %v227
        %v1317 = vunpack.c.h.b16 %v227
        %v1318 = vunpack.c.l.b16 %v228
        %v1319 = vunpack.c.l.b16 %v229
        %v1320 = vunpack.c.h.b16 %v229
        %v1321 = vunpack.c.l.b16 %v230
        %v1322 = vunpack.c.l.b16 %v231
        %v1323 = vunpack.c.h.b16 %v231
        %v1324 = vunpack.c.l.b16 %v232
        %v1325 = vunpack.c.l.b16 %v233
        %v1326 = vunpack.c.h.b16 %v233
        %v1327 = vunpack.c.l.b16 %v234
        %v1328 = vunpack.c.l.b16 %v235
        %v1329 = vunpack.c.h.b16 %v235
        %v1330 = vunpack.c.l.b16 %v236
        %v1331 = vunpack.c.l.b16 %v237
        %v1332 = vunpack.c.h.b16 %v237
        %v1333 = vunpack.c.l.b16 %v238
        %v1334 = vunpack.c.l.b16 %v239
        %v1335 = vunpack.c.h.b16 %v239
        %v1336 = vunpack.c.l.b16 %v240
        %v1337 = vunpack.c.l.b16 %v241
        %v1338 = vunpack.c.h.b16 %v241
        %v1339 = vunpack.c.l.b16 %v242
        %v1340 = vunpack.c.l.b16 %v243
        %v1341 = vunpack.c.h.b16 %v243
        %v1342 = vunpack.c.l.b16 %v244
        %v1343 = vunpack.c.l.b16 %v245
        %v1344 = vunpack.c.h.b16 %v245
        %v1345 = vunpack.c.l.b16 %v246
        %v1346 = vunpack.c.l.b16 %v247
        %v1347 = vunpack.c.h.b16 %v247
        %v1348 = vunpack.c.l.b16 %v248
        %v1349 = vunpack.c.l.b16 %v249
        %v1350 = vunpack.c.h.b16 %v249
        %v1351 = vunpack.c.l.b16 %v250
        %v1352 = vunpack.c.l.b16 %v251
        %v1353 = vunpack.c.h.b16 %v251
        %v1354 = vunpack.c.l.b16 %v252
        %v1355 = vunpack.c.l.b16 %v253
        %v1356 = vunpack.c.h.b16 %v253
        %v1357 = vunpack.c.l.b16 %v254
        %v1358 = vunpack.c.l.b16 %v255
        %v1359 = vunpack.c.h.b16 %v255
        %v1360 = vunpack.c.l.b16 %v256
        %v1361 = vunpack.c.l.b16 %v257
        %v1362 = vunpack.c.h.b16 %v257
        %v1363 = vunpack.c.l.b16 %v258
        %v1364 = vunpack.c.l.b16 %v259
        %v1365 = vunpack.c.h.b16 %v259
        %v1366 = vunpack.c.l.b16 %v260
        %v1367 = vunpack.c.l.b16 %v261
        %v1368 = vunpack.c.h.b16 %v261
        %v1369 = vunpack.c.l.b16 %v262
        %v1370 = vunpack.c.l.b16 %v263
        %v1371 = vunpack.c.h.b16 %v263
        %v1372 = vunpack.c.l.b16 %v264
        %v1373 = vunpack.c.l.b16 %v265
        %v1374 = vunpack.c.h.b16 %v265
        %v1375 = vunpack.c.l.b16 %v266
        %v1376 = vunpack.c.l.b16 %v267
        %v1377 = vunpack.c.h.b16 %v267
        %v1378 = vunpack.c.l.b16 %v268
        %v1379 = vunpack.c.l.b16 %v269
        %v1380 = vunpack.c.h.b16 %v269
        %v1381 = vunpack.c.l.b16 %v270
        %v1382 = vunpack.c.l.b16 %v271
        %v1383 = vunpack.c.h.b16 %v271
        %v1384 = vunpack.c.l.b16 %v272
        %v1385 = vunpack.c.l.b16 %v273
        %v1386 = vunpack.c.h.b16 %v273
        %v1387 = vunpack.c.l.b16 %v274
        %v1388 = vunpack.c.l.b16 %v275
        %v1389 = vunpack.c.h.b16 %v275
        %v1390 = vunpack.c.l.b16 %v276
        %v1391 = vunpack.c.l.b16 %v277
        %v1392 = vunpack.c.h.b16 %v277
        %v1393 = vunpack.c.l.b16 %v278
        %v1394 = vunpack.c.l.b16 %v279
        %v1395 = vunpack.c.h.b16 %v279
        %v1396 = vunpack.c.l.b16 %v280
        %v1397 = vunpack.c.l.b16 %v281
        %v1398 = vunpack.c.h.b16 %v281
        %v1399 = vunpack.c.l.b16 %v282
        %v1400 = vunpack.c.l.b16 %v283
        %v1401 = vunpack.c.h.b16 %v283
        %v1402 = vunpack.c.l.b16 %v284
        %v1403 = vunpack.c.l.b16 %v285
        %v1404 = vunpack.c.h.b16 %v285
        %v1405 = vunpack.c.l.b16 %v286
        %v1406 = vunpack.c.l.b16 %v287
        %v1407 = vunpack.c.h.b16 %v287
        %v1408 = vunpack.c.l.b16 %v288
        %v1409 = vunpack.c.l.b16 %v289
        %v1410 = vunpack.c.h.b16 %v289
        %v1411 = vunpack.c.l.b16 %v290
        %v1412 = vunpack.c.l.b16 %v291
        %v1413 = vunpack.c.h.b16 %v291
        %v1414 = vunpack.c.l.b16 %v292
        %v1415 = vunpack.c.l.b16 %v293
        %v1416 = vunpack.c.h.b16 %v293
        %v1417 = vunpack.c.l.b16 %v294
        %v1418 = vunpack.c.l.b16 %v295
        %v1419 = vunpack.c.h.b16 %v295
        %v1420 = vunpack.c.l.b16 %v296
        %v1421 = vunpack.c.l.b16 %v297
        %v1422 = vunpack.c.h.b16 %v297
        %v1423 = vunpack.c.l.b16 %v298
        %v1424 = vunpack.c.l.b16 %v299
        %v1425 = vunpack.c.h.b16 %v299
        %v1426 = vunpack.c.l.b16 %v300
        %v1427 = vunpack.c.l.b16 %v301
        %v1428 = vunpack.c.h.b16 %v301
        %v1429 = vunpack.c.l.b16 %v302
        %v1430 = vunpack.c.l.b16 %v303
        %v1431 = vunpack.c.h.b16 %v303
        %v1432 = vunpack.c.l.b16 %v304
        %v1433 = vunpack.c.l.b16 %v305
        %v1434 = vunpack.c.h.b16 %v305
        %v1435 = vunpack.c.l.b16 %v306
        %v1436 = vunpack.c.l.b16 %v307
        %v1437 = vunpack.c.h.b16 %v307
        %v1438 = vunpack.c.l.b16 %v308
        %v1439 = vunpack.c.l.b16 %v309
        %v1440 = vunpack.c.h.b16 %v309
        %v1441 = vunpack.c.l.b16 %v310
        %v1442 = vunpack.c.l.b16 %v311
        %v1443 = vunpack.c.h.b16 %v311
        %v1444 = vunpack.c.l.b16 %v312
        %v1445 = vunpack.c.l.b16 %v313
        %v1446 = vunpack.c.h.b16 %v313
        %v1447 = vunpack.c.l.b16 %v314
        %v1448 = vunpack.c.l.b16 %v315
        %v1449 = vunpack.c.h.b16 %v315
        %v1450 = vunpack.c.l.b16 %v316
        %v1451 = vunpack.c.l.b16 %v317
        %v1452 = vunpack.c.h.b16 %v317
        %v1453 = vunpack.c.l.b16 %v318
        %v1454 = vunpack.c.l.b16 %v319
        %v1455 = vunpack.c.h.b16 %v319
        %v1456 = vunpack.c.l.b16 %v320
        %v1457 = vunpack.c.l.b16 %v321
        %v1458 = vunpack.c.h.b16 %v321
        %v1459 = vunpack.c.l.b16 %v322
        %v1460 = vunpack.c.l.b16 %v323
        %v1461 = vunpack.c.h.b16 %v323
        %v1462 = vunpack.c.l.b16 %v324
        %v1463 = vunpack.c.l.b16 %v325
        %v1464 = vunpack.c.h.b16 %v325
        %v1465 = vunpack.c.l.b16 %v326
        %v1466 = vunpack.c.l.b16 %v327
        %v1467 = vunpack.c.h.b16 %v327
        %v1468 = vunpack.c.l.b16 %v328
        %v1469 = vunpack.c.l.b16 %v329
        %v1470 = vunpack.c.h.b16 %v329
        %v1471 = vunpack.c.l.b16 %v330
        %v1472 = vunpack.c.l.b16 %v331
        %v1473 = vunpack.c.h.b16 %v331
        %v1474 = vunpack.c.l.b16 %v332
        %v1475 = vunpack.c.l.b16 %v333
        %v1476 = vunpack.c.h.b16 %v333
        %v1477 = vunpack.c.l.b16 %v334
        %v1478 = vunpack.c.l.b16 %v335
        %v1479 = vunpack.c.h.b16 %v335
        %v1480 = vunpack.c.l.b16 %v336
        %v1481 = vunpack.c.l.b16 %v337
        %v1482 = vunpack.c.h.b16 %v337
        %v1483 = vunpack.c.l.b16 %v338
        %v1484 = vpack.c.b16 %v1295, %v1292
        %v1485 = vpack.c.b16 %v1296, %v1293
        %v1486 = vpack.c.b16 %v1297, %v1294
        %v1487 = vpack.c.b16 %v1301, %v1298
        %v1488 = vpack.c.b16 %v1302, %v1299
        %v1489 = vpack.c.b16 %v1303, %v1300
        %v1490 = vpack.c.b16 %v1307, %v1304
        %v1491 = vpack.c.b16 %v1308, %v1305
        %v1492 = vpack.c.b16 %v1309, %v1306
        %v1493 = vpack.c.b16 %v1313, %v1310
        %v1494 = vpack.c.b16 %v1314, %v1311
        %v1495 = vpack.c.b16 %v1315, %v1312
        %v1496 = vpack.c.b16 %v1319, %v1316
        %v1497 = vpack.c.b16 %v1320, %v1317
        %v1498 = vpack.c.b16 %v1321, %v1318
        %v1499 = vpack.c.b16 %v1325, %v1322
        %v1500 = vpack.c.b16 %v1326, %v1323
        %v1501 = vpack.c.b16 %v1327, %v1324
        %v1502 = vpack.c.b16 %v1331, %v1328
        %v1503 = vpack.c.b16 %v1332, %v1329
        %v1504 = vpack.c.b16 %v1333, %v1330
        %v1505 = vpack.c.b16 %v1337, %v1334
        %v1506 = vpack.c.b16 %v1338, %v1335
        %v1507 = vpack.c.b16 %v1339, %v1336
        %v1508 = vpack.c.b16 %v1343, %v1340
        %v1509 = vpack.c.b16 %v1344, %v1341
        %v1510 = vpack.c.b16 %v1345, %v1342
        %v1511 = vpack.c.b16 %v1349, %v1346
        %v1512 = vpack.c.b16 %v1350, %v1347
        %v1513 = vpack.c.b16 %v1351, %v1348
        %v1514 = vpack.c.b16 %v1355, %v1352
        %v1515 = vpack.c.b16 %v1356, %v1353
        %v1516 = vpack.c.b16 %v1357, %v1354
        %v1517 = vpack.c.b16 %v1361, %v1358
        %v1518 = vpack.c.b16 %v1362, %v1359
        %v1519 = vpack.c.b16 %v1363, %v1360
        %v1520 = vpack.c.b16 %v1367, %v1364
        %v1521 = vpack.c.b16 %v1368, %v1365
        %v1522 = vpack.c.b16 %v1369, %v1366
        %v1523 = vpack.c.b16 %v1373, %v1370
        %v1524 = vpack.c.b16 %v1374, %v1371
        %v1525 = vpack.c.b16 %v1375, %v1372
        %v1526 = vpack.c.b16 %v1379, %v1376
        %v1527 = vpack.c.b16 %v1380, %v1377
        %v1528 = vpack.c.b16 %v1381, %v1378
        %v1529 = vpack.c.b16 %v1385, %v1382
        %v1530 = vpack.c.b16 %v1386, %v1383
        %v1531 = vpack.c.b16 %v1387, %v1384
        %v1532 = vpack.c.b16 %v1391, %v1388
        %v1533 = vpack.c.b16 %v1392, %v1389
        %v1534 = vpack.c.b16 %v1393, %v1390
        %v1535 = vpack.c.b16 %v1397, %v1394
        %v1536 = vpack.c.b16 %v1398, %v1395
        %v1537 = vpack.c.b16 %v1399, %v1396
        %v1538 = vpack.c.b16 %v1403, %v1400
        %v1539 = vpack.c.b16 %v1404, %v1401
        %v1540 = vpack.c.b16 %v1405, %v1402
        %v1541 = vpack.c.b16 %v1409, %v1406
        %v1542 = vpack.c.b16 %v1410, %v1407
        %v1543 = vpack.c.b16 %v1411, %v1408
        %v1544 = vpack.c.b16 %v1415, %v1412
        %v1545 = vpack.c.b16 %v1416, %v1413
        %v1546 = vpack.c.b16 %v1417, %v1414
        %v1547 = vpack.c.b16 %v1421, %v1418
        %v1548 = vpack.c.b16 %v1422, %v1419
        %v1549 = vpack.c.b16 %v1423, %v1420
        %v1550 = vpack.c.b16 %v1427, %v1424
        %v1551 = vpack.c.b16 %v1428, %v1425
        %v1552 = vpack.c.b16 %v1429, %v1426
        %v1553 = vpack.c.b16 %v1433, %v1430
        %v1554 = vpack.c.b16 %v1434, %v1431
        %v1555 = vpack.c.b16 %v1435, %v1432
        %v1556 = vpack.c.b16 %v1439, %v1436
        %v1557 = vpack.c.b16 %v1440, %v1437
        %v1558 = vpack.c.b16 %v1441, %v1438
        %v1559 = vpack.c.b16 %v1445, %v1442
        %v1560 = vpack.c.b16 %v1446, %v1443
        %v1561 = vpack.c.b16 %v1447, %v1444
        %v1562 = vpack.c.b16 %v1451, %v1448
        %v1563 = vpack.c.b16 %v1452, %v1449
        %v1564 = vpack.c.b16 %v1453, %v1450
        %v1565 = vpack.c.b16 %v1457, %v1454
        %v1566 = vpack.c.b16 %v1458, %v1455
        %v1567 = vpack.c.b16 %v1459, %v1456
        %v1568 = vpack.c.b16 %v1463, %v1460
        %v1569 = vpack.c.b16 %v1464, %v1461
        %v1570 = vpack.c.b16 %v1465, %v1462
        %v1571 = vpack.c.b16 %v1469, %v1466
        %v1572 = vpack.c.b16 %v1470, %v1467
        %v1573 = vpack.c.b16 %v1471, %v1468
        %v1574 = vpack.c.b16 %v1475, %v1472
        %v1575 = vpack.c.b16 %v1476, %v1473
        %v1576 = vpack.c.b16 %v1477, %v1474
        %v1577 = vpack.c.b16 %v1481, %v1478
        %v1578 = vpack.c.b16 %v1482, %v1479
        %v1579 = vpack.c.b16 %v1483, %v1480
        %1676 = vmatpush.bf16.msra.mxu0 %v1505
        %1677 = vmatpush.bf16.msra.mxu0 %v1502
        %1678 = vmatpush.bf16.msra.mxu0 %v1499
        %1679 = vmatpush.bf16.msra.mxu0 %v1496
        %1680 = vmatpush.bf16.msra.mxu0 %v1493
        %1681 = vmatpush.bf16.msra.mxu0 %v1490
        %1682 = vmatpush.bf16.msra.mxu0 %v1487
        %1683 = vmatpush.bf16.msra.mxu0 %v1484
        %1684 = vmatmul.bf16.gmra.mxu0 %v1156
        %v1685 = vpop.f32.mrf.mxu0
        %v1686 = vadd.f32 %v1043, %v1685
        %v1687 = vpop.f32.mrf.mxu0
        %1688 = vdwg.mxu0
        %1689 = vmatpush.bf16.msra.mxu0 %v1529
        %1690 = vmatpush.bf16.msra.mxu0 %v1526
        %1691 = vmatpush.bf16.msra.mxu0 %v1523
        %1692 = vmatpush.bf16.msra.mxu0 %v1520
        %1693 = vmatpush.bf16.msra.mxu0 %v1517
        %1694 = vmatpush.bf16.msra.mxu0 %v1514
        %1695 = vmatpush.bf16.msra.mxu0 %v1511
        %1696 = vmatpush.bf16.msra.mxu0 %v1508
        %1697 = vmatmul.bf16.gmra.mxu0 %v1157
        %v1698 = vpop.f32.mrf.mxu0
        %v1699 = vadd.f32 %v1686, %v1698
        %v1700 = vpop.f32.mrf.mxu0
        %1701 = vdwg.mxu0
        %1702 = vmatpush.bf16.msra.mxu0 %v1553
        %1703 = vmatpush.bf16.msra.mxu0 %v1550
        %1704 = vmatpush.bf16.msra.mxu0 %v1547
        %1705 = vmatpush.bf16.msra.mxu0 %v1544
        %1706 = vmatpush.bf16.msra.mxu0 %v1541
        %1707 = vmatpush.bf16.msra.mxu0 %v1538
        %1708 = vmatpush.bf16.msra.mxu0 %v1535
        %1709 = vmatpush.bf16.msra.mxu0 %v1532
        %1710 = vmatmul.bf16.gmra.mxu0 %v1158
        %v1711 = vpop.f32.mrf.mxu0
        %v1712 = vadd.f32 %v1699, %v1711
        %v1713 = vpop.f32.mrf.mxu0
        %1714 = vdwg.mxu0
        %1715 = vmatpush.bf16.msra.mxu0 %v1577
        %1716 = vmatpush.bf16.msra.mxu0 %v1574
        %1717 = vmatpush.bf16.msra.mxu0 %v1571
        %1718 = vmatpush.bf16.msra.mxu0 %v1568
        %1719 = vmatpush.bf16.msra.mxu0 %v1565
        %1720 = vmatpush.bf16.msra.mxu0 %v1562
        %1721 = vmatpush.bf16.msra.mxu0 %v1559
        %1722 = vmatpush.bf16.msra.mxu0 %v1556
        %1723 = vmatmul.bf16.gmra.mxu0 %v1159
        %v1724 = vpop.f32.mrf.mxu0
        %v1725 = vadd.f32 %v1712, %v1724
        %v1726 = vpop.f32.mrf.mxu0
        %1727 = vdwg.mxu0
        %1728 = vmatpush.bf16.msra.mxu0 %v1506
        %1729 = vmatpush.bf16.msra.mxu0 %v1503
        %1730 = vmatpush.bf16.msra.mxu0 %v1500
        %1731 = vmatpush.bf16.msra.mxu0 %v1497
        %1732 = vmatpush.bf16.msra.mxu0 %v1494
        %1733 = vmatpush.bf16.msra.mxu0 %v1491
        %1734 = vmatpush.bf16.msra.mxu0 %v1488
        %1735 = vmatpush.bf16.msra.mxu0 %v1485
        %1736 = vmatmul.bf16.gmra.mxu0 %v1156
        %v1737 = vpop.f32.mrf.mxu0
        %v1738 = vadd.f32 %v1095, %v1737
        %v1739 = vpop.f32.mrf.mxu0
        %1740 = vdwg.mxu0
        %1741 = vmatpush.bf16.msra.mxu0 %v1530
        %1742 = vmatpush.bf16.msra.mxu0 %v1527
        %1743 = vmatpush.bf16.msra.mxu0 %v1524
        %1744 = vmatpush.bf16.msra.mxu0 %v1521
        %1745 = vmatpush.bf16.msra.mxu0 %v1518
        %1746 = vmatpush.bf16.msra.mxu0 %v1515
        %1747 = vmatpush.bf16.msra.mxu0 %v1512
        %1748 = vmatpush.bf16.msra.mxu0 %v1509
        %1749 = vmatmul.bf16.gmra.mxu0 %v1157
        %v1750 = vpop.f32.mrf.mxu0
        %v1751 = vadd.f32 %v1738, %v1750
        %v1752 = vpop.f32.mrf.mxu0
        %1753 = vdwg.mxu0
        %1754 = vmatpush.bf16.msra.mxu0 %v1554
        %1755 = vmatpush.bf16.msra.mxu0 %v1551
        %1756 = vmatpush.bf16.msra.mxu0 %v1548
        %1757 = vmatpush.bf16.msra.mxu0 %v1545
        %1758 = vmatpush.bf16.msra.mxu0 %v1542
        %1759 = vmatpush.bf16.msra.mxu0 %v1539
        %1760 = vmatpush.bf16.msra.mxu0 %v1536
        %1761 = vmatpush.bf16.msra.mxu0 %v1533
        %1762 = vmatmul.bf16.gmra.mxu0 %v1158
        %v1763 = vpop.f32.mrf.mxu0
        %v1764 = vadd.f32 %v1751, %v1763
        %v1765 = vpop.f32.mrf.mxu0
        %1766 = vdwg.mxu0
        %1767 = vmatpush.bf16.msra.mxu0 %v1578
        %1768 = vmatpush.bf16.msra.mxu0 %v1575
        %1769 = vmatpush.bf16.msra.mxu0 %v1572
        %1770 = vmatpush.bf16.msra.mxu0 %v1569
        %1771 = vmatpush.bf16.msra.mxu0 %v1566
        %1772 = vmatpush.bf16.msra.mxu0 %v1563
        %1773 = vmatpush.bf16.msra.mxu0 %v1560
        %1774 = vmatpush.bf16.msra.mxu0 %v1557
        %1775 = vmatmul.bf16.gmra.mxu0 %v1159
        %v1776 = vpop.f32.mrf.mxu0
        %v1777 = vadd.f32 %v1764, %v1776
        %v1778 = vpop.f32.mrf.mxu0
        %1779 = vdwg.mxu0
        %1780 = vmatpush.bf16.msra.mxu0 %v1507
        %1781 = vmatpush.bf16.msra.mxu0 %v1504
        %1782 = vmatpush.bf16.msra.mxu0 %v1501
        %1783 = vmatpush.bf16.msra.mxu0 %v1498
        %1784 = vmatpush.bf16.msra.mxu0 %v1495
        %1785 = vmatpush.bf16.msra.mxu0 %v1492
        %1786 = vmatpush.bf16.msra.mxu0 %v1489
        %1787 = vmatpush.bf16.msra.mxu0 %v1486
        %1788 = vmatmul.bf16.gmra.mxu0 %v1156
        %v1789 = vpop.f32.mrf.mxu0
        %v1790 = vadd.f32 %v1147, %v1789
        %v1791 = vpop.f32.mrf.mxu0
        %1792 = vdwg.mxu0
        %1793 = vmatpush.bf16.msra.mxu0 %v1531
        %1794 = vmatpush.bf16.msra.mxu0 %v1528
        %1795 = vmatpush.bf16.msra.mxu0 %v1525
        %1796 = vmatpush.bf16.msra.mxu0 %v1522
        %1797 = vmatpush.bf16.msra.mxu0 %v1519
        %1798 = vmatpush.bf16.msra.mxu0 %v1516
        %1799 = vmatpush.bf16.msra.mxu0 %v1513
        %1800 = vmatpush.bf16.msra.mxu0 %v1510
        %1801 = vmatmul.bf16.gmra.mxu0 %v1157
        %v1802 = vpop.f32.mrf.mxu0
        %v1803 = vadd.f32 %v1790, %v1802
        %v1804 = vpop.f32.mrf.mxu0
        %1805 = vdwg.mxu0
        %1806 = vmatpush.bf16.msra.mxu0 %v1555
        %1807 = vmatpush.bf16.msra.mxu0 %v1552
        %1808 = vmatpush.bf16.msra.mxu0 %v1549
        %1809 = vmatpush.bf16.msra.mxu0 %v1546
        %1810 = vmatpush.bf16.msra.mxu0 %v1543
        %1811 = vmatpush.bf16.msra.mxu0 %v1540
        %1812 = vmatpush.bf16.msra.mxu0 %v1537
        %1813 = vmatpush.bf16.msra.mxu0 %v1534
        %1814 = vmatmul.bf16.gmra.mxu0 %v1158
        %v1815 = vpop.f32.mrf.mxu0
        %v1816 = vadd.f32 %v1803, %v1815
        %v1817 = vpop.f32.mrf.mxu0
        %1818 = vdwg.mxu0
        %1819 = vmatpush.bf16.msra.mxu0 %v1579
        %1820 = vmatpush.bf16.msra.mxu0 %v1576
        %1821 = vmatpush.bf16.msra.mxu0 %v1573
        %1822 = vmatpush.bf16.msra.mxu0 %v1570
        %1823 = vmatpush.bf16.msra.mxu0 %v1567
        %1824 = vmatpush.bf16.msra.mxu0 %v1564
        %1825 = vmatpush.bf16.msra.mxu0 %v1561
        %1826 = vmatpush.bf16.msra.mxu0 %v1558
        %1827 = vmatmul.bf16.gmra.mxu0 %v1159
        %v1828 = vpop.f32.mrf.mxu0
        %v1829 = vadd.f32 %v1816, %v1828
        %v1830 = vpop.f32.mrf.mxu0
        %1831 = vdwg.mxu0
        %s1832 = scalar_lea.vmem [#allocation2], 1536
        %v1833 = vld [vmem:[%s1832] sm:$0xff]
        %v1834 = vld [vmem:[%s1832 + $0x8] sm:$0xf]
        %v1835 = vld [vmem:[%s1832 + $0xc] sm:$0xff]
        %v1836 = vld [vmem:[%s1832 + $0x14] sm:$0xf]
        %v1837 = vld [vmem:[%s1832 + $0x18] sm:$0xff]
        %v1838 = vld [vmem:[%s1832 + $0x20] sm:$0xf]
        %v1839 = vld [vmem:[%s1832 + $0x24] sm:$0xff]
        %v1840 = vld [vmem:[%s1832 + $0x2c] sm:$0xf]
        %v1841 = vld [vmem:[%s1832 + $0x30] sm:$0xff]
        %v1842 = vld [vmem:[%s1832 + $0x38] sm:$0xf]
        %v1843 = vld [vmem:[%s1832 + $0x3c] sm:$0xff]
        %v1844 = vld [vmem:[%s1832 + $0x44] sm:$0xf]
        %v1845 = vld [vmem:[%s1832 + $0x48] sm:$0xff]
        %v1846 = vld [vmem:[%s1832 + $0x50] sm:$0xf]
        %v1847 = vld [vmem:[%s1832 + $0x54] sm:$0xff]
        %v1848 = vld [vmem:[%s1832 + $0x5c] sm:$0xf]
        %v1849 = vld [vmem:[%s1832 + $0x60] sm:$0xff]
        %v1850 = vld [vmem:[%s1832 + $0x68] sm:$0xf]
        %v1851 = vld [vmem:[%s1832 + $0x6c] sm:$0xff]
        %v1852 = vld [vmem:[%s1832 + $0x74] sm:$0xf]
        %v1853 = vld [vmem:[%s1832 + $0x78] sm:$0xff]
        %v1854 = vld [vmem:[%s1832 + $0x80] sm:$0xf]
        %v1855 = vld [vmem:[%s1832 + $0x84] sm:$0xff]
        %v1856 = vld [vmem:[%s1832 + $0x8c] sm:$0xf]
        %v1857 = vld [vmem:[%s1832 + $0x90] sm:$0xff]
        %v1858 = vld [vmem:[%s1832 + $0x98] sm:$0xf]
        %v1859 = vld [vmem:[%s1832 + $0x9c] sm:$0xff]
        %v1860 = vld [vmem:[%s1832 + $0xa4] sm:$0xf]
        %v1861 = vld [vmem:[%s1832 + $0xa8] sm:$0xff]
        %v1862 = vld [vmem:[%s1832 + $0xb0] sm:$0xf]
        %v1863 = vld [vmem:[%s1832 + $0xb4] sm:$0xff]
        %v1864 = vld [vmem:[%s1832 + $0xbc] sm:$0xf]
        %v1865 = vld [vmem:[%s1832 + $0xc0] sm:$0xff]
        %v1866 = vld [vmem:[%s1832 + $0xc8] sm:$0xf]
        %v1867 = vld [vmem:[%s1832 + $0xcc] sm:$0xff]
        %v1868 = vld [vmem:[%s1832 + $0xd4] sm:$0xf]
        %v1869 = vld [vmem:[%s1832 + $0xd8] sm:$0xff]
        %v1870 = vld [vmem:[%s1832 + $0xe0] sm:$0xf]
        %v1871 = vld [vmem:[%s1832 + $0xe4] sm:$0xff]
        %v1872 = vld [vmem:[%s1832 + $0xec] sm:$0xf]
        %v1873 = vld [vmem:[%s1832 + $0xf0] sm:$0xff]
        %v1874 = vld [vmem:[%s1832 + $0xf8] sm:$0xf]
        %v1875 = vld [vmem:[%s1832 + $0xfc] sm:$0xff]
        %v1876 = vld [vmem:[%s1832 + $0x104] sm:$0xf]
        %v1877 = vld [vmem:[%s1832 + $0x108] sm:$0xff]
        %v1878 = vld [vmem:[%s1832 + $0x110] sm:$0xf]
        %v1879 = vld [vmem:[%s1832 + $0x114] sm:$0xff]
        %v1880 = vld [vmem:[%s1832 + $0x11c] sm:$0xf]
        %v1881 = vld [vmem:[%s1832 + $0x120] sm:$0xff]
        %v1882 = vld [vmem:[%s1832 + $0x128] sm:$0xf]
        %v1883 = vld [vmem:[%s1832 + $0x12c] sm:$0xff]
        %v1884 = vld [vmem:[%s1832 + $0x134] sm:$0xf]
        %v1885 = vld [vmem:[%s1832 + $0x138] sm:$0xff]
        %v1886 = vld [vmem:[%s1832 + $0x140] sm:$0xf]
        %v1887 = vld [vmem:[%s1832 + $0x144] sm:$0xff]
        %v1888 = vld [vmem:[%s1832 + $0x14c] sm:$0xf]
        %v1889 = vld [vmem:[%s1832 + $0x150] sm:$0xff]
        %v1890 = vld [vmem:[%s1832 + $0x158] sm:$0xf]
        %v1891 = vld [vmem:[%s1832 + $0x15c] sm:$0xff]
        %v1892 = vld [vmem:[%s1832 + $0x164] sm:$0xf]
        %v1893 = vld [vmem:[%s1832 + $0x168] sm:$0xff]
        %v1894 = vld [vmem:[%s1832 + $0x170] sm:$0xf]
        %v1895 = vld [vmem:[%s1832 + $0x174] sm:$0xff]
        %v1896 = vld [vmem:[%s1832 + $0x17c] sm:$0xf]
        %v1897 = vld [vmem:[%s1832 + $0x180] sm:$0xff]
        %v1898 = vld [vmem:[%s1832 + $0x188] sm:$0xf]
        %v1899 = vld [vmem:[%s1832 + $0x18c] sm:$0xff]
        %v1900 = vld [vmem:[%s1832 + $0x194] sm:$0xf]
        %v1901 = vld [vmem:[%s1832 + $0x198] sm:$0xff]
        %v1902 = vld [vmem:[%s1832 + $0x1a0] sm:$0xf]
        %v1903 = vld [vmem:[%s1832 + $0x1a4] sm:$0xff]
        %v1904 = vld [vmem:[%s1832 + $0x1ac] sm:$0xf]
        %v1905 = vld [vmem:[%s1832 + $0x1b0] sm:$0xff]
        %v1906 = vld [vmem:[%s1832 + $0x1b8] sm:$0xf]
        %v1907 = vld [vmem:[%s1832 + $0x1bc] sm:$0xff]
        %v1908 = vld [vmem:[%s1832 + $0x1c4] sm:$0xf]
        %v1909 = vld [vmem:[%s1832 + $0x1c8] sm:$0xff]
        %v1910 = vld [vmem:[%s1832 + $0x1d0] sm:$0xf]
        %v1911 = vld [vmem:[%s1832 + $0x1d4] sm:$0xff]
        %v1912 = vld [vmem:[%s1832 + $0x1dc] sm:$0xf]
        %v1913 = vld [vmem:[%s1832 + $0x1e0] sm:$0xff]
        %v1914 = vld [vmem:[%s1832 + $0x1e8] sm:$0xf]
        %v1915 = vld [vmem:[%s1832 + $0x1ec] sm:$0xff]
        %v1916 = vld [vmem:[%s1832 + $0x1f4] sm:$0xf]
        %v1917 = vld [vmem:[%s1832 + $0x1f8] sm:$0xff]
        %v1918 = vld [vmem:[%s1832 + $0x200] sm:$0xf]
        %v1919 = vld [vmem:[%s1832 + $0x204] sm:$0xff]
        %v1920 = vld [vmem:[%s1832 + $0x20c] sm:$0xf]
        %v1921 = vld [vmem:[%s1832 + $0x210] sm:$0xff]
        %v1922 = vld [vmem:[%s1832 + $0x218] sm:$0xf]
        %v1923 = vld [vmem:[%s1832 + $0x21c] sm:$0xff]
        %v1924 = vld [vmem:[%s1832 + $0x224] sm:$0xf]
        %v1925 = vld [vmem:[%s1832 + $0x228] sm:$0xff]
        %v1926 = vld [vmem:[%s1832 + $0x230] sm:$0xf]
        %v1927 = vld [vmem:[%s1832 + $0x234] sm:$0xff]
        %v1928 = vld [vmem:[%s1832 + $0x23c] sm:$0xf]
        %v1929 = vld [vmem:[%s1832 + $0x240] sm:$0xff]
        %v1930 = vld [vmem:[%s1832 + $0x248] sm:$0xf]
        %v1931 = vld [vmem:[%s1832 + $0x24c] sm:$0xff]
        %v1932 = vld [vmem:[%s1832 + $0x254] sm:$0xf]
        %v1933 = vld [vmem:[%s1832 + $0x258] sm:$0xff]
        %v1934 = vld [vmem:[%s1832 + $0x260] sm:$0xf]
        %v1935 = vld [vmem:[%s1832 + $0x264] sm:$0xff]
        %v1936 = vld [vmem:[%s1832 + $0x26c] sm:$0xf]
        %v1937 = vld [vmem:[%s1832 + $0x270] sm:$0xff]
        %v1938 = vld [vmem:[%s1832 + $0x278] sm:$0xf]
        %v1939 = vld [vmem:[%s1832 + $0x27c] sm:$0xff]
        %v1940 = vld [vmem:[%s1832 + $0x284] sm:$0xf]
        %v1941 = vld [vmem:[%s1832 + $0x288] sm:$0xff]
        %v1942 = vld [vmem:[%s1832 + $0x290] sm:$0xf]
        %v1943 = vld [vmem:[%s1832 + $0x294] sm:$0xff]
        %v1944 = vld [vmem:[%s1832 + $0x29c] sm:$0xf]
        %v1945 = vld [vmem:[%s1832 + $0x2a0] sm:$0xff]
        %v1946 = vld [vmem:[%s1832 + $0x2a8] sm:$0xf]
        %v1947 = vld [vmem:[%s1832 + $0x2ac] sm:$0xff]
        %v1948 = vld [vmem:[%s1832 + $0x2b4] sm:$0xf]
        %v1949 = vld [vmem:[%s1832 + $0x2b8] sm:$0xff]
        %v1950 = vld [vmem:[%s1832 + $0x2c0] sm:$0xf]
        %v1951 = vld [vmem:[%s1832 + $0x2c4] sm:$0xff]
        %v1952 = vld [vmem:[%s1832 + $0x2cc] sm:$0xf]
        %v1953 = vld [vmem:[%s1832 + $0x2d0] sm:$0xff]
        %v1954 = vld [vmem:[%s1832 + $0x2d8] sm:$0xf]
        %v1955 = vld [vmem:[%s1832 + $0x2dc] sm:$0xff]
        %v1956 = vld [vmem:[%s1832 + $0x2e4] sm:$0xf]
        %v1957 = vld [vmem:[%s1832 + $0x2e8] sm:$0xff]
        %v1958 = vld [vmem:[%s1832 + $0x2f0] sm:$0xf]
        %v1959 = vld [vmem:[%s1832 + $0x2f4] sm:$0xff]
        %v1960 = vld [vmem:[%s1832 + $0x2fc] sm:$0xf]
        %v1963 = vunpack.c.l.b16 %v207
        %v1964 = vunpack.c.h.b16 %v207
        %v1965 = vunpack.c.l.b16 %v208
        %v1966 = vunpack.c.h.b16 %v208
        %v1967 = vpack.c.b16 %v1963, %v1963
        %v1968 = vpack.c.b16 %v1964, %v1964
        %v1969 = vpack.c.b16 %v1965, %v1965
        %v1970 = vpack.c.b16 %v1966, %v1966
        %v1972 = vshrl.u32 %v1967, 16
        %v1974 = vshll.u32 %v1967, 16
        %v1976 = vrot.slane %v1974, 1
        %v1977 = vor.u32 %v1972, %v1976
        %v1979 = vshrl.u32 %v1968, 16
        %v1981 = vshll.u32 %v1968, 16
        %v1983 = vrot.slane %v1981, 1
        %v1984 = vor.u32 %v1979, %v1983
        %v1986 = vshrl.u32 %v1969, 16
        %v1988 = vshll.u32 %v1969, 16
        %v1990 = vrot.slane %v1988, 1
        %v1991 = vor.u32 %v1986, %v1990
        %v1993 = vshrl.u32 %v1970, 16
        %v1995 = vshll.u32 %v1970, 16
        %v1997 = vrot.slane %v1995, 1
        %v1998 = vor.u32 %v1993, %v1997
        %v2131 = vunpack.c.l.b16 %v1833
        %v2132 = vunpack.c.h.b16 %v1833
        %v2133 = vunpack.c.l.b16 %v1834
        %v2134 = vunpack.c.l.b16 %v1835
        %v2135 = vunpack.c.h.b16 %v1835
        %v2136 = vunpack.c.l.b16 %v1836
        %v2137 = vunpack.c.l.b16 %v1837
        %v2138 = vunpack.c.h.b16 %v1837
        %v2139 = vunpack.c.l.b16 %v1838
        %v2140 = vunpack.c.l.b16 %v1839
        %v2141 = vunpack.c.h.b16 %v1839
        %v2142 = vunpack.c.l.b16 %v1840
        %v2143 = vunpack.c.l.b16 %v1841
        %v2144 = vunpack.c.h.b16 %v1841
        %v2145 = vunpack.c.l.b16 %v1842
        %v2146 = vunpack.c.l.b16 %v1843
        %v2147 = vunpack.c.h.b16 %v1843
        %v2148 = vunpack.c.l.b16 %v1844
        %v2149 = vunpack.c.l.b16 %v1845
        %v2150 = vunpack.c.h.b16 %v1845
        %v2151 = vunpack.c.l.b16 %v1846
        %v2152 = vunpack.c.l.b16 %v1847
        %v2153 = vunpack.c.h.b16 %v1847
        %v2154 = vunpack.c.l.b16 %v1848
        %v2155 = vunpack.c.l.b16 %v1849
        %v2156 = vunpack.c.h.b16 %v1849
        %v2157 = vunpack.c.l.b16 %v1850
        %v2158 = vunpack.c.l.b16 %v1851
        %v2159 = vunpack.c.h.b16 %v1851
        %v2160 = vunpack.c.l.b16 %v1852
        %v2161 = vunpack.c.l.b16 %v1853
        %v2162 = vunpack.c.h.b16 %v1853
        %v2163 = vunpack.c.l.b16 %v1854
        %v2164 = vunpack.c.l.b16 %v1855
        %v2165 = vunpack.c.h.b16 %v1855
        %v2166 = vunpack.c.l.b16 %v1856
        %v2167 = vunpack.c.l.b16 %v1857
        %v2168 = vunpack.c.h.b16 %v1857
        %v2169 = vunpack.c.l.b16 %v1858
        %v2170 = vunpack.c.l.b16 %v1859
        %v2171 = vunpack.c.h.b16 %v1859
        %v2172 = vunpack.c.l.b16 %v1860
        %v2173 = vunpack.c.l.b16 %v1861
        %v2174 = vunpack.c.h.b16 %v1861
        %v2175 = vunpack.c.l.b16 %v1862
        %v2176 = vunpack.c.l.b16 %v1863
        %v2177 = vunpack.c.h.b16 %v1863
        %v2178 = vunpack.c.l.b16 %v1864
        %v2179 = vunpack.c.l.b16 %v1865
        %v2180 = vunpack.c.h.b16 %v1865
        %v2181 = vunpack.c.l.b16 %v1866
        %v2182 = vunpack.c.l.b16 %v1867
        %v2183 = vunpack.c.h.b16 %v1867
        %v2184 = vunpack.c.l.b16 %v1868
        %v2185 = vunpack.c.l.b16 %v1869
        %v2186 = vunpack.c.h.b16 %v1869
        %v2187 = vunpack.c.l.b16 %v1870
        %v2188 = vunpack.c.l.b16 %v1871
        %v2189 = vunpack.c.h.b16 %v1871
        %v2190 = vunpack.c.l.b16 %v1872
        %v2191 = vunpack.c.l.b16 %v1873
        %v2192 = vunpack.c.h.b16 %v1873
        %v2193 = vunpack.c.l.b16 %v1874
        %v2194 = vunpack.c.l.b16 %v1875
        %v2195 = vunpack.c.h.b16 %v1875
        %v2196 = vunpack.c.l.b16 %v1876
        %v2197 = vunpack.c.l.b16 %v1877
        %v2198 = vunpack.c.h.b16 %v1877
        %v2199 = vunpack.c.l.b16 %v1878
        %v2200 = vunpack.c.l.b16 %v1879
        %v2201 = vunpack.c.h.b16 %v1879
        %v2202 = vunpack.c.l.b16 %v1880
        %v2203 = vunpack.c.l.b16 %v1881
        %v2204 = vunpack.c.h.b16 %v1881
        %v2205 = vunpack.c.l.b16 %v1882
        %v2206 = vunpack.c.l.b16 %v1883
        %v2207 = vunpack.c.h.b16 %v1883
        %v2208 = vunpack.c.l.b16 %v1884
        %v2209 = vunpack.c.l.b16 %v1885
        %v2210 = vunpack.c.h.b16 %v1885
        %v2211 = vunpack.c.l.b16 %v1886
        %v2212 = vunpack.c.l.b16 %v1887
        %v2213 = vunpack.c.h.b16 %v1887
        %v2214 = vunpack.c.l.b16 %v1888
        %v2215 = vunpack.c.l.b16 %v1889
        %v2216 = vunpack.c.h.b16 %v1889
        %v2217 = vunpack.c.l.b16 %v1890
        %v2218 = vunpack.c.l.b16 %v1891
        %v2219 = vunpack.c.h.b16 %v1891
        %v2220 = vunpack.c.l.b16 %v1892
        %v2221 = vunpack.c.l.b16 %v1893
        %v2222 = vunpack.c.h.b16 %v1893
        %v2223 = vunpack.c.l.b16 %v1894
        %v2224 = vunpack.c.l.b16 %v1895
        %v2225 = vunpack.c.h.b16 %v1895
        %v2226 = vunpack.c.l.b16 %v1896
        %v2227 = vunpack.c.l.b16 %v1897
        %v2228 = vunpack.c.h.b16 %v1897
        %v2229 = vunpack.c.l.b16 %v1898
        %v2230 = vunpack.c.l.b16 %v1899
        %v2231 = vunpack.c.h.b16 %v1899
        %v2232 = vunpack.c.l.b16 %v1900
        %v2233 = vunpack.c.l.b16 %v1901
        %v2234 = vunpack.c.h.b16 %v1901
        %v2235 = vunpack.c.l.b16 %v1902
        %v2236 = vunpack.c.l.b16 %v1903
        %v2237 = vunpack.c.h.b16 %v1903
        %v2238 = vunpack.c.l.b16 %v1904
        %v2239 = vunpack.c.l.b16 %v1905
        %v2240 = vunpack.c.h.b16 %v1905
        %v2241 = vunpack.c.l.b16 %v1906
        %v2242 = vunpack.c.l.b16 %v1907
        %v2243 = vunpack.c.h.b16 %v1907
        %v2244 = vunpack.c.l.b16 %v1908
        %v2245 = vunpack.c.l.b16 %v1909
        %v2246 = vunpack.c.h.b16 %v1909
        %v2247 = vunpack.c.l.b16 %v1910
        %v2248 = vunpack.c.l.b16 %v1911
        %v2249 = vunpack.c.h.b16 %v1911
        %v2250 = vunpack.c.l.b16 %v1912
        %v2251 = vunpack.c.l.b16 %v1913
        %v2252 = vunpack.c.h.b16 %v1913
        %v2253 = vunpack.c.l.b16 %v1914
        %v2254 = vunpack.c.l.b16 %v1915
        %v2255 = vunpack.c.h.b16 %v1915
        %v2256 = vunpack.c.l.b16 %v1916
        %v2257 = vunpack.c.l.b16 %v1917
        %v2258 = vunpack.c.h.b16 %v1917
        %v2259 = vunpack.c.l.b16 %v1918
        %v2260 = vunpack.c.l.b16 %v1919
        %v2261 = vunpack.c.h.b16 %v1919
        %v2262 = vunpack.c.l.b16 %v1920
        %v2263 = vunpack.c.l.b16 %v1921
        %v2264 = vunpack.c.h.b16 %v1921
        %v2265 = vunpack.c.l.b16 %v1922
        %v2266 = vunpack.c.l.b16 %v1923
        %v2267 = vunpack.c.h.b16 %v1923
        %v2268 = vunpack.c.l.b16 %v1924
        %v2269 = vunpack.c.l.b16 %v1925
        %v2270 = vunpack.c.h.b16 %v1925
        %v2271 = vunpack.c.l.b16 %v1926
        %v2272 = vunpack.c.l.b16 %v1927
        %v2273 = vunpack.c.h.b16 %v1927
        %v2274 = vunpack.c.l.b16 %v1928
        %v2275 = vunpack.c.l.b16 %v1929
        %v2276 = vunpack.c.h.b16 %v1929
        %v2277 = vunpack.c.l.b16 %v1930
        %v2278 = vunpack.c.l.b16 %v1931
        %v2279 = vunpack.c.h.b16 %v1931
        %v2280 = vunpack.c.l.b16 %v1932
        %v2281 = vunpack.c.l.b16 %v1933
        %v2282 = vunpack.c.h.b16 %v1933
        %v2283 = vunpack.c.l.b16 %v1934
        %v2284 = vunpack.c.l.b16 %v1935
        %v2285 = vunpack.c.h.b16 %v1935
        %v2286 = vunpack.c.l.b16 %v1936
        %v2287 = vunpack.c.l.b16 %v1937
        %v2288 = vunpack.c.h.b16 %v1937
        %v2289 = vunpack.c.l.b16 %v1938
        %v2290 = vunpack.c.l.b16 %v1939
        %v2291 = vunpack.c.h.b16 %v1939
        %v2292 = vunpack.c.l.b16 %v1940
        %v2293 = vunpack.c.l.b16 %v1941
        %v2294 = vunpack.c.h.b16 %v1941
        %v2295 = vunpack.c.l.b16 %v1942
        %v2296 = vunpack.c.l.b16 %v1943
        %v2297 = vunpack.c.h.b16 %v1943
        %v2298 = vunpack.c.l.b16 %v1944
        %v2299 = vunpack.c.l.b16 %v1945
        %v2300 = vunpack.c.h.b16 %v1945
        %v2301 = vunpack.c.l.b16 %v1946
        %v2302 = vunpack.c.l.b16 %v1947
        %v2303 = vunpack.c.h.b16 %v1947
        %v2304 = vunpack.c.l.b16 %v1948
        %v2305 = vunpack.c.l.b16 %v1949
        %v2306 = vunpack.c.h.b16 %v1949
        %v2307 = vunpack.c.l.b16 %v1950
        %v2308 = vunpack.c.l.b16 %v1951
        %v2309 = vunpack.c.h.b16 %v1951
        %v2310 = vunpack.c.l.b16 %v1952
        %v2311 = vunpack.c.l.b16 %v1953
        %v2312 = vunpack.c.h.b16 %v1953
        %v2313 = vunpack.c.l.b16 %v1954
        %v2314 = vunpack.c.l.b16 %v1955
        %v2315 = vunpack.c.h.b16 %v1955
        %v2316 = vunpack.c.l.b16 %v1956
        %v2317 = vunpack.c.l.b16 %v1957
        %v2318 = vunpack.c.h.b16 %v1957
        %v2319 = vunpack.c.l.b16 %v1958
        %v2320 = vunpack.c.l.b16 %v1959
        %v2321 = vunpack.c.h.b16 %v1959
        %v2322 = vunpack.c.l.b16 %v1960
        %v2323 = vpack.c.b16 %v2134, %v2131
        %v2324 = vpack.c.b16 %v2135, %v2132
        %v2325 = vpack.c.b16 %v2136, %v2133
        %v2326 = vpack.c.b16 %v2140, %v2137
        %v2327 = vpack.c.b16 %v2141, %v2138
        %v2328 = vpack.c.b16 %v2142, %v2139
        %v2329 = vpack.c.b16 %v2146, %v2143
        %v2330 = vpack.c.b16 %v2147, %v2144
        %v2331 = vpack.c.b16 %v2148, %v2145
        %v2332 = vpack.c.b16 %v2152, %v2149
        %v2333 = vpack.c.b16 %v2153, %v2150
        %v2334 = vpack.c.b16 %v2154, %v2151
        %v2335 = vpack.c.b16 %v2158, %v2155
        %v2336 = vpack.c.b16 %v2159, %v2156
        %v2337 = vpack.c.b16 %v2160, %v2157
        %v2338 = vpack.c.b16 %v2164, %v2161
        %v2339 = vpack.c.b16 %v2165, %v2162
        %v2340 = vpack.c.b16 %v2166, %v2163
        %v2341 = vpack.c.b16 %v2170, %v2167
        %v2342 = vpack.c.b16 %v2171, %v2168
        %v2343 = vpack.c.b16 %v2172, %v2169
        %v2344 = vpack.c.b16 %v2176, %v2173
        %v2345 = vpack.c.b16 %v2177, %v2174
        %v2346 = vpack.c.b16 %v2178, %v2175
        %v2347 = vpack.c.b16 %v2182, %v2179
        %v2348 = vpack.c.b16 %v2183, %v2180
        %v2349 = vpack.c.b16 %v2184, %v2181
        %v2350 = vpack.c.b16 %v2188, %v2185
        %v2351 = vpack.c.b16 %v2189, %v2186
        %v2352 = vpack.c.b16 %v2190, %v2187
        %v2353 = vpack.c.b16 %v2194, %v2191
        %v2354 = vpack.c.b16 %v2195, %v2192
        %v2355 = vpack.c.b16 %v2196, %v2193
        %v2356 = vpack.c.b16 %v2200, %v2197
        %v2357 = vpack.c.b16 %v2201, %v2198
        %v2358 = vpack.c.b16 %v2202, %v2199
        %v2359 = vpack.c.b16 %v2206, %v2203
        %v2360 = vpack.c.b16 %v2207, %v2204
        %v2361 = vpack.c.b16 %v2208, %v2205
        %v2362 = vpack.c.b16 %v2212, %v2209
        %v2363 = vpack.c.b16 %v2213, %v2210
        %v2364 = vpack.c.b16 %v2214, %v2211
        %v2365 = vpack.c.b16 %v2218, %v2215
        %v2366 = vpack.c.b16 %v2219, %v2216
        %v2367 = vpack.c.b16 %v2220, %v2217
        %v2368 = vpack.c.b16 %v2224, %v2221
        %v2369 = vpack.c.b16 %v2225, %v2222
        %v2370 = vpack.c.b16 %v2226, %v2223
        %v2371 = vpack.c.b16 %v2230, %v2227
        %v2372 = vpack.c.b16 %v2231, %v2228
        %v2373 = vpack.c.b16 %v2232, %v2229
        %v2374 = vpack.c.b16 %v2236, %v2233
        %v2375 = vpack.c.b16 %v2237, %v2234
        %v2376 = vpack.c.b16 %v2238, %v2235
        %v2377 = vpack.c.b16 %v2242, %v2239
        %v2378 = vpack.c.b16 %v2243, %v2240
        %v2379 = vpack.c.b16 %v2244, %v2241
        %v2380 = vpack.c.b16 %v2248, %v2245
        %v2381 = vpack.c.b16 %v2249, %v2246
        %v2382 = vpack.c.b16 %v2250, %v2247
        %v2383 = vpack.c.b16 %v2254, %v2251
        %v2384 = vpack.c.b16 %v2255, %v2252
        %v2385 = vpack.c.b16 %v2256, %v2253
        %v2386 = vpack.c.b16 %v2260, %v2257
        %v2387 = vpack.c.b16 %v2261, %v2258
        %v2388 = vpack.c.b16 %v2262, %v2259
        %v2389 = vpack.c.b16 %v2266, %v2263
        %v2390 = vpack.c.b16 %v2267, %v2264
        %v2391 = vpack.c.b16 %v2268, %v2265
        %v2392 = vpack.c.b16 %v2272, %v2269
        %v2393 = vpack.c.b16 %v2273, %v2270
        %v2394 = vpack.c.b16 %v2274, %v2271
        %v2395 = vpack.c.b16 %v2278, %v2275
        %v2396 = vpack.c.b16 %v2279, %v2276
        %v2397 = vpack.c.b16 %v2280, %v2277
        %v2398 = vpack.c.b16 %v2284, %v2281
        %v2399 = vpack.c.b16 %v2285, %v2282
        %v2400 = vpack.c.b16 %v2286, %v2283
        %v2401 = vpack.c.b16 %v2290, %v2287
        %v2402 = vpack.c.b16 %v2291, %v2288
        %v2403 = vpack.c.b16 %v2292, %v2289
        %v2404 = vpack.c.b16 %v2296, %v2293
        %v2405 = vpack.c.b16 %v2297, %v2294
        %v2406 = vpack.c.b16 %v2298, %v2295
        %v2407 = vpack.c.b16 %v2302, %v2299
        %v2408 = vpack.c.b16 %v2303, %v2300
        %v2409 = vpack.c.b16 %v2304, %v2301
        %v2410 = vpack.c.b16 %v2308, %v2305
        %v2411 = vpack.c.b16 %v2309, %v2306
        %v2412 = vpack.c.b16 %v2310, %v2307
        %v2413 = vpack.c.b16 %v2314, %v2311
        %v2414 = vpack.c.b16 %v2315, %v2312
        %v2415 = vpack.c.b16 %v2316, %v2313
        %v2416 = vpack.c.b16 %v2320, %v2317
        %v2417 = vpack.c.b16 %v2321, %v2318
        %v2418 = vpack.c.b16 %v2322, %v2319
        %2515 = vmatpush.bf16.msra.mxu0 %v2344
        %2516 = vmatpush.bf16.msra.mxu0 %v2341
        %2517 = vmatpush.bf16.msra.mxu0 %v2338
        %2518 = vmatpush.bf16.msra.mxu0 %v2335
        %2519 = vmatpush.bf16.msra.mxu0 %v2332
        %2520 = vmatpush.bf16.msra.mxu0 %v2329
        %2521 = vmatpush.bf16.msra.mxu0 %v2326
        %2522 = vmatpush.bf16.msra.mxu0 %v2323
        %2523 = vmatmul.bf16.gmra.mxu0 %v1977
        %v2524 = vpop.f32.mrf.mxu0
        %v2525 = vadd.f32 0.0, %v2524
        %v2526 = vpop.f32.mrf.mxu0
        %2527 = vdwg.mxu0
        %2528 = vmatpush.bf16.msra.mxu0 %v2368
        %2529 = vmatpush.bf16.msra.mxu0 %v2365
        %2530 = vmatpush.bf16.msra.mxu0 %v2362
        %2531 = vmatpush.bf16.msra.mxu0 %v2359
        %2532 = vmatpush.bf16.msra.mxu0 %v2356
        %2533 = vmatpush.bf16.msra.mxu0 %v2353
        %2534 = vmatpush.bf16.msra.mxu0 %v2350
        %2535 = vmatpush.bf16.msra.mxu0 %v2347
        %2536 = vmatmul.bf16.gmra.mxu0 %v1984
        %v2537 = vpop.f32.mrf.mxu0
        %v2538 = vadd.f32 %v2525, %v2537
        %v2539 = vpop.f32.mrf.mxu0
        %2540 = vdwg.mxu0
        %2541 = vmatpush.bf16.msra.mxu0 %v2392
        %2542 = vmatpush.bf16.msra.mxu0 %v2389
        %2543 = vmatpush.bf16.msra.mxu0 %v2386
        %2544 = vmatpush.bf16.msra.mxu0 %v2383
        %2545 = vmatpush.bf16.msra.mxu0 %v2380
        %2546 = vmatpush.bf16.msra.mxu0 %v2377
        %2547 = vmatpush.bf16.msra.mxu0 %v2374
        %2548 = vmatpush.bf16.msra.mxu0 %v2371
        %2549 = vmatmul.bf16.gmra.mxu0 %v1991
        %v2550 = vpop.f32.mrf.mxu0
        %v2551 = vadd.f32 %v2538, %v2550
        %v2552 = vpop.f32.mrf.mxu0
        %2553 = vdwg.mxu0
        %2554 = vmatpush.bf16.msra.mxu0 %v2416
        %2555 = vmatpush.bf16.msra.mxu0 %v2413
        %2556 = vmatpush.bf16.msra.mxu0 %v2410
        %2557 = vmatpush.bf16.msra.mxu0 %v2407
        %2558 = vmatpush.bf16.msra.mxu0 %v2404
        %2559 = vmatpush.bf16.msra.mxu0 %v2401
        %2560 = vmatpush.bf16.msra.mxu0 %v2398
        %2561 = vmatpush.bf16.msra.mxu0 %v2395
        %2562 = vmatmul.bf16.gmra.mxu0 %v1998
        %v2563 = vpop.f32.mrf.mxu0
        %v2564 = vadd.f32 %v2551, %v2563
        %v2565 = vpop.f32.mrf.mxu0
        %2566 = vdwg.mxu0
        %2567 = vmatpush.bf16.msra.mxu0 %v2345
        %2568 = vmatpush.bf16.msra.mxu0 %v2342
        %2569 = vmatpush.bf16.msra.mxu0 %v2339
        %2570 = vmatpush.bf16.msra.mxu0 %v2336
        %2571 = vmatpush.bf16.msra.mxu0 %v2333
        %2572 = vmatpush.bf16.msra.mxu0 %v2330
        %2573 = vmatpush.bf16.msra.mxu0 %v2327
        %2574 = vmatpush.bf16.msra.mxu0 %v2324
        %2575 = vmatmul.bf16.gmra.mxu0 %v1977
        %v2576 = vpop.f32.mrf.mxu0
        %v2577 = vadd.f32 0.0, %v2576
        %v2578 = vpop.f32.mrf.mxu0
        %2579 = vdwg.mxu0
        %2580 = vmatpush.bf16.msra.mxu0 %v2369
        %2581 = vmatpush.bf16.msra.mxu0 %v2366
        %2582 = vmatpush.bf16.msra.mxu0 %v2363
        %2583 = vmatpush.bf16.msra.mxu0 %v2360
        %2584 = vmatpush.bf16.msra.mxu0 %v2357
        %2585 = vmatpush.bf16.msra.mxu0 %v2354
        %2586 = vmatpush.bf16.msra.mxu0 %v2351
        %2587 = vmatpush.bf16.msra.mxu0 %v2348
        %2588 = vmatmul.bf16.gmra.mxu0 %v1984
        %v2589 = vpop.f32.mrf.mxu0
        %v2590 = vadd.f32 %v2577, %v2589
        %v2591 = vpop.f32.mrf.mxu0
        %2592 = vdwg.mxu0
        %2593 = vmatpush.bf16.msra.mxu0 %v2393
        %2594 = vmatpush.bf16.msra.mxu0 %v2390
        %2595 = vmatpush.bf16.msra.mxu0 %v2387
        %2596 = vmatpush.bf16.msra.mxu0 %v2384
        %2597 = vmatpush.bf16.msra.mxu0 %v2381
        %2598 = vmatpush.bf16.msra.mxu0 %v2378
        %2599 = vmatpush.bf16.msra.mxu0 %v2375
        %2600 = vmatpush.bf16.msra.mxu0 %v2372
        %2601 = vmatmul.bf16.gmra.mxu0 %v1991
        %v2602 = vpop.f32.mrf.mxu0
        %v2603 = vadd.f32 %v2590, %v2602
        %v2604 = vpop.f32.mrf.mxu0
        %2605 = vdwg.mxu0
        %2606 = vmatpush.bf16.msra.mxu0 %v2417
        %2607 = vmatpush.bf16.msra.mxu0 %v2414
        %2608 = vmatpush.bf16.msra.mxu0 %v2411
        %2609 = vmatpush.bf16.msra.mxu0 %v2408
        %2610 = vmatpush.bf16.msra.mxu0 %v2405
        %2611 = vmatpush.bf16.msra.mxu0 %v2402
        %2612 = vmatpush.bf16.msra.mxu0 %v2399
        %2613 = vmatpush.bf16.msra.mxu0 %v2396
        %2614 = vmatmul.bf16.gmra.mxu0 %v1998
        %v2615 = vpop.f32.mrf.mxu0
        %v2616 = vadd.f32 %v2603, %v2615
        %v2617 = vpop.f32.mrf.mxu0
        %2618 = vdwg.mxu0
        %2619 = vmatpush.bf16.msra.mxu0 %v2346
        %2620 = vmatpush.bf16.msra.mxu0 %v2343
        %2621 = vmatpush.bf16.msra.mxu0 %v2340
        %2622 = vmatpush.bf16.msra.mxu0 %v2337
        %2623 = vmatpush.bf16.msra.mxu0 %v2334
        %2624 = vmatpush.bf16.msra.mxu0 %v2331
        %2625 = vmatpush.bf16.msra.mxu0 %v2328
        %2626 = vmatpush.bf16.msra.mxu0 %v2325
        %2627 = vmatmul.bf16.gmra.mxu0 %v1977
        %v2628 = vpop.f32.mrf.mxu0
        %v2629 = vadd.f32 0.0, %v2628
        %v2630 = vpop.f32.mrf.mxu0
        %2631 = vdwg.mxu0
        %2632 = vmatpush.bf16.msra.mxu0 %v2370
        %2633 = vmatpush.bf16.msra.mxu0 %v2367
        %2634 = vmatpush.bf16.msra.mxu0 %v2364
        %2635 = vmatpush.bf16.msra.mxu0 %v2361
        %2636 = vmatpush.bf16.msra.mxu0 %v2358
        %2637 = vmatpush.bf16.msra.mxu0 %v2355
        %2638 = vmatpush.bf16.msra.mxu0 %v2352
        %2639 = vmatpush.bf16.msra.mxu0 %v2349
        %2640 = vmatmul.bf16.gmra.mxu0 %v1984
        %v2641 = vpop.f32.mrf.mxu0
        %v2642 = vadd.f32 %v2629, %v2641
        %v2643 = vpop.f32.mrf.mxu0
        %2644 = vdwg.mxu0
        %2645 = vmatpush.bf16.msra.mxu0 %v2394
        %2646 = vmatpush.bf16.msra.mxu0 %v2391
        %2647 = vmatpush.bf16.msra.mxu0 %v2388
        %2648 = vmatpush.bf16.msra.mxu0 %v2385
        %2649 = vmatpush.bf16.msra.mxu0 %v2382
        %2650 = vmatpush.bf16.msra.mxu0 %v2379
        %2651 = vmatpush.bf16.msra.mxu0 %v2376
        %2652 = vmatpush.bf16.msra.mxu0 %v2373
        %2653 = vmatmul.bf16.gmra.mxu0 %v1991
        %v2654 = vpop.f32.mrf.mxu0
        %v2655 = vadd.f32 %v2642, %v2654
        %v2656 = vpop.f32.mrf.mxu0
        %2657 = vdwg.mxu0
        %2658 = vmatpush.bf16.msra.mxu0 %v2418
        %2659 = vmatpush.bf16.msra.mxu0 %v2415
        %2660 = vmatpush.bf16.msra.mxu0 %v2412
        %2661 = vmatpush.bf16.msra.mxu0 %v2409
        %2662 = vmatpush.bf16.msra.mxu0 %v2406
        %2663 = vmatpush.bf16.msra.mxu0 %v2403
        %2664 = vmatpush.bf16.msra.mxu0 %v2400
        %2665 = vmatpush.bf16.msra.mxu0 %v2397
        %2666 = vmatmul.bf16.gmra.mxu0 %v1998
        %v2667 = vpop.f32.mrf.mxu0
        %v2668 = vadd.f32 %v2655, %v2667
        %v2669 = vpop.f32.mrf.mxu0
        %2670 = vdwg.mxu0
        %v2671 = vadd.f32 %v1725, %v2564
        %v2672 = vadd.f32 %v1777, %v2616
        %v2673 = vadd.f32 %v1829, %v2668
        %s2674 = scalar_lea.vmem [#allocation2], 2304
        %v2675 = vld [vmem:[%s2674] sm:$0xff]
        %v2676 = vld [vmem:[%s2674 + $0x8] sm:$0xf]
        %v2677 = vld [vmem:[%s2674 + $0xc] sm:$0xff]
        %v2678 = vld [vmem:[%s2674 + $0x14] sm:$0xf]
        %v2679 = vld [vmem:[%s2674 + $0x18] sm:$0xff]
        %v2680 = vld [vmem:[%s2674 + $0x20] sm:$0xf]
        %v2681 = vld [vmem:[%s2674 + $0x24] sm:$0xff]
        %v2682 = vld [vmem:[%s2674 + $0x2c] sm:$0xf]
        %v2683 = vld [vmem:[%s2674 + $0x30] sm:$0xff]
        %v2684 = vld [vmem:[%s2674 + $0x38] sm:$0xf]
        %v2685 = vld [vmem:[%s2674 + $0x3c] sm:$0xff]
        %v2686 = vld [vmem:[%s2674 + $0x44] sm:$0xf]
        %v2687 = vld [vmem:[%s2674 + $0x48] sm:$0xff]
        %v2688 = vld [vmem:[%s2674 + $0x50] sm:$0xf]
        %v2689 = vld [vmem:[%s2674 + $0x54] sm:$0xff]
        %v2690 = vld [vmem:[%s2674 + $0x5c] sm:$0xf]
        %v2691 = vld [vmem:[%s2674 + $0x60] sm:$0xff]
        %v2692 = vld [vmem:[%s2674 + $0x68] sm:$0xf]
        %v2693 = vld [vmem:[%s2674 + $0x6c] sm:$0xff]
        %v2694 = vld [vmem:[%s2674 + $0x74] sm:$0xf]
        %v2695 = vld [vmem:[%s2674 + $0x78] sm:$0xff]
        %v2696 = vld [vmem:[%s2674 + $0x80] sm:$0xf]
        %v2697 = vld [vmem:[%s2674 + $0x84] sm:$0xff]
        %v2698 = vld [vmem:[%s2674 + $0x8c] sm:$0xf]
        %v2699 = vld [vmem:[%s2674 + $0x90] sm:$0xff]
        %v2700 = vld [vmem:[%s2674 + $0x98] sm:$0xf]
        %v2701 = vld [vmem:[%s2674 + $0x9c] sm:$0xff]
        %v2702 = vld [vmem:[%s2674 + $0xa4] sm:$0xf]
        %v2703 = vld [vmem:[%s2674 + $0xa8] sm:$0xff]
        %v2704 = vld [vmem:[%s2674 + $0xb0] sm:$0xf]
        %v2705 = vld [vmem:[%s2674 + $0xb4] sm:$0xff]
        %v2706 = vld [vmem:[%s2674 + $0xbc] sm:$0xf]
        %v2707 = vld [vmem:[%s2674 + $0xc0] sm:$0xff]
        %v2708 = vld [vmem:[%s2674 + $0xc8] sm:$0xf]
        %v2709 = vld [vmem:[%s2674 + $0xcc] sm:$0xff]
        %v2710 = vld [vmem:[%s2674 + $0xd4] sm:$0xf]
        %v2711 = vld [vmem:[%s2674 + $0xd8] sm:$0xff]
        %v2712 = vld [vmem:[%s2674 + $0xe0] sm:$0xf]
        %v2713 = vld [vmem:[%s2674 + $0xe4] sm:$0xff]
        %v2714 = vld [vmem:[%s2674 + $0xec] sm:$0xf]
        %v2715 = vld [vmem:[%s2674 + $0xf0] sm:$0xff]
        %v2716 = vld [vmem:[%s2674 + $0xf8] sm:$0xf]
        %v2717 = vld [vmem:[%s2674 + $0xfc] sm:$0xff]
        %v2718 = vld [vmem:[%s2674 + $0x104] sm:$0xf]
        %v2719 = vld [vmem:[%s2674 + $0x108] sm:$0xff]
        %v2720 = vld [vmem:[%s2674 + $0x110] sm:$0xf]
        %v2721 = vld [vmem:[%s2674 + $0x114] sm:$0xff]
        %v2722 = vld [vmem:[%s2674 + $0x11c] sm:$0xf]
        %v2723 = vld [vmem:[%s2674 + $0x120] sm:$0xff]
        %v2724 = vld [vmem:[%s2674 + $0x128] sm:$0xf]
        %v2725 = vld [vmem:[%s2674 + $0x12c] sm:$0xff]
        %v2726 = vld [vmem:[%s2674 + $0x134] sm:$0xf]
        %v2727 = vld [vmem:[%s2674 + $0x138] sm:$0xff]
        %v2728 = vld [vmem:[%s2674 + $0x140] sm:$0xf]
        %v2729 = vld [vmem:[%s2674 + $0x144] sm:$0xff]
        %v2730 = vld [vmem:[%s2674 + $0x14c] sm:$0xf]
        %v2731 = vld [vmem:[%s2674 + $0x150] sm:$0xff]
        %v2732 = vld [vmem:[%s2674 + $0x158] sm:$0xf]
        %v2733 = vld [vmem:[%s2674 + $0x15c] sm:$0xff]
        %v2734 = vld [vmem:[%s2674 + $0x164] sm:$0xf]
        %v2735 = vld [vmem:[%s2674 + $0x168] sm:$0xff]
        %v2736 = vld [vmem:[%s2674 + $0x170] sm:$0xf]
        %v2737 = vld [vmem:[%s2674 + $0x174] sm:$0xff]
        %v2738 = vld [vmem:[%s2674 + $0x17c] sm:$0xf]
        %v2739 = vld [vmem:[%s2674 + $0x180] sm:$0xff]
        %v2740 = vld [vmem:[%s2674 + $0x188] sm:$0xf]
        %v2741 = vld [vmem:[%s2674 + $0x18c] sm:$0xff]
        %v2742 = vld [vmem:[%s2674 + $0x194] sm:$0xf]
        %v2743 = vld [vmem:[%s2674 + $0x198] sm:$0xff]
        %v2744 = vld [vmem:[%s2674 + $0x1a0] sm:$0xf]
        %v2745 = vld [vmem:[%s2674 + $0x1a4] sm:$0xff]
        %v2746 = vld [vmem:[%s2674 + $0x1ac] sm:$0xf]
        %v2747 = vld [vmem:[%s2674 + $0x1b0] sm:$0xff]
        %v2748 = vld [vmem:[%s2674 + $0x1b8] sm:$0xf]
        %v2749 = vld [vmem:[%s2674 + $0x1bc] sm:$0xff]
        %v2750 = vld [vmem:[%s2674 + $0x1c4] sm:$0xf]
        %v2751 = vld [vmem:[%s2674 + $0x1c8] sm:$0xff]
        %v2752 = vld [vmem:[%s2674 + $0x1d0] sm:$0xf]
        %v2753 = vld [vmem:[%s2674 + $0x1d4] sm:$0xff]
        %v2754 = vld [vmem:[%s2674 + $0x1dc] sm:$0xf]
        %v2755 = vld [vmem:[%s2674 + $0x1e0] sm:$0xff]
        %v2756 = vld [vmem:[%s2674 + $0x1e8] sm:$0xf]
        %v2757 = vld [vmem:[%s2674 + $0x1ec] sm:$0xff]
        %v2758 = vld [vmem:[%s2674 + $0x1f4] sm:$0xf]
        %v2759 = vld [vmem:[%s2674 + $0x1f8] sm:$0xff]
        %v2760 = vld [vmem:[%s2674 + $0x200] sm:$0xf]
        %v2761 = vld [vmem:[%s2674 + $0x204] sm:$0xff]
        %v2762 = vld [vmem:[%s2674 + $0x20c] sm:$0xf]
        %v2763 = vld [vmem:[%s2674 + $0x210] sm:$0xff]
        %v2764 = vld [vmem:[%s2674 + $0x218] sm:$0xf]
        %v2765 = vld [vmem:[%s2674 + $0x21c] sm:$0xff]
        %v2766 = vld [vmem:[%s2674 + $0x224] sm:$0xf]
        %v2767 = vld [vmem:[%s2674 + $0x228] sm:$0xff]
        %v2768 = vld [vmem:[%s2674 + $0x230] sm:$0xf]
        %v2769 = vld [vmem:[%s2674 + $0x234] sm:$0xff]
        %v2770 = vld [vmem:[%s2674 + $0x23c] sm:$0xf]
        %v2771 = vld [vmem:[%s2674 + $0x240] sm:$0xff]
        %v2772 = vld [vmem:[%s2674 + $0x248] sm:$0xf]
        %v2773 = vld [vmem:[%s2674 + $0x24c] sm:$0xff]
        %v2774 = vld [vmem:[%s2674 + $0x254] sm:$0xf]
        %v2775 = vld [vmem:[%s2674 + $0x258] sm:$0xff]
        %v2776 = vld [vmem:[%s2674 + $0x260] sm:$0xf]
        %v2777 = vld [vmem:[%s2674 + $0x264] sm:$0xff]
        %v2778 = vld [vmem:[%s2674 + $0x26c] sm:$0xf]
        %v2779 = vld [vmem:[%s2674 + $0x270] sm:$0xff]
        %v2780 = vld [vmem:[%s2674 + $0x278] sm:$0xf]
        %v2781 = vld [vmem:[%s2674 + $0x27c] sm:$0xff]
        %v2782 = vld [vmem:[%s2674 + $0x284] sm:$0xf]
        %v2783 = vld [vmem:[%s2674 + $0x288] sm:$0xff]
        %v2784 = vld [vmem:[%s2674 + $0x290] sm:$0xf]
        %v2785 = vld [vmem:[%s2674 + $0x294] sm:$0xff]
        %v2786 = vld [vmem:[%s2674 + $0x29c] sm:$0xf]
        %v2787 = vld [vmem:[%s2674 + $0x2a0] sm:$0xff]
        %v2788 = vld [vmem:[%s2674 + $0x2a8] sm:$0xf]
        %v2789 = vld [vmem:[%s2674 + $0x2ac] sm:$0xff]
        %v2790 = vld [vmem:[%s2674 + $0x2b4] sm:$0xf]
        %v2791 = vld [vmem:[%s2674 + $0x2b8] sm:$0xff]
        %v2792 = vld [vmem:[%s2674 + $0x2c0] sm:$0xf]
        %v2793 = vld [vmem:[%s2674 + $0x2c4] sm:$0xff]
        %v2794 = vld [vmem:[%s2674 + $0x2cc] sm:$0xf]
        %v2795 = vld [vmem:[%s2674 + $0x2d0] sm:$0xff]
        %v2796 = vld [vmem:[%s2674 + $0x2d8] sm:$0xf]
        %v2797 = vld [vmem:[%s2674 + $0x2dc] sm:$0xff]
        %v2798 = vld [vmem:[%s2674 + $0x2e4] sm:$0xf]
        %v2799 = vld [vmem:[%s2674 + $0x2e8] sm:$0xff]
        %v2800 = vld [vmem:[%s2674 + $0x2f0] sm:$0xf]
        %v2801 = vld [vmem:[%s2674 + $0x2f4] sm:$0xff]
        %v2802 = vld [vmem:[%s2674 + $0x2fc] sm:$0xf]
        %s2803 = scalar_lea.vmem [#allocation2], 3072
        %v2804 = vld [vmem:[%s2803] sm:$0xff]
        %v2805 = vld [vmem:[%s2803 + $0x8] sm:$0xf]
        %v2806 = vld [vmem:[%s2803 + $0xc] sm:$0xff]
        %v2807 = vld [vmem:[%s2803 + $0x14] sm:$0xf]
        %v2808 = vld [vmem:[%s2803 + $0x18] sm:$0xff]
        %v2809 = vld [vmem:[%s2803 + $0x20] sm:$0xf]
        %v2810 = vld [vmem:[%s2803 + $0x24] sm:$0xff]
        %v2811 = vld [vmem:[%s2803 + $0x2c] sm:$0xf]
        %v2812 = vld [vmem:[%s2803 + $0x30] sm:$0xff]
        %v2813 = vld [vmem:[%s2803 + $0x38] sm:$0xf]
        %v2814 = vld [vmem:[%s2803 + $0x3c] sm:$0xff]
        %v2815 = vld [vmem:[%s2803 + $0x44] sm:$0xf]
        %v2816 = vld [vmem:[%s2803 + $0x48] sm:$0xff]
        %v2817 = vld [vmem:[%s2803 + $0x50] sm:$0xf]
        %v2818 = vld [vmem:[%s2803 + $0x54] sm:$0xff]
        %v2819 = vld [vmem:[%s2803 + $0x5c] sm:$0xf]
        %v2820 = vld [vmem:[%s2803 + $0x60] sm:$0xff]
        %v2821 = vld [vmem:[%s2803 + $0x68] sm:$0xf]
        %v2822 = vld [vmem:[%s2803 + $0x6c] sm:$0xff]
        %v2823 = vld [vmem:[%s2803 + $0x74] sm:$0xf]
        %v2824 = vld [vmem:[%s2803 + $0x78] sm:$0xff]
        %v2825 = vld [vmem:[%s2803 + $0x80] sm:$0xf]
        %v2826 = vld [vmem:[%s2803 + $0x84] sm:$0xff]
        %v2827 = vld [vmem:[%s2803 + $0x8c] sm:$0xf]
        %v2828 = vld [vmem:[%s2803 + $0x90] sm:$0xff]
        %v2829 = vld [vmem:[%s2803 + $0x98] sm:$0xf]
        %v2830 = vld [vmem:[%s2803 + $0x9c] sm:$0xff]
        %v2831 = vld [vmem:[%s2803 + $0xa4] sm:$0xf]
        %v2832 = vld [vmem:[%s2803 + $0xa8] sm:$0xff]
        %v2833 = vld [vmem:[%s2803 + $0xb0] sm:$0xf]
        %v2834 = vld [vmem:[%s2803 + $0xb4] sm:$0xff]
        %v2835 = vld [vmem:[%s2803 + $0xbc] sm:$0xf]
        %v2836 = vld [vmem:[%s2803 + $0xc0] sm:$0xff]
        %v2837 = vld [vmem:[%s2803 + $0xc8] sm:$0xf]
        %v2838 = vld [vmem:[%s2803 + $0xcc] sm:$0xff]
        %v2839 = vld [vmem:[%s2803 + $0xd4] sm:$0xf]
        %v2840 = vld [vmem:[%s2803 + $0xd8] sm:$0xff]
        %v2841 = vld [vmem:[%s2803 + $0xe0] sm:$0xf]
        %v2842 = vld [vmem:[%s2803 + $0xe4] sm:$0xff]
        %v2843 = vld [vmem:[%s2803 + $0xec] sm:$0xf]
        %v2844 = vld [vmem:[%s2803 + $0xf0] sm:$0xff]
        %v2845 = vld [vmem:[%s2803 + $0xf8] sm:$0xf]
        %v2846 = vld [vmem:[%s2803 + $0xfc] sm:$0xff]
        %v2847 = vld [vmem:[%s2803 + $0x104] sm:$0xf]
        %v2848 = vld [vmem:[%s2803 + $0x108] sm:$0xff]
        %v2849 = vld [vmem:[%s2803 + $0x110] sm:$0xf]
        %v2850 = vld [vmem:[%s2803 + $0x114] sm:$0xff]
        %v2851 = vld [vmem:[%s2803 + $0x11c] sm:$0xf]
        %v2852 = vld [vmem:[%s2803 + $0x120] sm:$0xff]
        %v2853 = vld [vmem:[%s2803 + $0x128] sm:$0xf]
        %v2854 = vld [vmem:[%s2803 + $0x12c] sm:$0xff]
        %v2855 = vld [vmem:[%s2803 + $0x134] sm:$0xf]
        %v2856 = vld [vmem:[%s2803 + $0x138] sm:$0xff]
        %v2857 = vld [vmem:[%s2803 + $0x140] sm:$0xf]
        %v2858 = vld [vmem:[%s2803 + $0x144] sm:$0xff]
        %v2859 = vld [vmem:[%s2803 + $0x14c] sm:$0xf]
        %v2860 = vld [vmem:[%s2803 + $0x150] sm:$0xff]
        %v2861 = vld [vmem:[%s2803 + $0x158] sm:$0xf]
        %v2862 = vld [vmem:[%s2803 + $0x15c] sm:$0xff]
        %v2863 = vld [vmem:[%s2803 + $0x164] sm:$0xf]
        %v2864 = vld [vmem:[%s2803 + $0x168] sm:$0xff]
        %v2865 = vld [vmem:[%s2803 + $0x170] sm:$0xf]
        %v2866 = vld [vmem:[%s2803 + $0x174] sm:$0xff]
        %v2867 = vld [vmem:[%s2803 + $0x17c] sm:$0xf]
        %v2868 = vld [vmem:[%s2803 + $0x180] sm:$0xff]
        %v2869 = vld [vmem:[%s2803 + $0x188] sm:$0xf]
        %v2870 = vld [vmem:[%s2803 + $0x18c] sm:$0xff]
        %v2871 = vld [vmem:[%s2803 + $0x194] sm:$0xf]
        %v2872 = vld [vmem:[%s2803 + $0x198] sm:$0xff]
        %v2873 = vld [vmem:[%s2803 + $0x1a0] sm:$0xf]
        %v2874 = vld [vmem:[%s2803 + $0x1a4] sm:$0xff]
        %v2875 = vld [vmem:[%s2803 + $0x1ac] sm:$0xf]
        %v2876 = vld [vmem:[%s2803 + $0x1b0] sm:$0xff]
        %v2877 = vld [vmem:[%s2803 + $0x1b8] sm:$0xf]
        %v2878 = vld [vmem:[%s2803 + $0x1bc] sm:$0xff]
        %v2879 = vld [vmem:[%s2803 + $0x1c4] sm:$0xf]
        %v2880 = vld [vmem:[%s2803 + $0x1c8] sm:$0xff]
        %v2881 = vld [vmem:[%s2803 + $0x1d0] sm:$0xf]
        %v2882 = vld [vmem:[%s2803 + $0x1d4] sm:$0xff]
        %v2883 = vld [vmem:[%s2803 + $0x1dc] sm:$0xf]
        %v2884 = vld [vmem:[%s2803 + $0x1e0] sm:$0xff]
        %v2885 = vld [vmem:[%s2803 + $0x1e8] sm:$0xf]
        %v2886 = vld [vmem:[%s2803 + $0x1ec] sm:$0xff]
        %v2887 = vld [vmem:[%s2803 + $0x1f4] sm:$0xf]
        %v2888 = vld [vmem:[%s2803 + $0x1f8] sm:$0xff]
        %v2889 = vld [vmem:[%s2803 + $0x200] sm:$0xf]
        %v2890 = vld [vmem:[%s2803 + $0x204] sm:$0xff]
        %v2891 = vld [vmem:[%s2803 + $0x20c] sm:$0xf]
        %v2892 = vld [vmem:[%s2803 + $0x210] sm:$0xff]
        %v2893 = vld [vmem:[%s2803 + $0x218] sm:$0xf]
        %v2894 = vld [vmem:[%s2803 + $0x21c] sm:$0xff]
        %v2895 = vld [vmem:[%s2803 + $0x224] sm:$0xf]
        %v2896 = vld [vmem:[%s2803 + $0x228] sm:$0xff]
        %v2897 = vld [vmem:[%s2803 + $0x230] sm:$0xf]
        %v2898 = vld [vmem:[%s2803 + $0x234] sm:$0xff]
        %v2899 = vld [vmem:[%s2803 + $0x23c] sm:$0xf]
        %v2900 = vld [vmem:[%s2803 + $0x240] sm:$0xff]
        %v2901 = vld [vmem:[%s2803 + $0x248] sm:$0xf]
        %v2902 = vld [vmem:[%s2803 + $0x24c] sm:$0xff]
        %v2903 = vld [vmem:[%s2803 + $0x254] sm:$0xf]
        %v2904 = vld [vmem:[%s2803 + $0x258] sm:$0xff]
        %v2905 = vld [vmem:[%s2803 + $0x260] sm:$0xf]
        %v2906 = vld [vmem:[%s2803 + $0x264] sm:$0xff]
        %v2907 = vld [vmem:[%s2803 + $0x26c] sm:$0xf]
        %v2908 = vld [vmem:[%s2803 + $0x270] sm:$0xff]
        %v2909 = vld [vmem:[%s2803 + $0x278] sm:$0xf]
        %v2910 = vld [vmem:[%s2803 + $0x27c] sm:$0xff]
        %v2911 = vld [vmem:[%s2803 + $0x284] sm:$0xf]
        %v2912 = vld [vmem:[%s2803 + $0x288] sm:$0xff]
        %v2913 = vld [vmem:[%s2803 + $0x290] sm:$0xf]
        %v2914 = vld [vmem:[%s2803 + $0x294] sm:$0xff]
        %v2915 = vld [vmem:[%s2803 + $0x29c] sm:$0xf]
        %v2916 = vld [vmem:[%s2803 + $0x2a0] sm:$0xff]
        %v2917 = vld [vmem:[%s2803 + $0x2a8] sm:$0xf]
        %v2918 = vld [vmem:[%s2803 + $0x2ac] sm:$0xff]
        %v2919 = vld [vmem:[%s2803 + $0x2b4] sm:$0xf]
        %v2920 = vld [vmem:[%s2803 + $0x2b8] sm:$0xff]
        %v2921 = vld [vmem:[%s2803 + $0x2c0] sm:$0xf]
        %v2922 = vld [vmem:[%s2803 + $0x2c4] sm:$0xff]
        %v2923 = vld [vmem:[%s2803 + $0x2cc] sm:$0xf]
        %v2924 = vld [vmem:[%s2803 + $0x2d0] sm:$0xff]
        %v2925 = vld [vmem:[%s2803 + $0x2d8] sm:$0xf]
        %v2926 = vld [vmem:[%s2803 + $0x2dc] sm:$0xff]
        %v2927 = vld [vmem:[%s2803 + $0x2e4] sm:$0xf]
        %v2928 = vld [vmem:[%s2803 + $0x2e8] sm:$0xff]
        %v2929 = vld [vmem:[%s2803 + $0x2f0] sm:$0xf]
        %v2930 = vld [vmem:[%s2803 + $0x2f4] sm:$0xff]
        %v2931 = vld [vmem:[%s2803 + $0x2fc] sm:$0xf]
        %v3060 = vunpack.c.l.b16 %v2804
        %v3061 = vunpack.c.h.b16 %v2804
        %v3062 = vunpack.c.l.b16 %v2805
        %v3063 = vunpack.c.l.b16 %v2806
        %v3064 = vunpack.c.h.b16 %v2806
        %v3065 = vunpack.c.l.b16 %v2807
        %v3066 = vunpack.c.l.b16 %v2808
        %v3067 = vunpack.c.h.b16 %v2808
        %v3068 = vunpack.c.l.b16 %v2809
        %v3069 = vunpack.c.l.b16 %v2810
        %v3070 = vunpack.c.h.b16 %v2810
        %v3071 = vunpack.c.l.b16 %v2811
        %v3072 = vunpack.c.l.b16 %v2812
        %v3073 = vunpack.c.h.b16 %v2812
        %v3074 = vunpack.c.l.b16 %v2813
        %v3075 = vunpack.c.l.b16 %v2814
        %v3076 = vunpack.c.h.b16 %v2814
        %v3077 = vunpack.c.l.b16 %v2815
        %v3078 = vunpack.c.l.b16 %v2816
        %v3079 = vunpack.c.h.b16 %v2816
        %v3080 = vunpack.c.l.b16 %v2817
        %v3081 = vunpack.c.l.b16 %v2818
        %v3082 = vunpack.c.h.b16 %v2818
        %v3083 = vunpack.c.l.b16 %v2819
        %v3084 = vunpack.c.l.b16 %v2820
        %v3085 = vunpack.c.h.b16 %v2820
        %v3086 = vunpack.c.l.b16 %v2821
        %v3087 = vunpack.c.l.b16 %v2822
        %v3088 = vunpack.c.h.b16 %v2822
        %v3089 = vunpack.c.l.b16 %v2823
        %v3090 = vunpack.c.l.b16 %v2824
        %v3091 = vunpack.c.h.b16 %v2824
        %v3092 = vunpack.c.l.b16 %v2825
        %v3093 = vunpack.c.l.b16 %v2826
        %v3094 = vunpack.c.h.b16 %v2826
        %v3095 = vunpack.c.l.b16 %v2827
        %v3096 = vunpack.c.l.b16 %v2828
        %v3097 = vunpack.c.h.b16 %v2828
        %v3098 = vunpack.c.l.b16 %v2829
        %v3099 = vunpack.c.l.b16 %v2830
        %v3100 = vunpack.c.h.b16 %v2830
        %v3101 = vunpack.c.l.b16 %v2831
        %v3102 = vunpack.c.l.b16 %v2832
        %v3103 = vunpack.c.h.b16 %v2832
        %v3104 = vunpack.c.l.b16 %v2833
        %v3105 = vunpack.c.l.b16 %v2834
        %v3106 = vunpack.c.h.b16 %v2834
        %v3107 = vunpack.c.l.b16 %v2835
        %v3108 = vunpack.c.l.b16 %v2836
        %v3109 = vunpack.c.h.b16 %v2836
        %v3110 = vunpack.c.l.b16 %v2837
        %v3111 = vunpack.c.l.b16 %v2838
        %v3112 = vunpack.c.h.b16 %v2838
        %v3113 = vunpack.c.l.b16 %v2839
        %v3114 = vunpack.c.l.b16 %v2840
        %v3115 = vunpack.c.h.b16 %v2840
        %v3116 = vunpack.c.l.b16 %v2841
        %v3117 = vunpack.c.l.b16 %v2842
        %v3118 = vunpack.c.h.b16 %v2842
        %v3119 = vunpack.c.l.b16 %v2843
        %v3120 = vunpack.c.l.b16 %v2844
        %v3121 = vunpack.c.h.b16 %v2844
        %v3122 = vunpack.c.l.b16 %v2845
        %v3123 = vunpack.c.l.b16 %v2846
        %v3124 = vunpack.c.h.b16 %v2846
        %v3125 = vunpack.c.l.b16 %v2847
        %v3126 = vunpack.c.l.b16 %v2848
        %v3127 = vunpack.c.h.b16 %v2848
        %v3128 = vunpack.c.l.b16 %v2849
        %v3129 = vunpack.c.l.b16 %v2850
        %v3130 = vunpack.c.h.b16 %v2850
        %v3131 = vunpack.c.l.b16 %v2851
        %v3132 = vunpack.c.l.b16 %v2852
        %v3133 = vunpack.c.h.b16 %v2852
        %v3134 = vunpack.c.l.b16 %v2853
        %v3135 = vunpack.c.l.b16 %v2854
        %v3136 = vunpack.c.h.b16 %v2854
        %v3137 = vunpack.c.l.b16 %v2855
        %v3138 = vunpack.c.l.b16 %v2856
        %v3139 = vunpack.c.h.b16 %v2856
        %v3140 = vunpack.c.l.b16 %v2857
        %v3141 = vunpack.c.l.b16 %v2858
        %v3142 = vunpack.c.h.b16 %v2858
        %v3143 = vunpack.c.l.b16 %v2859
        %v3144 = vunpack.c.l.b16 %v2860
        %v3145 = vunpack.c.h.b16 %v2860
        %v3146 = vunpack.c.l.b16 %v2861
        %v3147 = vunpack.c.l.b16 %v2862
        %v3148 = vunpack.c.h.b16 %v2862
        %v3149 = vunpack.c.l.b16 %v2863
        %v3150 = vunpack.c.l.b16 %v2864
        %v3151 = vunpack.c.h.b16 %v2864
        %v3152 = vunpack.c.l.b16 %v2865
        %v3153 = vunpack.c.l.b16 %v2866
        %v3154 = vunpack.c.h.b16 %v2866
        %v3155 = vunpack.c.l.b16 %v2867
        %v3156 = vunpack.c.l.b16 %v2868
        %v3157 = vunpack.c.h.b16 %v2868
        %v3158 = vunpack.c.l.b16 %v2869
        %v3159 = vunpack.c.l.b16 %v2870
        %v3160 = vunpack.c.h.b16 %v2870
        %v3161 = vunpack.c.l.b16 %v2871
        %v3162 = vunpack.c.l.b16 %v2872
        %v3163 = vunpack.c.h.b16 %v2872
        %v3164 = vunpack.c.l.b16 %v2873
        %v3165 = vunpack.c.l.b16 %v2874
        %v3166 = vunpack.c.h.b16 %v2874
        %v3167 = vunpack.c.l.b16 %v2875
        %v3168 = vunpack.c.l.b16 %v2876
        %v3169 = vunpack.c.h.b16 %v2876
        %v3170 = vunpack.c.l.b16 %v2877
        %v3171 = vunpack.c.l.b16 %v2878
        %v3172 = vunpack.c.h.b16 %v2878
        %v3173 = vunpack.c.l.b16 %v2879
        %v3174 = vunpack.c.l.b16 %v2880
        %v3175 = vunpack.c.h.b16 %v2880
        %v3176 = vunpack.c.l.b16 %v2881
        %v3177 = vunpack.c.l.b16 %v2882
        %v3178 = vunpack.c.h.b16 %v2882
        %v3179 = vunpack.c.l.b16 %v2883
        %v3180 = vunpack.c.l.b16 %v2884
        %v3181 = vunpack.c.h.b16 %v2884
        %v3182 = vunpack.c.l.b16 %v2885
        %v3183 = vunpack.c.l.b16 %v2886
        %v3184 = vunpack.c.h.b16 %v2886
        %v3185 = vunpack.c.l.b16 %v2887
        %v3186 = vunpack.c.l.b16 %v2888
        %v3187 = vunpack.c.h.b16 %v2888
        %v3188 = vunpack.c.l.b16 %v2889
        %v3189 = vunpack.c.l.b16 %v2890
        %v3190 = vunpack.c.h.b16 %v2890
        %v3191 = vunpack.c.l.b16 %v2891
        %v3192 = vunpack.c.l.b16 %v2892
        %v3193 = vunpack.c.h.b16 %v2892
        %v3194 = vunpack.c.l.b16 %v2893
        %v3195 = vunpack.c.l.b16 %v2894
        %v3196 = vunpack.c.h.b16 %v2894
        %v3197 = vunpack.c.l.b16 %v2895
        %v3198 = vunpack.c.l.b16 %v2896
        %v3199 = vunpack.c.h.b16 %v2896
        %v3200 = vunpack.c.l.b16 %v2897
        %v3201 = vunpack.c.l.b16 %v2898
        %v3202 = vunpack.c.h.b16 %v2898
        %v3203 = vunpack.c.l.b16 %v2899
        %v3204 = vunpack.c.l.b16 %v2900
        %v3205 = vunpack.c.h.b16 %v2900
        %v3206 = vunpack.c.l.b16 %v2901
        %v3207 = vunpack.c.l.b16 %v2902
        %v3208 = vunpack.c.h.b16 %v2902
        %v3209 = vunpack.c.l.b16 %v2903
        %v3210 = vunpack.c.l.b16 %v2904
        %v3211 = vunpack.c.h.b16 %v2904
        %v3212 = vunpack.c.l.b16 %v2905
        %v3213 = vunpack.c.l.b16 %v2906
        %v3214 = vunpack.c.h.b16 %v2906
        %v3215 = vunpack.c.l.b16 %v2907
        %v3216 = vunpack.c.l.b16 %v2908
        %v3217 = vunpack.c.h.b16 %v2908
        %v3218 = vunpack.c.l.b16 %v2909
        %v3219 = vunpack.c.l.b16 %v2910
        %v3220 = vunpack.c.h.b16 %v2910
        %v3221 = vunpack.c.l.b16 %v2911
        %v3222 = vunpack.c.l.b16 %v2912
        %v3223 = vunpack.c.h.b16 %v2912
        %v3224 = vunpack.c.l.b16 %v2913
        %v3225 = vunpack.c.l.b16 %v2914
        %v3226 = vunpack.c.h.b16 %v2914
        %v3227 = vunpack.c.l.b16 %v2915
        %v3228 = vunpack.c.l.b16 %v2916
        %v3229 = vunpack.c.h.b16 %v2916
        %v3230 = vunpack.c.l.b16 %v2917
        %v3231 = vunpack.c.l.b16 %v2918
        %v3232 = vunpack.c.h.b16 %v2918
        %v3233 = vunpack.c.l.b16 %v2919
        %v3234 = vunpack.c.l.b16 %v2920
        %v3235 = vunpack.c.h.b16 %v2920
        %v3236 = vunpack.c.l.b16 %v2921
        %v3237 = vunpack.c.l.b16 %v2922
        %v3238 = vunpack.c.h.b16 %v2922
        %v3239 = vunpack.c.l.b16 %v2923
        %v3240 = vunpack.c.l.b16 %v2924
        %v3241 = vunpack.c.h.b16 %v2924
        %v3242 = vunpack.c.l.b16 %v2925
        %v3243 = vunpack.c.l.b16 %v2926
        %v3244 = vunpack.c.h.b16 %v2926
        %v3245 = vunpack.c.l.b16 %v2927
        %v3246 = vunpack.c.l.b16 %v2928
        %v3247 = vunpack.c.h.b16 %v2928
        %v3248 = vunpack.c.l.b16 %v2929
        %v3249 = vunpack.c.l.b16 %v2930
        %v3250 = vunpack.c.h.b16 %v2930
        %v3251 = vunpack.c.l.b16 %v2931
        %v3252 = vpack.c.b16 %v3063, %v3060
        %v3253 = vpack.c.b16 %v3064, %v3061
        %v3254 = vpack.c.b16 %v3065, %v3062
        %v3255 = vpack.c.b16 %v3069, %v3066
        %v3256 = vpack.c.b16 %v3070, %v3067
        %v3257 = vpack.c.b16 %v3071, %v3068
        %v3258 = vpack.c.b16 %v3075, %v3072
        %v3259 = vpack.c.b16 %v3076, %v3073
        %v3260 = vpack.c.b16 %v3077, %v3074
        %v3261 = vpack.c.b16 %v3081, %v3078
        %v3262 = vpack.c.b16 %v3082, %v3079
        %v3263 = vpack.c.b16 %v3083, %v3080
        %v3264 = vpack.c.b16 %v3087, %v3084
        %v3265 = vpack.c.b16 %v3088, %v3085
        %v3266 = vpack.c.b16 %v3089, %v3086
        %v3267 = vpack.c.b16 %v3093, %v3090
        %v3268 = vpack.c.b16 %v3094, %v3091
        %v3269 = vpack.c.b16 %v3095, %v3092
        %v3270 = vpack.c.b16 %v3099, %v3096
        %v3271 = vpack.c.b16 %v3100, %v3097
        %v3272 = vpack.c.b16 %v3101, %v3098
        %v3273 = vpack.c.b16 %v3105, %v3102
        %v3274 = vpack.c.b16 %v3106, %v3103
        %v3275 = vpack.c.b16 %v3107, %v3104
        %v3276 = vpack.c.b16 %v3111, %v3108
        %v3277 = vpack.c.b16 %v3112, %v3109
        %v3278 = vpack.c.b16 %v3113, %v3110
        %v3279 = vpack.c.b16 %v3117, %v3114
        %v3280 = vpack.c.b16 %v3118, %v3115
        %v3281 = vpack.c.b16 %v3119, %v3116
        %v3282 = vpack.c.b16 %v3123, %v3120
        %v3283 = vpack.c.b16 %v3124, %v3121
        %v3284 = vpack.c.b16 %v3125, %v3122
        %v3285 = vpack.c.b16 %v3129, %v3126
        %v3286 = vpack.c.b16 %v3130, %v3127
        %v3287 = vpack.c.b16 %v3131, %v3128
        %v3288 = vpack.c.b16 %v3135, %v3132
        %v3289 = vpack.c.b16 %v3136, %v3133
        %v3290 = vpack.c.b16 %v3137, %v3134
        %v3291 = vpack.c.b16 %v3141, %v3138
        %v3292 = vpack.c.b16 %v3142, %v3139
        %v3293 = vpack.c.b16 %v3143, %v3140
        %v3294 = vpack.c.b16 %v3147, %v3144
        %v3295 = vpack.c.b16 %v3148, %v3145
        %v3296 = vpack.c.b16 %v3149, %v3146
        %v3297 = vpack.c.b16 %v3153, %v3150
        %v3298 = vpack.c.b16 %v3154, %v3151
        %v3299 = vpack.c.b16 %v3155, %v3152
        %v3300 = vpack.c.b16 %v3159, %v3156
        %v3301 = vpack.c.b16 %v3160, %v3157
        %v3302 = vpack.c.b16 %v3161, %v3158
        %v3303 = vpack.c.b16 %v3165, %v3162
        %v3304 = vpack.c.b16 %v3166, %v3163
        %v3305 = vpack.c.b16 %v3167, %v3164
        %v3306 = vpack.c.b16 %v3171, %v3168
        %v3307 = vpack.c.b16 %v3172, %v3169
        %v3308 = vpack.c.b16 %v3173, %v3170
        %v3309 = vpack.c.b16 %v3177, %v3174
        %v3310 = vpack.c.b16 %v3178, %v3175
        %v3311 = vpack.c.b16 %v3179, %v3176
        %v3312 = vpack.c.b16 %v3183, %v3180
        %v3313 = vpack.c.b16 %v3184, %v3181
        %v3314 = vpack.c.b16 %v3185, %v3182
        %v3315 = vpack.c.b16 %v3189, %v3186
        %v3316 = vpack.c.b16 %v3190, %v3187
        %v3317 = vpack.c.b16 %v3191, %v3188
        %v3318 = vpack.c.b16 %v3195, %v3192
        %v3319 = vpack.c.b16 %v3196, %v3193
        %v3320 = vpack.c.b16 %v3197, %v3194
        %v3321 = vpack.c.b16 %v3201, %v3198
        %v3322 = vpack.c.b16 %v3202, %v3199
        %v3323 = vpack.c.b16 %v3203, %v3200
        %v3324 = vpack.c.b16 %v3207, %v3204
        %v3325 = vpack.c.b16 %v3208, %v3205
        %v3326 = vpack.c.b16 %v3209, %v3206
        %v3327 = vpack.c.b16 %v3213, %v3210
        %v3328 = vpack.c.b16 %v3214, %v3211
        %v3329 = vpack.c.b16 %v3215, %v3212
        %v3330 = vpack.c.b16 %v3219, %v3216
        %v3331 = vpack.c.b16 %v3220, %v3217
        %v3332 = vpack.c.b16 %v3221, %v3218
        %v3333 = vpack.c.b16 %v3225, %v3222
        %v3334 = vpack.c.b16 %v3226, %v3223
        %v3335 = vpack.c.b16 %v3227, %v3224
        %v3336 = vpack.c.b16 %v3231, %v3228
        %v3337 = vpack.c.b16 %v3232, %v3229
        %v3338 = vpack.c.b16 %v3233, %v3230
        %v3339 = vpack.c.b16 %v3237, %v3234
        %v3340 = vpack.c.b16 %v3238, %v3235
        %v3341 = vpack.c.b16 %v3239, %v3236
        %v3342 = vpack.c.b16 %v3243, %v3240
        %v3343 = vpack.c.b16 %v3244, %v3241
        %v3344 = vpack.c.b16 %v3245, %v3242
        %v3345 = vpack.c.b16 %v3249, %v3246
        %v3346 = vpack.c.b16 %v3250, %v3247
        %v3347 = vpack.c.b16 %v3251, %v3248
        %3444 = vmatpush.bf16.msra.mxu0 %v3273
        %3445 = vmatpush.bf16.msra.mxu0 %v3270
        %3446 = vmatpush.bf16.msra.mxu0 %v3267
        %3447 = vmatpush.bf16.msra.mxu0 %v3264
        %3448 = vmatpush.bf16.msra.mxu0 %v3261
        %3449 = vmatpush.bf16.msra.mxu0 %v3258
        %3450 = vmatpush.bf16.msra.mxu0 %v3255
        %3451 = vmatpush.bf16.msra.mxu0 %v3252
        %3452 = vmatmul.bf16.gmra.mxu0 %v474
        %v3453 = vpop.f32.mrf.mxu0
        %v3454 = vadd.f32 0.0, %v3453
        %v3455 = vpop.f32.mrf.mxu0
        %3456 = vdwg.mxu0
        %3457 = vmatpush.bf16.msra.mxu0 %v3297
        %3458 = vmatpush.bf16.msra.mxu0 %v3294
        %3459 = vmatpush.bf16.msra.mxu0 %v3291
        %3460 = vmatpush.bf16.msra.mxu0 %v3288
        %3461 = vmatpush.bf16.msra.mxu0 %v3285
        %3462 = vmatpush.bf16.msra.mxu0 %v3282
        %3463 = vmatpush.bf16.msra.mxu0 %v3279
        %3464 = vmatpush.bf16.msra.mxu0 %v3276
        %3465 = vmatmul.bf16.gmra.mxu0 %v475
        %v3466 = vpop.f32.mrf.mxu0
        %v3467 = vadd.f32 %v3454, %v3466
        %v3468 = vpop.f32.mrf.mxu0
        %3469 = vdwg.mxu0
        %3470 = vmatpush.bf16.msra.mxu0 %v3321
        %3471 = vmatpush.bf16.msra.mxu0 %v3318
        %3472 = vmatpush.bf16.msra.mxu0 %v3315
        %3473 = vmatpush.bf16.msra.mxu0 %v3312
        %3474 = vmatpush.bf16.msra.mxu0 %v3309
        %3475 = vmatpush.bf16.msra.mxu0 %v3306
        %3476 = vmatpush.bf16.msra.mxu0 %v3303
        %3477 = vmatpush.bf16.msra.mxu0 %v3300
        %3478 = vmatmul.bf16.gmra.mxu0 %v476
        %v3479 = vpop.f32.mrf.mxu0
        %v3480 = vadd.f32 %v3467, %v3479
        %v3481 = vpop.f32.mrf.mxu0
        %3482 = vdwg.mxu0
        %3483 = vmatpush.bf16.msra.mxu0 %v3345
        %3484 = vmatpush.bf16.msra.mxu0 %v3342
        %3485 = vmatpush.bf16.msra.mxu0 %v3339
        %3486 = vmatpush.bf16.msra.mxu0 %v3336
        %3487 = vmatpush.bf16.msra.mxu0 %v3333
        %3488 = vmatpush.bf16.msra.mxu0 %v3330
        %3489 = vmatpush.bf16.msra.mxu0 %v3327
        %3490 = vmatpush.bf16.msra.mxu0 %v3324
        %3491 = vmatmul.bf16.gmra.mxu0 %v477
        %v3492 = vpop.f32.mrf.mxu0
        %v3493 = vadd.f32 %v3480, %v3492
        %v3494 = vpop.f32.mrf.mxu0
        %3495 = vdwg.mxu0
        %3496 = vmatpush.bf16.msra.mxu0 %v3274
        %3497 = vmatpush.bf16.msra.mxu0 %v3271
        %3498 = vmatpush.bf16.msra.mxu0 %v3268
        %3499 = vmatpush.bf16.msra.mxu0 %v3265
        %3500 = vmatpush.bf16.msra.mxu0 %v3262
        %3501 = vmatpush.bf16.msra.mxu0 %v3259
        %3502 = vmatpush.bf16.msra.mxu0 %v3256
        %3503 = vmatpush.bf16.msra.mxu0 %v3253
        %3504 = vmatmul.bf16.gmra.mxu0 %v474
        %v3505 = vpop.f32.mrf.mxu0
        %v3506 = vadd.f32 0.0, %v3505
        %v3507 = vpop.f32.mrf.mxu0
        %3508 = vdwg.mxu0
        %3509 = vmatpush.bf16.msra.mxu0 %v3298
        %3510 = vmatpush.bf16.msra.mxu0 %v3295
        %3511 = vmatpush.bf16.msra.mxu0 %v3292
        %3512 = vmatpush.bf16.msra.mxu0 %v3289
        %3513 = vmatpush.bf16.msra.mxu0 %v3286
        %3514 = vmatpush.bf16.msra.mxu0 %v3283
        %3515 = vmatpush.bf16.msra.mxu0 %v3280
        %3516 = vmatpush.bf16.msra.mxu0 %v3277
        %3517 = vmatmul.bf16.gmra.mxu0 %v475
        %v3518 = vpop.f32.mrf.mxu0
        %v3519 = vadd.f32 %v3506, %v3518
        %v3520 = vpop.f32.mrf.mxu0
        %3521 = vdwg.mxu0
        %3522 = vmatpush.bf16.msra.mxu0 %v3322
        %3523 = vmatpush.bf16.msra.mxu0 %v3319
        %3524 = vmatpush.bf16.msra.mxu0 %v3316
        %3525 = vmatpush.bf16.msra.mxu0 %v3313
        %3526 = vmatpush.bf16.msra.mxu0 %v3310
        %3527 = vmatpush.bf16.msra.mxu0 %v3307
        %3528 = vmatpush.bf16.msra.mxu0 %v3304
        %3529 = vmatpush.bf16.msra.mxu0 %v3301
        %3530 = vmatmul.bf16.gmra.mxu0 %v476
        %v3531 = vpop.f32.mrf.mxu0
        %v3532 = vadd.f32 %v3519, %v3531
        %v3533 = vpop.f32.mrf.mxu0
        %3534 = vdwg.mxu0
        %3535 = vmatpush.bf16.msra.mxu0 %v3346
        %3536 = vmatpush.bf16.msra.mxu0 %v3343
        %3537 = vmatpush.bf16.msra.mxu0 %v3340
        %3538 = vmatpush.bf16.msra.mxu0 %v3337
        %3539 = vmatpush.bf16.msra.mxu0 %v3334
        %3540 = vmatpush.bf16.msra.mxu0 %v3331
        %3541 = vmatpush.bf16.msra.mxu0 %v3328
        %3542 = vmatpush.bf16.msra.mxu0 %v3325
        %3543 = vmatmul.bf16.gmra.mxu0 %v477
        %v3544 = vpop.f32.mrf.mxu0
        %v3545 = vadd.f32 %v3532, %v3544
        %v3546 = vpop.f32.mrf.mxu0
        %3547 = vdwg.mxu0
        %3548 = vmatpush.bf16.msra.mxu0 %v3275
        %3549 = vmatpush.bf16.msra.mxu0 %v3272
        %3550 = vmatpush.bf16.msra.mxu0 %v3269
        %3551 = vmatpush.bf16.msra.mxu0 %v3266
        %3552 = vmatpush.bf16.msra.mxu0 %v3263
        %3553 = vmatpush.bf16.msra.mxu0 %v3260
        %3554 = vmatpush.bf16.msra.mxu0 %v3257
        %3555 = vmatpush.bf16.msra.mxu0 %v3254
        %3556 = vmatmul.bf16.gmra.mxu0 %v474
        %v3557 = vpop.f32.mrf.mxu0
        %v3558 = vadd.f32 0.0, %v3557
        %v3559 = vpop.f32.mrf.mxu0
        %3560 = vdwg.mxu0
        %3561 = vmatpush.bf16.msra.mxu0 %v3299
        %3562 = vmatpush.bf16.msra.mxu0 %v3296
        %3563 = vmatpush.bf16.msra.mxu0 %v3293
        %3564 = vmatpush.bf16.msra.mxu0 %v3290
        %3565 = vmatpush.bf16.msra.mxu0 %v3287
        %3566 = vmatpush.bf16.msra.mxu0 %v3284
        %3567 = vmatpush.bf16.msra.mxu0 %v3281
        %3568 = vmatpush.bf16.msra.mxu0 %v3278
        %3569 = vmatmul.bf16.gmra.mxu0 %v475
        %v3570 = vpop.f32.mrf.mxu0
        %v3571 = vadd.f32 %v3558, %v3570
        %v3572 = vpop.f32.mrf.mxu0
        %3573 = vdwg.mxu0
        %3574 = vmatpush.bf16.msra.mxu0 %v3323
        %3575 = vmatpush.bf16.msra.mxu0 %v3320
        %3576 = vmatpush.bf16.msra.mxu0 %v3317
        %3577 = vmatpush.bf16.msra.mxu0 %v3314
        %3578 = vmatpush.bf16.msra.mxu0 %v3311
        %3579 = vmatpush.bf16.msra.mxu0 %v3308
        %3580 = vmatpush.bf16.msra.mxu0 %v3305
        %3581 = vmatpush.bf16.msra.mxu0 %v3302
        %3582 = vmatmul.bf16.gmra.mxu0 %v476
        %v3583 = vpop.f32.mrf.mxu0
        %v3584 = vadd.f32 %v3571, %v3583
        %v3585 = vpop.f32.mrf.mxu0
        %3586 = vdwg.mxu0
        %3587 = vmatpush.bf16.msra.mxu0 %v3347
        %3588 = vmatpush.bf16.msra.mxu0 %v3344
        %3589 = vmatpush.bf16.msra.mxu0 %v3341
        %3590 = vmatpush.bf16.msra.mxu0 %v3338
        %3591 = vmatpush.bf16.msra.mxu0 %v3335
        %3592 = vmatpush.bf16.msra.mxu0 %v3332
        %3593 = vmatpush.bf16.msra.mxu0 %v3329
        %3594 = vmatpush.bf16.msra.mxu0 %v3326
        %3595 = vmatmul.bf16.gmra.mxu0 %v477
        %v3596 = vpop.f32.mrf.mxu0
        %v3597 = vadd.f32 %v3584, %v3596
        %v3598 = vpop.f32.mrf.mxu0
        %3599 = vdwg.mxu0
        %v3728 = vunpack.c.l.b16 %v2675
        %v3729 = vunpack.c.h.b16 %v2675
        %v3730 = vunpack.c.l.b16 %v2676
        %v3731 = vunpack.c.l.b16 %v2677
        %v3732 = vunpack.c.h.b16 %v2677
        %v3733 = vunpack.c.l.b16 %v2678
        %v3734 = vunpack.c.l.b16 %v2679
        %v3735 = vunpack.c.h.b16 %v2679
        %v3736 = vunpack.c.l.b16 %v2680
        %v3737 = vunpack.c.l.b16 %v2681
        %v3738 = vunpack.c.h.b16 %v2681
        %v3739 = vunpack.c.l.b16 %v2682
        %v3740 = vunpack.c.l.b16 %v2683
        %v3741 = vunpack.c.h.b16 %v2683
        %v3742 = vunpack.c.l.b16 %v2684
        %v3743 = vunpack.c.l.b16 %v2685
        %v3744 = vunpack.c.h.b16 %v2685
        %v3745 = vunpack.c.l.b16 %v2686
        %v3746 = vunpack.c.l.b16 %v2687
        %v3747 = vunpack.c.h.b16 %v2687
        %v3748 = vunpack.c.l.b16 %v2688
        %v3749 = vunpack.c.l.b16 %v2689
        %v3750 = vunpack.c.h.b16 %v2689
        %v3751 = vunpack.c.l.b16 %v2690
        %v3752 = vunpack.c.l.b16 %v2691
        %v3753 = vunpack.c.h.b16 %v2691
        %v3754 = vunpack.c.l.b16 %v2692
        %v3755 = vunpack.c.l.b16 %v2693
        %v3756 = vunpack.c.h.b16 %v2693
        %v3757 = vunpack.c.l.b16 %v2694
        %v3758 = vunpack.c.l.b16 %v2695
        %v3759 = vunpack.c.h.b16 %v2695
        %v3760 = vunpack.c.l.b16 %v2696
        %v3761 = vunpack.c.l.b16 %v2697
        %v3762 = vunpack.c.h.b16 %v2697
        %v3763 = vunpack.c.l.b16 %v2698
        %v3764 = vunpack.c.l.b16 %v2699
        %v3765 = vunpack.c.h.b16 %v2699
        %v3766 = vunpack.c.l.b16 %v2700
        %v3767 = vunpack.c.l.b16 %v2701
        %v3768 = vunpack.c.h.b16 %v2701
        %v3769 = vunpack.c.l.b16 %v2702
        %v3770 = vunpack.c.l.b16 %v2703
        %v3771 = vunpack.c.h.b16 %v2703
        %v3772 = vunpack.c.l.b16 %v2704
        %v3773 = vunpack.c.l.b16 %v2705
        %v3774 = vunpack.c.h.b16 %v2705
        %v3775 = vunpack.c.l.b16 %v2706
        %v3776 = vunpack.c.l.b16 %v2707
        %v3777 = vunpack.c.h.b16 %v2707
        %v3778 = vunpack.c.l.b16 %v2708
        %v3779 = vunpack.c.l.b16 %v2709
        %v3780 = vunpack.c.h.b16 %v2709
        %v3781 = vunpack.c.l.b16 %v2710
        %v3782 = vunpack.c.l.b16 %v2711
        %v3783 = vunpack.c.h.b16 %v2711
        %v3784 = vunpack.c.l.b16 %v2712
        %v3785 = vunpack.c.l.b16 %v2713
        %v3786 = vunpack.c.h.b16 %v2713
        %v3787 = vunpack.c.l.b16 %v2714
        %v3788 = vunpack.c.l.b16 %v2715
        %v3789 = vunpack.c.h.b16 %v2715
        %v3790 = vunpack.c.l.b16 %v2716
        %v3791 = vunpack.c.l.b16 %v2717
        %v3792 = vunpack.c.h.b16 %v2717
        %v3793 = vunpack.c.l.b16 %v2718
        %v3794 = vunpack.c.l.b16 %v2719
        %v3795 = vunpack.c.h.b16 %v2719
        %v3796 = vunpack.c.l.b16 %v2720
        %v3797 = vunpack.c.l.b16 %v2721
        %v3798 = vunpack.c.h.b16 %v2721
        %v3799 = vunpack.c.l.b16 %v2722
        %v3800 = vunpack.c.l.b16 %v2723
        %v3801 = vunpack.c.h.b16 %v2723
        %v3802 = vunpack.c.l.b16 %v2724
        %v3803 = vunpack.c.l.b16 %v2725
        %v3804 = vunpack.c.h.b16 %v2725
        %v3805 = vunpack.c.l.b16 %v2726
        %v3806 = vunpack.c.l.b16 %v2727
        %v3807 = vunpack.c.h.b16 %v2727
        %v3808 = vunpack.c.l.b16 %v2728
        %v3809 = vunpack.c.l.b16 %v2729
        %v3810 = vunpack.c.h.b16 %v2729
        %v3811 = vunpack.c.l.b16 %v2730
        %v3812 = vunpack.c.l.b16 %v2731
        %v3813 = vunpack.c.h.b16 %v2731
        %v3814 = vunpack.c.l.b16 %v2732
        %v3815 = vunpack.c.l.b16 %v2733
        %v3816 = vunpack.c.h.b16 %v2733
        %v3817 = vunpack.c.l.b16 %v2734
        %v3818 = vunpack.c.l.b16 %v2735
        %v3819 = vunpack.c.h.b16 %v2735
        %v3820 = vunpack.c.l.b16 %v2736
        %v3821 = vunpack.c.l.b16 %v2737
        %v3822 = vunpack.c.h.b16 %v2737
        %v3823 = vunpack.c.l.b16 %v2738
        %v3824 = vunpack.c.l.b16 %v2739
        %v3825 = vunpack.c.h.b16 %v2739
        %v3826 = vunpack.c.l.b16 %v2740
        %v3827 = vunpack.c.l.b16 %v2741
        %v3828 = vunpack.c.h.b16 %v2741
        %v3829 = vunpack.c.l.b16 %v2742
        %v3830 = vunpack.c.l.b16 %v2743
        %v3831 = vunpack.c.h.b16 %v2743
        %v3832 = vunpack.c.l.b16 %v2744
        %v3833 = vunpack.c.l.b16 %v2745
        %v3834 = vunpack.c.h.b16 %v2745
        %v3835 = vunpack.c.l.b16 %v2746
        %v3836 = vunpack.c.l.b16 %v2747
        %v3837 = vunpack.c.h.b16 %v2747
        %v3838 = vunpack.c.l.b16 %v2748
        %v3839 = vunpack.c.l.b16 %v2749
        %v3840 = vunpack.c.h.b16 %v2749
        %v3841 = vunpack.c.l.b16 %v2750
        %v3842 = vunpack.c.l.b16 %v2751
        %v3843 = vunpack.c.h.b16 %v2751
        %v3844 = vunpack.c.l.b16 %v2752
        %v3845 = vunpack.c.l.b16 %v2753
        %v3846 = vunpack.c.h.b16 %v2753
        %v3847 = vunpack.c.l.b16 %v2754
        %v3848 = vunpack.c.l.b16 %v2755
        %v3849 = vunpack.c.h.b16 %v2755
        %v3850 = vunpack.c.l.b16 %v2756
        %v3851 = vunpack.c.l.b16 %v2757
        %v3852 = vunpack.c.h.b16 %v2757
        %v3853 = vunpack.c.l.b16 %v2758
        %v3854 = vunpack.c.l.b16 %v2759
        %v3855 = vunpack.c.h.b16 %v2759
        %v3856 = vunpack.c.l.b16 %v2760
        %v3857 = vunpack.c.l.b16 %v2761
        %v3858 = vunpack.c.h.b16 %v2761
        %v3859 = vunpack.c.l.b16 %v2762
        %v3860 = vunpack.c.l.b16 %v2763
        %v3861 = vunpack.c.h.b16 %v2763
        %v3862 = vunpack.c.l.b16 %v2764
        %v3863 = vunpack.c.l.b16 %v2765
        %v3864 = vunpack.c.h.b16 %v2765
        %v3865 = vunpack.c.l.b16 %v2766
        %v3866 = vunpack.c.l.b16 %v2767
        %v3867 = vunpack.c.h.b16 %v2767
        %v3868 = vunpack.c.l.b16 %v2768
        %v3869 = vunpack.c.l.b16 %v2769
        %v3870 = vunpack.c.h.b16 %v2769
        %v3871 = vunpack.c.l.b16 %v2770
        %v3872 = vunpack.c.l.b16 %v2771
        %v3873 = vunpack.c.h.b16 %v2771
        %v3874 = vunpack.c.l.b16 %v2772
        %v3875 = vunpack.c.l.b16 %v2773
        %v3876 = vunpack.c.h.b16 %v2773
        %v3877 = vunpack.c.l.b16 %v2774
        %v3878 = vunpack.c.l.b16 %v2775
        %v3879 = vunpack.c.h.b16 %v2775
        %v3880 = vunpack.c.l.b16 %v2776
        %v3881 = vunpack.c.l.b16 %v2777
        %v3882 = vunpack.c.h.b16 %v2777
        %v3883 = vunpack.c.l.b16 %v2778
        %v3884 = vunpack.c.l.b16 %v2779
        %v3885 = vunpack.c.h.b16 %v2779
        %v3886 = vunpack.c.l.b16 %v2780
        %v3887 = vunpack.c.l.b16 %v2781
        %v3888 = vunpack.c.h.b16 %v2781
        %v3889 = vunpack.c.l.b16 %v2782
        %v3890 = vunpack.c.l.b16 %v2783
        %v3891 = vunpack.c.h.b16 %v2783
        %v3892 = vunpack.c.l.b16 %v2784
        %v3893 = vunpack.c.l.b16 %v2785
        %v3894 = vunpack.c.h.b16 %v2785
        %v3895 = vunpack.c.l.b16 %v2786
        %v3896 = vunpack.c.l.b16 %v2787
        %v3897 = vunpack.c.h.b16 %v2787
        %v3898 = vunpack.c.l.b16 %v2788
        %v3899 = vunpack.c.l.b16 %v2789
        %v3900 = vunpack.c.h.b16 %v2789
        %v3901 = vunpack.c.l.b16 %v2790
        %v3902 = vunpack.c.l.b16 %v2791
        %v3903 = vunpack.c.h.b16 %v2791
        %v3904 = vunpack.c.l.b16 %v2792
        %v3905 = vunpack.c.l.b16 %v2793
        %v3906 = vunpack.c.h.b16 %v2793
        %v3907 = vunpack.c.l.b16 %v2794
        %v3908 = vunpack.c.l.b16 %v2795
        %v3909 = vunpack.c.h.b16 %v2795
        %v3910 = vunpack.c.l.b16 %v2796
        %v3911 = vunpack.c.l.b16 %v2797
        %v3912 = vunpack.c.h.b16 %v2797
        %v3913 = vunpack.c.l.b16 %v2798
        %v3914 = vunpack.c.l.b16 %v2799
        %v3915 = vunpack.c.h.b16 %v2799
        %v3916 = vunpack.c.l.b16 %v2800
        %v3917 = vunpack.c.l.b16 %v2801
        %v3918 = vunpack.c.h.b16 %v2801
        %v3919 = vunpack.c.l.b16 %v2802
        %v3920 = vpack.c.b16 %v3731, %v3728
        %v3921 = vpack.c.b16 %v3732, %v3729
        %v3922 = vpack.c.b16 %v3733, %v3730
        %v3923 = vpack.c.b16 %v3737, %v3734
        %v3924 = vpack.c.b16 %v3738, %v3735
        %v3925 = vpack.c.b16 %v3739, %v3736
        %v3926 = vpack.c.b16 %v3743, %v3740
        %v3927 = vpack.c.b16 %v3744, %v3741
        %v3928 = vpack.c.b16 %v3745, %v3742
        %v3929 = vpack.c.b16 %v3749, %v3746
        %v3930 = vpack.c.b16 %v3750, %v3747
        %v3931 = vpack.c.b16 %v3751, %v3748
        %v3932 = vpack.c.b16 %v3755, %v3752
        %v3933 = vpack.c.b16 %v3756, %v3753
        %v3934 = vpack.c.b16 %v3757, %v3754
        %v3935 = vpack.c.b16 %v3761, %v3758
        %v3936 = vpack.c.b16 %v3762, %v3759
        %v3937 = vpack.c.b16 %v3763, %v3760
        %v3938 = vpack.c.b16 %v3767, %v3764
        %v3939 = vpack.c.b16 %v3768, %v3765
        %v3940 = vpack.c.b16 %v3769, %v3766
        %v3941 = vpack.c.b16 %v3773, %v3770
        %v3942 = vpack.c.b16 %v3774, %v3771
        %v3943 = vpack.c.b16 %v3775, %v3772
        %v3944 = vpack.c.b16 %v3779, %v3776
        %v3945 = vpack.c.b16 %v3780, %v3777
        %v3946 = vpack.c.b16 %v3781, %v3778
        %v3947 = vpack.c.b16 %v3785, %v3782
        %v3948 = vpack.c.b16 %v3786, %v3783
        %v3949 = vpack.c.b16 %v3787, %v3784
        %v3950 = vpack.c.b16 %v3791, %v3788
        %v3951 = vpack.c.b16 %v3792, %v3789
        %v3952 = vpack.c.b16 %v3793, %v3790
        %v3953 = vpack.c.b16 %v3797, %v3794
        %v3954 = vpack.c.b16 %v3798, %v3795
        %v3955 = vpack.c.b16 %v3799, %v3796
        %v3956 = vpack.c.b16 %v3803, %v3800
        %v3957 = vpack.c.b16 %v3804, %v3801
        %v3958 = vpack.c.b16 %v3805, %v3802
        %v3959 = vpack.c.b16 %v3809, %v3806
        %v3960 = vpack.c.b16 %v3810, %v3807
        %v3961 = vpack.c.b16 %v3811, %v3808
        %v3962 = vpack.c.b16 %v3815, %v3812
        %v3963 = vpack.c.b16 %v3816, %v3813
        %v3964 = vpack.c.b16 %v3817, %v3814
        %v3965 = vpack.c.b16 %v3821, %v3818
        %v3966 = vpack.c.b16 %v3822, %v3819
        %v3967 = vpack.c.b16 %v3823, %v3820
        %v3968 = vpack.c.b16 %v3827, %v3824
        %v3969 = vpack.c.b16 %v3828, %v3825
        %v3970 = vpack.c.b16 %v3829, %v3826
        %v3971 = vpack.c.b16 %v3833, %v3830
        %v3972 = vpack.c.b16 %v3834, %v3831
        %v3973 = vpack.c.b16 %v3835, %v3832
        %v3974 = vpack.c.b16 %v3839, %v3836
        %v3975 = vpack.c.b16 %v3840, %v3837
        %v3976 = vpack.c.b16 %v3841, %v3838
        %v3977 = vpack.c.b16 %v3845, %v3842
        %v3978 = vpack.c.b16 %v3846, %v3843
        %v3979 = vpack.c.b16 %v3847, %v3844
        %v3980 = vpack.c.b16 %v3851, %v3848
        %v3981 = vpack.c.b16 %v3852, %v3849
        %v3982 = vpack.c.b16 %v3853, %v3850
        %v3983 = vpack.c.b16 %v3857, %v3854
        %v3984 = vpack.c.b16 %v3858, %v3855
        %v3985 = vpack.c.b16 %v3859, %v3856
        %v3986 = vpack.c.b16 %v3863, %v3860
        %v3987 = vpack.c.b16 %v3864, %v3861
        %v3988 = vpack.c.b16 %v3865, %v3862
        %v3989 = vpack.c.b16 %v3869, %v3866
        %v3990 = vpack.c.b16 %v3870, %v3867
        %v3991 = vpack.c.b16 %v3871, %v3868
        %v3992 = vpack.c.b16 %v3875, %v3872
        %v3993 = vpack.c.b16 %v3876, %v3873
        %v3994 = vpack.c.b16 %v3877, %v3874
        %v3995 = vpack.c.b16 %v3881, %v3878
        %v3996 = vpack.c.b16 %v3882, %v3879
        %v3997 = vpack.c.b16 %v3883, %v3880
        %v3998 = vpack.c.b16 %v3887, %v3884
        %v3999 = vpack.c.b16 %v3888, %v3885
        %v4000 = vpack.c.b16 %v3889, %v3886
        %v4001 = vpack.c.b16 %v3893, %v3890
        %v4002 = vpack.c.b16 %v3894, %v3891
        %v4003 = vpack.c.b16 %v3895, %v3892
        %v4004 = vpack.c.b16 %v3899, %v3896
        %v4005 = vpack.c.b16 %v3900, %v3897
        %v4006 = vpack.c.b16 %v3901, %v3898
        %v4007 = vpack.c.b16 %v3905, %v3902
        %v4008 = vpack.c.b16 %v3906, %v3903
        %v4009 = vpack.c.b16 %v3907, %v3904
        %v4010 = vpack.c.b16 %v3911, %v3908
        %v4011 = vpack.c.b16 %v3912, %v3909
        %v4012 = vpack.c.b16 %v3913, %v3910
        %v4013 = vpack.c.b16 %v3917, %v3914
        %v4014 = vpack.c.b16 %v3918, %v3915
        %v4015 = vpack.c.b16 %v3919, %v3916
        %4112 = vmatpush.bf16.msra.mxu0 %v3941
        %4113 = vmatpush.bf16.msra.mxu0 %v3938
        %4114 = vmatpush.bf16.msra.mxu0 %v3935
        %4115 = vmatpush.bf16.msra.mxu0 %v3932
        %4116 = vmatpush.bf16.msra.mxu0 %v3929
        %4117 = vmatpush.bf16.msra.mxu0 %v3926
        %4118 = vmatpush.bf16.msra.mxu0 %v3923
        %4119 = vmatpush.bf16.msra.mxu0 %v3920
        %4120 = vmatmul.bf16.gmra.mxu0 %v1156
        %v4121 = vpop.f32.mrf.mxu0
        %v4122 = vadd.f32 %v3493, %v4121
        %v4123 = vpop.f32.mrf.mxu0
        %4124 = vdwg.mxu0
        %4125 = vmatpush.bf16.msra.mxu0 %v3965
        %4126 = vmatpush.bf16.msra.mxu0 %v3962
        %4127 = vmatpush.bf16.msra.mxu0 %v3959
        %4128 = vmatpush.bf16.msra.mxu0 %v3956
        %4129 = vmatpush.bf16.msra.mxu0 %v3953
        %4130 = vmatpush.bf16.msra.mxu0 %v3950
        %4131 = vmatpush.bf16.msra.mxu0 %v3947
        %4132 = vmatpush.bf16.msra.mxu0 %v3944
        %4133 = vmatmul.bf16.gmra.mxu0 %v1157
        %v4134 = vpop.f32.mrf.mxu0
        %v4135 = vadd.f32 %v4122, %v4134
        %v4136 = vpop.f32.mrf.mxu0
        %4137 = vdwg.mxu0
        %4138 = vmatpush.bf16.msra.mxu0 %v3989
        %4139 = vmatpush.bf16.msra.mxu0 %v3986
        %4140 = vmatpush.bf16.msra.mxu0 %v3983
        %4141 = vmatpush.bf16.msra.mxu0 %v3980
        %4142 = vmatpush.bf16.msra.mxu0 %v3977
        %4143 = vmatpush.bf16.msra.mxu0 %v3974
        %4144 = vmatpush.bf16.msra.mxu0 %v3971
        %4145 = vmatpush.bf16.msra.mxu0 %v3968
        %4146 = vmatmul.bf16.gmra.mxu0 %v1158
        %v4147 = vpop.f32.mrf.mxu0
        %v4148 = vadd.f32 %v4135, %v4147
        %v4149 = vpop.f32.mrf.mxu0
        %4150 = vdwg.mxu0
        %4151 = vmatpush.bf16.msra.mxu0 %v4013
        %4152 = vmatpush.bf16.msra.mxu0 %v4010
        %4153 = vmatpush.bf16.msra.mxu0 %v4007
        %4154 = vmatpush.bf16.msra.mxu0 %v4004
        %4155 = vmatpush.bf16.msra.mxu0 %v4001
        %4156 = vmatpush.bf16.msra.mxu0 %v3998
        %4157 = vmatpush.bf16.msra.mxu0 %v3995
        %4158 = vmatpush.bf16.msra.mxu0 %v3992
        %4159 = vmatmul.bf16.gmra.mxu0 %v1159
        %v4160 = vpop.f32.mrf.mxu0
        %v4161 = vadd.f32 %v4148, %v4160
        %v4162 = vpop.f32.mrf.mxu0
        %4163 = vdwg.mxu0
        %4164 = vmatpush.bf16.msra.mxu0 %v3942
        %4165 = vmatpush.bf16.msra.mxu0 %v3939
        %4166 = vmatpush.bf16.msra.mxu0 %v3936
        %4167 = vmatpush.bf16.msra.mxu0 %v3933
        %4168 = vmatpush.bf16.msra.mxu0 %v3930
        %4169 = vmatpush.bf16.msra.mxu0 %v3927
        %4170 = vmatpush.bf16.msra.mxu0 %v3924
        %4171 = vmatpush.bf16.msra.mxu0 %v3921
        %4172 = vmatmul.bf16.gmra.mxu0 %v1156
        %v4173 = vpop.f32.mrf.mxu0
        %v4174 = vadd.f32 %v3545, %v4173
        %v4175 = vpop.f32.mrf.mxu0
        %4176 = vdwg.mxu0
        %4177 = vmatpush.bf16.msra.mxu0 %v3966
        %4178 = vmatpush.bf16.msra.mxu0 %v3963
        %4179 = vmatpush.bf16.msra.mxu0 %v3960
        %4180 = vmatpush.bf16.msra.mxu0 %v3957
        %4181 = vmatpush.bf16.msra.mxu0 %v3954
        %4182 = vmatpush.bf16.msra.mxu0 %v3951
        %4183 = vmatpush.bf16.msra.mxu0 %v3948
        %4184 = vmatpush.bf16.msra.mxu0 %v3945
        %4185 = vmatmul.bf16.gmra.mxu0 %v1157
        %v4186 = vpop.f32.mrf.mxu0
        %v4187 = vadd.f32 %v4174, %v4186
        %v4188 = vpop.f32.mrf.mxu0
        %4189 = vdwg.mxu0
        %4190 = vmatpush.bf16.msra.mxu0 %v3990
        %4191 = vmatpush.bf16.msra.mxu0 %v3987
        %4192 = vmatpush.bf16.msra.mxu0 %v3984
        %4193 = vmatpush.bf16.msra.mxu0 %v3981
        %4194 = vmatpush.bf16.msra.mxu0 %v3978
        %4195 = vmatpush.bf16.msra.mxu0 %v3975
        %4196 = vmatpush.bf16.msra.mxu0 %v3972
        %4197 = vmatpush.bf16.msra.mxu0 %v3969
        %4198 = vmatmul.bf16.gmra.mxu0 %v1158
        %v4199 = vpop.f32.mrf.mxu0
        %v4200 = vadd.f32 %v4187, %v4199
        %v4201 = vpop.f32.mrf.mxu0
        %4202 = vdwg.mxu0
        %4203 = vmatpush.bf16.msra.mxu0 %v4014
        %4204 = vmatpush.bf16.msra.mxu0 %v4011
        %4205 = vmatpush.bf16.msra.mxu0 %v4008
        %4206 = vmatpush.bf16.msra.mxu0 %v4005
        %4207 = vmatpush.bf16.msra.mxu0 %v4002
        %4208 = vmatpush.bf16.msra.mxu0 %v3999
        %4209 = vmatpush.bf16.msra.mxu0 %v3996
        %4210 = vmatpush.bf16.msra.mxu0 %v3993
        %4211 = vmatmul.bf16.gmra.mxu0 %v1159
        %v4212 = vpop.f32.mrf.mxu0
        %v4213 = vadd.f32 %v4200, %v4212
        %v4214 = vpop.f32.mrf.mxu0
        %4215 = vdwg.mxu0
        %4216 = vmatpush.bf16.msra.mxu0 %v3943
        %4217 = vmatpush.bf16.msra.mxu0 %v3940
        %4218 = vmatpush.bf16.msra.mxu0 %v3937
        %4219 = vmatpush.bf16.msra.mxu0 %v3934
        %4220 = vmatpush.bf16.msra.mxu0 %v3931
        %4221 = vmatpush.bf16.msra.mxu0 %v3928
        %4222 = vmatpush.bf16.msra.mxu0 %v3925
        %4223 = vmatpush.bf16.msra.mxu0 %v3922
        %4224 = vmatmul.bf16.gmra.mxu0 %v1156
        %v4225 = vpop.f32.mrf.mxu0
        %v4226 = vadd.f32 %v3597, %v4225
        %v4227 = vpop.f32.mrf.mxu0
        %4228 = vdwg.mxu0
        %4229 = vmatpush.bf16.msra.mxu0 %v3967
        %4230 = vmatpush.bf16.msra.mxu0 %v3964
        %4231 = vmatpush.bf16.msra.mxu0 %v3961
        %4232 = vmatpush.bf16.msra.mxu0 %v3958
        %4233 = vmatpush.bf16.msra.mxu0 %v3955
        %4234 = vmatpush.bf16.msra.mxu0 %v3952
        %4235 = vmatpush.bf16.msra.mxu0 %v3949
        %4236 = vmatpush.bf16.msra.mxu0 %v3946
        %4237 = vmatmul.bf16.gmra.mxu0 %v1157
        %v4238 = vpop.f32.mrf.mxu0
        %v4239 = vadd.f32 %v4226, %v4238
        %v4240 = vpop.f32.mrf.mxu0
        %4241 = vdwg.mxu0
        %4242 = vmatpush.bf16.msra.mxu0 %v3991
        %4243 = vmatpush.bf16.msra.mxu0 %v3988
        %4244 = vmatpush.bf16.msra.mxu0 %v3985
        %4245 = vmatpush.bf16.msra.mxu0 %v3982
        %4246 = vmatpush.bf16.msra.mxu0 %v3979
        %4247 = vmatpush.bf16.msra.mxu0 %v3976
        %4248 = vmatpush.bf16.msra.mxu0 %v3973
        %4249 = vmatpush.bf16.msra.mxu0 %v3970
        %4250 = vmatmul.bf16.gmra.mxu0 %v1158
        %v4251 = vpop.f32.mrf.mxu0
        %v4252 = vadd.f32 %v4239, %v4251
        %v4253 = vpop.f32.mrf.mxu0
        %4254 = vdwg.mxu0
        %4255 = vmatpush.bf16.msra.mxu0 %v4015
        %4256 = vmatpush.bf16.msra.mxu0 %v4012
        %4257 = vmatpush.bf16.msra.mxu0 %v4009
        %4258 = vmatpush.bf16.msra.mxu0 %v4006
        %4259 = vmatpush.bf16.msra.mxu0 %v4003
        %4260 = vmatpush.bf16.msra.mxu0 %v4000
        %4261 = vmatpush.bf16.msra.mxu0 %v3997
        %4262 = vmatpush.bf16.msra.mxu0 %v3994
        %4263 = vmatmul.bf16.gmra.mxu0 %v1159
        %v4264 = vpop.f32.mrf.mxu0
        %v4265 = vadd.f32 %v4252, %v4264
        %v4266 = vpop.f32.mrf.mxu0
        %4267 = vdwg.mxu0
        %s4268 = scalar_lea.vmem [#allocation2], 3840
        %v4269 = vld [vmem:[%s4268] sm:$0xff]
        %v4270 = vld [vmem:[%s4268 + $0x8] sm:$0xf]
        %v4271 = vld [vmem:[%s4268 + $0xc] sm:$0xff]
        %v4272 = vld [vmem:[%s4268 + $0x14] sm:$0xf]
        %v4273 = vld [vmem:[%s4268 + $0x18] sm:$0xff]
        %v4274 = vld [vmem:[%s4268 + $0x20] sm:$0xf]
        %v4275 = vld [vmem:[%s4268 + $0x24] sm:$0xff]
        %v4276 = vld [vmem:[%s4268 + $0x2c] sm:$0xf]
        %v4277 = vld [vmem:[%s4268 + $0x30] sm:$0xff]
        %v4278 = vld [vmem:[%s4268 + $0x38] sm:$0xf]
        %v4279 = vld [vmem:[%s4268 + $0x3c] sm:$0xff]
        %v4280 = vld [vmem:[%s4268 + $0x44] sm:$0xf]
        %v4281 = vld [vmem:[%s4268 + $0x48] sm:$0xff]
        %v4282 = vld [vmem:[%s4268 + $0x50] sm:$0xf]
        %v4283 = vld [vmem:[%s4268 + $0x54] sm:$0xff]
        %v4284 = vld [vmem:[%s4268 + $0x5c] sm:$0xf]
        %v4285 = vld [vmem:[%s4268 + $0x60] sm:$0xff]
        %v4286 = vld [vmem:[%s4268 + $0x68] sm:$0xf]
        %v4287 = vld [vmem:[%s4268 + $0x6c] sm:$0xff]
        %v4288 = vld [vmem:[%s4268 + $0x74] sm:$0xf]
        %v4289 = vld [vmem:[%s4268 + $0x78] sm:$0xff]
        %v4290 = vld [vmem:[%s4268 + $0x80] sm:$0xf]
        %v4291 = vld [vmem:[%s4268 + $0x84] sm:$0xff]
        %v4292 = vld [vmem:[%s4268 + $0x8c] sm:$0xf]
        %v4293 = vld [vmem:[%s4268 + $0x90] sm:$0xff]
        %v4294 = vld [vmem:[%s4268 + $0x98] sm:$0xf]
        %v4295 = vld [vmem:[%s4268 + $0x9c] sm:$0xff]
        %v4296 = vld [vmem:[%s4268 + $0xa4] sm:$0xf]
        %v4297 = vld [vmem:[%s4268 + $0xa8] sm:$0xff]
        %v4298 = vld [vmem:[%s4268 + $0xb0] sm:$0xf]
        %v4299 = vld [vmem:[%s4268 + $0xb4] sm:$0xff]
        %v4300 = vld [vmem:[%s4268 + $0xbc] sm:$0xf]
        %v4301 = vld [vmem:[%s4268 + $0xc0] sm:$0xff]
        %v4302 = vld [vmem:[%s4268 + $0xc8] sm:$0xf]
        %v4303 = vld [vmem:[%s4268 + $0xcc] sm:$0xff]
        %v4304 = vld [vmem:[%s4268 + $0xd4] sm:$0xf]
        %v4305 = vld [vmem:[%s4268 + $0xd8] sm:$0xff]
        %v4306 = vld [vmem:[%s4268 + $0xe0] sm:$0xf]
        %v4307 = vld [vmem:[%s4268 + $0xe4] sm:$0xff]
        %v4308 = vld [vmem:[%s4268 + $0xec] sm:$0xf]
        %v4309 = vld [vmem:[%s4268 + $0xf0] sm:$0xff]
        %v4310 = vld [vmem:[%s4268 + $0xf8] sm:$0xf]
        %v4311 = vld [vmem:[%s4268 + $0xfc] sm:$0xff]
        %v4312 = vld [vmem:[%s4268 + $0x104] sm:$0xf]
        %v4313 = vld [vmem:[%s4268 + $0x108] sm:$0xff]
        %v4314 = vld [vmem:[%s4268 + $0x110] sm:$0xf]
        %v4315 = vld [vmem:[%s4268 + $0x114] sm:$0xff]
        %v4316 = vld [vmem:[%s4268 + $0x11c] sm:$0xf]
        %v4317 = vld [vmem:[%s4268 + $0x120] sm:$0xff]
        %v4318 = vld [vmem:[%s4268 + $0x128] sm:$0xf]
        %v4319 = vld [vmem:[%s4268 + $0x12c] sm:$0xff]
        %v4320 = vld [vmem:[%s4268 + $0x134] sm:$0xf]
        %v4321 = vld [vmem:[%s4268 + $0x138] sm:$0xff]
        %v4322 = vld [vmem:[%s4268 + $0x140] sm:$0xf]
        %v4323 = vld [vmem:[%s4268 + $0x144] sm:$0xff]
        %v4324 = vld [vmem:[%s4268 + $0x14c] sm:$0xf]
        %v4325 = vld [vmem:[%s4268 + $0x150] sm:$0xff]
        %v4326 = vld [vmem:[%s4268 + $0x158] sm:$0xf]
        %v4327 = vld [vmem:[%s4268 + $0x15c] sm:$0xff]
        %v4328 = vld [vmem:[%s4268 + $0x164] sm:$0xf]
        %v4329 = vld [vmem:[%s4268 + $0x168] sm:$0xff]
        %v4330 = vld [vmem:[%s4268 + $0x170] sm:$0xf]
        %v4331 = vld [vmem:[%s4268 + $0x174] sm:$0xff]
        %v4332 = vld [vmem:[%s4268 + $0x17c] sm:$0xf]
        %v4333 = vld [vmem:[%s4268 + $0x180] sm:$0xff]
        %v4334 = vld [vmem:[%s4268 + $0x188] sm:$0xf]
        %v4335 = vld [vmem:[%s4268 + $0x18c] sm:$0xff]
        %v4336 = vld [vmem:[%s4268 + $0x194] sm:$0xf]
        %v4337 = vld [vmem:[%s4268 + $0x198] sm:$0xff]
        %v4338 = vld [vmem:[%s4268 + $0x1a0] sm:$0xf]
        %v4339 = vld [vmem:[%s4268 + $0x1a4] sm:$0xff]
        %v4340 = vld [vmem:[%s4268 + $0x1ac] sm:$0xf]
        %v4341 = vld [vmem:[%s4268 + $0x1b0] sm:$0xff]
        %v4342 = vld [vmem:[%s4268 + $0x1b8] sm:$0xf]
        %v4343 = vld [vmem:[%s4268 + $0x1bc] sm:$0xff]
        %v4344 = vld [vmem:[%s4268 + $0x1c4] sm:$0xf]
        %v4345 = vld [vmem:[%s4268 + $0x1c8] sm:$0xff]
        %v4346 = vld [vmem:[%s4268 + $0x1d0] sm:$0xf]
        %v4347 = vld [vmem:[%s4268 + $0x1d4] sm:$0xff]
        %v4348 = vld [vmem:[%s4268 + $0x1dc] sm:$0xf]
        %v4349 = vld [vmem:[%s4268 + $0x1e0] sm:$0xff]
        %v4350 = vld [vmem:[%s4268 + $0x1e8] sm:$0xf]
        %v4351 = vld [vmem:[%s4268 + $0x1ec] sm:$0xff]
        %v4352 = vld [vmem:[%s4268 + $0x1f4] sm:$0xf]
        %v4353 = vld [vmem:[%s4268 + $0x1f8] sm:$0xff]
        %v4354 = vld [vmem:[%s4268 + $0x200] sm:$0xf]
        %v4355 = vld [vmem:[%s4268 + $0x204] sm:$0xff]
        %v4356 = vld [vmem:[%s4268 + $0x20c] sm:$0xf]
        %v4357 = vld [vmem:[%s4268 + $0x210] sm:$0xff]
        %v4358 = vld [vmem:[%s4268 + $0x218] sm:$0xf]
        %v4359 = vld [vmem:[%s4268 + $0x21c] sm:$0xff]
        %v4360 = vld [vmem:[%s4268 + $0x224] sm:$0xf]
        %v4361 = vld [vmem:[%s4268 + $0x228] sm:$0xff]
        %v4362 = vld [vmem:[%s4268 + $0x230] sm:$0xf]
        %v4363 = vld [vmem:[%s4268 + $0x234] sm:$0xff]
        %v4364 = vld [vmem:[%s4268 + $0x23c] sm:$0xf]
        %v4365 = vld [vmem:[%s4268 + $0x240] sm:$0xff]
        %v4366 = vld [vmem:[%s4268 + $0x248] sm:$0xf]
        %v4367 = vld [vmem:[%s4268 + $0x24c] sm:$0xff]
        %v4368 = vld [vmem:[%s4268 + $0x254] sm:$0xf]
        %v4369 = vld [vmem:[%s4268 + $0x258] sm:$0xff]
        %v4370 = vld [vmem:[%s4268 + $0x260] sm:$0xf]
        %v4371 = vld [vmem:[%s4268 + $0x264] sm:$0xff]
        %v4372 = vld [vmem:[%s4268 + $0x26c] sm:$0xf]
        %v4373 = vld [vmem:[%s4268 + $0x270] sm:$0xff]
        %v4374 = vld [vmem:[%s4268 + $0x278] sm:$0xf]
        %v4375 = vld [vmem:[%s4268 + $0x27c] sm:$0xff]
        %v4376 = vld [vmem:[%s4268 + $0x284] sm:$0xf]
        %v4377 = vld [vmem:[%s4268 + $0x288] sm:$0xff]
        %v4378 = vld [vmem:[%s4268 + $0x290] sm:$0xf]
        %v4379 = vld [vmem:[%s4268 + $0x294] sm:$0xff]
        %v4380 = vld [vmem:[%s4268 + $0x29c] sm:$0xf]
        %v4381 = vld [vmem:[%s4268 + $0x2a0] sm:$0xff]
        %v4382 = vld [vmem:[%s4268 + $0x2a8] sm:$0xf]
        %v4383 = vld [vmem:[%s4268 + $0x2ac] sm:$0xff]
        %v4384 = vld [vmem:[%s4268 + $0x2b4] sm:$0xf]
        %v4385 = vld [vmem:[%s4268 + $0x2b8] sm:$0xff]
        %v4386 = vld [vmem:[%s4268 + $0x2c0] sm:$0xf]
        %v4387 = vld [vmem:[%s4268 + $0x2c4] sm:$0xff]
        %v4388 = vld [vmem:[%s4268 + $0x2cc] sm:$0xf]
        %v4389 = vld [vmem:[%s4268 + $0x2d0] sm:$0xff]
        %v4390 = vld [vmem:[%s4268 + $0x2d8] sm:$0xf]
        %v4391 = vld [vmem:[%s4268 + $0x2dc] sm:$0xff]
        %v4392 = vld [vmem:[%s4268 + $0x2e4] sm:$0xf]
        %v4393 = vld [vmem:[%s4268 + $0x2e8] sm:$0xff]
        %v4394 = vld [vmem:[%s4268 + $0x2f0] sm:$0xf]
        %v4395 = vld [vmem:[%s4268 + $0x2f4] sm:$0xff]
        %v4396 = vld [vmem:[%s4268 + $0x2fc] sm:$0xf]
        %v4525 = vunpack.c.l.b16 %v4269
        %v4526 = vunpack.c.h.b16 %v4269
        %v4527 = vunpack.c.l.b16 %v4270
        %v4528 = vunpack.c.l.b16 %v4271
        %v4529 = vunpack.c.h.b16 %v4271
        %v4530 = vunpack.c.l.b16 %v4272
        %v4531 = vunpack.c.l.b16 %v4273
        %v4532 = vunpack.c.h.b16 %v4273
        %v4533 = vunpack.c.l.b16 %v4274
        %v4534 = vunpack.c.l.b16 %v4275
        %v4535 = vunpack.c.h.b16 %v4275
        %v4536 = vunpack.c.l.b16 %v4276
        %v4537 = vunpack.c.l.b16 %v4277
        %v4538 = vunpack.c.h.b16 %v4277
        %v4539 = vunpack.c.l.b16 %v4278
        %v4540 = vunpack.c.l.b16 %v4279
        %v4541 = vunpack.c.h.b16 %v4279
        %v4542 = vunpack.c.l.b16 %v4280
        %v4543 = vunpack.c.l.b16 %v4281
        %v4544 = vunpack.c.h.b16 %v4281
        %v4545 = vunpack.c.l.b16 %v4282
        %v4546 = vunpack.c.l.b16 %v4283
        %v4547 = vunpack.c.h.b16 %v4283
        %v4548 = vunpack.c.l.b16 %v4284
        %v4549 = vunpack.c.l.b16 %v4285
        %v4550 = vunpack.c.h.b16 %v4285
        %v4551 = vunpack.c.l.b16 %v4286
        %v4552 = vunpack.c.l.b16 %v4287
        %v4553 = vunpack.c.h.b16 %v4287
        %v4554 = vunpack.c.l.b16 %v4288
        %v4555 = vunpack.c.l.b16 %v4289
        %v4556 = vunpack.c.h.b16 %v4289
        %v4557 = vunpack.c.l.b16 %v4290
        %v4558 = vunpack.c.l.b16 %v4291
        %v4559 = vunpack.c.h.b16 %v4291
        %v4560 = vunpack.c.l.b16 %v4292
        %v4561 = vunpack.c.l.b16 %v4293
        %v4562 = vunpack.c.h.b16 %v4293
        %v4563 = vunpack.c.l.b16 %v4294
        %v4564 = vunpack.c.l.b16 %v4295
        %v4565 = vunpack.c.h.b16 %v4295
        %v4566 = vunpack.c.l.b16 %v4296
        %v4567 = vunpack.c.l.b16 %v4297
        %v4568 = vunpack.c.h.b16 %v4297
        %v4569 = vunpack.c.l.b16 %v4298
        %v4570 = vunpack.c.l.b16 %v4299
        %v4571 = vunpack.c.h.b16 %v4299
        %v4572 = vunpack.c.l.b16 %v4300
        %v4573 = vunpack.c.l.b16 %v4301
        %v4574 = vunpack.c.h.b16 %v4301
        %v4575 = vunpack.c.l.b16 %v4302
        %v4576 = vunpack.c.l.b16 %v4303
        %v4577 = vunpack.c.h.b16 %v4303
        %v4578 = vunpack.c.l.b16 %v4304
        %v4579 = vunpack.c.l.b16 %v4305
        %v4580 = vunpack.c.h.b16 %v4305
        %v4581 = vunpack.c.l.b16 %v4306
        %v4582 = vunpack.c.l.b16 %v4307
        %v4583 = vunpack.c.h.b16 %v4307
        %v4584 = vunpack.c.l.b16 %v4308
        %v4585 = vunpack.c.l.b16 %v4309
        %v4586 = vunpack.c.h.b16 %v4309
        %v4587 = vunpack.c.l.b16 %v4310
        %v4588 = vunpack.c.l.b16 %v4311
        %v4589 = vunpack.c.h.b16 %v4311
        %v4590 = vunpack.c.l.b16 %v4312
        %v4591 = vunpack.c.l.b16 %v4313
        %v4592 = vunpack.c.h.b16 %v4313
        %v4593 = vunpack.c.l.b16 %v4314
        %v4594 = vunpack.c.l.b16 %v4315
        %v4595 = vunpack.c.h.b16 %v4315
        %v4596 = vunpack.c.l.b16 %v4316
        %v4597 = vunpack.c.l.b16 %v4317
        %v4598 = vunpack.c.h.b16 %v4317
        %v4599 = vunpack.c.l.b16 %v4318
        %v4600 = vunpack.c.l.b16 %v4319
        %v4601 = vunpack.c.h.b16 %v4319
        %v4602 = vunpack.c.l.b16 %v4320
        %v4603 = vunpack.c.l.b16 %v4321
        %v4604 = vunpack.c.h.b16 %v4321
        %v4605 = vunpack.c.l.b16 %v4322
        %v4606 = vunpack.c.l.b16 %v4323
        %v4607 = vunpack.c.h.b16 %v4323
        %v4608 = vunpack.c.l.b16 %v4324
        %v4609 = vunpack.c.l.b16 %v4325
        %v4610 = vunpack.c.h.b16 %v4325
        %v4611 = vunpack.c.l.b16 %v4326
        %v4612 = vunpack.c.l.b16 %v4327
        %v4613 = vunpack.c.h.b16 %v4327
        %v4614 = vunpack.c.l.b16 %v4328
        %v4615 = vunpack.c.l.b16 %v4329
        %v4616 = vunpack.c.h.b16 %v4329
        %v4617 = vunpack.c.l.b16 %v4330
        %v4618 = vunpack.c.l.b16 %v4331
        %v4619 = vunpack.c.h.b16 %v4331
        %v4620 = vunpack.c.l.b16 %v4332
        %v4621 = vunpack.c.l.b16 %v4333
        %v4622 = vunpack.c.h.b16 %v4333
        %v4623 = vunpack.c.l.b16 %v4334
        %v4624 = vunpack.c.l.b16 %v4335
        %v4625 = vunpack.c.h.b16 %v4335
        %v4626 = vunpack.c.l.b16 %v4336
        %v4627 = vunpack.c.l.b16 %v4337
        %v4628 = vunpack.c.h.b16 %v4337
        %v4629 = vunpack.c.l.b16 %v4338
        %v4630 = vunpack.c.l.b16 %v4339
        %v4631 = vunpack.c.h.b16 %v4339
        %v4632 = vunpack.c.l.b16 %v4340
        %v4633 = vunpack.c.l.b16 %v4341
        %v4634 = vunpack.c.h.b16 %v4341
        %v4635 = vunpack.c.l.b16 %v4342
        %v4636 = vunpack.c.l.b16 %v4343
        %v4637 = vunpack.c.h.b16 %v4343
        %v4638 = vunpack.c.l.b16 %v4344
        %v4639 = vunpack.c.l.b16 %v4345
        %v4640 = vunpack.c.h.b16 %v4345
        %v4641 = vunpack.c.l.b16 %v4346
        %v4642 = vunpack.c.l.b16 %v4347
        %v4643 = vunpack.c.h.b16 %v4347
        %v4644 = vunpack.c.l.b16 %v4348
        %v4645 = vunpack.c.l.b16 %v4349
        %v4646 = vunpack.c.h.b16 %v4349
        %v4647 = vunpack.c.l.b16 %v4350
        %v4648 = vunpack.c.l.b16 %v4351
        %v4649 = vunpack.c.h.b16 %v4351
        %v4650 = vunpack.c.l.b16 %v4352
        %v4651 = vunpack.c.l.b16 %v4353
        %v4652 = vunpack.c.h.b16 %v4353
        %v4653 = vunpack.c.l.b16 %v4354
        %v4654 = vunpack.c.l.b16 %v4355
        %v4655 = vunpack.c.h.b16 %v4355
        %v4656 = vunpack.c.l.b16 %v4356
        %v4657 = vunpack.c.l.b16 %v4357
        %v4658 = vunpack.c.h.b16 %v4357
        %v4659 = vunpack.c.l.b16 %v4358
        %v4660 = vunpack.c.l.b16 %v4359
        %v4661 = vunpack.c.h.b16 %v4359
        %v4662 = vunpack.c.l.b16 %v4360
        %v4663 = vunpack.c.l.b16 %v4361
        %v4664 = vunpack.c.h.b16 %v4361
        %v4665 = vunpack.c.l.b16 %v4362
        %v4666 = vunpack.c.l.b16 %v4363
        %v4667 = vunpack.c.h.b16 %v4363
        %v4668 = vunpack.c.l.b16 %v4364
        %v4669 = vunpack.c.l.b16 %v4365
        %v4670 = vunpack.c.h.b16 %v4365
        %v4671 = vunpack.c.l.b16 %v4366
        %v4672 = vunpack.c.l.b16 %v4367
        %v4673 = vunpack.c.h.b16 %v4367
        %v4674 = vunpack.c.l.b16 %v4368
        %v4675 = vunpack.c.l.b16 %v4369
        %v4676 = vunpack.c.h.b16 %v4369
        %v4677 = vunpack.c.l.b16 %v4370
        %v4678 = vunpack.c.l.b16 %v4371
        %v4679 = vunpack.c.h.b16 %v4371
        %v4680 = vunpack.c.l.b16 %v4372
        %v4681 = vunpack.c.l.b16 %v4373
        %v4682 = vunpack.c.h.b16 %v4373
        %v4683 = vunpack.c.l.b16 %v4374
        %v4684 = vunpack.c.l.b16 %v4375
        %v4685 = vunpack.c.h.b16 %v4375
        %v4686 = vunpack.c.l.b16 %v4376
        %v4687 = vunpack.c.l.b16 %v4377
        %v4688 = vunpack.c.h.b16 %v4377
        %v4689 = vunpack.c.l.b16 %v4378
        %v4690 = vunpack.c.l.b16 %v4379
        %v4691 = vunpack.c.h.b16 %v4379
        %v4692 = vunpack.c.l.b16 %v4380
        %v4693 = vunpack.c.l.b16 %v4381
        %v4694 = vunpack.c.h.b16 %v4381
        %v4695 = vunpack.c.l.b16 %v4382
        %v4696 = vunpack.c.l.b16 %v4383
        %v4697 = vunpack.c.h.b16 %v4383
        %v4698 = vunpack.c.l.b16 %v4384
        %v4699 = vunpack.c.l.b16 %v4385
        %v4700 = vunpack.c.h.b16 %v4385
        %v4701 = vunpack.c.l.b16 %v4386
        %v4702 = vunpack.c.l.b16 %v4387
        %v4703 = vunpack.c.h.b16 %v4387
        %v4704 = vunpack.c.l.b16 %v4388
        %v4705 = vunpack.c.l.b16 %v4389
        %v4706 = vunpack.c.h.b16 %v4389
        %v4707 = vunpack.c.l.b16 %v4390
        %v4708 = vunpack.c.l.b16 %v4391
        %v4709 = vunpack.c.h.b16 %v4391
        %v4710 = vunpack.c.l.b16 %v4392
        %v4711 = vunpack.c.l.b16 %v4393
        %v4712 = vunpack.c.h.b16 %v4393
        %v4713 = vunpack.c.l.b16 %v4394
        %v4714 = vunpack.c.l.b16 %v4395
        %v4715 = vunpack.c.h.b16 %v4395
        %v4716 = vunpack.c.l.b16 %v4396
        %v4717 = vpack.c.b16 %v4528, %v4525
        %v4718 = vpack.c.b16 %v4529, %v4526
        %v4719 = vpack.c.b16 %v4530, %v4527
        %v4720 = vpack.c.b16 %v4534, %v4531
        %v4721 = vpack.c.b16 %v4535, %v4532
        %v4722 = vpack.c.b16 %v4536, %v4533
        %v4723 = vpack.c.b16 %v4540, %v4537
        %v4724 = vpack.c.b16 %v4541, %v4538
        %v4725 = vpack.c.b16 %v4542, %v4539
        %v4726 = vpack.c.b16 %v4546, %v4543
        %v4727 = vpack.c.b16 %v4547, %v4544
        %v4728 = vpack.c.b16 %v4548, %v4545
        %v4729 = vpack.c.b16 %v4552, %v4549
        %v4730 = vpack.c.b16 %v4553, %v4550
        %v4731 = vpack.c.b16 %v4554, %v4551
        %v4732 = vpack.c.b16 %v4558, %v4555
        %v4733 = vpack.c.b16 %v4559, %v4556
        %v4734 = vpack.c.b16 %v4560, %v4557
        %v4735 = vpack.c.b16 %v4564, %v4561
        %v4736 = vpack.c.b16 %v4565, %v4562
        %v4737 = vpack.c.b16 %v4566, %v4563
        %v4738 = vpack.c.b16 %v4570, %v4567
        %v4739 = vpack.c.b16 %v4571, %v4568
        %v4740 = vpack.c.b16 %v4572, %v4569
        %v4741 = vpack.c.b16 %v4576, %v4573
        %v4742 = vpack.c.b16 %v4577, %v4574
        %v4743 = vpack.c.b16 %v4578, %v4575
        %v4744 = vpack.c.b16 %v4582, %v4579
        %v4745 = vpack.c.b16 %v4583, %v4580
        %v4746 = vpack.c.b16 %v4584, %v4581
        %v4747 = vpack.c.b16 %v4588, %v4585
        %v4748 = vpack.c.b16 %v4589, %v4586
        %v4749 = vpack.c.b16 %v4590, %v4587
        %v4750 = vpack.c.b16 %v4594, %v4591
        %v4751 = vpack.c.b16 %v4595, %v4592
        %v4752 = vpack.c.b16 %v4596, %v4593
        %v4753 = vpack.c.b16 %v4600, %v4597
        %v4754 = vpack.c.b16 %v4601, %v4598
        %v4755 = vpack.c.b16 %v4602, %v4599
        %v4756 = vpack.c.b16 %v4606, %v4603
        %v4757 = vpack.c.b16 %v4607, %v4604
        %v4758 = vpack.c.b16 %v4608, %v4605
        %v4759 = vpack.c.b16 %v4612, %v4609
        %v4760 = vpack.c.b16 %v4613, %v4610
        %v4761 = vpack.c.b16 %v4614, %v4611
        %v4762 = vpack.c.b16 %v4618, %v4615
        %v4763 = vpack.c.b16 %v4619, %v4616
        %v4764 = vpack.c.b16 %v4620, %v4617
        %v4765 = vpack.c.b16 %v4624, %v4621
        %v4766 = vpack.c.b16 %v4625, %v4622
        %v4767 = vpack.c.b16 %v4626, %v4623
        %v4768 = vpack.c.b16 %v4630, %v4627
        %v4769 = vpack.c.b16 %v4631, %v4628
        %v4770 = vpack.c.b16 %v4632, %v4629
        %v4771 = vpack.c.b16 %v4636, %v4633
        %v4772 = vpack.c.b16 %v4637, %v4634
        %v4773 = vpack.c.b16 %v4638, %v4635
        %v4774 = vpack.c.b16 %v4642, %v4639
        %v4775 = vpack.c.b16 %v4643, %v4640
        %v4776 = vpack.c.b16 %v4644, %v4641
        %v4777 = vpack.c.b16 %v4648, %v4645
        %v4778 = vpack.c.b16 %v4649, %v4646
        %v4779 = vpack.c.b16 %v4650, %v4647
        %v4780 = vpack.c.b16 %v4654, %v4651
        %v4781 = vpack.c.b16 %v4655, %v4652
        %v4782 = vpack.c.b16 %v4656, %v4653
        %v4783 = vpack.c.b16 %v4660, %v4657
        %v4784 = vpack.c.b16 %v4661, %v4658
        %v4785 = vpack.c.b16 %v4662, %v4659
        %v4786 = vpack.c.b16 %v4666, %v4663
        %v4787 = vpack.c.b16 %v4667, %v4664
        %v4788 = vpack.c.b16 %v4668, %v4665
        %v4789 = vpack.c.b16 %v4672, %v4669
        %v4790 = vpack.c.b16 %v4673, %v4670
        %v4791 = vpack.c.b16 %v4674, %v4671
        %v4792 = vpack.c.b16 %v4678, %v4675
        %v4793 = vpack.c.b16 %v4679, %v4676
        %v4794 = vpack.c.b16 %v4680, %v4677
        %v4795 = vpack.c.b16 %v4684, %v4681
        %v4796 = vpack.c.b16 %v4685, %v4682
        %v4797 = vpack.c.b16 %v4686, %v4683
        %v4798 = vpack.c.b16 %v4690, %v4687
        %v4799 = vpack.c.b16 %v4691, %v4688
        %v4800 = vpack.c.b16 %v4692, %v4689
        %v4801 = vpack.c.b16 %v4696, %v4693
        %v4802 = vpack.c.b16 %v4697, %v4694
        %v4803 = vpack.c.b16 %v4698, %v4695
        %v4804 = vpack.c.b16 %v4702, %v4699
        %v4805 = vpack.c.b16 %v4703, %v4700
        %v4806 = vpack.c.b16 %v4704, %v4701
        %v4807 = vpack.c.b16 %v4708, %v4705
        %v4808 = vpack.c.b16 %v4709, %v4706
        %v4809 = vpack.c.b16 %v4710, %v4707
        %v4810 = vpack.c.b16 %v4714, %v4711
        %v4811 = vpack.c.b16 %v4715, %v4712
        %v4812 = vpack.c.b16 %v4716, %v4713
        %4909 = vmatpush.bf16.msra.mxu0 %v4738
        %4910 = vmatpush.bf16.msra.mxu0 %v4735
        %4911 = vmatpush.bf16.msra.mxu0 %v4732
        %4912 = vmatpush.bf16.msra.mxu0 %v4729
        %4913 = vmatpush.bf16.msra.mxu0 %v4726
        %4914 = vmatpush.bf16.msra.mxu0 %v4723
        %4915 = vmatpush.bf16.msra.mxu0 %v4720
        %4916 = vmatpush.bf16.msra.mxu0 %v4717
        %4917 = vmatmul.bf16.gmra.mxu0 %v1977
        %v4918 = vpop.f32.mrf.mxu0
        %v4919 = vadd.f32 0.0, %v4918
        %v4920 = vpop.f32.mrf.mxu0
        %4921 = vdwg.mxu0
        %4922 = vmatpush.bf16.msra.mxu0 %v4762
        %4923 = vmatpush.bf16.msra.mxu0 %v4759
        %4924 = vmatpush.bf16.msra.mxu0 %v4756
        %4925 = vmatpush.bf16.msra.mxu0 %v4753
        %4926 = vmatpush.bf16.msra.mxu0 %v4750
        %4927 = vmatpush.bf16.msra.mxu0 %v4747
        %4928 = vmatpush.bf16.msra.mxu0 %v4744
        %4929 = vmatpush.bf16.msra.mxu0 %v4741
        %4930 = vmatmul.bf16.gmra.mxu0 %v1984
        %v4931 = vpop.f32.mrf.mxu0
        %v4932 = vadd.f32 %v4919, %v4931
        %v4933 = vpop.f32.mrf.mxu0
        %4934 = vdwg.mxu0
        %4935 = vmatpush.bf16.msra.mxu0 %v4786
        %4936 = vmatpush.bf16.msra.mxu0 %v4783
        %4937 = vmatpush.bf16.msra.mxu0 %v4780
        %4938 = vmatpush.bf16.msra.mxu0 %v4777
        %4939 = vmatpush.bf16.msra.mxu0 %v4774
        %4940 = vmatpush.bf16.msra.mxu0 %v4771
        %4941 = vmatpush.bf16.msra.mxu0 %v4768
        %4942 = vmatpush.bf16.msra.mxu0 %v4765
        %4943 = vmatmul.bf16.gmra.mxu0 %v1991
        %v4944 = vpop.f32.mrf.mxu0
        %v4945 = vadd.f32 %v4932, %v4944
        %v4946 = vpop.f32.mrf.mxu0
        %4947 = vdwg.mxu0
        %4948 = vmatpush.bf16.msra.mxu0 %v4810
        %4949 = vmatpush.bf16.msra.mxu0 %v4807
        %4950 = vmatpush.bf16.msra.mxu0 %v4804
        %4951 = vmatpush.bf16.msra.mxu0 %v4801
        %4952 = vmatpush.bf16.msra.mxu0 %v4798
        %4953 = vmatpush.bf16.msra.mxu0 %v4795
        %4954 = vmatpush.bf16.msra.mxu0 %v4792
        %4955 = vmatpush.bf16.msra.mxu0 %v4789
        %4956 = vmatmul.bf16.gmra.mxu0 %v1998
        %v4957 = vpop.f32.mrf.mxu0
        %v4958 = vadd.f32 %v4945, %v4957
        %v4959 = vpop.f32.mrf.mxu0
        %4960 = vdwg.mxu0
        %4961 = vmatpush.bf16.msra.mxu0 %v4739
        %4962 = vmatpush.bf16.msra.mxu0 %v4736
        %4963 = vmatpush.bf16.msra.mxu0 %v4733
        %4964 = vmatpush.bf16.msra.mxu0 %v4730
        %4965 = vmatpush.bf16.msra.mxu0 %v4727
        %4966 = vmatpush.bf16.msra.mxu0 %v4724
        %4967 = vmatpush.bf16.msra.mxu0 %v4721
        %4968 = vmatpush.bf16.msra.mxu0 %v4718
        %4969 = vmatmul.bf16.gmra.mxu0 %v1977
        %v4970 = vpop.f32.mrf.mxu0
        %v4971 = vadd.f32 0.0, %v4970
        %v4972 = vpop.f32.mrf.mxu0
        %4973 = vdwg.mxu0
        %4974 = vmatpush.bf16.msra.mxu0 %v4763
        %4975 = vmatpush.bf16.msra.mxu0 %v4760
        %4976 = vmatpush.bf16.msra.mxu0 %v4757
        %4977 = vmatpush.bf16.msra.mxu0 %v4754
        %4978 = vmatpush.bf16.msra.mxu0 %v4751
        %4979 = vmatpush.bf16.msra.mxu0 %v4748
        %4980 = vmatpush.bf16.msra.mxu0 %v4745
        %4981 = vmatpush.bf16.msra.mxu0 %v4742
        %4982 = vmatmul.bf16.gmra.mxu0 %v1984
        %v4983 = vpop.f32.mrf.mxu0
        %v4984 = vadd.f32 %v4971, %v4983
        %v4985 = vpop.f32.mrf.mxu0
        %4986 = vdwg.mxu0
        %4987 = vmatpush.bf16.msra.mxu0 %v4787
        %4988 = vmatpush.bf16.msra.mxu0 %v4784
        %4989 = vmatpush.bf16.msra.mxu0 %v4781
        %4990 = vmatpush.bf16.msra.mxu0 %v4778
        %4991 = vmatpush.bf16.msra.mxu0 %v4775
        %4992 = vmatpush.bf16.msra.mxu0 %v4772
        %4993 = vmatpush.bf16.msra.mxu0 %v4769
        %4994 = vmatpush.bf16.msra.mxu0 %v4766
        %4995 = vmatmul.bf16.gmra.mxu0 %v1991
        %v4996 = vpop.f32.mrf.mxu0
        %v4997 = vadd.f32 %v4984, %v4996
        %v4998 = vpop.f32.mrf.mxu0
        %4999 = vdwg.mxu0
        %5000 = vmatpush.bf16.msra.mxu0 %v4811
        %5001 = vmatpush.bf16.msra.mxu0 %v4808
        %5002 = vmatpush.bf16.msra.mxu0 %v4805
        %5003 = vmatpush.bf16.msra.mxu0 %v4802
        %5004 = vmatpush.bf16.msra.mxu0 %v4799
        %5005 = vmatpush.bf16.msra.mxu0 %v4796
        %5006 = vmatpush.bf16.msra.mxu0 %v4793
        %5007 = vmatpush.bf16.msra.mxu0 %v4790
        %5008 = vmatmul.bf16.gmra.mxu0 %v1998
        %v5009 = vpop.f32.mrf.mxu0
        %v5010 = vadd.f32 %v4997, %v5009
        %v5011 = vpop.f32.mrf.mxu0
        %5012 = vdwg.mxu0
        %5013 = vmatpush.bf16.msra.mxu0 %v4740
        %5014 = vmatpush.bf16.msra.mxu0 %v4737
        %5015 = vmatpush.bf16.msra.mxu0 %v4734
        %5016 = vmatpush.bf16.msra.mxu0 %v4731
        %5017 = vmatpush.bf16.msra.mxu0 %v4728
        %5018 = vmatpush.bf16.msra.mxu0 %v4725
        %5019 = vmatpush.bf16.msra.mxu0 %v4722
        %5020 = vmatpush.bf16.msra.mxu0 %v4719
        %5021 = vmatmul.bf16.gmra.mxu0 %v1977
        %v5022 = vpop.f32.mrf.mxu0
        %v5023 = vadd.f32 0.0, %v5022
        %v5024 = vpop.f32.mrf.mxu0
        %5025 = vdwg.mxu0
        %5026 = vmatpush.bf16.msra.mxu0 %v4764
        %5027 = vmatpush.bf16.msra.mxu0 %v4761
        %5028 = vmatpush.bf16.msra.mxu0 %v4758
        %5029 = vmatpush.bf16.msra.mxu0 %v4755
        %5030 = vmatpush.bf16.msra.mxu0 %v4752
        %5031 = vmatpush.bf16.msra.mxu0 %v4749
        %5032 = vmatpush.bf16.msra.mxu0 %v4746
        %5033 = vmatpush.bf16.msra.mxu0 %v4743
        %5034 = vmatmul.bf16.gmra.mxu0 %v1984
        %v5035 = vpop.f32.mrf.mxu0
        %v5036 = vadd.f32 %v5023, %v5035
        %v5037 = vpop.f32.mrf.mxu0
        %5038 = vdwg.mxu0
        %5039 = vmatpush.bf16.msra.mxu0 %v4788
        %5040 = vmatpush.bf16.msra.mxu0 %v4785
        %5041 = vmatpush.bf16.msra.mxu0 %v4782
        %5042 = vmatpush.bf16.msra.mxu0 %v4779
        %5043 = vmatpush.bf16.msra.mxu0 %v4776
        %5044 = vmatpush.bf16.msra.mxu0 %v4773
        %5045 = vmatpush.bf16.msra.mxu0 %v4770
        %5046 = vmatpush.bf16.msra.mxu0 %v4767
        %5047 = vmatmul.bf16.gmra.mxu0 %v1991
        %v5048 = vpop.f32.mrf.mxu0
        %v5049 = vadd.f32 %v5036, %v5048
        %v5050 = vpop.f32.mrf.mxu0
        %5051 = vdwg.mxu0
        %5052 = vmatpush.bf16.msra.mxu0 %v4812
        %5053 = vmatpush.bf16.msra.mxu0 %v4809
        %5054 = vmatpush.bf16.msra.mxu0 %v4806
        %5055 = vmatpush.bf16.msra.mxu0 %v4803
        %5056 = vmatpush.bf16.msra.mxu0 %v4800
        %5057 = vmatpush.bf16.msra.mxu0 %v4797
        %5058 = vmatpush.bf16.msra.mxu0 %v4794
        %5059 = vmatpush.bf16.msra.mxu0 %v4791
        %5060 = vmatmul.bf16.gmra.mxu0 %v1998
        %v5061 = vpop.f32.mrf.mxu0
        %v5062 = vadd.f32 %v5049, %v5061
        %v5063 = vpop.f32.mrf.mxu0
        %5064 = vdwg.mxu0
        %v5065 = vadd.f32 %v4161, %v4958
        %v5066 = vadd.f32 %v4213, %v5010
        %v5067 = vadd.f32 %v4265, %v5062
        %v5068 = vmax.f32 %v2671, %v5065
        %v5069 = vmax.f32 %v2672, %v5066
        %v5070 = vmax.f32 %v2673, %v5067
        %5071 = vmatpush.bf16.msra.mxu0 %v823
        %5072 = vmatpush.bf16.msra.mxu0 %v820
        %5073 = vmatpush.bf16.msra.mxu0 %v817
        %5074 = vmatpush.bf16.msra.mxu0 %v814
        %5075 = vmatpush.bf16.msra.mxu0 %v811
        %5076 = vmatpush.bf16.msra.mxu0 %v808
        %5077 = vmatpush.bf16.msra.mxu0 %v805
        %5078 = vmatpush.bf16.msra.mxu0 %v802
        %5079 = vmatmul.bf16.gmra.mxu0 %v1977
        %v5080 = vpop.f32.mrf.mxu0
        %v5081 = vadd.f32 0.0, %v5080
        %v5082 = vpop.f32.mrf.mxu0
        %5083 = vdwg.mxu0
        %5084 = vmatpush.bf16.msra.mxu0 %v847
        %5085 = vmatpush.bf16.msra.mxu0 %v844
        %5086 = vmatpush.bf16.msra.mxu0 %v841
        %5087 = vmatpush.bf16.msra.mxu0 %v838
        %5088 = vmatpush.bf16.msra.mxu0 %v835
        %5089 = vmatpush.bf16.msra.mxu0 %v832
        %5090 = vmatpush.bf16.msra.mxu0 %v829
        %5091 = vmatpush.bf16.msra.mxu0 %v826
        %5092 = vmatmul.bf16.gmra.mxu0 %v1984
        %v5093 = vpop.f32.mrf.mxu0
        %v5094 = vadd.f32 %v5081, %v5093
        %v5095 = vpop.f32.mrf.mxu0
        %5096 = vdwg.mxu0
        %5097 = vmatpush.bf16.msra.mxu0 %v871
        %5098 = vmatpush.bf16.msra.mxu0 %v868
        %5099 = vmatpush.bf16.msra.mxu0 %v865
        %5100 = vmatpush.bf16.msra.mxu0 %v862
        %5101 = vmatpush.bf16.msra.mxu0 %v859
        %5102 = vmatpush.bf16.msra.mxu0 %v856
        %5103 = vmatpush.bf16.msra.mxu0 %v853
        %5104 = vmatpush.bf16.msra.mxu0 %v850
        %5105 = vmatmul.bf16.gmra.mxu0 %v1991
        %v5106 = vpop.f32.mrf.mxu0
        %v5107 = vadd.f32 %v5094, %v5106
        %v5108 = vpop.f32.mrf.mxu0
        %5109 = vdwg.mxu0
        %5110 = vmatpush.bf16.msra.mxu0 %v895
        %5111 = vmatpush.bf16.msra.mxu0 %v892
        %5112 = vmatpush.bf16.msra.mxu0 %v889
        %5113 = vmatpush.bf16.msra.mxu0 %v886
        %5114 = vmatpush.bf16.msra.mxu0 %v883
        %5115 = vmatpush.bf16.msra.mxu0 %v880
        %5116 = vmatpush.bf16.msra.mxu0 %v877
        %5117 = vmatpush.bf16.msra.mxu0 %v874
        %5118 = vmatmul.bf16.gmra.mxu0 %v1998
        %v5119 = vpop.f32.mrf.mxu0
        %v5120 = vadd.f32 %v5107, %v5119
        %v5121 = vpop.f32.mrf.mxu0
        %5122 = vdwg.mxu0
        %5123 = vmatpush.bf16.msra.mxu0 %v824
        %5124 = vmatpush.bf16.msra.mxu0 %v821
        %5125 = vmatpush.bf16.msra.mxu0 %v818
        %5126 = vmatpush.bf16.msra.mxu0 %v815
        %5127 = vmatpush.bf16.msra.mxu0 %v812
        %5128 = vmatpush.bf16.msra.mxu0 %v809
        %5129 = vmatpush.bf16.msra.mxu0 %v806
        %5130 = vmatpush.bf16.msra.mxu0 %v803
        %5131 = vmatmul.bf16.gmra.mxu0 %v1977
        %v5132 = vpop.f32.mrf.mxu0
        %v5133 = vadd.f32 0.0, %v5132
        %v5134 = vpop.f32.mrf.mxu0
        %5135 = vdwg.mxu0
        %5136 = vmatpush.bf16.msra.mxu0 %v848
        %5137 = vmatpush.bf16.msra.mxu0 %v845
        %5138 = vmatpush.bf16.msra.mxu0 %v842
        %5139 = vmatpush.bf16.msra.mxu0 %v839
        %5140 = vmatpush.bf16.msra.mxu0 %v836
        %5141 = vmatpush.bf16.msra.mxu0 %v833
        %5142 = vmatpush.bf16.msra.mxu0 %v830
        %5143 = vmatpush.bf16.msra.mxu0 %v827
        %5144 = vmatmul.bf16.gmra.mxu0 %v1984
        %v5145 = vpop.f32.mrf.mxu0
        %v5146 = vadd.f32 %v5133, %v5145
        %v5147 = vpop.f32.mrf.mxu0
        %5148 = vdwg.mxu0
        %5149 = vmatpush.bf16.msra.mxu0 %v872
        %5150 = vmatpush.bf16.msra.mxu0 %v869
        %5151 = vmatpush.bf16.msra.mxu0 %v866
        %5152 = vmatpush.bf16.msra.mxu0 %v863
        %5153 = vmatpush.bf16.msra.mxu0 %v860
        %5154 = vmatpush.bf16.msra.mxu0 %v857
        %5155 = vmatpush.bf16.msra.mxu0 %v854
        %5156 = vmatpush.bf16.msra.mxu0 %v851
        %5157 = vmatmul.bf16.gmra.mxu0 %v1991
        %v5158 = vpop.f32.mrf.mxu0
        %v5159 = vadd.f32 %v5146, %v5158
        %v5160 = vpop.f32.mrf.mxu0
        %5161 = vdwg.mxu0
        %5162 = vmatpush.bf16.msra.mxu0 %v896
        %5163 = vmatpush.bf16.msra.mxu0 %v893
        %5164 = vmatpush.bf16.msra.mxu0 %v890
        %5165 = vmatpush.bf16.msra.mxu0 %v887
        %5166 = vmatpush.bf16.msra.mxu0 %v884
        %5167 = vmatpush.bf16.msra.mxu0 %v881
        %5168 = vmatpush.bf16.msra.mxu0 %v878
        %5169 = vmatpush.bf16.msra.mxu0 %v875
        %5170 = vmatmul.bf16.gmra.mxu0 %v1998
        %v5171 = vpop.f32.mrf.mxu0
        %v5172 = vadd.f32 %v5159, %v5171
        %v5173 = vpop.f32.mrf.mxu0
        %5174 = vdwg.mxu0
        %5175 = vmatpush.bf16.msra.mxu0 %v825
        %5176 = vmatpush.bf16.msra.mxu0 %v822
        %5177 = vmatpush.bf16.msra.mxu0 %v819
        %5178 = vmatpush.bf16.msra.mxu0 %v816
        %5179 = vmatpush.bf16.msra.mxu0 %v813
        %5180 = vmatpush.bf16.msra.mxu0 %v810
        %5181 = vmatpush.bf16.msra.mxu0 %v807
        %5182 = vmatpush.bf16.msra.mxu0 %v804
        %5183 = vmatmul.bf16.gmra.mxu0 %v1977
        %v5184 = vpop.f32.mrf.mxu0
        %v5185 = vadd.f32 0.0, %v5184
        %v5186 = vpop.f32.mrf.mxu0
        %5187 = vdwg.mxu0
        %5188 = vmatpush.bf16.msra.mxu0 %v849
        %5189 = vmatpush.bf16.msra.mxu0 %v846
        %5190 = vmatpush.bf16.msra.mxu0 %v843
        %5191 = vmatpush.bf16.msra.mxu0 %v840
        %5192 = vmatpush.bf16.msra.mxu0 %v837
        %5193 = vmatpush.bf16.msra.mxu0 %v834
        %5194 = vmatpush.bf16.msra.mxu0 %v831
        %5195 = vmatpush.bf16.msra.mxu0 %v828
        %5196 = vmatmul.bf16.gmra.mxu0 %v1984
        %v5197 = vpop.f32.mrf.mxu0
        %v5198 = vadd.f32 %v5185, %v5197
        %v5199 = vpop.f32.mrf.mxu0
        %5200 = vdwg.mxu0
        %5201 = vmatpush.bf16.msra.mxu0 %v873
        %5202 = vmatpush.bf16.msra.mxu0 %v870
        %5203 = vmatpush.bf16.msra.mxu0 %v867
        %5204 = vmatpush.bf16.msra.mxu0 %v864
        %5205 = vmatpush.bf16.msra.mxu0 %v861
        %5206 = vmatpush.bf16.msra.mxu0 %v858
        %5207 = vmatpush.bf16.msra.mxu0 %v855
        %5208 = vmatpush.bf16.msra.mxu0 %v852
        %5209 = vmatmul.bf16.gmra.mxu0 %v1991
        %v5210 = vpop.f32.mrf.mxu0
        %v5211 = vadd.f32 %v5198, %v5210
        %v5212 = vpop.f32.mrf.mxu0
        %5213 = vdwg.mxu0
        %5214 = vmatpush.bf16.msra.mxu0 %v897
        %5215 = vmatpush.bf16.msra.mxu0 %v894
        %5216 = vmatpush.bf16.msra.mxu0 %v891
        %5217 = vmatpush.bf16.msra.mxu0 %v888
        %5218 = vmatpush.bf16.msra.mxu0 %v885
        %5219 = vmatpush.bf16.msra.mxu0 %v882
        %5220 = vmatpush.bf16.msra.mxu0 %v879
        %5221 = vmatpush.bf16.msra.mxu0 %v876
        %5222 = vmatmul.bf16.gmra.mxu0 %v1998
        %v5223 = vpop.f32.mrf.mxu0
        %v5224 = vadd.f32 %v5211, %v5223
        %v5225 = vpop.f32.mrf.mxu0
        %5226 = vdwg.mxu0
        %5227 = vmatpush.bf16.msra.mxu0 %v1505
        %5228 = vmatpush.bf16.msra.mxu0 %v1502
        %5229 = vmatpush.bf16.msra.mxu0 %v1499
        %5230 = vmatpush.bf16.msra.mxu0 %v1496
        %5231 = vmatpush.bf16.msra.mxu0 %v1493
        %5232 = vmatpush.bf16.msra.mxu0 %v1490
        %5233 = vmatpush.bf16.msra.mxu0 %v1487
        %5234 = vmatpush.bf16.msra.mxu0 %v1484
        %5235 = vmatmul.bf16.gmra.mxu0 %v474
        %v5236 = vpop.f32.mrf.mxu0
        %v5237 = vadd.f32 %v5120, %v5236
        %v5238 = vpop.f32.mrf.mxu0
        %5239 = vdwg.mxu0
        %5240 = vmatpush.bf16.msra.mxu0 %v1529
        %5241 = vmatpush.bf16.msra.mxu0 %v1526
        %5242 = vmatpush.bf16.msra.mxu0 %v1523
        %5243 = vmatpush.bf16.msra.mxu0 %v1520
        %5244 = vmatpush.bf16.msra.mxu0 %v1517
        %5245 = vmatpush.bf16.msra.mxu0 %v1514
        %5246 = vmatpush.bf16.msra.mxu0 %v1511
        %5247 = vmatpush.bf16.msra.mxu0 %v1508
        %5248 = vmatmul.bf16.gmra.mxu0 %v475
        %v5249 = vpop.f32.mrf.mxu0
        %v5250 = vadd.f32 %v5237, %v5249
        %v5251 = vpop.f32.mrf.mxu0
        %5252 = vdwg.mxu0
        %5253 = vmatpush.bf16.msra.mxu0 %v1553
        %5254 = vmatpush.bf16.msra.mxu0 %v1550
        %5255 = vmatpush.bf16.msra.mxu0 %v1547
        %5256 = vmatpush.bf16.msra.mxu0 %v1544
        %5257 = vmatpush.bf16.msra.mxu0 %v1541
        %5258 = vmatpush.bf16.msra.mxu0 %v1538
        %5259 = vmatpush.bf16.msra.mxu0 %v1535
        %5260 = vmatpush.bf16.msra.mxu0 %v1532
        %5261 = vmatmul.bf16.gmra.mxu0 %v476
        %v5262 = vpop.f32.mrf.mxu0
        %v5263 = vadd.f32 %v5250, %v5262
        %v5264 = vpop.f32.mrf.mxu0
        %5265 = vdwg.mxu0
        %5266 = vmatpush.bf16.msra.mxu0 %v1577
        %5267 = vmatpush.bf16.msra.mxu0 %v1574
        %5268 = vmatpush.bf16.msra.mxu0 %v1571
        %5269 = vmatpush.bf16.msra.mxu0 %v1568
        %5270 = vmatpush.bf16.msra.mxu0 %v1565
        %5271 = vmatpush.bf16.msra.mxu0 %v1562
        %5272 = vmatpush.bf16.msra.mxu0 %v1559
        %5273 = vmatpush.bf16.msra.mxu0 %v1556
        %5274 = vmatmul.bf16.gmra.mxu0 %v477
        %v5275 = vpop.f32.mrf.mxu0
        %v5276 = vadd.f32 %v5263, %v5275
        %v5277 = vpop.f32.mrf.mxu0
        %5278 = vdwg.mxu0
        %5279 = vmatpush.bf16.msra.mxu0 %v1506
        %5280 = vmatpush.bf16.msra.mxu0 %v1503
        %5281 = vmatpush.bf16.msra.mxu0 %v1500
        %5282 = vmatpush.bf16.msra.mxu0 %v1497
        %5283 = vmatpush.bf16.msra.mxu0 %v1494
        %5284 = vmatpush.bf16.msra.mxu0 %v1491
        %5285 = vmatpush.bf16.msra.mxu0 %v1488
        %5286 = vmatpush.bf16.msra.mxu0 %v1485
        %5287 = vmatmul.bf16.gmra.mxu0 %v474
        %v5288 = vpop.f32.mrf.mxu0
        %v5289 = vadd.f32 %v5172, %v5288
        %v5290 = vpop.f32.mrf.mxu0
        %5291 = vdwg.mxu0
        %5292 = vmatpush.bf16.msra.mxu0 %v1530
        %5293 = vmatpush.bf16.msra.mxu0 %v1527
        %5294 = vmatpush.bf16.msra.mxu0 %v1524
        %5295 = vmatpush.bf16.msra.mxu0 %v1521
        %5296 = vmatpush.bf16.msra.mxu0 %v1518
        %5297 = vmatpush.bf16.msra.mxu0 %v1515
        %5298 = vmatpush.bf16.msra.mxu0 %v1512
        %5299 = vmatpush.bf16.msra.mxu0 %v1509
        %5300 = vmatmul.bf16.gmra.mxu0 %v475
        %v5301 = vpop.f32.mrf.mxu0
        %v5302 = vadd.f32 %v5289, %v5301
        %v5303 = vpop.f32.mrf.mxu0
        %5304 = vdwg.mxu0
        %5305 = vmatpush.bf16.msra.mxu0 %v1554
        %5306 = vmatpush.bf16.msra.mxu0 %v1551
        %5307 = vmatpush.bf16.msra.mxu0 %v1548
        %5308 = vmatpush.bf16.msra.mxu0 %v1545
        %5309 = vmatpush.bf16.msra.mxu0 %v1542
        %5310 = vmatpush.bf16.msra.mxu0 %v1539
        %5311 = vmatpush.bf16.msra.mxu0 %v1536
        %5312 = vmatpush.bf16.msra.mxu0 %v1533
        %5313 = vmatmul.bf16.gmra.mxu0 %v476
        %v5314 = vpop.f32.mrf.mxu0
        %v5315 = vadd.f32 %v5302, %v5314
        %v5316 = vpop.f32.mrf.mxu0
        %5317 = vdwg.mxu0
        %5318 = vmatpush.bf16.msra.mxu0 %v1578
        %5319 = vmatpush.bf16.msra.mxu0 %v1575
        %5320 = vmatpush.bf16.msra.mxu0 %v1572
        %5321 = vmatpush.bf16.msra.mxu0 %v1569
        %5322 = vmatpush.bf16.msra.mxu0 %v1566
        %5323 = vmatpush.bf16.msra.mxu0 %v1563
        %5324 = vmatpush.bf16.msra.mxu0 %v1560
        %5325 = vmatpush.bf16.msra.mxu0 %v1557
        %5326 = vmatmul.bf16.gmra.mxu0 %v477
        %v5327 = vpop.f32.mrf.mxu0
        %v5328 = vadd.f32 %v5315, %v5327
        %v5329 = vpop.f32.mrf.mxu0
        %5330 = vdwg.mxu0
        %5331 = vmatpush.bf16.msra.mxu0 %v1507
        %5332 = vmatpush.bf16.msra.mxu0 %v1504
        %5333 = vmatpush.bf16.msra.mxu0 %v1501
        %5334 = vmatpush.bf16.msra.mxu0 %v1498
        %5335 = vmatpush.bf16.msra.mxu0 %v1495
        %5336 = vmatpush.bf16.msra.mxu0 %v1492
        %5337 = vmatpush.bf16.msra.mxu0 %v1489
        %5338 = vmatpush.bf16.msra.mxu0 %v1486
        %5339 = vmatmul.bf16.gmra.mxu0 %v474
        %v5340 = vpop.f32.mrf.mxu0
        %v5341 = vadd.f32 %v5224, %v5340
        %v5342 = vpop.f32.mrf.mxu0
        %5343 = vdwg.mxu0
        %5344 = vmatpush.bf16.msra.mxu0 %v1531
        %5345 = vmatpush.bf16.msra.mxu0 %v1528
        %5346 = vmatpush.bf16.msra.mxu0 %v1525
        %5347 = vmatpush.bf16.msra.mxu0 %v1522
        %5348 = vmatpush.bf16.msra.mxu0 %v1519
        %5349 = vmatpush.bf16.msra.mxu0 %v1516
        %5350 = vmatpush.bf16.msra.mxu0 %v1513
        %5351 = vmatpush.bf16.msra.mxu0 %v1510
        %5352 = vmatmul.bf16.gmra.mxu0 %v475
        %v5353 = vpop.f32.mrf.mxu0
        %v5354 = vadd.f32 %v5341, %v5353
        %v5355 = vpop.f32.mrf.mxu0
        %5356 = vdwg.mxu0
        %5357 = vmatpush.bf16.msra.mxu0 %v1555
        %5358 = vmatpush.bf16.msra.mxu0 %v1552
        %5359 = vmatpush.bf16.msra.mxu0 %v1549
        %5360 = vmatpush.bf16.msra.mxu0 %v1546
        %5361 = vmatpush.bf16.msra.mxu0 %v1543
        %5362 = vmatpush.bf16.msra.mxu0 %v1540
        %5363 = vmatpush.bf16.msra.mxu0 %v1537
        %5364 = vmatpush.bf16.msra.mxu0 %v1534
        %5365 = vmatmul.bf16.gmra.mxu0 %v476
        %v5366 = vpop.f32.mrf.mxu0
        %v5367 = vadd.f32 %v5354, %v5366
        %v5368 = vpop.f32.mrf.mxu0
        %5369 = vdwg.mxu0
        %5370 = vmatpush.bf16.msra.mxu0 %v1579
        %5371 = vmatpush.bf16.msra.mxu0 %v1576
        %5372 = vmatpush.bf16.msra.mxu0 %v1573
        %5373 = vmatpush.bf16.msra.mxu0 %v1570
        %5374 = vmatpush.bf16.msra.mxu0 %v1567
        %5375 = vmatpush.bf16.msra.mxu0 %v1564
        %5376 = vmatpush.bf16.msra.mxu0 %v1561
        %5377 = vmatpush.bf16.msra.mxu0 %v1558
        %5378 = vmatmul.bf16.gmra.mxu0 %v477
        %v5379 = vpop.f32.mrf.mxu0
        %v5380 = vadd.f32 %v5367, %v5379
        %v5381 = vpop.f32.mrf.mxu0
        %5382 = vdwg.mxu0
        %v5385 = vunpack.c.l.b16 %v209
        %v5386 = vunpack.c.h.b16 %v209
        %v5387 = vunpack.c.l.b16 %v210
        %v5388 = vunpack.c.h.b16 %v210
        %v5389 = vpack.c.b16 %v5385, %v5385
        %v5390 = vpack.c.b16 %v5386, %v5386
        %v5391 = vpack.c.b16 %v5387, %v5387
        %v5392 = vpack.c.b16 %v5388, %v5388
        %v5394 = vshrl.u32 %v5389, 16
        %v5396 = vshll.u32 %v5389, 16
        %v5398 = vrot.slane %v5396, 1
        %v5399 = vor.u32 %v5394, %v5398
        %v5401 = vshrl.u32 %v5390, 16
        %v5403 = vshll.u32 %v5390, 16
        %v5405 = vrot.slane %v5403, 1
        %v5406 = vor.u32 %v5401, %v5405
        %v5408 = vshrl.u32 %v5391, 16
        %v5410 = vshll.u32 %v5391, 16
        %v5412 = vrot.slane %v5410, 1
        %v5413 = vor.u32 %v5408, %v5412
        %v5415 = vshrl.u32 %v5392, 16
        %v5417 = vshll.u32 %v5392, 16
        %v5419 = vrot.slane %v5417, 1
        %v5420 = vor.u32 %v5415, %v5419
        %5425 = vmatpush.bf16.msra.mxu0 %v2344
        %5426 = vmatpush.bf16.msra.mxu0 %v2341
        %5427 = vmatpush.bf16.msra.mxu0 %v2338
        %5428 = vmatpush.bf16.msra.mxu0 %v2335
        %5429 = vmatpush.bf16.msra.mxu0 %v2332
        %5430 = vmatpush.bf16.msra.mxu0 %v2329
        %5431 = vmatpush.bf16.msra.mxu0 %v2326
        %5432 = vmatpush.bf16.msra.mxu0 %v2323
        %5433 = vmatmul.bf16.gmra.mxu0 %v5399
        %v5434 = vpop.f32.mrf.mxu0
        %v5435 = vadd.f32 0.0, %v5434
        %v5436 = vpop.f32.mrf.mxu0
        %5437 = vdwg.mxu0
        %5438 = vmatpush.bf16.msra.mxu0 %v2368
        %5439 = vmatpush.bf16.msra.mxu0 %v2365
        %5440 = vmatpush.bf16.msra.mxu0 %v2362
        %5441 = vmatpush.bf16.msra.mxu0 %v2359
        %5442 = vmatpush.bf16.msra.mxu0 %v2356
        %5443 = vmatpush.bf16.msra.mxu0 %v2353
        %5444 = vmatpush.bf16.msra.mxu0 %v2350
        %5445 = vmatpush.bf16.msra.mxu0 %v2347
        %5446 = vmatmul.bf16.gmra.mxu0 %v5406
        %v5447 = vpop.f32.mrf.mxu0
        %v5448 = vadd.f32 %v5435, %v5447
        %v5449 = vpop.f32.mrf.mxu0
        %5450 = vdwg.mxu0
        %5451 = vmatpush.bf16.msra.mxu0 %v2392
        %5452 = vmatpush.bf16.msra.mxu0 %v2389
        %5453 = vmatpush.bf16.msra.mxu0 %v2386
        %5454 = vmatpush.bf16.msra.mxu0 %v2383
        %5455 = vmatpush.bf16.msra.mxu0 %v2380
        %5456 = vmatpush.bf16.msra.mxu0 %v2377
        %5457 = vmatpush.bf16.msra.mxu0 %v2374
        %5458 = vmatpush.bf16.msra.mxu0 %v2371
        %5459 = vmatmul.bf16.gmra.mxu0 %v5413
        %v5460 = vpop.f32.mrf.mxu0
        %v5461 = vadd.f32 %v5448, %v5460
        %v5462 = vpop.f32.mrf.mxu0
        %5463 = vdwg.mxu0
        %5464 = vmatpush.bf16.msra.mxu0 %v2416
        %5465 = vmatpush.bf16.msra.mxu0 %v2413
        %5466 = vmatpush.bf16.msra.mxu0 %v2410
        %5467 = vmatpush.bf16.msra.mxu0 %v2407
        %5468 = vmatpush.bf16.msra.mxu0 %v2404
        %5469 = vmatpush.bf16.msra.mxu0 %v2401
        %5470 = vmatpush.bf16.msra.mxu0 %v2398
        %5471 = vmatpush.bf16.msra.mxu0 %v2395
        %5472 = vmatmul.bf16.gmra.mxu0 %v5420
        %v5473 = vpop.f32.mrf.mxu0
        %v5474 = vadd.f32 %v5461, %v5473
        %v5475 = vpop.f32.mrf.mxu0
        %5476 = vdwg.mxu0
        %5477 = vmatpush.bf16.msra.mxu0 %v2345
        %5478 = vmatpush.bf16.msra.mxu0 %v2342
        %5479 = vmatpush.bf16.msra.mxu0 %v2339
        %5480 = vmatpush.bf16.msra.mxu0 %v2336
        %5481 = vmatpush.bf16.msra.mxu0 %v2333
        %5482 = vmatpush.bf16.msra.mxu0 %v2330
        %5483 = vmatpush.bf16.msra.mxu0 %v2327
        %5484 = vmatpush.bf16.msra.mxu0 %v2324
        %5485 = vmatmul.bf16.gmra.mxu0 %v5399
        %v5486 = vpop.f32.mrf.mxu0
        %v5487 = vadd.f32 0.0, %v5486
        %v5488 = vpop.f32.mrf.mxu0
        %5489 = vdwg.mxu0
        %5490 = vmatpush.bf16.msra.mxu0 %v2369
        %5491 = vmatpush.bf16.msra.mxu0 %v2366
        %5492 = vmatpush.bf16.msra.mxu0 %v2363
        %5493 = vmatpush.bf16.msra.mxu0 %v2360
        %5494 = vmatpush.bf16.msra.mxu0 %v2357
        %5495 = vmatpush.bf16.msra.mxu0 %v2354
        %5496 = vmatpush.bf16.msra.mxu0 %v2351
        %5497 = vmatpush.bf16.msra.mxu0 %v2348
        %5498 = vmatmul.bf16.gmra.mxu0 %v5406
        %v5499 = vpop.f32.mrf.mxu0
        %v5500 = vadd.f32 %v5487, %v5499
        %v5501 = vpop.f32.mrf.mxu0
        %5502 = vdwg.mxu0
        %5503 = vmatpush.bf16.msra.mxu0 %v2393
        %5504 = vmatpush.bf16.msra.mxu0 %v2390
        %5505 = vmatpush.bf16.msra.mxu0 %v2387
        %5506 = vmatpush.bf16.msra.mxu0 %v2384
        %5507 = vmatpush.bf16.msra.mxu0 %v2381
        %5508 = vmatpush.bf16.msra.mxu0 %v2378
        %5509 = vmatpush.bf16.msra.mxu0 %v2375
        %5510 = vmatpush.bf16.msra.mxu0 %v2372
        %5511 = vmatmul.bf16.gmra.mxu0 %v5413
        %v5512 = vpop.f32.mrf.mxu0
        %v5513 = vadd.f32 %v5500, %v5512
        %v5514 = vpop.f32.mrf.mxu0
        %5515 = vdwg.mxu0
        %5516 = vmatpush.bf16.msra.mxu0 %v2417
        %5517 = vmatpush.bf16.msra.mxu0 %v2414
        %5518 = vmatpush.bf16.msra.mxu0 %v2411
        %5519 = vmatpush.bf16.msra.mxu0 %v2408
        %5520 = vmatpush.bf16.msra.mxu0 %v2405
        %5521 = vmatpush.bf16.msra.mxu0 %v2402
        %5522 = vmatpush.bf16.msra.mxu0 %v2399
        %5523 = vmatpush.bf16.msra.mxu0 %v2396
        %5524 = vmatmul.bf16.gmra.mxu0 %v5420
        %v5525 = vpop.f32.mrf.mxu0
        %v5526 = vadd.f32 %v5513, %v5525
        %v5527 = vpop.f32.mrf.mxu0
        %5528 = vdwg.mxu0
        %5529 = vmatpush.bf16.msra.mxu0 %v2346
        %5530 = vmatpush.bf16.msra.mxu0 %v2343
        %5531 = vmatpush.bf16.msra.mxu0 %v2340
        %5532 = vmatpush.bf16.msra.mxu0 %v2337
        %5533 = vmatpush.bf16.msra.mxu0 %v2334
        %5534 = vmatpush.bf16.msra.mxu0 %v2331
        %5535 = vmatpush.bf16.msra.mxu0 %v2328
        %5536 = vmatpush.bf16.msra.mxu0 %v2325
        %5537 = vmatmul.bf16.gmra.mxu0 %v5399
        %v5538 = vpop.f32.mrf.mxu0
        %v5539 = vadd.f32 0.0, %v5538
        %v5540 = vpop.f32.mrf.mxu0
        %5541 = vdwg.mxu0
        %5542 = vmatpush.bf16.msra.mxu0 %v2370
        %5543 = vmatpush.bf16.msra.mxu0 %v2367
        %5544 = vmatpush.bf16.msra.mxu0 %v2364
        %5545 = vmatpush.bf16.msra.mxu0 %v2361
        %5546 = vmatpush.bf16.msra.mxu0 %v2358
        %5547 = vmatpush.bf16.msra.mxu0 %v2355
        %5548 = vmatpush.bf16.msra.mxu0 %v2352
        %5549 = vmatpush.bf16.msra.mxu0 %v2349
        %5550 = vmatmul.bf16.gmra.mxu0 %v5406
        %v5551 = vpop.f32.mrf.mxu0
        %v5552 = vadd.f32 %v5539, %v5551
        %v5553 = vpop.f32.mrf.mxu0
        %5554 = vdwg.mxu0
        %5555 = vmatpush.bf16.msra.mxu0 %v2394
        %5556 = vmatpush.bf16.msra.mxu0 %v2391
        %5557 = vmatpush.bf16.msra.mxu0 %v2388
        %5558 = vmatpush.bf16.msra.mxu0 %v2385
        %5559 = vmatpush.bf16.msra.mxu0 %v2382
        %5560 = vmatpush.bf16.msra.mxu0 %v2379
        %5561 = vmatpush.bf16.msra.mxu0 %v2376
        %5562 = vmatpush.bf16.msra.mxu0 %v2373
        %5563 = vmatmul.bf16.gmra.mxu0 %v5413
        %v5564 = vpop.f32.mrf.mxu0
        %v5565 = vadd.f32 %v5552, %v5564
        %v5566 = vpop.f32.mrf.mxu0
        %5567 = vdwg.mxu0
        %5568 = vmatpush.bf16.msra.mxu0 %v2418
        %5569 = vmatpush.bf16.msra.mxu0 %v2415
        %5570 = vmatpush.bf16.msra.mxu0 %v2412
        %5571 = vmatpush.bf16.msra.mxu0 %v2409
        %5572 = vmatpush.bf16.msra.mxu0 %v2406
        %5573 = vmatpush.bf16.msra.mxu0 %v2403
        %5574 = vmatpush.bf16.msra.mxu0 %v2400
        %5575 = vmatpush.bf16.msra.mxu0 %v2397
        %5576 = vmatmul.bf16.gmra.mxu0 %v5420
        %v5577 = vpop.f32.mrf.mxu0
        %v5578 = vadd.f32 %v5565, %v5577
        %v5579 = vpop.f32.mrf.mxu0
        %5580 = vdwg.mxu0
        %v5581 = vadd.f32 %v5276, %v5474
        %v5582 = vadd.f32 %v5328, %v5526
        %v5583 = vadd.f32 %v5380, %v5578
        %5584 = vmatpush.bf16.msra.mxu0 %v3273
        %5585 = vmatpush.bf16.msra.mxu0 %v3270
        %5586 = vmatpush.bf16.msra.mxu0 %v3267
        %5587 = vmatpush.bf16.msra.mxu0 %v3264
        %5588 = vmatpush.bf16.msra.mxu0 %v3261
        %5589 = vmatpush.bf16.msra.mxu0 %v3258
        %5590 = vmatpush.bf16.msra.mxu0 %v3255
        %5591 = vmatpush.bf16.msra.mxu0 %v3252
        %5592 = vmatmul.bf16.gmra.mxu0 %v1977
        %v5593 = vpop.f32.mrf.mxu0
        %v5594 = vadd.f32 0.0, %v5593
        %v5595 = vpop.f32.mrf.mxu0
        %5596 = vdwg.mxu0
        %5597 = vmatpush.bf16.msra.mxu0 %v3297
        %5598 = vmatpush.bf16.msra.mxu0 %v3294
        %5599 = vmatpush.bf16.msra.mxu0 %v3291
        %5600 = vmatpush.bf16.msra.mxu0 %v3288
        %5601 = vmatpush.bf16.msra.mxu0 %v3285
        %5602 = vmatpush.bf16.msra.mxu0 %v3282
        %5603 = vmatpush.bf16.msra.mxu0 %v3279
        %5604 = vmatpush.bf16.msra.mxu0 %v3276
        %5605 = vmatmul.bf16.gmra.mxu0 %v1984
        %v5606 = vpop.f32.mrf.mxu0
        %v5607 = vadd.f32 %v5594, %v5606
        %v5608 = vpop.f32.mrf.mxu0
        %5609 = vdwg.mxu0
        %5610 = vmatpush.bf16.msra.mxu0 %v3321
        %5611 = vmatpush.bf16.msra.mxu0 %v3318
        %5612 = vmatpush.bf16.msra.mxu0 %v3315
        %5613 = vmatpush.bf16.msra.mxu0 %v3312
        %5614 = vmatpush.bf16.msra.mxu0 %v3309
        %5615 = vmatpush.bf16.msra.mxu0 %v3306
        %5616 = vmatpush.bf16.msra.mxu0 %v3303
        %5617 = vmatpush.bf16.msra.mxu0 %v3300
        %5618 = vmatmul.bf16.gmra.mxu0 %v1991
        %v5619 = vpop.f32.mrf.mxu0
        %v5620 = vadd.f32 %v5607, %v5619
        %v5621 = vpop.f32.mrf.mxu0
        %5622 = vdwg.mxu0
        %5623 = vmatpush.bf16.msra.mxu0 %v3345
        %5624 = vmatpush.bf16.msra.mxu0 %v3342
        %5625 = vmatpush.bf16.msra.mxu0 %v3339
        %5626 = vmatpush.bf16.msra.mxu0 %v3336
        %5627 = vmatpush.bf16.msra.mxu0 %v3333
        %5628 = vmatpush.bf16.msra.mxu0 %v3330
        %5629 = vmatpush.bf16.msra.mxu0 %v3327
        %5630 = vmatpush.bf16.msra.mxu0 %v3324
        %5631 = vmatmul.bf16.gmra.mxu0 %v1998
        %v5632 = vpop.f32.mrf.mxu0
        %v5633 = vadd.f32 %v5620, %v5632
        %v5634 = vpop.f32.mrf.mxu0
        %5635 = vdwg.mxu0
        %5636 = vmatpush.bf16.msra.mxu0 %v3274
        %5637 = vmatpush.bf16.msra.mxu0 %v3271
        %5638 = vmatpush.bf16.msra.mxu0 %v3268
        %5639 = vmatpush.bf16.msra.mxu0 %v3265
        %5640 = vmatpush.bf16.msra.mxu0 %v3262
        %5641 = vmatpush.bf16.msra.mxu0 %v3259
        %5642 = vmatpush.bf16.msra.mxu0 %v3256
        %5643 = vmatpush.bf16.msra.mxu0 %v3253
        %5644 = vmatmul.bf16.gmra.mxu0 %v1977
        %v5645 = vpop.f32.mrf.mxu0
        %v5646 = vadd.f32 0.0, %v5645
        %v5647 = vpop.f32.mrf.mxu0
        %5648 = vdwg.mxu0
        %5649 = vmatpush.bf16.msra.mxu0 %v3298
        %5650 = vmatpush.bf16.msra.mxu0 %v3295
        %5651 = vmatpush.bf16.msra.mxu0 %v3292
        %5652 = vmatpush.bf16.msra.mxu0 %v3289
        %5653 = vmatpush.bf16.msra.mxu0 %v3286
        %5654 = vmatpush.bf16.msra.mxu0 %v3283
        %5655 = vmatpush.bf16.msra.mxu0 %v3280
        %5656 = vmatpush.bf16.msra.mxu0 %v3277
        %5657 = vmatmul.bf16.gmra.mxu0 %v1984
        %v5658 = vpop.f32.mrf.mxu0
        %v5659 = vadd.f32 %v5646, %v5658
        %v5660 = vpop.f32.mrf.mxu0
        %5661 = vdwg.mxu0
        %5662 = vmatpush.bf16.msra.mxu0 %v3322
        %5663 = vmatpush.bf16.msra.mxu0 %v3319
        %5664 = vmatpush.bf16.msra.mxu0 %v3316
        %5665 = vmatpush.bf16.msra.mxu0 %v3313
        %5666 = vmatpush.bf16.msra.mxu0 %v3310
        %5667 = vmatpush.bf16.msra.mxu0 %v3307
        %5668 = vmatpush.bf16.msra.mxu0 %v3304
        %5669 = vmatpush.bf16.msra.mxu0 %v3301
        %5670 = vmatmul.bf16.gmra.mxu0 %v1991
        %v5671 = vpop.f32.mrf.mxu0
        %v5672 = vadd.f32 %v5659, %v5671
        %v5673 = vpop.f32.mrf.mxu0
        %5674 = vdwg.mxu0
        %5675 = vmatpush.bf16.msra.mxu0 %v3346
        %5676 = vmatpush.bf16.msra.mxu0 %v3343
        %5677 = vmatpush.bf16.msra.mxu0 %v3340
        %5678 = vmatpush.bf16.msra.mxu0 %v3337
        %5679 = vmatpush.bf16.msra.mxu0 %v3334
        %5680 = vmatpush.bf16.msra.mxu0 %v3331
        %5681 = vmatpush.bf16.msra.mxu0 %v3328
        %5682 = vmatpush.bf16.msra.mxu0 %v3325
        %5683 = vmatmul.bf16.gmra.mxu0 %v1998
        %v5684 = vpop.f32.mrf.mxu0
        %v5685 = vadd.f32 %v5672, %v5684
        %v5686 = vpop.f32.mrf.mxu0
        %5687 = vdwg.mxu0
        %5688 = vmatpush.bf16.msra.mxu0 %v3275
        %5689 = vmatpush.bf16.msra.mxu0 %v3272
        %5690 = vmatpush.bf16.msra.mxu0 %v3269
        %5691 = vmatpush.bf16.msra.mxu0 %v3266
        %5692 = vmatpush.bf16.msra.mxu0 %v3263
        %5693 = vmatpush.bf16.msra.mxu0 %v3260
        %5694 = vmatpush.bf16.msra.mxu0 %v3257
        %5695 = vmatpush.bf16.msra.mxu0 %v3254
        %5696 = vmatmul.bf16.gmra.mxu0 %v1977
        %v5697 = vpop.f32.mrf.mxu0
        %v5698 = vadd.f32 0.0, %v5697
        %v5699 = vpop.f32.mrf.mxu0
        %5700 = vdwg.mxu0
        %5701 = vmatpush.bf16.msra.mxu0 %v3299
        %5702 = vmatpush.bf16.msra.mxu0 %v3296
        %5703 = vmatpush.bf16.msra.mxu0 %v3293
        %5704 = vmatpush.bf16.msra.mxu0 %v3290
        %5705 = vmatpush.bf16.msra.mxu0 %v3287
        %5706 = vmatpush.bf16.msra.mxu0 %v3284
        %5707 = vmatpush.bf16.msra.mxu0 %v3281
        %5708 = vmatpush.bf16.msra.mxu0 %v3278
        %5709 = vmatmul.bf16.gmra.mxu0 %v1984
        %v5710 = vpop.f32.mrf.mxu0
        %v5711 = vadd.f32 %v5698, %v5710
        %v5712 = vpop.f32.mrf.mxu0
        %5713 = vdwg.mxu0
        %5714 = vmatpush.bf16.msra.mxu0 %v3323
        %5715 = vmatpush.bf16.msra.mxu0 %v3320
        %5716 = vmatpush.bf16.msra.mxu0 %v3317
        %5717 = vmatpush.bf16.msra.mxu0 %v3314
        %5718 = vmatpush.bf16.msra.mxu0 %v3311
        %5719 = vmatpush.bf16.msra.mxu0 %v3308
        %5720 = vmatpush.bf16.msra.mxu0 %v3305
        %5721 = vmatpush.bf16.msra.mxu0 %v3302
        %5722 = vmatmul.bf16.gmra.mxu0 %v1991
        %v5723 = vpop.f32.mrf.mxu0
        %v5724 = vadd.f32 %v5711, %v5723
        %v5725 = vpop.f32.mrf.mxu0
        %5726 = vdwg.mxu0
        %5727 = vmatpush.bf16.msra.mxu0 %v3347
        %5728 = vmatpush.bf16.msra.mxu0 %v3344
        %5729 = vmatpush.bf16.msra.mxu0 %v3341
        %5730 = vmatpush.bf16.msra.mxu0 %v3338
        %5731 = vmatpush.bf16.msra.mxu0 %v3335
        %5732 = vmatpush.bf16.msra.mxu0 %v3332
        %5733 = vmatpush.bf16.msra.mxu0 %v3329
        %5734 = vmatpush.bf16.msra.mxu0 %v3326
        %5735 = vmatmul.bf16.gmra.mxu0 %v1998
        %v5736 = vpop.f32.mrf.mxu0
        %v5737 = vadd.f32 %v5724, %v5736
        %v5738 = vpop.f32.mrf.mxu0
        %5739 = vdwg.mxu0
        %5740 = vmatpush.bf16.msra.mxu0 %v3941
        %5741 = vmatpush.bf16.msra.mxu0 %v3938
        %5742 = vmatpush.bf16.msra.mxu0 %v3935
        %5743 = vmatpush.bf16.msra.mxu0 %v3932
        %5744 = vmatpush.bf16.msra.mxu0 %v3929
        %5745 = vmatpush.bf16.msra.mxu0 %v3926
        %5746 = vmatpush.bf16.msra.mxu0 %v3923
        %5747 = vmatpush.bf16.msra.mxu0 %v3920
        %5748 = vmatmul.bf16.gmra.mxu0 %v474
        %v5749 = vpop.f32.mrf.mxu0
        %v5750 = vadd.f32 %v5633, %v5749
        %v5751 = vpop.f32.mrf.mxu0
        %5752 = vdwg.mxu0
        %5753 = vmatpush.bf16.msra.mxu0 %v3965
        %5754 = vmatpush.bf16.msra.mxu0 %v3962
        %5755 = vmatpush.bf16.msra.mxu0 %v3959
        %5756 = vmatpush.bf16.msra.mxu0 %v3956
        %5757 = vmatpush.bf16.msra.mxu0 %v3953
        %5758 = vmatpush.bf16.msra.mxu0 %v3950
        %5759 = vmatpush.bf16.msra.mxu0 %v3947
        %5760 = vmatpush.bf16.msra.mxu0 %v3944
        %5761 = vmatmul.bf16.gmra.mxu0 %v475
        %v5762 = vpop.f32.mrf.mxu0
        %v5763 = vadd.f32 %v5750, %v5762
        %v5764 = vpop.f32.mrf.mxu0
        %5765 = vdwg.mxu0
        %5766 = vmatpush.bf16.msra.mxu0 %v3989
        %5767 = vmatpush.bf16.msra.mxu0 %v3986
        %5768 = vmatpush.bf16.msra.mxu0 %v3983
        %5769 = vmatpush.bf16.msra.mxu0 %v3980
        %5770 = vmatpush.bf16.msra.mxu0 %v3977
        %5771 = vmatpush.bf16.msra.mxu0 %v3974
        %5772 = vmatpush.bf16.msra.mxu0 %v3971
        %5773 = vmatpush.bf16.msra.mxu0 %v3968
        %5774 = vmatmul.bf16.gmra.mxu0 %v476
        %v5775 = vpop.f32.mrf.mxu0
        %v5776 = vadd.f32 %v5763, %v5775
        %v5777 = vpop.f32.mrf.mxu0
        %5778 = vdwg.mxu0
        %5779 = vmatpush.bf16.msra.mxu0 %v4013
        %5780 = vmatpush.bf16.msra.mxu0 %v4010
        %5781 = vmatpush.bf16.msra.mxu0 %v4007
        %5782 = vmatpush.bf16.msra.mxu0 %v4004
        %5783 = vmatpush.bf16.msra.mxu0 %v4001
        %5784 = vmatpush.bf16.msra.mxu0 %v3998
        %5785 = vmatpush.bf16.msra.mxu0 %v3995
        %5786 = vmatpush.bf16.msra.mxu0 %v3992
        %5787 = vmatmul.bf16.gmra.mxu0 %v477
        %v5788 = vpop.f32.mrf.mxu0
        %v5789 = vadd.f32 %v5776, %v5788
        %v5790 = vpop.f32.mrf.mxu0
        %5791 = vdwg.mxu0
        %5792 = vmatpush.bf16.msra.mxu0 %v3942
        %5793 = vmatpush.bf16.msra.mxu0 %v3939
        %5794 = vmatpush.bf16.msra.mxu0 %v3936
        %5795 = vmatpush.bf16.msra.mxu0 %v3933
        %5796 = vmatpush.bf16.msra.mxu0 %v3930
        %5797 = vmatpush.bf16.msra.mxu0 %v3927
        %5798 = vmatpush.bf16.msra.mxu0 %v3924
        %5799 = vmatpush.bf16.msra.mxu0 %v3921
        %5800 = vmatmul.bf16.gmra.mxu0 %v474
        %v5801 = vpop.f32.mrf.mxu0
        %v5802 = vadd.f32 %v5685, %v5801
        %v5803 = vpop.f32.mrf.mxu0
        %5804 = vdwg.mxu0
        %5805 = vmatpush.bf16.msra.mxu0 %v3966
        %5806 = vmatpush.bf16.msra.mxu0 %v3963
        %5807 = vmatpush.bf16.msra.mxu0 %v3960
        %5808 = vmatpush.bf16.msra.mxu0 %v3957
        %5809 = vmatpush.bf16.msra.mxu0 %v3954
        %5810 = vmatpush.bf16.msra.mxu0 %v3951
        %5811 = vmatpush.bf16.msra.mxu0 %v3948
        %5812 = vmatpush.bf16.msra.mxu0 %v3945
        %5813 = vmatmul.bf16.gmra.mxu0 %v475
        %v5814 = vpop.f32.mrf.mxu0
        %v5815 = vadd.f32 %v5802, %v5814
        %v5816 = vpop.f32.mrf.mxu0
        %5817 = vdwg.mxu0
        %5818 = vmatpush.bf16.msra.mxu0 %v3990
        %5819 = vmatpush.bf16.msra.mxu0 %v3987
        %5820 = vmatpush.bf16.msra.mxu0 %v3984
        %5821 = vmatpush.bf16.msra.mxu0 %v3981
        %5822 = vmatpush.bf16.msra.mxu0 %v3978
        %5823 = vmatpush.bf16.msra.mxu0 %v3975
        %5824 = vmatpush.bf16.msra.mxu0 %v3972
        %5825 = vmatpush.bf16.msra.mxu0 %v3969
        %5826 = vmatmul.bf16.gmra.mxu0 %v476
        %v5827 = vpop.f32.mrf.mxu0
        %v5828 = vadd.f32 %v5815, %v5827
        %v5829 = vpop.f32.mrf.mxu0
        %5830 = vdwg.mxu0
        %5831 = vmatpush.bf16.msra.mxu0 %v4014
        %5832 = vmatpush.bf16.msra.mxu0 %v4011
        %5833 = vmatpush.bf16.msra.mxu0 %v4008
        %5834 = vmatpush.bf16.msra.mxu0 %v4005
        %5835 = vmatpush.bf16.msra.mxu0 %v4002
        %5836 = vmatpush.bf16.msra.mxu0 %v3999
        %5837 = vmatpush.bf16.msra.mxu0 %v3996
        %5838 = vmatpush.bf16.msra.mxu0 %v3993
        %5839 = vmatmul.bf16.gmra.mxu0 %v477
        %v5840 = vpop.f32.mrf.mxu0
        %v5841 = vadd.f32 %v5828, %v5840
        %v5842 = vpop.f32.mrf.mxu0
        %5843 = vdwg.mxu0
        %5844 = vmatpush.bf16.msra.mxu0 %v3943
        %5845 = vmatpush.bf16.msra.mxu0 %v3940
        %5846 = vmatpush.bf16.msra.mxu0 %v3937
        %5847 = vmatpush.bf16.msra.mxu0 %v3934
        %5848 = vmatpush.bf16.msra.mxu0 %v3931
        %5849 = vmatpush.bf16.msra.mxu0 %v3928
        %5850 = vmatpush.bf16.msra.mxu0 %v3925
        %5851 = vmatpush.bf16.msra.mxu0 %v3922
        %5852 = vmatmul.bf16.gmra.mxu0 %v474
        %v5853 = vpop.f32.mrf.mxu0
        %v5854 = vadd.f32 %v5737, %v5853
        %v5855 = vpop.f32.mrf.mxu0
        %5856 = vdwg.mxu0
        %5857 = vmatpush.bf16.msra.mxu0 %v3967
        %5858 = vmatpush.bf16.msra.mxu0 %v3964
        %5859 = vmatpush.bf16.msra.mxu0 %v3961
        %5860 = vmatpush.bf16.msra.mxu0 %v3958
        %5861 = vmatpush.bf16.msra.mxu0 %v3955
        %5862 = vmatpush.bf16.msra.mxu0 %v3952
        %5863 = vmatpush.bf16.msra.mxu0 %v3949
        %5864 = vmatpush.bf16.msra.mxu0 %v3946
        %5865 = vmatmul.bf16.gmra.mxu0 %v475
        %v5866 = vpop.f32.mrf.mxu0
        %v5867 = vadd.f32 %v5854, %v5866
        %v5868 = vpop.f32.mrf.mxu0
        %5869 = vdwg.mxu0
        %5870 = vmatpush.bf16.msra.mxu0 %v3991
        %5871 = vmatpush.bf16.msra.mxu0 %v3988
        %5872 = vmatpush.bf16.msra.mxu0 %v3985
        %5873 = vmatpush.bf16.msra.mxu0 %v3982
        %5874 = vmatpush.bf16.msra.mxu0 %v3979
        %5875 = vmatpush.bf16.msra.mxu0 %v3976
        %5876 = vmatpush.bf16.msra.mxu0 %v3973
        %5877 = vmatpush.bf16.msra.mxu0 %v3970
        %5878 = vmatmul.bf16.gmra.mxu0 %v476
        %v5879 = vpop.f32.mrf.mxu0
        %v5880 = vadd.f32 %v5867, %v5879
        %v5881 = vpop.f32.mrf.mxu0
        %5882 = vdwg.mxu0
        %5883 = vmatpush.bf16.msra.mxu0 %v4015
        %5884 = vmatpush.bf16.msra.mxu0 %v4012
        %5885 = vmatpush.bf16.msra.mxu0 %v4009
        %5886 = vmatpush.bf16.msra.mxu0 %v4006
        %5887 = vmatpush.bf16.msra.mxu0 %v4003
        %5888 = vmatpush.bf16.msra.mxu0 %v4000
        %5889 = vmatpush.bf16.msra.mxu0 %v3997
        %5890 = vmatpush.bf16.msra.mxu0 %v3994
        %5891 = vmatmul.bf16.gmra.mxu0 %v477
        %v5892 = vpop.f32.mrf.mxu0
        %v5893 = vadd.f32 %v5880, %v5892
        %v5894 = vpop.f32.mrf.mxu0
        %5895 = vdwg.mxu0
        %5896 = vmatpush.bf16.msra.mxu0 %v4738
        %5897 = vmatpush.bf16.msra.mxu0 %v4735
        %5898 = vmatpush.bf16.msra.mxu0 %v4732
        %5899 = vmatpush.bf16.msra.mxu0 %v4729
        %5900 = vmatpush.bf16.msra.mxu0 %v4726
        %5901 = vmatpush.bf16.msra.mxu0 %v4723
        %5902 = vmatpush.bf16.msra.mxu0 %v4720
        %5903 = vmatpush.bf16.msra.mxu0 %v4717
        %5904 = vmatmul.bf16.gmra.mxu0 %v5399
        %v5905 = vpop.f32.mrf.mxu0
        %v5906 = vadd.f32 0.0, %v5905
        %v5907 = vpop.f32.mrf.mxu0
        %5908 = vdwg.mxu0
        %5909 = vmatpush.bf16.msra.mxu0 %v4762
        %5910 = vmatpush.bf16.msra.mxu0 %v4759
        %5911 = vmatpush.bf16.msra.mxu0 %v4756
        %5912 = vmatpush.bf16.msra.mxu0 %v4753
        %5913 = vmatpush.bf16.msra.mxu0 %v4750
        %5914 = vmatpush.bf16.msra.mxu0 %v4747
        %5915 = vmatpush.bf16.msra.mxu0 %v4744
        %5916 = vmatpush.bf16.msra.mxu0 %v4741
        %5917 = vmatmul.bf16.gmra.mxu0 %v5406
        %v5918 = vpop.f32.mrf.mxu0
        %v5919 = vadd.f32 %v5906, %v5918
        %v5920 = vpop.f32.mrf.mxu0
        %5921 = vdwg.mxu0
        %5922 = vmatpush.bf16.msra.mxu0 %v4786
        %5923 = vmatpush.bf16.msra.mxu0 %v4783
        %5924 = vmatpush.bf16.msra.mxu0 %v4780
        %5925 = vmatpush.bf16.msra.mxu0 %v4777
        %5926 = vmatpush.bf16.msra.mxu0 %v4774
        %5927 = vmatpush.bf16.msra.mxu0 %v4771
        %5928 = vmatpush.bf16.msra.mxu0 %v4768
        %5929 = vmatpush.bf16.msra.mxu0 %v4765
        %5930 = vmatmul.bf16.gmra.mxu0 %v5413
        %v5931 = vpop.f32.mrf.mxu0
        %v5932 = vadd.f32 %v5919, %v5931
        %v5933 = vpop.f32.mrf.mxu0
        %5934 = vdwg.mxu0
        %5935 = vmatpush.bf16.msra.mxu0 %v4810
        %5936 = vmatpush.bf16.msra.mxu0 %v4807
        %5937 = vmatpush.bf16.msra.mxu0 %v4804
        %5938 = vmatpush.bf16.msra.mxu0 %v4801
        %5939 = vmatpush.bf16.msra.mxu0 %v4798
        %5940 = vmatpush.bf16.msra.mxu0 %v4795
        %5941 = vmatpush.bf16.msra.mxu0 %v4792
        %5942 = vmatpush.bf16.msra.mxu0 %v4789
        %5943 = vmatmul.bf16.gmra.mxu0 %v5420
        %v5944 = vpop.f32.mrf.mxu0
        %v5945 = vadd.f32 %v5932, %v5944
        %v5946 = vpop.f32.mrf.mxu0
        %5947 = vdwg.mxu0
        %5948 = vmatpush.bf16.msra.mxu0 %v4739
        %5949 = vmatpush.bf16.msra.mxu0 %v4736
        %5950 = vmatpush.bf16.msra.mxu0 %v4733
        %5951 = vmatpush.bf16.msra.mxu0 %v4730
        %5952 = vmatpush.bf16.msra.mxu0 %v4727
        %5953 = vmatpush.bf16.msra.mxu0 %v4724
        %5954 = vmatpush.bf16.msra.mxu0 %v4721
        %5955 = vmatpush.bf16.msra.mxu0 %v4718
        %5956 = vmatmul.bf16.gmra.mxu0 %v5399
        %v5957 = vpop.f32.mrf.mxu0
        %v5958 = vadd.f32 0.0, %v5957
        %v5959 = vpop.f32.mrf.mxu0
        %5960 = vdwg.mxu0
        %5961 = vmatpush.bf16.msra.mxu0 %v4763
        %5962 = vmatpush.bf16.msra.mxu0 %v4760
        %5963 = vmatpush.bf16.msra.mxu0 %v4757
        %5964 = vmatpush.bf16.msra.mxu0 %v4754
        %5965 = vmatpush.bf16.msra.mxu0 %v4751
        %5966 = vmatpush.bf16.msra.mxu0 %v4748
        %5967 = vmatpush.bf16.msra.mxu0 %v4745
        %5968 = vmatpush.bf16.msra.mxu0 %v4742
        %5969 = vmatmul.bf16.gmra.mxu0 %v5406
        %v5970 = vpop.f32.mrf.mxu0
        %v5971 = vadd.f32 %v5958, %v5970
        %v5972 = vpop.f32.mrf.mxu0
        %5973 = vdwg.mxu0
        %5974 = vmatpush.bf16.msra.mxu0 %v4787
        %5975 = vmatpush.bf16.msra.mxu0 %v4784
        %5976 = vmatpush.bf16.msra.mxu0 %v4781
        %5977 = vmatpush.bf16.msra.mxu0 %v4778
        %5978 = vmatpush.bf16.msra.mxu0 %v4775
        %5979 = vmatpush.bf16.msra.mxu0 %v4772
        %5980 = vmatpush.bf16.msra.mxu0 %v4769
        %5981 = vmatpush.bf16.msra.mxu0 %v4766
        %5982 = vmatmul.bf16.gmra.mxu0 %v5413
        %v5983 = vpop.f32.mrf.mxu0
        %v5984 = vadd.f32 %v5971, %v5983
        %v5985 = vpop.f32.mrf.mxu0
        %5986 = vdwg.mxu0
        %5987 = vmatpush.bf16.msra.mxu0 %v4811
        %5988 = vmatpush.bf16.msra.mxu0 %v4808
        %5989 = vmatpush.bf16.msra.mxu0 %v4805
        %5990 = vmatpush.bf16.msra.mxu0 %v4802
        %5991 = vmatpush.bf16.msra.mxu0 %v4799
        %5992 = vmatpush.bf16.msra.mxu0 %v4796
        %5993 = vmatpush.bf16.msra.mxu0 %v4793
        %5994 = vmatpush.bf16.msra.mxu0 %v4790
        %5995 = vmatmul.bf16.gmra.mxu0 %v5420
        %v5996 = vpop.f32.mrf.mxu0
        %v5997 = vadd.f32 %v5984, %v5996
        %v5998 = vpop.f32.mrf.mxu0
        %5999 = vdwg.mxu0
        %6000 = vmatpush.bf16.msra.mxu0 %v4740
        %6001 = vmatpush.bf16.msra.mxu0 %v4737
        %6002 = vmatpush.bf16.msra.mxu0 %v4734
        %6003 = vmatpush.bf16.msra.mxu0 %v4731
        %6004 = vmatpush.bf16.msra.mxu0 %v4728
        %6005 = vmatpush.bf16.msra.mxu0 %v4725
        %6006 = vmatpush.bf16.msra.mxu0 %v4722
        %6007 = vmatpush.bf16.msra.mxu0 %v4719
        %6008 = vmatmul.bf16.gmra.mxu0 %v5399
        %v6009 = vpop.f32.mrf.mxu0
        %v6010 = vadd.f32 0.0, %v6009
        %v6011 = vpop.f32.mrf.mxu0
        %6012 = vdwg.mxu0
        %6013 = vmatpush.bf16.msra.mxu0 %v4764
        %6014 = vmatpush.bf16.msra.mxu0 %v4761
        %6015 = vmatpush.bf16.msra.mxu0 %v4758
        %6016 = vmatpush.bf16.msra.mxu0 %v4755
        %6017 = vmatpush.bf16.msra.mxu0 %v4752
        %6018 = vmatpush.bf16.msra.mxu0 %v4749
        %6019 = vmatpush.bf16.msra.mxu0 %v4746
        %6020 = vmatpush.bf16.msra.mxu0 %v4743
        %6021 = vmatmul.bf16.gmra.mxu0 %v5406
        %v6022 = vpop.f32.mrf.mxu0
        %v6023 = vadd.f32 %v6010, %v6022
        %v6024 = vpop.f32.mrf.mxu0
        %6025 = vdwg.mxu0
        %6026 = vmatpush.bf16.msra.mxu0 %v4788
        %6027 = vmatpush.bf16.msra.mxu0 %v4785
        %6028 = vmatpush.bf16.msra.mxu0 %v4782
        %6029 = vmatpush.bf16.msra.mxu0 %v4779
        %6030 = vmatpush.bf16.msra.mxu0 %v4776
        %6031 = vmatpush.bf16.msra.mxu0 %v4773
        %6032 = vmatpush.bf16.msra.mxu0 %v4770
        %6033 = vmatpush.bf16.msra.mxu0 %v4767
        %6034 = vmatmul.bf16.gmra.mxu0 %v5413
        %v6035 = vpop.f32.mrf.mxu0
        %v6036 = vadd.f32 %v6023, %v6035
        %v6037 = vpop.f32.mrf.mxu0
        %6038 = vdwg.mxu0
        %6039 = vmatpush.bf16.msra.mxu0 %v4812
        %6040 = vmatpush.bf16.msra.mxu0 %v4809
        %6041 = vmatpush.bf16.msra.mxu0 %v4806
        %6042 = vmatpush.bf16.msra.mxu0 %v4803
        %6043 = vmatpush.bf16.msra.mxu0 %v4800
        %6044 = vmatpush.bf16.msra.mxu0 %v4797
        %6045 = vmatpush.bf16.msra.mxu0 %v4794
        %6046 = vmatpush.bf16.msra.mxu0 %v4791
        %6047 = vmatmul.bf16.gmra.mxu0 %v5420
        %v6048 = vpop.f32.mrf.mxu0
        %v6049 = vadd.f32 %v6036, %v6048
        %v6050 = vpop.f32.mrf.mxu0
        %6051 = vdwg.mxu0
        %v6052 = vadd.f32 %v5789, %v5945
        %v6053 = vadd.f32 %v5841, %v5997
        %v6054 = vadd.f32 %v5893, %v6049
        %v6055 = vmax.f32 %v5581, %v6052
        %v6056 = vmax.f32 %v5582, %v6053
        %v6057 = vmax.f32 %v5583, %v6054
        %v6058 = vmax.f32 %v5068, %v6055
        %v6059 = vmax.f32 %v5069, %v6056
        %v6060 = vmax.f32 %v5070, %v6057
        %v6061 = vld [vmem:[#allocation4] sm:$0x7]
        %v6063 = vperm.slane %v6061, 0
        %v6064 = vperm.slane %v6061, 1
        %v6065 = vperm.slane %v6061, 2
        %v6069 = vadd.f32 %v6058, %v6063
        %v6070 = vadd.f32 %v6059, %v6064
        %v6071 = vadd.f32 %v6060, %v6065
        %v6072 = vmax.f32 %v6069, 0.0
        %v6073 = vmax.f32 %v6070, 0.0
        %v6074 = vmax.f32 %v6071, 0.0
        %v6075 = vpack.c.bf16 %v6073, %v6072
        %v6076 = vpack.c.bf16 %v6074, %v6074
        %6077 = vst [vmem:[%s202] sm:$0x77] %v6075
        %6078 = vst [vmem:[%s202 + $0x8] sm:$0x7] %v6076
        %p6079 = scmp.lt.s32.totalorder %s16, 1
        %s6080 = scalar_select %p6079, %s16, 1
        %s6081 = smul.addr %s6080, 3
        %s6082 = smul.addr %s6081, 4
        %s6083 = scalar_lea.vmem %s3, %s6082
        // Predicated region
        $region41: #{cnn_forward.4} parent=31 // pred_check
          %p6084 = pneg %p102
        $region42: #{cnn_forward.4} parent=31 // pred_check_branch
          %6086 = sbr.rel (%p6084) target = $region44
        $region43: #{cnn_forward.4} parent=31 // pred_region
          _
        $region44: #{cnn_forward.4} parent=31 // pred_fallthru
          _
      $region32: #{cnn_forward.4} parent=5 // pred_fallthru
        _
      %p6087 = scmp.le.s32.totalorder 2, %s11
      // Predicated region
      $region45: #{cnn_forward.4} parent=5 // pred_check
        %p6088 = pneg %p6087
      $region46: #{cnn_forward.4} parent=5 // pred_check_branch
        %6090 = sbr.rel (%p6088) target = $region48
      $region47: #{cnn_forward.4} parent=5 // pred_region
        %s6091 = ssub.s32 %s11, 2
        // Predicated region
        $region49: #{cnn_forward.4} parent=47 // pred_check
          %p6092 = pneg %p108
        $region50: #{cnn_forward.4} parent=47 // pred_check_branch
          %6094 = sbr.rel (%p6092) target = $region52
        $region51: #{cnn_forward.4} parent=47 // pred_region
          %p6095 = scmp.lt.s32.totalorder %s17, 1
          %s6096 = scalar_select %p6095, %s17, 1
          %s6097 = smul.addr %s6096, 3
          %s6098 = smul.addr %s6097, 4
          %s6099 = scalar_lea.vmem %s3, %s6098
        $region52: #{cnn_forward.4} parent=47 // pred_fallthru
          _
      $region48: #{cnn_forward.4} parent=5 // pred_fallthru
        _
    $region6: #{cnn_forward.4} parent=1 // loop_footer
      %s15 = sadd.s32 1, %s11
    $region7: #{cnn_forward.4} parent=1 // loop_footer_branch
      %10 = sbr.rel target = $region3
    $region8: #{cnn_forward.4} parent=1 // loop_exit
      _
    %6100 = vsyncpa [#allocation3], 1
    %s6101 = scalar_lea.sflag [#allocation3], 1
    %6102 = vsyncpa %s6101, 1
    %6103 = vsyncpa [#allocation5], 1

</llo_original>
